<compile_context>
chip_gen: v7x
topology: tpu7x:2x2x1
jax: 0.10.0
libtpu: 0.0.40
codegen_flags: <defaults>
</compile_context>

<pallas_src>
import jax
import jax.numpy as jnp
from jax.experimental import pallas as pl
from jax.experimental.pallas import tpu as pltpu


def _encoder_kernel(xproj_ref, x_ref,
                    w_h_ref, w_c_ref, blin_ref, w2_ref, b2_ref,
                    w_lstm_ref, b_lstm_ref,
                    weighted_ref, encoded_ref):
    B, T, N = x_ref.shape
    H = w_h_ref.shape[0]

    # Hoist all weight loads / broadcast shapes out of the time loop.
    x_proj = xproj_ref[...]                 # (B, N, T)  time-invariant term
    w_h = w_h_ref[...]                      # (H, T)
    w_c = w_c_ref[...]                      # (H, T)
    blin = blin_ref[...]                    # (1, T)
    w2_b = w2_ref[...][:, None, :]          # (1, 1, T)
    b2 = b2_ref[...]                        # (1, 1)
    w_lstm = w_lstm_ref[...]                # (N+H, 4H) = [W_ih^T ; W_hh^T]
    b_lstm = b_lstm_ref[...]                # (1, 4H)   = b_ih + b_hh

    h = jnp.zeros((B, H), jnp.float32)
    c = jnp.zeros((B, H), jnp.float32)

    # Static full unroll: every index / slice below is a compile-time
    # constant (no dynamic sublane addressing, no per-step index math).
    for t in range(T):
        # Recurrent projection, split to avoid a per-step lane concat.
        # (A VPU broadcast-multiply + sublane-reduce formulation is a
        #  possible latency experiment here; kept on the MXU for now.)
        hc_term = (jnp.dot(h, w_h, preferred_element_type=jnp.float32)
                   + jnp.dot(c, w_c, preferred_element_type=jnp.float32)
                   + blin)                                          # (B, T)

        # tanh(linear(cat(h, c, x.permute))) with the x-part precomputed.
        z = jnp.tanh(x_proj + hc_term[:, None, :])                  # (B, N, T)

        # attn_linear2 as VPU multiply + lane reduction (no width-1 MXU pass).
        e = jnp.sum(z * w2_b, axis=-1) + b2                         # (B, N)

        # Softmax over the input-feature axis.
        e_max = jnp.max(e, axis=1, keepdims=True)
        exp_e = jnp.exp(e - e_max)
        denom = jnp.sum(exp_e, axis=1, keepdims=True)
        attn = exp_e * pl.reciprocal(denom, approx=True)            # (B, N)

        x_t = x_ref[:, t, :]                                        # (B, N) static slice
        weighted = attn * x_t                                       # (B, N)

        # One LSTM cell step (PyTorch gate order i, f, g, o) as a single
        # fused MXU matmul over the concatenated [weighted, h] operand.
        lhs = jnp.concatenate([weighted, h], axis=1)                # (B, N+H)
        gates = (jnp.dot(lhs, w_lstm, preferred_element_type=jnp.float32)
                 + b_lstm)                                          # (B, 4H)

        # 2 EUP pushes over the full gate vreg, then slice the segments.
        sig = jax.nn.sigmoid(gates)
        tng = jnp.tanh(gates)
        i_g = sig[:, 0:H]
        f_g = sig[:, H:2 * H]
        g_g = tng[:, 2 * H:3 * H]
        o_g = sig[:, 3 * H:4 * H]

        c = f_g * c + i_g * g_g
        h = o_g * jnp.tanh(c)

        # Outputs written directly in their final (B, T, *) layout.
        weighted_ref[:, t, :] = weighted
        encoded_ref[:, t, :] = h


@jax.jit
def encoder_forward(x, params):
    """x: (B, T, N) float32. Returns (input_weighted (B,T,N), input_encoded (B,T,H))."""
    B, T, N = x.shape
    H = params['W_hh'].shape[1]

    # ---- one-time (XLA-side) preprocessing: hoisted / fused / transposed ----
    w_lin = params['W_lin']                            # (T, 2H + T)
    w_h = jnp.transpose(w_lin[:, :H])                  # (H, T)
    w_c = jnp.transpose(w_lin[:, H:2 * H])             # (H, T)
    w_x = w_lin[:, 2 * H:]                             # (T, T)
    # x_proj[b,n,u] = sum_t x[b,t,n] * w_x[u,t]  (time-invariant attention term)
    x_proj = jnp.einsum('btn,ut->bnu', x, w_x)         # (B, N, T)
    # Fused LSTM gate weights / biases.
    w_lstm = jnp.concatenate(
        [jnp.transpose(params['W_ih']), jnp.transpose(params['W_hh'])],
        axis=0)                                        # (N + H, 4H)
    b_lstm = params['b_ih'] + params['b_hh']           # (1, 4H)

    full = lambda shape: pl.BlockSpec(shape, lambda i: (0,) * len(shape))

    grid_spec = pltpu.PrefetchScalarGridSpec(
        num_scalar_prefetch=0,
        grid=(1,),                                     # single step; time loop in-kernel
        in_specs=[
            full((B, N, T)),                           # x_proj
            full((B, T, N)),                           # x (original layout, no transpose)
            full((H, T)),                              # W_h
            full((H, T)),                              # W_c
            full((1, T)),                              # b_lin
            full((1, T)),                              # W_attn2
            full((1, 1)),                              # b_attn2
            full((N + H, 4 * H)),                      # [W_ih^T ; W_hh^T]
            full((1, 4 * H)),                          # b_ih + b_hh
        ],
        out_specs=[
            full((B, T, N)),                           # input_weighted
            full((B, T, H)),                           # input_encoded
        ],
    )

    input_weighted, input_encoded = pl.pallas_call(
        _encoder_kernel,
        out_shape=(jax.ShapeDtypeStruct((B, T, N), jnp.float32),
                   jax.ShapeDtypeStruct((B, T, H), jnp.float32)),
        grid_spec=grid_spec,
        compiler_params=pltpu.CompilerParams(
            dimension_semantics=("arbitrary",),
            # Explicit VMEM budget (safe under v7x's 64 MiB physical / 32 MiB
            # scoped default as well as v5e/v6e). All operands here are KBs;
            # for large T, tile the time axis onto the grid instead.
            vmem_limit_bytes=32 * 1024 * 1024),
    )(x_proj, x, w_h, w_c, params['b_lin'], params['W_attn2'], params['b_attn2'],
      w_lstm, b_lstm)

    return input_weighted, input_encoded


def encoder_reference(x, params):
    """Pure-JAX reference mirroring the PyTorch forward (mode='none')."""
    B, T, N = x.shape
    H = params['W_hh'].shape[1]
    h = jnp.zeros((B, H), jnp.float32)
    c = jnp.zeros((B, H), jnp.float32)
    x_bnt = jnp.transpose(x, (0, 2, 1))
    iw, ie = [], []
    for t in range(T):
        cat = jnp.concatenate(
            [jnp.broadcast_to(h[:, None, :], (B, N, H)),
             jnp.broadcast_to(c[:, None, :], (B, N, H)),
             x_bnt], axis=2).reshape(-1, 2 * H + T)
        z = jnp.tanh(cat @ params['W_lin'].T + params['b_lin'][0])
        e = (z @ params['W_attn2'][0] + params['b_attn2'][0, 0]).reshape(B, N)
        attn = jax.nn.softmax(e, axis=1)
        weighted = attn * x[:, t, :]
        gates = (weighted @ params['W_ih'].T + h @ params['W_hh'].T
                 + params['b_ih'][0] + params['b_hh'][0])
        i_g = jax.nn.sigmoid(gates[:, 0:H])
        f_g = jax.nn.sigmoid(gates[:, H:2 * H])
        g_g = jnp.tanh(gates[:, 2 * H:3 * H])
        o_g = jax.nn.sigmoid(gates[:, 3 * H:4 * H])
        c = f_g * c + i_g * g_g
        h = o_g * jnp.tanh(c)
        iw.append(weighted)
        ie.append(h)
    return jnp.stack(iw, axis=1), jnp.stack(ie, axis=1)


def init_params(key, input_size, hidden_size, T):
    """Deterministic synthetic parameters (shapes from Encoder.__init__)."""
    ks = jax.random.split(key, 8)
    H, N = hidden_size, input_size

    def u(k, shape, fan_in):
        bound = 1.0 / jnp.sqrt(jnp.float32(fan_in))
        return jax.random.uniform(k, shape, jnp.float32, -bound, bound)

    return {
        # self.linear: Linear(2H + T -> T)
        'W_lin': u(ks[0], (T, 2 * H + T), 2 * H + T),
        'b_lin': u(ks[1], (1, T), 2 * H + T),
        # self.attn_linear2: Linear(T -> 1)
        'W_attn2': u(ks[2], (1, T), T),
        'b_attn2': u(ks[3], (1, 1), T),
        # self.lstm_layer: LSTM(input_size=N, hidden_size=H, num_layers=1)
        'W_ih': u(ks[4], (4 * H, N), H),
        'W_hh': u(ks[5], (4 * H, H), H),
        'b_ih': u(ks[6], (1, 4 * H), H),
        'b_hh': u(ks[7], (1, 4 * H), H),
    }


if __name__ == "__main__":
    # B=8 fills every vreg sublane / MXU row with real data; still small.
    B, T, N, H = 8, 8, 8, 16   # batch, T, input_size, hidden_size
    key = jax.random.PRNGKey(0)
    k_x, k_p = jax.random.split(key)
    x = jax.random.normal(k_x, (B, T, N), jnp.float32)
    params = init_params(k_p, N, H, T)

    input_weighted, input_encoded = encoder_forward(x, params)
    jax.block_until_ready((input_weighted, input_encoded))

    ref_w, ref_e = encoder_reference(x, params)
    assert input_weighted.shape == (B, T, N)
    assert input_encoded.shape == (B, T, H)
    # Tolerance covers the EUP approx-reciprocal in the softmax normalization.
    assert jnp.allclose(input_weighted, ref_w, atol=2e-3, rtol=2e-3)
    assert jnp.allclose(input_encoded, ref_e, atol=2e-3, rtol=2e-3)

    print("KERNEL_OK")
</pallas_src>

<mosaic_0001>
module attributes {stable_mosaic.version = 11 : i64} {
  func.func @_encoder_kernel(%arg0: i32, %arg1: memref<8x8x8xf32, #tpu.memory_space<vmem>>, %arg2: memref<8x8x8xf32, #tpu.memory_space<vmem>>, %arg3: memref<16x8xf32, #tpu.memory_space<vmem>>, %arg4: memref<16x8xf32, #tpu.memory_space<vmem>>, %arg5: memref<1x8xf32, #tpu.memory_space<vmem>>, %arg6: memref<1x8xf32, #tpu.memory_space<vmem>>, %arg7: memref<1x1xf32, #tpu.memory_space<vmem>>, %arg8: memref<24x64xf32, #tpu.memory_space<vmem>>, %arg9: memref<1x64xf32, #tpu.memory_space<vmem>>, %arg10: memref<8x8x8xf32, #tpu.memory_space<vmem>>, %arg11: memref<8x8x16xf32, #tpu.memory_space<vmem>>) attributes {dimension_semantics = [#tpu.dimension_semantics<arbitrary>], iteration_bounds = array<i64: 1>, scalar_prefetch = 0 : i64, scratch_operands = 0 : i64, tpu.core_type = #tpu.core_type<tc>, window_params = [{pipeline_mode = #tpu.pipeline_mode<synchronous>, transform_indices = @transform_0, window_bounds = array<i64: 8, 8, 8>}, {pipeline_mode = #tpu.pipeline_mode<synchronous>, transform_indices = @transform_1, window_bounds = array<i64: 8, 8, 8>}, {pipeline_mode = #tpu.pipeline_mode<synchronous>, transform_indices = @transform_2, window_bounds = array<i64: 16, 8>}, {pipeline_mode = #tpu.pipeline_mode<synchronous>, transform_indices = @transform_3, window_bounds = array<i64: 16, 8>}, {pipeline_mode = #tpu.pipeline_mode<synchronous>, transform_indices = @transform_4, window_bounds = array<i64: 1, 8>}, {pipeline_mode = #tpu.pipeline_mode<synchronous>, transform_indices = @transform_5, window_bounds = array<i64: 1, 8>}, {pipeline_mode = #tpu.pipeline_mode<synchronous>, transform_indices = @transform_6, window_bounds = array<i64: 1, 1>}, {pipeline_mode = #tpu.pipeline_mode<synchronous>, transform_indices = @transform_7, window_bounds = array<i64: 24, 64>}, {pipeline_mode = #tpu.pipeline_mode<synchronous>, transform_indices = @transform_8, window_bounds = array<i64: 1, 64>}, {pipeline_mode = #tpu.pipeline_mode<synchronous>, transform_indices = @transform_9, window_bounds = array<i64: 8, 8, 8>}, {pipeline_mode = #tpu.pipeline_mode<synchronous>, transform_indices = @transform_10, window_bounds = array<i64: 8, 8, 16>}]} {
    %c0 = arith.constant 0 : index
    %c0_0 = arith.constant 0 : index
    %c0_1 = arith.constant 0 : index
    %0 = vector.load %arg1[%c0, %c0_0, %c0_1] : memref<8x8x8xf32, #tpu.memory_space<vmem>>, vector<8x8x8xf32>
    %c0_2 = arith.constant 0 : index
    %c0_3 = arith.constant 0 : index
    %1 = vector.load %arg3[%c0_2, %c0_3] : memref<16x8xf32, #tpu.memory_space<vmem>>, vector<16x8xf32>
    %c0_4 = arith.constant 0 : index
    %c0_5 = arith.constant 0 : index
    %2 = vector.load %arg4[%c0_4, %c0_5] : memref<16x8xf32, #tpu.memory_space<vmem>>, vector<16x8xf32>
    %c0_6 = arith.constant 0 : index
    %c0_7 = arith.constant 0 : index
    %3 = vector.load %arg5[%c0_6, %c0_7] : memref<1x8xf32, #tpu.memory_space<vmem>>, vector<1x8xf32>
    %c0_8 = arith.constant 0 : index
    %c0_9 = arith.constant 0 : index
    %4 = vector.load %arg6[%c0_8, %c0_9] : memref<1x8xf32, #tpu.memory_space<vmem>>, vector<1x8xf32>
    %5 = vector.shape_cast %4 : vector<1x8xf32> to vector<1x1x8xf32>
    %c0_10 = arith.constant 0 : index
    %c0_11 = arith.constant 0 : index
    %6 = vector.load %arg7[%c0_10, %c0_11] : memref<1x1xf32, #tpu.memory_space<vmem>>, vector<1x1xf32>
    %c0_12 = arith.constant 0 : index
    %c0_13 = arith.constant 0 : index
    %7 = vector.load %arg8[%c0_12, %c0_13] : memref<24x64xf32, #tpu.memory_space<vmem>>, vector<24x64xf32>
    %c0_14 = arith.constant 0 : index
    %c0_15 = arith.constant 0 : index
    %8 = vector.load %arg9[%c0_14, %c0_15] : memref<1x64xf32, #tpu.memory_space<vmem>>, vector<1x64xf32>
    %cst = arith.constant 0.000000e+00 : f32
    %9 = vector.broadcast %cst : f32 to vector<8x16xf32>
    %cst_16 = arith.constant 0.000000e+00 : f32
    %10 = vector.broadcast %cst_16 : f32 to vector<8x16xf32>
    %cst_17 = arith.constant dense<0.000000e+00> : vector<8x8xf32>
    %11 = tpu.matmul %9, %1, %cst_17 {dimension_numbers = #tpu.dot_dimension_numbers<[1], [0], [0], [1], [0, 0, 1, 1], [], []>} : vector<8x16xf32>, vector<16x8xf32>, vector<8x8xf32> -> vector<8x8xf32>
    %cst_18 = arith.constant dense<0.000000e+00> : vector<8x8xf32>
    %12 = tpu.matmul %10, %2, %cst_18 {dimension_numbers = #tpu.dot_dimension_numbers<[1], [0], [0], [1], [0, 0, 1, 1], [], []>} : vector<8x16xf32>, vector<16x8xf32>, vector<8x8xf32> -> vector<8x8xf32>
    %13 = arith.addf %11, %12 : vector<8x8xf32>
    %14 = vector.broadcast %3 : vector<1x8xf32> to vector<8x8xf32>
    %15 = arith.addf %13, %14 : vector<8x8xf32>
    %16 = vector.shape_cast %15 : vector<8x8xf32> to vector<8x1x8xf32>
    %17 = vector.broadcast %16 : vector<8x1x8xf32> to vector<8x8x8xf32>
    %18 = arith.addf %0, %17 : vector<8x8x8xf32>
    %19 = math.tanh %18 : vector<8x8x8xf32>
    %20 = vector.broadcast %5 : vector<1x1x8xf32> to vector<8x8x8xf32>
    %21 = arith.mulf %19, %20 : vector<8x8x8xf32>
    %cst_19 = arith.constant dense<0.000000e+00> : vector<8x8xf32>
    %22 = vector.multi_reduction <add>, %21, %cst_19 [2] : vector<8x8x8xf32> to vector<8x8xf32>
    %23 = vector.broadcast %6 : vector<1x1xf32> to vector<8x8xf32>
    %24 = arith.addf %22, %23 : vector<8x8xf32>
    %cst_20 = arith.constant dense<0xFF800000> : vector<8xf32>
    %25 = vector.multi_reduction <maximumf>, %24, %cst_20 [1] : vector<8x8xf32> to vector<8xf32>
    %26 = vector.shape_cast %25 : vector<8xf32> to vector<8x1xf32>
    %27 = vector.broadcast %26 : vector<8x1xf32> to vector<8x8xf32>
    %28 = arith.subf %24, %27 : vector<8x8xf32>
    %29 = math.exp %28 : vector<8x8xf32>
    %cst_21 = arith.constant dense<0.000000e+00> : vector<8xf32>
    %30 = vector.multi_reduction <add>, %29, %cst_21 [1] : vector<8x8xf32> to vector<8xf32>
    %31 = vector.shape_cast %30 : vector<8xf32> to vector<8x1xf32>
    %32 = tpu.reciprocal %31 {approx = true} : vector<8x1xf32> -> vector<8x1xf32>
    %33 = vector.broadcast %32 : vector<8x1xf32> to vector<8x8xf32>
    %34 = arith.mulf %29, %33 : vector<8x8xf32>
    %c0_22 = arith.constant 0 : index
    %c0_23 = arith.constant 0 : index
    %c0_24 = arith.constant 0 : index
    %35 = vector.load %arg2[%c0_22, %c0_23, %c0_24] : memref<8x8x8xf32, #tpu.memory_space<vmem>>, vector<8x1x8xf32>
    %36 = vector.shape_cast %35 : vector<8x1x8xf32> to vector<8x8xf32>
    %37 = arith.mulf %34, %36 : vector<8x8xf32>
    %38 = tpu.concatenate %37, %9 in 1 : vector<8x8xf32>, vector<8x16xf32> -> vector<8x24xf32>
    %cst_25 = arith.constant dense<0.000000e+00> : vector<8x64xf32>
    %39 = tpu.matmul %38, %7, %cst_25 {dimension_numbers = #tpu.dot_dimension_numbers<[1], [0], [0], [1], [0, 0, 1, 1], [], []>} : vector<8x24xf32>, vector<24x64xf32>, vector<8x64xf32> -> vector<8x64xf32>
    %40 = vector.broadcast %8 : vector<1x64xf32> to vector<8x64xf32>
    %41 = arith.addf %39, %40 : vector<8x64xf32>
    %42 = arith.negf %41 : vector<8x64xf32>
    %43 = math.exp %42 : vector<8x64xf32>
    %cst_26 = arith.constant 1.000000e+00 : f32
    %44 = vector.broadcast %cst_26 : f32 to vector<8x64xf32>
    %45 = arith.addf %44, %43 : vector<8x64xf32>
    %46 = arith.divf %44, %45 : vector<8x64xf32>
    %47 = math.tanh %41 : vector<8x64xf32>
    %48 = vector.extract_strided_slice %46 {offsets = [0, 0], sizes = [8, 16], strides = [1, 1]} : vector<8x64xf32> to vector<8x16xf32>
    %49 = vector.extract_strided_slice %46 {offsets = [0, 16], sizes = [8, 16], strides = [1, 1]} : vector<8x64xf32> to vector<8x16xf32>
    %50 = vector.extract_strided_slice %47 {offsets = [0, 32], sizes = [8, 16], strides = [1, 1]} : vector<8x64xf32> to vector<8x16xf32>
    %51 = vector.extract_strided_slice %46 {offsets = [0, 48], sizes = [8, 16], strides = [1, 1]} : vector<8x64xf32> to vector<8x16xf32>
    %52 = arith.mulf %49, %10 : vector<8x16xf32>
    %53 = arith.mulf %48, %50 : vector<8x16xf32>
    %54 = arith.addf %52, %53 : vector<8x16xf32>
    %55 = math.tanh %54 : vector<8x16xf32>
    %56 = arith.mulf %51, %55 : vector<8x16xf32>
    %c0_27 = arith.constant 0 : index
    %c0_28 = arith.constant 0 : index
    %c0_29 = arith.constant 0 : index
    %57 = vector.load %arg10[%c0_27, %c0_28, %c0_29] : memref<8x8x8xf32, #tpu.memory_space<vmem>>, vector<8x1x8xf32>
    %58 = vector.shape_cast %57 : vector<8x1x8xf32> to vector<8x8xf32>
    %59 = vector.shape_cast %37 : vector<8x8xf32> to vector<8x1x8xf32>
    tpu.vector_store %arg10[%c0_27, %c0_28, %c0_29], %59 {strides = array<i32>} : memref<8x8x8xf32, #tpu.memory_space<vmem>>, vector<8x1x8xf32>,
    %c0_30 = arith.constant 0 : index
    %c0_31 = arith.constant 0 : index
    %c0_32 = arith.constant 0 : index
    %60 = vector.load %arg11[%c0_30, %c0_31, %c0_32] : memref<8x8x16xf32, #tpu.memory_space<vmem>>, vector<8x1x16xf32>
    %61 = vector.shape_cast %60 : vector<8x1x16xf32> to vector<8x16xf32>
    %62 = vector.shape_cast %56 : vector<8x16xf32> to vector<8x1x16xf32>
    tpu.vector_store %arg11[%c0_30, %c0_31, %c0_32], %62 {strides = array<i32>} : memref<8x8x16xf32, #tpu.memory_space<vmem>>, vector<8x1x16xf32>,
    %cst_33 = arith.constant dense<0.000000e+00> : vector<8x8xf32>
    %63 = tpu.matmul %56, %1, %cst_33 {dimension_numbers = #tpu.dot_dimension_numbers<[1], [0], [0], [1], [0, 0, 1, 1], [], []>} : vector<8x16xf32>, vector<16x8xf32>, vector<8x8xf32> -> vector<8x8xf32>
    %cst_34 = arith.constant dense<0.000000e+00> : vector<8x8xf32>
    %64 = tpu.matmul %54, %2, %cst_34 {dimension_numbers = #tpu.dot_dimension_numbers<[1], [0], [0], [1], [0, 0, 1, 1], [], []>} : vector<8x16xf32>, vector<16x8xf32>, vector<8x8xf32> -> vector<8x8xf32>
    %65 = arith.addf %63, %64 : vector<8x8xf32>
    %66 = vector.broadcast %3 : vector<1x8xf32> to vector<8x8xf32>
    %67 = arith.addf %65, %66 : vector<8x8xf32>
    %68 = vector.shape_cast %67 : vector<8x8xf32> to vector<8x1x8xf32>
    %69 = vector.broadcast %68 : vector<8x1x8xf32> to vector<8x8x8xf32>
    %70 = arith.addf %0, %69 : vector<8x8x8xf32>
    %71 = math.tanh %70 : vector<8x8x8xf32>
    %72 = vector.broadcast %5 : vector<1x1x8xf32> to vector<8x8x8xf32>
    %73 = arith.mulf %71, %72 : vector<8x8x8xf32>
    %cst_35 = arith.constant dense<0.000000e+00> : vector<8x8xf32>
    %74 = vector.multi_reduction <add>, %73, %cst_35 [2] : vector<8x8x8xf32> to vector<8x8xf32>
    %75 = vector.broadcast %6 : vector<1x1xf32> to vector<8x8xf32>
    %76 = arith.addf %74, %75 : vector<8x8xf32>
    %cst_36 = arith.constant dense<0xFF800000> : vector<8xf32>
    %77 = vector.multi_reduction <maximumf>, %76, %cst_36 [1] : vector<8x8xf32> to vector<8xf32>
    %78 = vector.shape_cast %77 : vector<8xf32> to vector<8x1xf32>
    %79 = vector.broadcast %78 : vector<8x1xf32> to vector<8x8xf32>
    %80 = arith.subf %76, %79 : vector<8x8xf32>
    %81 = math.exp %80 : vector<8x8xf32>
    %cst_37 = arith.constant dense<0.000000e+00> : vector<8xf32>
    %82 = vector.multi_reduction <add>, %81, %cst_37 [1] : vector<8x8xf32> to vector<8xf32>
    %83 = vector.shape_cast %82 : vector<8xf32> to vector<8x1xf32>
    %84 = tpu.reciprocal %83 {approx = true} : vector<8x1xf32> -> vector<8x1xf32>
    %85 = vector.broadcast %84 : vector<8x1xf32> to vector<8x8xf32>
    %86 = arith.mulf %81, %85 : vector<8x8xf32>
    %c0_38 = arith.constant 0 : index
    %c1 = arith.constant 1 : index
    %c0_39 = arith.constant 0 : index
    %87 = vector.load %arg2[%c0_38, %c1, %c0_39] : memref<8x8x8xf32, #tpu.memory_space<vmem>>, vector<8x1x8xf32>
    %88 = vector.shape_cast %87 : vector<8x1x8xf32> to vector<8x8xf32>
    %89 = arith.mulf %86, %88 : vector<8x8xf32>
    %90 = tpu.concatenate %89, %56 in 1 : vector<8x8xf32>, vector<8x16xf32> -> vector<8x24xf32>
    %cst_40 = arith.constant dense<0.000000e+00> : vector<8x64xf32>
    %91 = tpu.matmul %90, %7, %cst_40 {dimension_numbers = #tpu.dot_dimension_numbers<[1], [0], [0], [1], [0, 0, 1, 1], [], []>} : vector<8x24xf32>, vector<24x64xf32>, vector<8x64xf32> -> vector<8x64xf32>
    %92 = vector.broadcast %8 : vector<1x64xf32> to vector<8x64xf32>
    %93 = arith.addf %91, %92 : vector<8x64xf32>
    %94 = arith.negf %93 : vector<8x64xf32>
    %95 = math.exp %94 : vector<8x64xf32>
    %cst_41 = arith.constant 1.000000e+00 : f32
    %96 = vector.broadcast %cst_41 : f32 to vector<8x64xf32>
    %97 = arith.addf %96, %95 : vector<8x64xf32>
    %98 = arith.divf %96, %97 : vector<8x64xf32>
    %99 = math.tanh %93 : vector<8x64xf32>
    %100 = vector.extract_strided_slice %98 {offsets = [0, 0], sizes = [8, 16], strides = [1, 1]} : vector<8x64xf32> to vector<8x16xf32>
    %101 = vector.extract_strided_slice %98 {offsets = [0, 16], sizes = [8, 16], strides = [1, 1]} : vector<8x64xf32> to vector<8x16xf32>
    %102 = vector.extract_strided_slice %99 {offsets = [0, 32], sizes = [8, 16], strides = [1, 1]} : vector<8x64xf32> to vector<8x16xf32>
    %103 = vector.extract_strided_slice %98 {offsets = [0, 48], sizes = [8, 16], strides = [1, 1]} : vector<8x64xf32> to vector<8x16xf32>
    %104 = arith.mulf %101, %54 : vector<8x16xf32>
    %105 = arith.mulf %100, %102 : vector<8x16xf32>
    %106 = arith.addf %104, %105 : vector<8x16xf32>
    %107 = math.tanh %106 : vector<8x16xf32>
    %108 = arith.mulf %103, %107 : vector<8x16xf32>
    %c0_42 = arith.constant 0 : index
    %c1_43 = arith.constant 1 : index
    %c0_44 = arith.constant 0 : index
    %109 = vector.load %arg10[%c0_42, %c1_43, %c0_44] : memref<8x8x8xf32, #tpu.memory_space<vmem>>, vector<8x1x8xf32>
    %110 = vector.shape_cast %109 : vector<8x1x8xf32> to vector<8x8xf32>
    %111 = vector.shape_cast %89 : vector<8x8xf32> to vector<8x1x8xf32>
    tpu.vector_store %arg10[%c0_42, %c1_43, %c0_44], %111 {strides = array<i32>} : memref<8x8x8xf32, #tpu.memory_space<vmem>>, vector<8x1x8xf32>,
    %c0_45 = arith.constant 0 : index
    %c1_46 = arith.constant 1 : index
    %c0_47 = arith.constant 0 : index
    %112 = vector.load %arg11[%c0_45, %c1_46, %c0_47] : memref<8x8x16xf32, #tpu.memory_space<vmem>>, vector<8x1x16xf32>
    %113 = vector.shape_cast %112 : vector<8x1x16xf32> to vector<8x16xf32>
    %114 = vector.shape_cast %108 : vector<8x16xf32> to vector<8x1x16xf32>
    tpu.vector_store %arg11[%c0_45, %c1_46, %c0_47], %114 {strides = array<i32>} : memref<8x8x16xf32, #tpu.memory_space<vmem>>, vector<8x1x16xf32>,
    %cst_48 = arith.constant dense<0.000000e+00> : vector<8x8xf32>
    %115 = tpu.matmul %108, %1, %cst_48 {dimension_numbers = #tpu.dot_dimension_numbers<[1], [0], [0], [1], [0, 0, 1, 1], [], []>} : vector<8x16xf32>, vector<16x8xf32>, vector<8x8xf32> -> vector<8x8xf32>
    %cst_49 = arith.constant dense<0.000000e+00> : vector<8x8xf32>
    %116 = tpu.matmul %106, %2, %cst_49 {dimension_numbers = #tpu.dot_dimension_numbers<[1], [0], [0], [1], [0, 0, 1, 1], [], []>} : vector<8x16xf32>, vector<16x8xf32>, vector<8x8xf32> -> vector<8x8xf32>
    %117 = arith.addf %115, %116 : vector<8x8xf32>
    %118 = vector.broadcast %3 : vector<1x8xf32> to vector<8x8xf32>
    %119 = arith.addf %117, %118 : vector<8x8xf32>
    %120 = vector.shape_cast %119 : vector<8x8xf32> to vector<8x1x8xf32>
    %121 = vector.broadcast %120 : vector<8x1x8xf32> to vector<8x8x8xf32>
    %122 = arith.addf %0, %121 : vector<8x8x8xf32>
    %123 = math.tanh %122 : vector<8x8x8xf32>
    %124 = vector.broadcast %5 : vector<1x1x8xf32> to vector<8x8x8xf32>
    %125 = arith.mulf %123, %124 : vector<8x8x8xf32>
    %cst_50 = arith.constant dense<0.000000e+00> : vector<8x8xf32>
    %126 = vector.multi_reduction <add>, %125, %cst_50 [2] : vector<8x8x8xf32> to vector<8x8xf32>
    %127 = vector.broadcast %6 : vector<1x1xf32> to vector<8x8xf32>
    %128 = arith.addf %126, %127 : vector<8x8xf32>
    %cst_51 = arith.constant dense<0xFF800000> : vector<8xf32>
    %129 = vector.multi_reduction <maximumf>, %128, %cst_51 [1] : vector<8x8xf32> to vector<8xf32>
    %130 = vector.shape_cast %129 : vector<8xf32> to vector<8x1xf32>
    %131 = vector.broadcast %130 : vector<8x1xf32> to vector<8x8xf32>
    %132 = arith.subf %128, %131 : vector<8x8xf32>
    %133 = math.exp %132 : vector<8x8xf32>
    %cst_52 = arith.constant dense<0.000000e+00> : vector<8xf32>
    %134 = vector.multi_reduction <add>, %133, %cst_52 [1] : vector<8x8xf32> to vector<8xf32>
    %135 = vector.shape_cast %134 : vector<8xf32> to vector<8x1xf32>
    %136 = tpu.reciprocal %135 {approx = true} : vector<8x1xf32> -> vector<8x1xf32>
    %137 = vector.broadcast %136 : vector<8x1xf32> to vector<8x8xf32>
    %138 = arith.mulf %133, %137 : vector<8x8xf32>
    %c0_53 = arith.constant 0 : index
    %c2 = arith.constant 2 : index
    %c0_54 = arith.constant 0 : index
    %139 = vector.load %arg2[%c0_53, %c2, %c0_54] : memref<8x8x8xf32, #tpu.memory_space<vmem>>, vector<8x1x8xf32>
    %140 = vector.shape_cast %139 : vector<8x1x8xf32> to vector<8x8xf32>
    %141 = arith.mulf %138, %140 : vector<8x8xf32>
    %142 = tpu.concatenate %141, %108 in 1 : vector<8x8xf32>, vector<8x16xf32> -> vector<8x24xf32>
    %cst_55 = arith.constant dense<0.000000e+00> : vector<8x64xf32>
    %143 = tpu.matmul %142, %7, %cst_55 {dimension_numbers = #tpu.dot_dimension_numbers<[1], [0], [0], [1], [0, 0, 1, 1], [], []>} : vector<8x24xf32>, vector<24x64xf32>, vector<8x64xf32> -> vector<8x64xf32>
    %144 = vector.broadcast %8 : vector<1x64xf32> to vector<8x64xf32>
    %145 = arith.addf %143, %144 : vector<8x64xf32>
    %146 = arith.negf %145 : vector<8x64xf32>
    %147 = math.exp %146 : vector<8x64xf32>
    %cst_56 = arith.constant 1.000000e+00 : f32
    %148 = vector.broadcast %cst_56 : f32 to vector<8x64xf32>
    %149 = arith.addf %148, %147 : vector<8x64xf32>
    %150 = arith.divf %148, %149 : vector<8x64xf32>
    %151 = math.tanh %145 : vector<8x64xf32>
    %152 = vector.extract_strided_slice %150 {offsets = [0, 0], sizes = [8, 16], strides = [1, 1]} : vector<8x64xf32> to vector<8x16xf32>
    %153 = vector.extract_strided_slice %150 {offsets = [0, 16], sizes = [8, 16], strides = [1, 1]} : vector<8x64xf32> to vector<8x16xf32>
    %154 = vector.extract_strided_slice %151 {offsets = [0, 32], sizes = [8, 16], strides = [1, 1]} : vector<8x64xf32> to vector<8x16xf32>
    %155 = vector.extract_strided_slice %150 {offsets = [0, 48], sizes = [8, 16], strides = [1, 1]} : vector<8x64xf32> to vector<8x16xf32>
    %156 = arith.mulf %153, %106 : vector<8x16xf32>
    %157 = arith.mulf %152, %154 : vector<8x16xf32>
    %158 = arith.addf %156, %157 : vector<8x16xf32>
    %159 = math.tanh %158 : vector<8x16xf32>
    %160 = arith.mulf %155, %159 : vector<8x16xf32>
    %c0_57 = arith.constant 0 : index
    %c2_58 = arith.constant 2 : index
    %c0_59 = arith.constant 0 : index
    %161 = vector.load %arg10[%c0_57, %c2_58, %c0_59] : memref<8x8x8xf32, #tpu.memory_space<vmem>>, vector<8x1x8xf32>
    %162 = vector.shape_cast %161 : vector<8x1x8xf32> to vector<8x8xf32>
    %163 = vector.shape_cast %141 : vector<8x8xf32> to vector<8x1x8xf32>
    tpu.vector_store %arg10[%c0_57, %c2_58, %c0_59], %163 {strides = array<i32>} : memref<8x8x8xf32, #tpu.memory_space<vmem>>, vector<8x1x8xf32>,
    %c0_60 = arith.constant 0 : index
    %c2_61 = arith.constant 2 : index
    %c0_62 = arith.constant 0 : index
    %164 = vector.load %arg11[%c0_60, %c2_61, %c0_62] : memref<8x8x16xf32, #tpu.memory_space<vmem>>, vector<8x1x16xf32>
    %165 = vector.shape_cast %164 : vector<8x1x16xf32> to vector<8x16xf32>
    %166 = vector.shape_cast %160 : vector<8x16xf32> to vector<8x1x16xf32>
    tpu.vector_store %arg11[%c0_60, %c2_61, %c0_62], %166 {strides = array<i32>} : memref<8x8x16xf32, #tpu.memory_space<vmem>>, vector<8x1x16xf32>,
    %cst_63 = arith.constant dense<0.000000e+00> : vector<8x8xf32>
    %167 = tpu.matmul %160, %1, %cst_63 {dimension_numbers = #tpu.dot_dimension_numbers<[1], [0], [0], [1], [0, 0, 1, 1], [], []>} : vector<8x16xf32>, vector<16x8xf32>, vector<8x8xf32> -> vector<8x8xf32>
    %cst_64 = arith.constant dense<0.000000e+00> : vector<8x8xf32>
    %168 = tpu.matmul %158, %2, %cst_64 {dimension_numbers = #tpu.dot_dimension_numbers<[1], [0], [0], [1], [0, 0, 1, 1], [], []>} : vector<8x16xf32>, vector<16x8xf32>, vector<8x8xf32> -> vector<8x8xf32>
    %169 = arith.addf %167, %168 : vector<8x8xf32>
    %170 = vector.broadcast %3 : vector<1x8xf32> to vector<8x8xf32>
    %171 = arith.addf %169, %170 : vector<8x8xf32>
    %172 = vector.shape_cast %171 : vector<8x8xf32> to vector<8x1x8xf32>
    %173 = vector.broadcast %172 : vector<8x1x8xf32> to vector<8x8x8xf32>
    %174 = arith.addf %0, %173 : vector<8x8x8xf32>
    %175 = math.tanh %174 : vector<8x8x8xf32>
    %176 = vector.broadcast %5 : vector<1x1x8xf32> to vector<8x8x8xf32>
    %177 = arith.mulf %175, %176 : vector<8x8x8xf32>
    %cst_65 = arith.constant dense<0.000000e+00> : vector<8x8xf32>
    %178 = vector.multi_reduction <add>, %177, %cst_65 [2] : vector<8x8x8xf32> to vector<8x8xf32>
    %179 = vector.broadcast %6 : vector<1x1xf32> to vector<8x8xf32>
    %180 = arith.addf %178, %179 : vector<8x8xf32>
    %cst_66 = arith.constant dense<0xFF800000> : vector<8xf32>
    %181 = vector.multi_reduction <maximumf>, %180, %cst_66 [1] : vector<8x8xf32> to vector<8xf32>
    %182 = vector.shape_cast %181 : vector<8xf32> to vector<8x1xf32>
    %183 = vector.broadcast %182 : vector<8x1xf32> to vector<8x8xf32>
    %184 = arith.subf %180, %183 : vector<8x8xf32>
    %185 = math.exp %184 : vector<8x8xf32>
    %cst_67 = arith.constant dense<0.000000e+00> : vector<8xf32>
    %186 = vector.multi_reduction <add>, %185, %cst_67 [1] : vector<8x8xf32> to vector<8xf32>
    %187 = vector.shape_cast %186 : vector<8xf32> to vector<8x1xf32>
    %188 = tpu.reciprocal %187 {approx = true} : vector<8x1xf32> -> vector<8x1xf32>
    %189 = vector.broadcast %188 : vector<8x1xf32> to vector<8x8xf32>
    %190 = arith.mulf %185, %189 : vector<8x8xf32>
    %c0_68 = arith.constant 0 : index
    %c3 = arith.constant 3 : index
    %c0_69 = arith.constant 0 : index
    %191 = vector.load %arg2[%c0_68, %c3, %c0_69] : memref<8x8x8xf32, #tpu.memory_space<vmem>>, vector<8x1x8xf32>
    %192 = vector.shape_cast %191 : vector<8x1x8xf32> to vector<8x8xf32>
    %193 = arith.mulf %190, %192 : vector<8x8xf32>
    %194 = tpu.concatenate %193, %160 in 1 : vector<8x8xf32>, vector<8x16xf32> -> vector<8x24xf32>
    %cst_70 = arith.constant dense<0.000000e+00> : vector<8x64xf32>
    %195 = tpu.matmul %194, %7, %cst_70 {dimension_numbers = #tpu.dot_dimension_numbers<[1], [0], [0], [1], [0, 0, 1, 1], [], []>} : vector<8x24xf32>, vector<24x64xf32>, vector<8x64xf32> -> vector<8x64xf32>
    %196 = vector.broadcast %8 : vector<1x64xf32> to vector<8x64xf32>
    %197 = arith.addf %195, %196 : vector<8x64xf32>
    %198 = arith.negf %197 : vector<8x64xf32>
    %199 = math.exp %198 : vector<8x64xf32>
    %cst_71 = arith.constant 1.000000e+00 : f32
    %200 = vector.broadcast %cst_71 : f32 to vector<8x64xf32>
    %201 = arith.addf %200, %199 : vector<8x64xf32>
    %202 = arith.divf %200, %201 : vector<8x64xf32>
    %203 = math.tanh %197 : vector<8x64xf32>
    %204 = vector.extract_strided_slice %202 {offsets = [0, 0], sizes = [8, 16], strides = [1, 1]} : vector<8x64xf32> to vector<8x16xf32>
    %205 = vector.extract_strided_slice %202 {offsets = [0, 16], sizes = [8, 16], strides = [1, 1]} : vector<8x64xf32> to vector<8x16xf32>
    %206 = vector.extract_strided_slice %203 {offsets = [0, 32], sizes = [8, 16], strides = [1, 1]} : vector<8x64xf32> to vector<8x16xf32>
    %207 = vector.extract_strided_slice %202 {offsets = [0, 48], sizes = [8, 16], strides = [1, 1]} : vector<8x64xf32> to vector<8x16xf32>
    %208 = arith.mulf %205, %158 : vector<8x16xf32>
    %209 = arith.mulf %204, %206 : vector<8x16xf32>
    %210 = arith.addf %208, %209 : vector<8x16xf32>
    %211 = math.tanh %210 : vector<8x16xf32>
    %212 = arith.mulf %207, %211 : vector<8x16xf32>
    %c0_72 = arith.constant 0 : index
    %c3_73 = arith.constant 3 : index
    %c0_74 = arith.constant 0 : index
    %213 = vector.load %arg10[%c0_72, %c3_73, %c0_74] : memref<8x8x8xf32, #tpu.memory_space<vmem>>, vector<8x1x8xf32>
    %214 = vector.shape_cast %213 : vector<8x1x8xf32> to vector<8x8xf32>
    %215 = vector.shape_cast %193 : vector<8x8xf32> to vector<8x1x8xf32>
    tpu.vector_store %arg10[%c0_72, %c3_73, %c0_74], %215 {strides = array<i32>} : memref<8x8x8xf32, #tpu.memory_space<vmem>>, vector<8x1x8xf32>,
    %c0_75 = arith.constant 0 : index
    %c3_76 = arith.constant 3 : index
    %c0_77 = arith.constant 0 : index
    %216 = vector.load %arg11[%c0_75, %c3_76, %c0_77] : memref<8x8x16xf32, #tpu.memory_space<vmem>>, vector<8x1x16xf32>
    %217 = vector.shape_cast %216 : vector<8x1x16xf32> to vector<8x16xf32>
    %218 = vector.shape_cast %212 : vector<8x16xf32> to vector<8x1x16xf32>
    tpu.vector_store %arg11[%c0_75, %c3_76, %c0_77], %218 {strides = array<i32>} : memref<8x8x16xf32, #tpu.memory_space<vmem>>, vector<8x1x16xf32>,
    %cst_78 = arith.constant dense<0.000000e+00> : vector<8x8xf32>
    %219 = tpu.matmul %212, %1, %cst_78 {dimension_numbers = #tpu.dot_dimension_numbers<[1], [0], [0], [1], [0, 0, 1, 1], [], []>} : vector<8x16xf32>, vector<16x8xf32>, vector<8x8xf32> -> vector<8x8xf32>
    %cst_79 = arith.constant dense<0.000000e+00> : vector<8x8xf32>
    %220 = tpu.matmul %210, %2, %cst_79 {dimension_numbers = #tpu.dot_dimension_numbers<[1], [0], [0], [1], [0, 0, 1, 1], [], []>} : vector<8x16xf32>, vector<16x8xf32>, vector<8x8xf32> -> vector<8x8xf32>
    %221 = arith.addf %219, %220 : vector<8x8xf32>
    %222 = vector.broadcast %3 : vector<1x8xf32> to vector<8x8xf32>
    %223 = arith.addf %221, %222 : vector<8x8xf32>
    %224 = vector.shape_cast %223 : vector<8x8xf32> to vector<8x1x8xf32>
    %225 = vector.broadcast %224 : vector<8x1x8xf32> to vector<8x8x8xf32>
    %226 = arith.addf %0, %225 : vector<8x8x8xf32>
    %227 = math.tanh %226 : vector<8x8x8xf32>
    %228 = vector.broadcast %5 : vector<1x1x8xf32> to vector<8x8x8xf32>
    %229 = arith.mulf %227, %228 : vector<8x8x8xf32>
    %cst_80 = arith.constant dense<0.000000e+00> : vector<8x8xf32>
    %230 = vector.multi_reduction <add>, %229, %cst_80 [2] : vector<8x8x8xf32> to vector<8x8xf32>
    %231 = vector.broadcast %6 : vector<1x1xf32> to vector<8x8xf32>
    %232 = arith.addf %230, %231 : vector<8x8xf32>
    %cst_81 = arith.constant dense<0xFF800000> : vector<8xf32>
    %233 = vector.multi_reduction <maximumf>, %232, %cst_81 [1] : vector<8x8xf32> to vector<8xf32>
    %234 = vector.shape_cast %233 : vector<8xf32> to vector<8x1xf32>
    %235 = vector.broadcast %234 : vector<8x1xf32> to vector<8x8xf32>
    %236 = arith.subf %232, %235 : vector<8x8xf32>
    %237 = math.exp %236 : vector<8x8xf32>
    %cst_82 = arith.constant dense<0.000000e+00> : vector<8xf32>
    %238 = vector.multi_reduction <add>, %237, %cst_82 [1] : vector<8x8xf32> to vector<8xf32>
    %239 = vector.shape_cast %238 : vector<8xf32> to vector<8x1xf32>
    %240 = tpu.reciprocal %239 {approx = true} : vector<8x1xf32> -> vector<8x1xf32>
    %241 = vector.broadcast %240 : vector<8x1xf32> to vector<8x8xf32>
    %242 = arith.mulf %237, %241 : vector<8x8xf32>
    %c0_83 = arith.constant 0 : index
    %c4 = arith.constant 4 : index
    %c0_84 = arith.constant 0 : index
    %243 = vector.load %arg2[%c0_83, %c4, %c0_84] : memref<8x8x8xf32, #tpu.memory_space<vmem>>, vector<8x1x8xf32>
    %244 = vector.shape_cast %243 : vector<8x1x8xf32> to vector<8x8xf32>
    %245 = arith.mulf %242, %244 : vector<8x8xf32>
    %246 = tpu.concatenate %245, %212 in 1 : vector<8x8xf32>, vector<8x16xf32> -> vector<8x24xf32>
    %cst_85 = arith.constant dense<0.000000e+00> : vector<8x64xf32>
    %247 = tpu.matmul %246, %7, %cst_85 {dimension_numbers = #tpu.dot_dimension_numbers<[1], [0], [0], [1], [0, 0, 1, 1], [], []>} : vector<8x24xf32>, vector<24x64xf32>, vector<8x64xf32> -> vector<8x64xf32>
    %248 = vector.broadcast %8 : vector<1x64xf32> to vector<8x64xf32>
    %249 = arith.addf %247, %248 : vector<8x64xf32>
    %250 = arith.negf %249 : vector<8x64xf32>
    %251 = math.exp %250 : vector<8x64xf32>
    %cst_86 = arith.constant 1.000000e+00 : f32
    %252 = vector.broadcast %cst_86 : f32 to vector<8x64xf32>
    %253 = arith.addf %252, %251 : vector<8x64xf32>
    %254 = arith.divf %252, %253 : vector<8x64xf32>
    %255 = math.tanh %249 : vector<8x64xf32>
    %256 = vector.extract_strided_slice %254 {offsets = [0, 0], sizes = [8, 16], strides = [1, 1]} : vector<8x64xf32> to vector<8x16xf32>
    %257 = vector.extract_strided_slice %254 {offsets = [0, 16], sizes = [8, 16], strides = [1, 1]} : vector<8x64xf32> to vector<8x16xf32>
    %258 = vector.extract_strided_slice %255 {offsets = [0, 32], sizes = [8, 16], strides = [1, 1]} : vector<8x64xf32> to vector<8x16xf32>
    %259 = vector.extract_strided_slice %254 {offsets = [0, 48], sizes = [8, 16], strides = [1, 1]} : vector<8x64xf32> to vector<8x16xf32>
    %260 = arith.mulf %257, %210 : vector<8x16xf32>
    %261 = arith.mulf %256, %258 : vector<8x16xf32>
    %262 = arith.addf %260, %261 : vector<8x16xf32>
    %263 = math.tanh %262 : vector<8x16xf32>
    %264 = arith.mulf %259, %263 : vector<8x16xf32>
    %c0_87 = arith.constant 0 : index
    %c4_88 = arith.constant 4 : index
    %c0_89 = arith.constant 0 : index
    %265 = vector.load %arg10[%c0_87, %c4_88, %c0_89] : memref<8x8x8xf32, #tpu.memory_space<vmem>>, vector<8x1x8xf32>
    %266 = vector.shape_cast %265 : vector<8x1x8xf32> to vector<8x8xf32>
    %267 = vector.shape_cast %245 : vector<8x8xf32> to vector<8x1x8xf32>
    tpu.vector_store %arg10[%c0_87, %c4_88, %c0_89], %267 {strides = array<i32>} : memref<8x8x8xf32, #tpu.memory_space<vmem>>, vector<8x1x8xf32>,
    %c0_90 = arith.constant 0 : index
    %c4_91 = arith.constant 4 : index
    %c0_92 = arith.constant 0 : index
    %268 = vector.load %arg11[%c0_90, %c4_91, %c0_92] : memref<8x8x16xf32, #tpu.memory_space<vmem>>, vector<8x1x16xf32>
    %269 = vector.shape_cast %268 : vector<8x1x16xf32> to vector<8x16xf32>
    %270 = vector.shape_cast %264 : vector<8x16xf32> to vector<8x1x16xf32>
    tpu.vector_store %arg11[%c0_90, %c4_91, %c0_92], %270 {strides = array<i32>} : memref<8x8x16xf32, #tpu.memory_space<vmem>>, vector<8x1x16xf32>,
    %cst_93 = arith.constant dense<0.000000e+00> : vector<8x8xf32>
    %271 = tpu.matmul %264, %1, %cst_93 {dimension_numbers = #tpu.dot_dimension_numbers<[1], [0], [0], [1], [0, 0, 1, 1], [], []>} : vector<8x16xf32>, vector<16x8xf32>, vector<8x8xf32> -> vector<8x8xf32>
    %cst_94 = arith.constant dense<0.000000e+00> : vector<8x8xf32>
    %272 = tpu.matmul %262, %2, %cst_94 {dimension_numbers = #tpu.dot_dimension_numbers<[1], [0], [0], [1], [0, 0, 1, 1], [], []>} : vector<8x16xf32>, vector<16x8xf32>, vector<8x8xf32> -> vector<8x8xf32>
    %273 = arith.addf %271, %272 : vector<8x8xf32>
    %274 = vector.broadcast %3 : vector<1x8xf32> to vector<8x8xf32>
    %275 = arith.addf %273, %274 : vector<8x8xf32>
    %276 = vector.shape_cast %275 : vector<8x8xf32> to vector<8x1x8xf32>
    %277 = vector.broadcast %276 : vector<8x1x8xf32> to vector<8x8x8xf32>
    %278 = arith.addf %0, %277 : vector<8x8x8xf32>
    %279 = math.tanh %278 : vector<8x8x8xf32>
    %280 = vector.broadcast %5 : vector<1x1x8xf32> to vector<8x8x8xf32>
    %281 = arith.mulf %279, %280 : vector<8x8x8xf32>
    %cst_95 = arith.constant dense<0.000000e+00> : vector<8x8xf32>
    %282 = vector.multi_reduction <add>, %281, %cst_95 [2] : vector<8x8x8xf32> to vector<8x8xf32>
    %283 = vector.broadcast %6 : vector<1x1xf32> to vector<8x8xf32>
    %284 = arith.addf %282, %283 : vector<8x8xf32>
    %cst_96 = arith.constant dense<0xFF800000> : vector<8xf32>
    %285 = vector.multi_reduction <maximumf>, %284, %cst_96 [1] : vector<8x8xf32> to vector<8xf32>
    %286 = vector.shape_cast %285 : vector<8xf32> to vector<8x1xf32>
    %287 = vector.broadcast %286 : vector<8x1xf32> to vector<8x8xf32>
    %288 = arith.subf %284, %287 : vector<8x8xf32>
    %289 = math.exp %288 : vector<8x8xf32>
    %cst_97 = arith.constant dense<0.000000e+00> : vector<8xf32>
    %290 = vector.multi_reduction <add>, %289, %cst_97 [1] : vector<8x8xf32> to vector<8xf32>
    %291 = vector.shape_cast %290 : vector<8xf32> to vector<8x1xf32>
    %292 = tpu.reciprocal %291 {approx = true} : vector<8x1xf32> -> vector<8x1xf32>
    %293 = vector.broadcast %292 : vector<8x1xf32> to vector<8x8xf32>
    %294 = arith.mulf %289, %293 : vector<8x8xf32>
    %c0_98 = arith.constant 0 : index
    %c5 = arith.constant 5 : index
    %c0_99 = arith.constant 0 : index
    %295 = vector.load %arg2[%c0_98, %c5, %c0_99] : memref<8x8x8xf32, #tpu.memory_space<vmem>>, vector<8x1x8xf32>
    %296 = vector.shape_cast %295 : vector<8x1x8xf32> to vector<8x8xf32>
    %297 = arith.mulf %294, %296 : vector<8x8xf32>
    %298 = tpu.concatenate %297, %264 in 1 : vector<8x8xf32>, vector<8x16xf32> -> vector<8x24xf32>
    %cst_100 = arith.constant dense<0.000000e+00> : vector<8x64xf32>
    %299 = tpu.matmul %298, %7, %cst_100 {dimension_numbers = #tpu.dot_dimension_numbers<[1], [0], [0], [1], [0, 0, 1, 1], [], []>} : vector<8x24xf32>, vector<24x64xf32>, vector<8x64xf32> -> vector<8x64xf32>
    %300 = vector.broadcast %8 : vector<1x64xf32> to vector<8x64xf32>
    %301 = arith.addf %299, %300 : vector<8x64xf32>
    %302 = arith.negf %301 : vector<8x64xf32>
    %303 = math.exp %302 : vector<8x64xf32>
    %cst_101 = arith.constant 1.000000e+00 : f32
    %304 = vector.broadcast %cst_101 : f32 to vector<8x64xf32>
    %305 = arith.addf %304, %303 : vector<8x64xf32>
    %306 = arith.divf %304, %305 : vector<8x64xf32>
    %307 = math.tanh %301 : vector<8x64xf32>
    %308 = vector.extract_strided_slice %306 {offsets = [0, 0], sizes = [8, 16], strides = [1, 1]} : vector<8x64xf32> to vector<8x16xf32>
    %309 = vector.extract_strided_slice %306 {offsets = [0, 16], sizes = [8, 16], strides = [1, 1]} : vector<8x64xf32> to vector<8x16xf32>
    %310 = vector.extract_strided_slice %307 {offsets = [0, 32], sizes = [8, 16], strides = [1, 1]} : vector<8x64xf32> to vector<8x16xf32>
    %311 = vector.extract_strided_slice %306 {offsets = [0, 48], sizes = [8, 16], strides = [1, 1]} : vector<8x64xf32> to vector<8x16xf32>
    %312 = arith.mulf %309, %262 : vector<8x16xf32>
    %313 = arith.mulf %308, %310 : vector<8x16xf32>
    %314 = arith.addf %312, %313 : vector<8x16xf32>
    %315 = math.tanh %314 : vector<8x16xf32>
    %316 = arith.mulf %311, %315 : vector<8x16xf32>
    %c0_102 = arith.constant 0 : index
    %c5_103 = arith.constant 5 : index
    %c0_104 = arith.constant 0 : index
    %317 = vector.load %arg10[%c0_102, %c5_103, %c0_104] : memref<8x8x8xf32, #tpu.memory_space<vmem>>, vector<8x1x8xf32>
    %318 = vector.shape_cast %317 : vector<8x1x8xf32> to vector<8x8xf32>
    %319 = vector.shape_cast %297 : vector<8x8xf32> to vector<8x1x8xf32>
    tpu.vector_store %arg10[%c0_102, %c5_103, %c0_104], %319 {strides = array<i32>} : memref<8x8x8xf32, #tpu.memory_space<vmem>>, vector<8x1x8xf32>,
    %c0_105 = arith.constant 0 : index
    %c5_106 = arith.constant 5 : index
    %c0_107 = arith.constant 0 : index
    %320 = vector.load %arg11[%c0_105, %c5_106, %c0_107] : memref<8x8x16xf32, #tpu.memory_space<vmem>>, vector<8x1x16xf32>
    %321 = vector.shape_cast %320 : vector<8x1x16xf32> to vector<8x16xf32>
    %322 = vector.shape_cast %316 : vector<8x16xf32> to vector<8x1x16xf32>
    tpu.vector_store %arg11[%c0_105, %c5_106, %c0_107], %322 {strides = array<i32>} : memref<8x8x16xf32, #tpu.memory_space<vmem>>, vector<8x1x16xf32>,
    %cst_108 = arith.constant dense<0.000000e+00> : vector<8x8xf32>
    %323 = tpu.matmul %316, %1, %cst_108 {dimension_numbers = #tpu.dot_dimension_numbers<[1], [0], [0], [1], [0, 0, 1, 1], [], []>} : vector<8x16xf32>, vector<16x8xf32>, vector<8x8xf32> -> vector<8x8xf32>
    %cst_109 = arith.constant dense<0.000000e+00> : vector<8x8xf32>
    %324 = tpu.matmul %314, %2, %cst_109 {dimension_numbers = #tpu.dot_dimension_numbers<[1], [0], [0], [1], [0, 0, 1, 1], [], []>} : vector<8x16xf32>, vector<16x8xf32>, vector<8x8xf32> -> vector<8x8xf32>
    %325 = arith.addf %323, %324 : vector<8x8xf32>
    %326 = vector.broadcast %3 : vector<1x8xf32> to vector<8x8xf32>
    %327 = arith.addf %325, %326 : vector<8x8xf32>
    %328 = vector.shape_cast %327 : vector<8x8xf32> to vector<8x1x8xf32>
    %329 = vector.broadcast %328 : vector<8x1x8xf32> to vector<8x8x8xf32>
    %330 = arith.addf %0, %329 : vector<8x8x8xf32>
    %331 = math.tanh %330 : vector<8x8x8xf32>
    %332 = vector.broadcast %5 : vector<1x1x8xf32> to vector<8x8x8xf32>
    %333 = arith.mulf %331, %332 : vector<8x8x8xf32>
    %cst_110 = arith.constant dense<0.000000e+00> : vector<8x8xf32>
    %334 = vector.multi_reduction <add>, %333, %cst_110 [2] : vector<8x8x8xf32> to vector<8x8xf32>
    %335 = vector.broadcast %6 : vector<1x1xf32> to vector<8x8xf32>
    %336 = arith.addf %334, %335 : vector<8x8xf32>
    %cst_111 = arith.constant dense<0xFF800000> : vector<8xf32>
    %337 = vector.multi_reduction <maximumf>, %336, %cst_111 [1] : vector<8x8xf32> to vector<8xf32>
    %338 = vector.shape_cast %337 : vector<8xf32> to vector<8x1xf32>
    %339 = vector.broadcast %338 : vector<8x1xf32> to vector<8x8xf32>
    %340 = arith.subf %336, %339 : vector<8x8xf32>
    %341 = math.exp %340 : vector<8x8xf32>
    %cst_112 = arith.constant dense<0.000000e+00> : vector<8xf32>
    %342 = vector.multi_reduction <add>, %341, %cst_112 [1] : vector<8x8xf32> to vector<8xf32>
    %343 = vector.shape_cast %342 : vector<8xf32> to vector<8x1xf32>
    %344 = tpu.reciprocal %343 {approx = true} : vector<8x1xf32> -> vector<8x1xf32>
    %345 = vector.broadcast %344 : vector<8x1xf32> to vector<8x8xf32>
    %346 = arith.mulf %341, %345 : vector<8x8xf32>
    %c0_113 = arith.constant 0 : index
    %c6 = arith.constant 6 : index
    %c0_114 = arith.constant 0 : index
    %347 = vector.load %arg2[%c0_113, %c6, %c0_114] : memref<8x8x8xf32, #tpu.memory_space<vmem>>, vector<8x1x8xf32>
    %348 = vector.shape_cast %347 : vector<8x1x8xf32> to vector<8x8xf32>
    %349 = arith.mulf %346, %348 : vector<8x8xf32>
    %350 = tpu.concatenate %349, %316 in 1 : vector<8x8xf32>, vector<8x16xf32> -> vector<8x24xf32>
    %cst_115 = arith.constant dense<0.000000e+00> : vector<8x64xf32>
    %351 = tpu.matmul %350, %7, %cst_115 {dimension_numbers = #tpu.dot_dimension_numbers<[1], [0], [0], [1], [0, 0, 1, 1], [], []>} : vector<8x24xf32>, vector<24x64xf32>, vector<8x64xf32> -> vector<8x64xf32>
    %352 = vector.broadcast %8 : vector<1x64xf32> to vector<8x64xf32>
    %353 = arith.addf %351, %352 : vector<8x64xf32>
    %354 = arith.negf %353 : vector<8x64xf32>
    %355 = math.exp %354 : vector<8x64xf32>
    %cst_116 = arith.constant 1.000000e+00 : f32
    %356 = vector.broadcast %cst_116 : f32 to vector<8x64xf32>
    %357 = arith.addf %356, %355 : vector<8x64xf32>
    %358 = arith.divf %356, %357 : vector<8x64xf32>
    %359 = math.tanh %353 : vector<8x64xf32>
    %360 = vector.extract_strided_slice %358 {offsets = [0, 0], sizes = [8, 16], strides = [1, 1]} : vector<8x64xf32> to vector<8x16xf32>
    %361 = vector.extract_strided_slice %358 {offsets = [0, 16], sizes = [8, 16], strides = [1, 1]} : vector<8x64xf32> to vector<8x16xf32>
    %362 = vector.extract_strided_slice %359 {offsets = [0, 32], sizes = [8, 16], strides = [1, 1]} : vector<8x64xf32> to vector<8x16xf32>
    %363 = vector.extract_strided_slice %358 {offsets = [0, 48], sizes = [8, 16], strides = [1, 1]} : vector<8x64xf32> to vector<8x16xf32>
    %364 = arith.mulf %361, %314 : vector<8x16xf32>
    %365 = arith.mulf %360, %362 : vector<8x16xf32>
    %366 = arith.addf %364, %365 : vector<8x16xf32>
    %367 = math.tanh %366 : vector<8x16xf32>
    %368 = arith.mulf %363, %367 : vector<8x16xf32>
    %c0_117 = arith.constant 0 : index
    %c6_118 = arith.constant 6 : index
    %c0_119 = arith.constant 0 : index
    %369 = vector.load %arg10[%c0_117, %c6_118, %c0_119] : memref<8x8x8xf32, #tpu.memory_space<vmem>>, vector<8x1x8xf32>
    %370 = vector.shape_cast %369 : vector<8x1x8xf32> to vector<8x8xf32>
    %371 = vector.shape_cast %349 : vector<8x8xf32> to vector<8x1x8xf32>
    tpu.vector_store %arg10[%c0_117, %c6_118, %c0_119], %371 {strides = array<i32>} : memref<8x8x8xf32, #tpu.memory_space<vmem>>, vector<8x1x8xf32>,
    %c0_120 = arith.constant 0 : index
    %c6_121 = arith.constant 6 : index
    %c0_122 = arith.constant 0 : index
    %372 = vector.load %arg11[%c0_120, %c6_121, %c0_122] : memref<8x8x16xf32, #tpu.memory_space<vmem>>, vector<8x1x16xf32>
    %373 = vector.shape_cast %372 : vector<8x1x16xf32> to vector<8x16xf32>
    %374 = vector.shape_cast %368 : vector<8x16xf32> to vector<8x1x16xf32>
    tpu.vector_store %arg11[%c0_120, %c6_121, %c0_122], %374 {strides = array<i32>} : memref<8x8x16xf32, #tpu.memory_space<vmem>>, vector<8x1x16xf32>,
    %cst_123 = arith.constant dense<0.000000e+00> : vector<8x8xf32>
    %375 = tpu.matmul %368, %1, %cst_123 {dimension_numbers = #tpu.dot_dimension_numbers<[1], [0], [0], [1], [0, 0, 1, 1], [], []>} : vector<8x16xf32>, vector<16x8xf32>, vector<8x8xf32> -> vector<8x8xf32>
    %cst_124 = arith.constant dense<0.000000e+00> : vector<8x8xf32>
    %376 = tpu.matmul %366, %2, %cst_124 {dimension_numbers = #tpu.dot_dimension_numbers<[1], [0], [0], [1], [0, 0, 1, 1], [], []>} : vector<8x16xf32>, vector<16x8xf32>, vector<8x8xf32> -> vector<8x8xf32>
    %377 = arith.addf %375, %376 : vector<8x8xf32>
    %378 = vector.broadcast %3 : vector<1x8xf32> to vector<8x8xf32>
    %379 = arith.addf %377, %378 : vector<8x8xf32>
    %380 = vector.shape_cast %379 : vector<8x8xf32> to vector<8x1x8xf32>
    %381 = vector.broadcast %380 : vector<8x1x8xf32> to vector<8x8x8xf32>
    %382 = arith.addf %0, %381 : vector<8x8x8xf32>
    %383 = math.tanh %382 : vector<8x8x8xf32>
    %384 = vector.broadcast %5 : vector<1x1x8xf32> to vector<8x8x8xf32>
    %385 = arith.mulf %383, %384 : vector<8x8x8xf32>
    %cst_125 = arith.constant dense<0.000000e+00> : vector<8x8xf32>
    %386 = vector.multi_reduction <add>, %385, %cst_125 [2] : vector<8x8x8xf32> to vector<8x8xf32>
    %387 = vector.broadcast %6 : vector<1x1xf32> to vector<8x8xf32>
    %388 = arith.addf %386, %387 : vector<8x8xf32>
    %cst_126 = arith.constant dense<0xFF800000> : vector<8xf32>
    %389 = vector.multi_reduction <maximumf>, %388, %cst_126 [1] : vector<8x8xf32> to vector<8xf32>
    %390 = vector.shape_cast %389 : vector<8xf32> to vector<8x1xf32>
    %391 = vector.broadcast %390 : vector<8x1xf32> to vector<8x8xf32>
    %392 = arith.subf %388, %391 : vector<8x8xf32>
    %393 = math.exp %392 : vector<8x8xf32>
    %cst_127 = arith.constant dense<0.000000e+00> : vector<8xf32>
    %394 = vector.multi_reduction <add>, %393, %cst_127 [1] : vector<8x8xf32> to vector<8xf32>
    %395 = vector.shape_cast %394 : vector<8xf32> to vector<8x1xf32>
    %396 = tpu.reciprocal %395 {approx = true} : vector<8x1xf32> -> vector<8x1xf32>
    %397 = vector.broadcast %396 : vector<8x1xf32> to vector<8x8xf32>
    %398 = arith.mulf %393, %397 : vector<8x8xf32>
    %c0_128 = arith.constant 0 : index
    %c7 = arith.constant 7 : index
    %c0_129 = arith.constant 0 : index
    %399 = vector.load %arg2[%c0_128, %c7, %c0_129] : memref<8x8x8xf32, #tpu.memory_space<vmem>>, vector<8x1x8xf32>
    %400 = vector.shape_cast %399 : vector<8x1x8xf32> to vector<8x8xf32>
    %401 = arith.mulf %398, %400 : vector<8x8xf32>
    %402 = tpu.concatenate %401, %368 in 1 : vector<8x8xf32>, vector<8x16xf32> -> vector<8x24xf32>
    %cst_130 = arith.constant dense<0.000000e+00> : vector<8x64xf32>
    %403 = tpu.matmul %402, %7, %cst_130 {dimension_numbers = #tpu.dot_dimension_numbers<[1], [0], [0], [1], [0, 0, 1, 1], [], []>} : vector<8x24xf32>, vector<24x64xf32>, vector<8x64xf32> -> vector<8x64xf32>
    %404 = vector.broadcast %8 : vector<1x64xf32> to vector<8x64xf32>
    %405 = arith.addf %403, %404 : vector<8x64xf32>
    %406 = arith.negf %405 : vector<8x64xf32>
    %407 = math.exp %406 : vector<8x64xf32>
    %cst_131 = arith.constant 1.000000e+00 : f32
    %408 = vector.broadcast %cst_131 : f32 to vector<8x64xf32>
    %409 = arith.addf %408, %407 : vector<8x64xf32>
    %410 = arith.divf %408, %409 : vector<8x64xf32>
    %411 = math.tanh %405 : vector<8x64xf32>
    %412 = vector.extract_strided_slice %410 {offsets = [0, 0], sizes = [8, 16], strides = [1, 1]} : vector<8x64xf32> to vector<8x16xf32>
    %413 = vector.extract_strided_slice %410 {offsets = [0, 16], sizes = [8, 16], strides = [1, 1]} : vector<8x64xf32> to vector<8x16xf32>
    %414 = vector.extract_strided_slice %411 {offsets = [0, 32], sizes = [8, 16], strides = [1, 1]} : vector<8x64xf32> to vector<8x16xf32>
    %415 = vector.extract_strided_slice %410 {offsets = [0, 48], sizes = [8, 16], strides = [1, 1]} : vector<8x64xf32> to vector<8x16xf32>
    %416 = arith.mulf %413, %366 : vector<8x16xf32>
    %417 = arith.mulf %412, %414 : vector<8x16xf32>
    %418 = arith.addf %416, %417 : vector<8x16xf32>
    %419 = math.tanh %418 : vector<8x16xf32>
    %420 = arith.mulf %415, %419 : vector<8x16xf32>
    %c0_132 = arith.constant 0 : index
    %c7_133 = arith.constant 7 : index
    %c0_134 = arith.constant 0 : index
    %421 = vector.load %arg10[%c0_132, %c7_133, %c0_134] : memref<8x8x8xf32, #tpu.memory_space<vmem>>, vector<8x1x8xf32>
    %422 = vector.shape_cast %421 : vector<8x1x8xf32> to vector<8x8xf32>
    %423 = vector.shape_cast %401 : vector<8x8xf32> to vector<8x1x8xf32>
    tpu.vector_store %arg10[%c0_132, %c7_133, %c0_134], %423 {strides = array<i32>} : memref<8x8x8xf32, #tpu.memory_space<vmem>>, vector<8x1x8xf32>,
    %c0_135 = arith.constant 0 : index
    %c7_136 = arith.constant 7 : index
    %c0_137 = arith.constant 0 : index
    %424 = vector.load %arg11[%c0_135, %c7_136, %c0_137] : memref<8x8x16xf32, #tpu.memory_space<vmem>>, vector<8x1x16xf32>
    %425 = vector.shape_cast %424 : vector<8x1x16xf32> to vector<8x16xf32>
    %426 = vector.shape_cast %420 : vector<8x16xf32> to vector<8x1x16xf32>
    tpu.vector_store %arg11[%c0_135, %c7_136, %c0_137], %426 {strides = array<i32>} : memref<8x8x16xf32, #tpu.memory_space<vmem>>, vector<8x1x16xf32>,
    return
  }
  func.func @transform_0(%arg0: i32) -> (i32, i32, i32) {
    %c0_i32 = arith.constant 0 : i32
    %c0_i32_0 = arith.constant 0 : i32
    %c0_i32_1 = arith.constant 0 : i32
    %c0_i32_2 = arith.constant 0 : i32
    return %c0_i32, %c0_i32_0, %c0_i32_1 : i32, i32, i32
  }
  func.func @transform_1(%arg0: i32) -> (i32, i32, i32) {
    %c0_i32 = arith.constant 0 : i32
    %c0_i32_0 = arith.constant 0 : i32
    %c0_i32_1 = arith.constant 0 : i32
    %c0_i32_2 = arith.constant 0 : i32
    return %c0_i32, %c0_i32_0, %c0_i32_1 : i32, i32, i32
  }
  func.func @transform_2(%arg0: i32) -> (i32, i32) {
    %c0_i32 = arith.constant 0 : i32
    %c0_i32_0 = arith.constant 0 : i32
    %c0_i32_1 = arith.constant 0 : i32
    return %c0_i32, %c0_i32_0 : i32, i32
  }
  func.func @transform_3(%arg0: i32) -> (i32, i32) {
    %c0_i32 = arith.constant 0 : i32
    %c0_i32_0 = arith.constant 0 : i32
    %c0_i32_1 = arith.constant 0 : i32
    return %c0_i32, %c0_i32_0 : i32, i32
  }
  func.func @transform_4(%arg0: i32) -> (i32, i32) {
    %c0_i32 = arith.constant 0 : i32
    %c0_i32_0 = arith.constant 0 : i32
    %c0_i32_1 = arith.constant 0 : i32
    return %c0_i32, %c0_i32_0 : i32, i32
  }
  func.func @transform_5(%arg0: i32) -> (i32, i32) {
    %c0_i32 = arith.constant 0 : i32
    %c0_i32_0 = arith.constant 0 : i32
    %c0_i32_1 = arith.constant 0 : i32
    return %c0_i32, %c0_i32_0 : i32, i32
  }
  func.func @transform_6(%arg0: i32) -> (i32, i32) {
    %c0_i32 = arith.constant 0 : i32
    %c0_i32_0 = arith.constant 0 : i32
    %c0_i32_1 = arith.constant 0 : i32
    return %c0_i32, %c0_i32_0 : i32, i32
  }
  func.func @transform_7(%arg0: i32) -> (i32, i32) {
    %c0_i32 = arith.constant 0 : i32
    %c0_i32_0 = arith.constant 0 : i32
    %c0_i32_1 = arith.constant 0 : i32
    return %c0_i32, %c0_i32_0 : i32, i32
  }
  func.func @transform_8(%arg0: i32) -> (i32, i32) {
    %c0_i32 = arith.constant 0 : i32
    %c0_i32_0 = arith.constant 0 : i32
    %c0_i32_1 = arith.constant 0 : i32
    return %c0_i32, %c0_i32_0 : i32, i32
  }
  func.func @transform_9(%arg0: i32) -> (i32, i32, i32) {
    %c0_i32 = arith.constant 0 : i32
    %c0_i32_0 = arith.constant 0 : i32
    %c0_i32_1 = arith.constant 0 : i32
    %c0_i32_2 = arith.constant 0 : i32
    return %c0_i32, %c0_i32_0, %c0_i32_1 : i32, i32, i32
  }
  func.func @transform_10(%arg0: i32) -> (i32, i32, i32) {
    %c0_i32 = arith.constant 0 : i32
    %c0_i32_0 = arith.constant 0 : i32
    %c0_i32_1 = arith.constant 0 : i32
    %c0_i32_2 = arith.constant 0 : i32
    return %c0_i32, %c0_i32_0, %c0_i32_1 : i32, i32, i32
  }
}

</mosaic_0001>

<llo_original>
// kernel: encoder_forward.1
$region0: #{encoder_forward.1}
  #allocation0 [shape = 'u32[]', space=smem, size = 0x4, offset = 0x4, fixed_abs, tag = 'smem constant byte address 0x4 - core index']
  #allocation1 [shape = 'u32[144,128]{1,0:T(1,128)}', space=vmem, size = 0x12000, scoped, tag = 'internal scratch']
  #allocation2 [shape = 'f32[1,1]{1,0:T(1,128)S(1)}', space=vmem, size = 0x200, scoped, tag = 'scoped memory for encoder_forward.1']
  %s0 = inlined_call_operand.vmem [shape: f32[8,8,8], index: 0, kind: input, shape index: {}]
  %s1 = inlined_call_operand.vmem [shape: f32[8,8,8], index: 1, kind: input, shape index: {}]
  %s2 = inlined_call_operand.vmem [shape: f32[16,8], index: 2, kind: input, shape index: {}]
  %s3 = inlined_call_operand.vmem [shape: f32[16,8], index: 3, kind: input, shape index: {}]
  %s4 = inlined_call_operand.vmem [shape: f32[1,8], index: 4, kind: input, shape index: {}]
  %s5 = inlined_call_operand.vmem [shape: f32[1,8], index: 5, kind: input, shape index: {}]
  %s6 = inlined_call_operand.<no memory space> [shape: f32[1,1], index: 6, kind: input, shape index: {}]
  %s7 = inlined_call_operand.vmem [shape: f32[24,64], index: 7, kind: input, shape index: {}]
  %s8 = inlined_call_operand.vmem [shape: f32[1,64], index: 8, kind: input, shape index: {}]
  %s9 = inlined_call_operand.hbm [shape: f32[8,8,8], index: 9, kind: output, shape index: {0}]
  %s10 = inlined_call_operand.hbm [shape: f32[8,8,16], index: 10, kind: output, shape index: {1}]
  %11 = xla_tuple %s9, %s10
  %s12 = sld [smem:[#allocation0]]
  $region54: #{encoder_forward.1} parent=0
    _
  %s14 = ssub.s32 1, %s12
  %s15 = scalar_select 0, %s14, %s12
  %v16 = vstv %s6
  %17 = vst [vmem:[#allocation2] sm:$0x1] %v16
  $region1: #{encoder_forward.1} parent=0
    #allocation3 [shape = 'u8[32768]{0}', space=vmem, size = 0x8000, scoped, tag = 'output window, operand 0, single buffered']
    #allocation4 [shape = 's32[1]{0}', space=sflag, size = 0x4, scoped, tag = 'scoped memory for encoder_forward.1']
    #allocation5 [shape = 'u8[32768]{0}', space=vmem, size = 0x8000, scoped, tag = 'output window, operand 1, single buffered']
    #allocation6 [shape = 's32[1]{0}', space=sflag, size = 0x4, scoped, tag = 'scoped memory for encoder_forward.1']
    %18 = vsyncpa [#allocation4], 0
    %19 = vsyncpa [#allocation6], 0
    // Predicated region
    $region2: #{encoder_forward.1} parent=1 // pred_check
      _
    $region3: #{encoder_forward.1} parent=1 // pred_check_branch
      %21 = sbr.rel (0) target = $region5
    $region4: #{encoder_forward.1} parent=1 // pred_region
      _
    $region5: #{encoder_forward.1} parent=1 // pred_fallthru
      _
    // Predicated region
    $region6: #{encoder_forward.1} parent=1 // pred_check
      _
    $region7: #{encoder_forward.1} parent=1 // pred_check_branch
      %23 = sbr.rel (0) target = $region9
    $region8: #{encoder_forward.1} parent=1 // pred_region
      _
    $region9: #{encoder_forward.1} parent=1 // pred_fallthru
      _
    // Predicated region
    $region10: #{encoder_forward.1} parent=1 // pred_check
      _
    $region11: #{encoder_forward.1} parent=1 // pred_check_branch
      %25 = sbr.rel (0) target = $region13
    $region12: #{encoder_forward.1} parent=1 // pred_region
      _
    $region13: #{encoder_forward.1} parent=1 // pred_fallthru
      _
    // Predicated region
    $region14: #{encoder_forward.1} parent=1 // pred_check
      _
    $region15: #{encoder_forward.1} parent=1 // pred_check_branch
      %27 = sbr.rel (0) target = $region17
    $region16: #{encoder_forward.1} parent=1 // pred_region
      _
    $region17: #{encoder_forward.1} parent=1 // pred_fallthru
      _
    // Predicated region
    $region18: #{encoder_forward.1} parent=1 // pred_check
      _
    $region19: #{encoder_forward.1} parent=1 // pred_check_branch
      %29 = sbr.rel (0) target = $region21
    $region20: #{encoder_forward.1} parent=1 // pred_region
      _
    $region21: #{encoder_forward.1} parent=1 // pred_fallthru
      _
    // Predicated region
    $region22: #{encoder_forward.1} parent=1 // pred_check
      _
    $region23: #{encoder_forward.1} parent=1 // pred_check_branch
      %31 = sbr.rel (0) target = $region25
    $region24: #{encoder_forward.1} parent=1 // pred_region
      _
    $region25: #{encoder_forward.1} parent=1 // pred_fallthru
      _
    // Predicated region
    $region26: #{encoder_forward.1} parent=1 // pred_check
      _
    $region27: #{encoder_forward.1} parent=1 // pred_check_branch
      %33 = sbr.rel (0) target = $region29
    $region28: #{encoder_forward.1} parent=1 // pred_region
      _
    $region29: #{encoder_forward.1} parent=1 // pred_fallthru
      _
    // Predicated region
    $region30: #{encoder_forward.1} parent=1 // pred_check
      _
    $region31: #{encoder_forward.1} parent=1 // pred_check_branch
      %35 = sbr.rel (0) target = $region33
    $region32: #{encoder_forward.1} parent=1 // pred_region
      _
    $region33: #{encoder_forward.1} parent=1 // pred_fallthru
      _
    // Predicated region
    $region34: #{encoder_forward.1} parent=1 // pred_check
      _
    $region35: #{encoder_forward.1} parent=1 // pred_check_branch
      %37 = sbr.rel (0) target = $region37
    $region36: #{encoder_forward.1} parent=1 // pred_region
      _
    $region37: #{encoder_forward.1} parent=1 // pred_fallthru
      _
    %v38 = vld [vmem:[%s0] sm:$0xff]
    %v39 = vld [vmem:[%s0 + $0x8] sm:$0xff]
    %v40 = vld [vmem:[%s0 + $0x10] sm:$0xff]
    %v41 = vld [vmem:[%s0 + $0x18] sm:$0xff]
    %v42 = vld [vmem:[%s0 + $0x20] sm:$0xff]
    %v43 = vld [vmem:[%s0 + $0x28] sm:$0xff]
    %v44 = vld [vmem:[%s0 + $0x30] sm:$0xff]
    %v45 = vld [vmem:[%s0 + $0x38] sm:$0xff]
    %v46 = vld [vmem:[%s2] sm:$0xff]
    %v47 = vld [vmem:[%s2 + $0x8] sm:$0xff]
    %v48 = vld [vmem:[%s3] sm:$0xff]
    %v49 = vld [vmem:[%s3 + $0x8] sm:$0xff]
    %v50 = vld [vmem:[%s4] sm:$0x1]
    %v51 = vld [vmem:[%s5] sm:$0x1]
    %v52 = vld [vmem:[#allocation2] sm:$0x1]
    %v53 = vld [vmem:[%s7] sm:$0xff]
    %v54 = vld [vmem:[%s7 + $0x8] sm:$0xff]
    %v55 = vld [vmem:[%s7 + $0x10] sm:$0xff]
    %v56 = vld [vmem:[%s8] sm:$0x1]
    %vm57 = vcmask 130048
    %v59 = vsel %vm57, 0.0, 0
    %61 = vmatprep.subr.mxu0 0.0
    %62 = vmatpush1.msra.mxu0 %v48
    %63 = vmatprep.subr.mxu0 0.0
    %64 = vmatpush1.msra.mxu0 %v49
    %65 = vmatprep.subr.mxu0 0.0
    %66 = vmatpush1.msra.mxu0 0.0
    %67 = vmatprep.subr.mxu0 0.0
    %68 = vmatpush1.msra.mxu0 0.0
    %69 = vmatprep.subr.mxu0 0.0
    %70 = vmatpush1.msra.mxu0 0.0
    %71 = vmatprep.subr.mxu0 0.0
    %72 = vmatpush1.msra.mxu0 0.0
    %73 = vmatprep.subr.mxu0 0.0
    %74 = vmatpush1.msra.mxu0 0.0
    %75 = vmatprep.subr.mxu0 0.0
    %76 = vmatpush1.msra.mxu0 0.0
    %77 = vmatprep.subr.mxu0 0.0
    %78 = vmatpush1.msra.mxu0 0.0
    %79 = vmatprep.subr.mxu0 0.0
    %80 = vmatpush1.msra.mxu0 0.0
    %81 = vmatprep.subr.mxu0 0.0
    %82 = vmatpush1.msra.mxu0 0.0
    %83 = vmatprep.subr.mxu0 0.0
    %84 = vmatpush1.msra.mxu0 0.0
    %85 = vmatprep.subr.mxu0 0.0
    %86 = vmatpush1.msra.mxu0 0.0
    %87 = vmatprep.subr.mxu0 0.0
    %88 = vmatpush1.msra.mxu0 0.0
    %89 = vmatprep.subr.mxu0 0.0
    %90 = vmatpush1.msra.mxu0 0.0
    %91 = vmatprep.subr.mxu0 0.0
    %92 = vmatpush1.msra.mxu0 0.0
    %93 = vmatprep.subr.mxu0 0.0
    %94 = vmatpush1.msra.mxu0 0.0
    %95 = vmatprep.subr.mxu0 0.0
    %96 = vmatpush1.msra.mxu0 0.0
    %97 = vmatprep.subr.mxu0 0.0
    %98 = vmatpush1.msra.mxu0 0.0
    %99 = vmatprep.subr.mxu0 0.0
    %100 = vmatpush1.msra.mxu0 0.0
    %101 = vmatprep.subr.mxu0 0.0
    %102 = vmatpush1.msra.mxu0 0.0
    %103 = vmatprep.subr.mxu0 0.0
    %104 = vmatpush1.msra.mxu0 0.0
    %105 = vmatprep.subr.mxu0 0.0
    %106 = vmatpush1.msra.mxu0 0.0
    %107 = vmatprep.subr.mxu0 0.0
    %108 = vmatpush1.msra.mxu0 0.0
    %109 = vmatprep.subr.mxu0 0.0
    %110 = vmatpush1.msra.mxu0 0.0
    %111 = vmatprep.subr.mxu0 0.0
    %112 = vmatpush1.msra.mxu0 0.0
    %113 = vmatprep.subr.mxu0 0.0
    %114 = vmatpush1.msra.mxu0 0.0
    %115 = vmatprep.subr.mxu0 0.0
    %116 = vmatpush1.msra.mxu0 0.0
    %117 = vmatprep.subr.mxu0 0.0
    %118 = vmatpush1.msra.mxu0 0.0
    %119 = vmatprep.subr.mxu0 0.0
    %120 = vmatpush1.msra.mxu0 0.0
    %121 = vmatprep.subr.mxu0 0.0
    %122 = vmatpush1.msra.mxu0 0.0
    %123 = vmatprep.subr.mxu0 0.0
    %124 = vmatpush1.msra.mxu0 0.0
    %125 = vmatprep.mubr.f32.mxu0 0.0
    %126 = vmatmul.mubr.f32.gmra.mrb[0].mxu0 %v59
    %v127 = vpop.f32.mrb[0].mxu0
    %v128 = vadd.f32 0.0, %v127
    %v129 = vpop.f32.mrb[0].mxu0
    %130 = vdwg.mxu0
    %131 = vmatprep.subr.mxu0 0.0
    %132 = vmatpush1.msra.mxu0 %v46
    %133 = vmatprep.subr.mxu0 0.0
    %134 = vmatpush1.msra.mxu0 %v47
    %135 = vmatprep.subr.mxu0 0.0
    %136 = vmatpush1.msra.mxu0 0.0
    %137 = vmatprep.subr.mxu0 0.0
    %138 = vmatpush1.msra.mxu0 0.0
    %139 = vmatprep.subr.mxu0 0.0
    %140 = vmatpush1.msra.mxu0 0.0
    %141 = vmatprep.subr.mxu0 0.0
    %142 = vmatpush1.msra.mxu0 0.0
    %143 = vmatprep.subr.mxu0 0.0
    %144 = vmatpush1.msra.mxu0 0.0
    %145 = vmatprep.subr.mxu0 0.0
    %146 = vmatpush1.msra.mxu0 0.0
    %147 = vmatprep.subr.mxu0 0.0
    %148 = vmatpush1.msra.mxu0 0.0
    %149 = vmatprep.subr.mxu0 0.0
    %150 = vmatpush1.msra.mxu0 0.0
    %151 = vmatprep.subr.mxu0 0.0
    %152 = vmatpush1.msra.mxu0 0.0
    %153 = vmatprep.subr.mxu0 0.0
    %154 = vmatpush1.msra.mxu0 0.0
    %155 = vmatprep.subr.mxu0 0.0
    %156 = vmatpush1.msra.mxu0 0.0
    %157 = vmatprep.subr.mxu0 0.0
    %158 = vmatpush1.msra.mxu0 0.0
    %159 = vmatprep.subr.mxu0 0.0
    %160 = vmatpush1.msra.mxu0 0.0
    %161 = vmatprep.subr.mxu0 0.0
    %162 = vmatpush1.msra.mxu0 0.0
    %163 = vmatprep.subr.mxu0 0.0
    %164 = vmatpush1.msra.mxu0 0.0
    %165 = vmatprep.subr.mxu0 0.0
    %166 = vmatpush1.msra.mxu0 0.0
    %167 = vmatprep.subr.mxu0 0.0
    %168 = vmatpush1.msra.mxu0 0.0
    %169 = vmatprep.subr.mxu0 0.0
    %170 = vmatpush1.msra.mxu0 0.0
    %171 = vmatprep.subr.mxu0 0.0
    %172 = vmatpush1.msra.mxu0 0.0
    %173 = vmatprep.subr.mxu0 0.0
    %174 = vmatpush1.msra.mxu0 0.0
    %175 = vmatprep.subr.mxu0 0.0
    %176 = vmatpush1.msra.mxu0 0.0
    %177 = vmatprep.subr.mxu0 0.0
    %178 = vmatpush1.msra.mxu0 0.0
    %179 = vmatprep.subr.mxu0 0.0
    %180 = vmatpush1.msra.mxu0 0.0
    %181 = vmatprep.subr.mxu0 0.0
    %182 = vmatpush1.msra.mxu0 0.0
    %183 = vmatprep.subr.mxu0 0.0
    %184 = vmatpush1.msra.mxu0 0.0
    %185 = vmatprep.subr.mxu0 0.0
    %186 = vmatpush1.msra.mxu0 0.0
    %187 = vmatprep.subr.mxu0 0.0
    %188 = vmatpush1.msra.mxu0 0.0
    %189 = vmatprep.subr.mxu0 0.0
    %190 = vmatpush1.msra.mxu0 0.0
    %191 = vmatprep.subr.mxu0 0.0
    %192 = vmatpush1.msra.mxu0 0.0
    %193 = vmatprep.subr.mxu0 0.0
    %194 = vmatpush1.msra.mxu0 0.0
    %195 = vmatprep.mubr.f32.mxu0 0.0
    %196 = vmatmul.mubr.f32.gmra.mrb[0].mxu0 %v59
    %v197 = vpop.f32.mrb[0].mxu0
    %v198 = vadd.f32 %v128, %v197
    %v199 = vpop.f32.mrb[0].mxu0
    %200 = vdwg.mxu0
    %v202 = vlaneseq
    %v203 = vshrl.u32 %v202, 7
    %v204 = vsub.s32 0, %v203
    %v205 = vrot.slane %v50, %v204
    %v207 = vadd.f32 %v198, %v205
    %v209 = vcombine.high %v207, %v207
    %v211 = vunpack.c.l.s4 1966171168
    %v212 = vunpack.c.0.s8 %v211
    %v213 = vlaneseq
    %v214 = vshrl.u32 %v213, 7
    %v215 = vsub.s32 %v212, %v214
    %v216 = vrot.slane %v207, %v215
    %v218 = vunpack.c.l.s4 1966171168
    %v219 = vunpack.c.0.s8 %v218
    %v220 = vlaneseq
    %v221 = vshrl.u32 %v220, 7
    %v222 = vsub.s32 %v219, %v221
    %v223 = vrot.slane %v209, %v222
    %v224 = vcombine.high %v216, %v216
    %v225 = vcombine.high %v223, %v223
    %v227 = vunpack.c.l.s4 1966171168
    %v228 = vunpack.c.0.s8 %v227
    %v229 = vlaneseq
    %v230 = vshrl.u32 %v229, 7
    %v231 = vsub.s32 %v228, %v230
    %v232 = vrot.slane %v216, %v231
    %v234 = vunpack.c.l.s4 1966171168
    %v235 = vunpack.c.0.s8 %v234
    %v236 = vlaneseq
    %v237 = vshrl.u32 %v236, 7
    %v238 = vsub.s32 %v235, %v237
    %v239 = vrot.slane %v223, %v238
    %v241 = vunpack.c.l.s4 1966171168
    %v242 = vunpack.c.0.s8 %v241
    %v243 = vlaneseq
    %v244 = vshrl.u32 %v243, 7
    %v245 = vsub.s32 %v242, %v244
    %v246 = vrot.slane %v224, %v245
    %v248 = vunpack.c.l.s4 1966171168
    %v249 = vunpack.c.0.s8 %v248
    %v250 = vlaneseq
    %v251 = vshrl.u32 %v250, 7
    %v252 = vsub.s32 %v249, %v251
    %v253 = vrot.slane %v225, %v252
    %v254 = vcombine.high %v232, %v232
    %v255 = vcombine.high %v239, %v239
    %v256 = vcombine.high %v246, %v246
    %v257 = vcombine.high %v253, %v253
    %v258 = vlaneseq
    %v259 = vshrl.u32 %v258, 7
    %v260 = vsub.s32 0, %v259
    %v261 = vrot.slane %v232, %v260
    %v262 = vlaneseq
    %v263 = vshrl.u32 %v262, 7
    %v264 = vsub.s32 0, %v263
    %v265 = vrot.slane %v246, %v264
    %v266 = vlaneseq
    %v267 = vshrl.u32 %v266, 7
    %v268 = vsub.s32 0, %v267
    %v269 = vrot.slane %v254, %v268
    %v270 = vlaneseq
    %v271 = vshrl.u32 %v270, 7
    %v272 = vsub.s32 0, %v271
    %v273 = vrot.slane %v256, %v272
    %v274 = vlaneseq
    %v275 = vshrl.u32 %v274, 7
    %v276 = vsub.s32 0, %v275
    %v277 = vrot.slane %v239, %v276
    %v278 = vlaneseq
    %v279 = vshrl.u32 %v278, 7
    %v280 = vsub.s32 0, %v279
    %v281 = vrot.slane %v253, %v280
    %v282 = vlaneseq
    %v283 = vshrl.u32 %v282, 7
    %v284 = vsub.s32 0, %v283
    %v285 = vrot.slane %v255, %v284
    %v286 = vlaneseq
    %v287 = vshrl.u32 %v286, 7
    %v288 = vsub.s32 0, %v287
    %v289 = vrot.slane %v257, %v288
    %v298 = vadd.f32 %v38, %v261
    %v299 = vadd.f32 %v39, %v265
    %v300 = vadd.f32 %v40, %v269
    %v301 = vadd.f32 %v41, %v273
    %v302 = vadd.f32 %v42, %v277
    %v303 = vadd.f32 %v43, %v281
    %v304 = vadd.f32 %v44, %v285
    %v305 = vadd.f32 %v45, %v289
    %v306 = vtanh.pop %v298
    %v307 = vtanh.pop %v299
    %v308 = vtanh.pop %v300
    %v309 = vtanh.pop %v301
    %v310 = vtanh.pop %v302
    %v311 = vtanh.pop %v303
    %v312 = vtanh.pop %v304
    %v313 = vtanh.pop %v305
    %v315 = vlaneseq
    %v316 = vshrl.u32 %v315, 7
    %v317 = vsub.s32 0, %v316
    %v318 = vrot.slane %v51, %v317
    %v320 = vmul.f32 %v306, %v318
    %v321 = vmul.f32 %v307, %v318
    %v322 = vmul.f32 %v308, %v318
    %v323 = vmul.f32 %v309, %v318
    %v324 = vmul.f32 %v310, %v318
    %v325 = vmul.f32 %v311, %v318
    %v326 = vmul.f32 %v312, %v318
    %v327 = vmul.f32 %v313, %v318
    %vm328 = vcmask 64512
    %v329 = vsel %vm328, %v320, 0.0
    %330 = vadd.xlane.f32.xlu0 %v329
    %v331 = vpop.xlane.xlu0 %330
    %v332 = vsel %vm328, %v321, 0.0
    %333 = vadd.xlane.f32.xlu0 %v332
    %v334 = vpop.xlane.xlu0 %333
    %v335 = vsel %vm328, %v322, 0.0
    %336 = vadd.xlane.f32.xlu0 %v335
    %v337 = vpop.xlane.xlu0 %336
    %v338 = vsel %vm328, %v323, 0.0
    %339 = vadd.xlane.f32.xlu0 %v338
    %v340 = vpop.xlane.xlu0 %339
    %v341 = vsel %vm328, %v324, 0.0
    %342 = vadd.xlane.f32.xlu0 %v341
    %v343 = vpop.xlane.xlu0 %342
    %v344 = vsel %vm328, %v325, 0.0
    %345 = vadd.xlane.f32.xlu0 %v344
    %v346 = vpop.xlane.xlu0 %345
    %v347 = vsel %vm328, %v326, 0.0
    %348 = vadd.xlane.f32.xlu0 %v347
    %v349 = vpop.xlane.xlu0 %348
    %v350 = vsel %vm328, %v327, 0.0
    %351 = vadd.xlane.f32.xlu0 %v350
    %v352 = vpop.xlane.xlu0 %351
    %v354 = vlaneseq
    %v355 = vshrl.u32 %v354, 7
    %v356 = vsub.s32 0, %v355
    %v357 = vrot.slane %v52, %v356
    %358 = vset.pattern.permute.xlu0 0
    %359 = vperm.xlu0 %358, %v357
    %v360 = vpop.permute.xlu0 %359
    %v362 = vadd.f32 %v331, %v360
    %v363 = vadd.f32 %v334, %v360
    %v364 = vadd.f32 %v337, %v360
    %v365 = vadd.f32 %v340, %v360
    %v366 = vadd.f32 %v343, %v360
    %v367 = vadd.f32 %v346, %v360
    %v368 = vadd.f32 %v349, %v360
    %v369 = vadd.f32 %v352, %v360
    %v378 = vlaneseq
    %v379 = vand.u32 %v378, 127
    %v380 = vlaneseq
    %v381 = vshrl.u32 %v380, 7
    %v382 = vsub.s32 %v379, %v381
    %v383 = vrot.slane %v362, %v382
    %v384 = vlaneseq
    %v385 = vshrl.u32 %v384, 7
    %v386 = vsub.s32 %v379, %v385
    %v387 = vrot.slane %v363, %v386
    %v388 = vlaneseq
    %v389 = vshrl.u32 %v388, 7
    %v390 = vsub.s32 %v379, %v389
    %v391 = vrot.slane %v364, %v390
    %v392 = vlaneseq
    %v393 = vshrl.u32 %v392, 7
    %v394 = vsub.s32 %v379, %v393
    %v395 = vrot.slane %v365, %v394
    %v396 = vlaneseq
    %v397 = vshrl.u32 %v396, 7
    %v398 = vsub.s32 %v379, %v397
    %v399 = vrot.slane %v366, %v398
    %v400 = vlaneseq
    %v401 = vshrl.u32 %v400, 7
    %v402 = vsub.s32 %v379, %v401
    %v403 = vrot.slane %v367, %v402
    %v404 = vlaneseq
    %v405 = vshrl.u32 %v404, 7
    %v406 = vsub.s32 %v379, %v405
    %v407 = vrot.slane %v368, %v406
    %v408 = vlaneseq
    %v409 = vshrl.u32 %v408, 7
    %v410 = vsub.s32 %v379, %v409
    %v411 = vrot.slane %v369, %v410
    %vm412 = vcmask 1041409
    %v413 = vsel %vm412, %v387, %v383
    %vm414 = vcmask 1042434
    %v415 = vsel %vm414, %v391, %v413
    %vm416 = vcmask 1043459
    %v417 = vsel %vm416, %v395, %v415
    %vm418 = vcmask 1044484
    %v419 = vsel %vm418, %v399, %v417
    %vm420 = vcmask 1045509
    %v421 = vsel %vm420, %v403, %v419
    %vm422 = vcmask 1046534
    %v423 = vsel %vm422, %v407, %v421
    %vm424 = vcmask 1047559
    %v425 = vsel %vm424, %v411, %v423
    %v427 = vsel %vm328, %v425, -inf
    %428 = vmax.xlane.f32.xlu0 %v427
    %v429 = vpop.xlane.xlu0 %428
    %v431 = vlaneseq
    %v432 = vshrl.u32 %v431, 7
    %v433 = vsub.s32 0, %v432
    %v434 = vrot.slane %v429, %v433
    %v435 = vlaneseq
    %v436 = vshrl.u32 %v435, 7
    %v437 = vsub.s32 1, %v436
    %v438 = vrot.slane %v429, %v437
    %v439 = vlaneseq
    %v440 = vshrl.u32 %v439, 7
    %v441 = vsub.s32 2, %v440
    %v442 = vrot.slane %v429, %v441
    %v443 = vlaneseq
    %v444 = vshrl.u32 %v443, 7
    %v445 = vsub.s32 3, %v444
    %v446 = vrot.slane %v429, %v445
    %v447 = vlaneseq
    %v448 = vshrl.u32 %v447, 7
    %v449 = vsub.s32 4, %v448
    %v450 = vrot.slane %v429, %v449
    %v451 = vlaneseq
    %v452 = vshrl.u32 %v451, 7
    %v453 = vsub.s32 5, %v452
    %v454 = vrot.slane %v429, %v453
    %v455 = vlaneseq
    %v456 = vshrl.u32 %v455, 7
    %v457 = vsub.s32 6, %v456
    %v458 = vrot.slane %v429, %v457
    %v459 = vlaneseq
    %v460 = vshrl.u32 %v459, 7
    %v461 = vsub.s32 7, %v460
    %v462 = vrot.slane %v429, %v461
    %v471 = vsub.f32 %v362, %v434
    %v472 = vsub.f32 %v363, %v438
    %v473 = vsub.f32 %v364, %v442
    %v474 = vsub.f32 %v365, %v446
    %v475 = vsub.f32 %v366, %v450
    %v476 = vsub.f32 %v367, %v454
    %v477 = vsub.f32 %v368, %v458
    %v478 = vsub.f32 %v369, %v462
    %v479 = vmul.f32 %v471, 1.442695
    %v480 = vpow.pop %v479
    %v481 = vmul.f32 %v472, 1.442695
    %v482 = vpow.pop %v481
    %v483 = vmul.f32 %v473, 1.442695
    %v484 = vpow.pop %v483
    %v485 = vmul.f32 %v474, 1.442695
    %v486 = vpow.pop %v485
    %v487 = vmul.f32 %v475, 1.442695
    %v488 = vpow.pop %v487
    %v489 = vmul.f32 %v476, 1.442695
    %v490 = vpow.pop %v489
    %v491 = vmul.f32 %v477, 1.442695
    %v492 = vpow.pop %v491
    %v493 = vmul.f32 %v478, 1.442695
    %v494 = vpow.pop %v493
    %503 = vset.pattern.permute.xlu0 0
    %504 = vperm.xlu0 %503, %v480
    %v505 = vpop.permute.xlu0 %504
    %506 = vset.pattern.permute.xlu0 0
    %507 = vperm.xlu0 %506, %v482
    %v508 = vpop.permute.xlu0 %507
    %509 = vset.pattern.permute.xlu0 0
    %510 = vperm.xlu0 %509, %v484
    %v511 = vpop.permute.xlu0 %510
    %512 = vset.pattern.permute.xlu0 0
    %513 = vperm.xlu0 %512, %v486
    %v514 = vpop.permute.xlu0 %513
    %515 = vset.pattern.permute.xlu0 0
    %516 = vperm.xlu0 %515, %v488
    %v517 = vpop.permute.xlu0 %516
    %518 = vset.pattern.permute.xlu0 0
    %519 = vperm.xlu0 %518, %v490
    %v520 = vpop.permute.xlu0 %519
    %521 = vset.pattern.permute.xlu0 0
    %522 = vperm.xlu0 %521, %v492
    %v523 = vpop.permute.xlu0 %522
    %524 = vset.pattern.permute.xlu0 0
    %525 = vperm.xlu0 %524, %v494
    %v526 = vpop.permute.xlu0 %525
    %v527 = vlaneseq
    %v528 = vshrl.u32 %v527, 7
    %v529 = vsub.s32 %v379, %v528
    %v530 = vrot.slane %v505, %v529
    %v531 = vlaneseq
    %v532 = vshrl.u32 %v531, 7
    %v533 = vsub.s32 %v379, %v532
    %v534 = vrot.slane %v508, %v533
    %v535 = vlaneseq
    %v536 = vshrl.u32 %v535, 7
    %v537 = vsub.s32 %v379, %v536
    %v538 = vrot.slane %v511, %v537
    %v539 = vlaneseq
    %v540 = vshrl.u32 %v539, 7
    %v541 = vsub.s32 %v379, %v540
    %v542 = vrot.slane %v514, %v541
    %v543 = vlaneseq
    %v544 = vshrl.u32 %v543, 7
    %v545 = vsub.s32 %v379, %v544
    %v546 = vrot.slane %v517, %v545
    %v547 = vlaneseq
    %v548 = vshrl.u32 %v547, 7
    %v549 = vsub.s32 %v379, %v548
    %v550 = vrot.slane %v520, %v549
    %v551 = vlaneseq
    %v552 = vshrl.u32 %v551, 7
    %v553 = vsub.s32 %v379, %v552
    %v554 = vrot.slane %v523, %v553
    %v555 = vlaneseq
    %v556 = vshrl.u32 %v555, 7
    %v557 = vsub.s32 %v379, %v556
    %v558 = vrot.slane %v526, %v557
    %v559 = vsel %vm412, %v534, %v530
    %v560 = vsel %vm414, %v538, %v559
    %v561 = vsel %vm416, %v542, %v560
    %v562 = vsel %vm418, %v546, %v561
    %v563 = vsel %vm420, %v550, %v562
    %v564 = vsel %vm422, %v554, %v563
    %v565 = vsel %vm424, %v558, %v564
    %v567 = vsel %vm328, %v565, 0.0
    %568 = vadd.xlane.f32.xlu0 %v567
    %v569 = vpop.xlane.xlu0 %568
    %v570 = vrcp.pop %v569
    %v572 = vlaneseq
    %v573 = vshrl.u32 %v572, 7
    %v574 = vsub.s32 0, %v573
    %v575 = vrot.slane %v570, %v574
    %v576 = vlaneseq
    %v577 = vshrl.u32 %v576, 7
    %v578 = vsub.s32 1, %v577
    %v579 = vrot.slane %v570, %v578
    %v580 = vlaneseq
    %v581 = vshrl.u32 %v580, 7
    %v582 = vsub.s32 2, %v581
    %v583 = vrot.slane %v570, %v582
    %v584 = vlaneseq
    %v585 = vshrl.u32 %v584, 7
    %v586 = vsub.s32 3, %v585
    %v587 = vrot.slane %v570, %v586
    %v588 = vlaneseq
    %v589 = vshrl.u32 %v588, 7
    %v590 = vsub.s32 4, %v589
    %v591 = vrot.slane %v570, %v590
    %v592 = vlaneseq
    %v593 = vshrl.u32 %v592, 7
    %v594 = vsub.s32 5, %v593
    %v595 = vrot.slane %v570, %v594
    %v596 = vlaneseq
    %v597 = vshrl.u32 %v596, 7
    %v598 = vsub.s32 6, %v597
    %v599 = vrot.slane %v570, %v598
    %v600 = vlaneseq
    %v601 = vshrl.u32 %v600, 7
    %v602 = vsub.s32 7, %v601
    %v603 = vrot.slane %v570, %v602
    %v612 = vmul.f32 %v480, %v575
    %v613 = vmul.f32 %v482, %v579
    %v614 = vmul.f32 %v484, %v583
    %v615 = vmul.f32 %v486, %v587
    %v616 = vmul.f32 %v488, %v591
    %v617 = vmul.f32 %v490, %v595
    %v618 = vmul.f32 %v492, %v599
    %v619 = vmul.f32 %v494, %v603
    %v620 = vld [vmem:[%s1] sm:$0x1]
    %v621 = vld [vmem:[%s1 + $0x8] sm:$0x1]
    %v622 = vld [vmem:[%s1 + $0x10] sm:$0x1]
    %v623 = vld [vmem:[%s1 + $0x18] sm:$0x1]
    %v624 = vld [vmem:[%s1 + $0x20] sm:$0x1]
    %v625 = vld [vmem:[%s1 + $0x28] sm:$0x1]
    %v626 = vld [vmem:[%s1 + $0x30] sm:$0x1]
    %v627 = vld [vmem:[%s1 + $0x38] sm:$0x1]
    %v636 = vlaneseq
    %v637 = vshrl.u32 %v636, 7
    %v638 = vsub.s32 0, %v637
    %v639 = vrot.slane %v620, %v638
    %641 = vbcast.lane.b32.xlu0 %v639, 256
    %v642 = vpop.permute.xlu0 %641
    %v643 = vlaneseq
    %v644 = vshrl.u32 %v643, 7
    %v645 = vsub.s32 0, %v644
    %v646 = vrot.slane %v621, %v645
    %648 = vbcast.lane.b32.xlu0 %v646, 256
    %v649 = vpop.permute.xlu0 %648
    %v650 = vlaneseq
    %v651 = vshrl.u32 %v650, 7
    %v652 = vsub.s32 0, %v651
    %v653 = vrot.slane %v622, %v652
    %655 = vbcast.lane.b32.xlu0 %v653, 256
    %v656 = vpop.permute.xlu0 %655
    %v657 = vlaneseq
    %v658 = vshrl.u32 %v657, 7
    %v659 = vsub.s32 0, %v658
    %v660 = vrot.slane %v623, %v659
    %662 = vbcast.lane.b32.xlu0 %v660, 256
    %v663 = vpop.permute.xlu0 %662
    %v664 = vlaneseq
    %v665 = vshrl.u32 %v664, 7
    %v666 = vsub.s32 0, %v665
    %v667 = vrot.slane %v624, %v666
    %669 = vbcast.lane.b32.xlu0 %v667, 256
    %v670 = vpop.permute.xlu0 %669
    %v671 = vlaneseq
    %v672 = vshrl.u32 %v671, 7
    %v673 = vsub.s32 0, %v672
    %v674 = vrot.slane %v625, %v673
    %676 = vbcast.lane.b32.xlu0 %v674, 256
    %v677 = vpop.permute.xlu0 %676
    %v678 = vlaneseq
    %v679 = vshrl.u32 %v678, 7
    %v680 = vsub.s32 0, %v679
    %v681 = vrot.slane %v626, %v680
    %683 = vbcast.lane.b32.xlu0 %v681, 256
    %v684 = vpop.permute.xlu0 %683
    %v685 = vlaneseq
    %v686 = vshrl.u32 %v685, 7
    %v687 = vsub.s32 0, %v686
    %v688 = vrot.slane %v627, %v687
    %690 = vbcast.lane.b32.xlu0 %v688, 256
    %v691 = vpop.permute.xlu0 %690
    %v700 = vmul.f32 %v612, %v642
    %v701 = vmul.f32 %v613, %v649
    %v702 = vmul.f32 %v614, %v656
    %v703 = vmul.f32 %v615, %v663
    %v704 = vmul.f32 %v616, %v670
    %v705 = vmul.f32 %v617, %v677
    %v706 = vmul.f32 %v618, %v684
    %v707 = vmul.f32 %v619, %v691
    %716 = vset.pattern.permute.xlu0 0
    %717 = vperm.xlu0 %716, %v700
    %v718 = vpop.permute.xlu0 %717
    %719 = vset.pattern.permute.xlu0 0
    %720 = vperm.xlu0 %719, %v701
    %v721 = vpop.permute.xlu0 %720
    %722 = vset.pattern.permute.xlu0 0
    %723 = vperm.xlu0 %722, %v702
    %v724 = vpop.permute.xlu0 %723
    %725 = vset.pattern.permute.xlu0 0
    %726 = vperm.xlu0 %725, %v703
    %v727 = vpop.permute.xlu0 %726
    %728 = vset.pattern.permute.xlu0 0
    %729 = vperm.xlu0 %728, %v704
    %v730 = vpop.permute.xlu0 %729
    %731 = vset.pattern.permute.xlu0 0
    %732 = vperm.xlu0 %731, %v705
    %v733 = vpop.permute.xlu0 %732
    %734 = vset.pattern.permute.xlu0 0
    %735 = vperm.xlu0 %734, %v706
    %v736 = vpop.permute.xlu0 %735
    %737 = vset.pattern.permute.xlu0 0
    %738 = vperm.xlu0 %737, %v707
    %v739 = vpop.permute.xlu0 %738
    %v740 = vlaneseq
    %v741 = vshrl.u32 %v740, 7
    %v742 = vsub.s32 %v379, %v741
    %v743 = vrot.slane %v718, %v742
    %v744 = vlaneseq
    %v745 = vshrl.u32 %v744, 7
    %v746 = vsub.s32 %v379, %v745
    %v747 = vrot.slane %v721, %v746
    %v748 = vlaneseq
    %v749 = vshrl.u32 %v748, 7
    %v750 = vsub.s32 %v379, %v749
    %v751 = vrot.slane %v724, %v750
    %v752 = vlaneseq
    %v753 = vshrl.u32 %v752, 7
    %v754 = vsub.s32 %v379, %v753
    %v755 = vrot.slane %v727, %v754
    %v756 = vlaneseq
    %v757 = vshrl.u32 %v756, 7
    %v758 = vsub.s32 %v379, %v757
    %v759 = vrot.slane %v730, %v758
    %v760 = vlaneseq
    %v761 = vshrl.u32 %v760, 7
    %v762 = vsub.s32 %v379, %v761
    %v763 = vrot.slane %v733, %v762
    %v764 = vlaneseq
    %v765 = vshrl.u32 %v764, 7
    %v766 = vsub.s32 %v379, %v765
    %v767 = vrot.slane %v736, %v766
    %v768 = vlaneseq
    %v769 = vshrl.u32 %v768, 7
    %v770 = vsub.s32 %v379, %v769
    %v771 = vrot.slane %v739, %v770
    %v772 = vsel %vm412, %v747, %v743
    %v773 = vsel %vm414, %v751, %v772
    %v774 = vsel %vm416, %v755, %v773
    %v775 = vsel %vm418, %v759, %v774
    %v776 = vsel %vm420, %v763, %v775
    %v777 = vsel %vm422, %v767, %v776
    %v778 = vsel %vm424, %v771, %v777
    %v780 = vsel %vm328, %v778, 0.0
    %v782 = vlaneseq
    %v783 = vshrl.u32 %v782, 7
    %v784 = vsub.s32 0, %v783
    %v785 = vrot.slane %v56, %v784
    %vm787 = vcmask 195584
    %v789 = vsel %vm787, %v780, 0
    %791 = vmatprep.subr.mxu0 0.0
    %792 = vmatpush1.msra.mxu0 %v53
    %793 = vmatprep.subr.mxu0 0.0
    %794 = vmatpush1.msra.mxu0 %v54
    %795 = vmatprep.subr.mxu0 0.0
    %796 = vmatpush1.msra.mxu0 %v55
    %797 = vmatprep.subr.mxu0 0.0
    %798 = vmatpush1.msra.mxu0 0.0
    %799 = vmatprep.subr.mxu0 0.0
    %800 = vmatpush1.msra.mxu0 0.0
    %801 = vmatprep.subr.mxu0 0.0
    %802 = vmatpush1.msra.mxu0 0.0
    %803 = vmatprep.subr.mxu0 0.0
    %804 = vmatpush1.msra.mxu0 0.0
    %805 = vmatprep.subr.mxu0 0.0
    %806 = vmatpush1.msra.mxu0 0.0
    %807 = vmatprep.subr.mxu0 0.0
    %808 = vmatpush1.msra.mxu0 0.0
    %809 = vmatprep.subr.mxu0 0.0
    %810 = vmatpush1.msra.mxu0 0.0
    %811 = vmatprep.subr.mxu0 0.0
    %812 = vmatpush1.msra.mxu0 0.0
    %813 = vmatprep.subr.mxu0 0.0
    %814 = vmatpush1.msra.mxu0 0.0
    %815 = vmatprep.subr.mxu0 0.0
    %816 = vmatpush1.msra.mxu0 0.0
    %817 = vmatprep.subr.mxu0 0.0
    %818 = vmatpush1.msra.mxu0 0.0
    %819 = vmatprep.subr.mxu0 0.0
    %820 = vmatpush1.msra.mxu0 0.0
    %821 = vmatprep.subr.mxu0 0.0
    %822 = vmatpush1.msra.mxu0 0.0
    %823 = vmatprep.subr.mxu0 0.0
    %824 = vmatpush1.msra.mxu0 0.0
    %825 = vmatprep.subr.mxu0 0.0
    %826 = vmatpush1.msra.mxu0 0.0
    %827 = vmatprep.subr.mxu0 0.0
    %828 = vmatpush1.msra.mxu0 0.0
    %829 = vmatprep.subr.mxu0 0.0
    %830 = vmatpush1.msra.mxu0 0.0
    %831 = vmatprep.subr.mxu0 0.0
    %832 = vmatpush1.msra.mxu0 0.0
    %833 = vmatprep.subr.mxu0 0.0
    %834 = vmatpush1.msra.mxu0 0.0
    %835 = vmatprep.subr.mxu0 0.0
    %836 = vmatpush1.msra.mxu0 0.0
    %837 = vmatprep.subr.mxu0 0.0
    %838 = vmatpush1.msra.mxu0 0.0
    %839 = vmatprep.subr.mxu0 0.0
    %840 = vmatpush1.msra.mxu0 0.0
    %841 = vmatprep.subr.mxu0 0.0
    %842 = vmatpush1.msra.mxu0 0.0
    %843 = vmatprep.subr.mxu0 0.0
    %844 = vmatpush1.msra.mxu0 0.0
    %845 = vmatprep.subr.mxu0 0.0
    %846 = vmatpush1.msra.mxu0 0.0
    %847 = vmatprep.subr.mxu0 0.0
    %848 = vmatpush1.msra.mxu0 0.0
    %849 = vmatprep.subr.mxu0 0.0
    %850 = vmatpush1.msra.mxu0 0.0
    %851 = vmatprep.subr.mxu0 0.0
    %852 = vmatpush1.msra.mxu0 0.0
    %853 = vmatprep.subr.mxu0 0.0
    %854 = vmatpush1.msra.mxu0 0.0
    %855 = vmatprep.mubr.f32.mxu0 0.0
    %856 = vmatmul.mubr.f32.gmra.mrb[0].mxu0 %v789
    %v857 = vpop.f32.mrb[0].mxu0
    %v858 = vadd.f32 %v785, %v857
    %v859 = vpop.f32.mrb[0].mxu0
    %860 = vdwg.mxu0
    %v861 = vxor.u32 %v858, 2147483648
    %v862 = vmul.f32 %v861, 1.442695
    %v863 = vpow.pop %v862
    %v864 = vadd.f32 %v863, 1.0
    %v865 = vrcp.pop %v864
    %v866 = vmul.f32 1.0, %v865
    %v867 = vtanh.pop %v858
    %v868 = vmul.f32 %v866, 0.0
    %870 = vrot.lane.b32.xlu0 %v867, 96
    %v871 = vpop.permute.xlu0 %870
    %v873 = vmul.f32 %v866, %v871
    %875 = vrot.lane.b32.xlu0 %v873, 16
    %v876 = vpop.permute.xlu0 %875
    %v878 = vadd.f32 %v868, %v876
    %v879 = vtanh.pop %v878
    %881 = vrot.lane.b32.xlu0 %v879, 32
    %v882 = vpop.permute.xlu0 %881
    %v884 = vmul.f32 %v866, %v882
    %vm893 = vcmask 57344
    %894 = vst.msk [vmem:[#allocation3] sm:$0x1] %vm893, %v743
    %895 = vst.msk [vmem:[#allocation3 + $0x8] sm:$0x1] %vm893, %v747
    %896 = vst.msk [vmem:[#allocation3 + $0x10] sm:$0x1] %vm893, %v751
    %897 = vst.msk [vmem:[#allocation3 + $0x18] sm:$0x1] %vm893, %v755
    %898 = vst.msk [vmem:[#allocation3 + $0x20] sm:$0x1] %vm893, %v759
    %899 = vst.msk [vmem:[#allocation3 + $0x28] sm:$0x1] %vm893, %v763
    %900 = vst.msk [vmem:[#allocation3 + $0x30] sm:$0x1] %vm893, %v767
    %901 = vst.msk [vmem:[#allocation3 + $0x38] sm:$0x1] %vm893, %v771
    %v903 = vcombine.high %v884, %v884
    %v905 = vunpack.c.l.s4 1966171168
    %v906 = vunpack.c.0.s8 %v905
    %v907 = vlaneseq
    %v908 = vshrl.u32 %v907, 7
    %v909 = vsub.s32 %v906, %v908
    %v910 = vrot.slane %v884, %v909
    %v912 = vunpack.c.l.s4 1966171168
    %v913 = vunpack.c.0.s8 %v912
    %v914 = vlaneseq
    %v915 = vshrl.u32 %v914, 7
    %v916 = vsub.s32 %v913, %v915
    %v917 = vrot.slane %v903, %v916
    %v918 = vcombine.high %v910, %v910
    %v919 = vcombine.high %v917, %v917
    %v921 = vunpack.c.l.s4 1966171168
    %v922 = vunpack.c.0.s8 %v921
    %v923 = vlaneseq
    %v924 = vshrl.u32 %v923, 7
    %v925 = vsub.s32 %v922, %v924
    %v926 = vrot.slane %v910, %v925
    %v928 = vunpack.c.l.s4 1966171168
    %v929 = vunpack.c.0.s8 %v928
    %v930 = vlaneseq
    %v931 = vshrl.u32 %v930, 7
    %v932 = vsub.s32 %v929, %v931
    %v933 = vrot.slane %v917, %v932
    %v935 = vunpack.c.l.s4 1966171168
    %v936 = vunpack.c.0.s8 %v935
    %v937 = vlaneseq
    %v938 = vshrl.u32 %v937, 7
    %v939 = vsub.s32 %v936, %v938
    %v940 = vrot.slane %v918, %v939
    %v942 = vunpack.c.l.s4 1966171168
    %v943 = vunpack.c.0.s8 %v942
    %v944 = vlaneseq
    %v945 = vshrl.u32 %v944, 7
    %v946 = vsub.s32 %v943, %v945
    %v947 = vrot.slane %v919, %v946
    %v948 = vcombine.high %v926, %v926
    %v949 = vcombine.high %v933, %v933
    %v950 = vcombine.high %v940, %v940
    %v951 = vcombine.high %v947, %v947
    %v952 = vlaneseq
    %v953 = vshrl.u32 %v952, 7
    %v954 = vsub.s32 0, %v953
    %v955 = vrot.slane %v926, %v954
    %v956 = vlaneseq
    %v957 = vshrl.u32 %v956, 7
    %v958 = vsub.s32 0, %v957
    %v959 = vrot.slane %v940, %v958
    %v960 = vlaneseq
    %v961 = vshrl.u32 %v960, 7
    %v962 = vsub.s32 0, %v961
    %v963 = vrot.slane %v948, %v962
    %v964 = vlaneseq
    %v965 = vshrl.u32 %v964, 7
    %v966 = vsub.s32 0, %v965
    %v967 = vrot.slane %v950, %v966
    %v968 = vlaneseq
    %v969 = vshrl.u32 %v968, 7
    %v970 = vsub.s32 0, %v969
    %v971 = vrot.slane %v933, %v970
    %v972 = vlaneseq
    %v973 = vshrl.u32 %v972, 7
    %v974 = vsub.s32 0, %v973
    %v975 = vrot.slane %v947, %v974
    %v976 = vlaneseq
    %v977 = vshrl.u32 %v976, 7
    %v978 = vsub.s32 0, %v977
    %v979 = vrot.slane %v949, %v978
    %v980 = vlaneseq
    %v981 = vshrl.u32 %v980, 7
    %v982 = vsub.s32 0, %v981
    %v983 = vrot.slane %v951, %v982
    %984 = vrot.lane.b32.xlu0 %v955, 80
    %v985 = vpop.permute.xlu0 %984
    %986 = vrot.lane.b32.xlu0 %v959, 80
    %v987 = vpop.permute.xlu0 %986
    %988 = vrot.lane.b32.xlu0 %v963, 80
    %v989 = vpop.permute.xlu0 %988
    %990 = vrot.lane.b32.xlu0 %v967, 80
    %v991 = vpop.permute.xlu0 %990
    %992 = vrot.lane.b32.xlu0 %v971, 80
    %v993 = vpop.permute.xlu0 %992
    %994 = vrot.lane.b32.xlu0 %v975, 80
    %v995 = vpop.permute.xlu0 %994
    %996 = vrot.lane.b32.xlu0 %v979, 80
    %v997 = vpop.permute.xlu0 %996
    %998 = vrot.lane.b32.xlu0 %v983, 80
    %v999 = vpop.permute.xlu0 %998
    %vm1008 = vcmask 122880
    %1009 = vst.msk [vmem:[#allocation5] sm:$0x1] %vm1008, %v985
    %1010 = vst.msk [vmem:[#allocation5 + $0x8] sm:$0x1] %vm1008, %v987
    %1011 = vst.msk [vmem:[#allocation5 + $0x10] sm:$0x1] %vm1008, %v989
    %1012 = vst.msk [vmem:[#allocation5 + $0x18] sm:$0x1] %vm1008, %v991
    %1013 = vst.msk [vmem:[#allocation5 + $0x20] sm:$0x1] %vm1008, %v993
    %1014 = vst.msk [vmem:[#allocation5 + $0x28] sm:$0x1] %vm1008, %v995
    %1015 = vst.msk [vmem:[#allocation5 + $0x30] sm:$0x1] %vm1008, %v997
    %1016 = vst.msk [vmem:[#allocation5 + $0x38] sm:$0x1] %vm1008, %v999
    %1018 = vrot.lane.b32.xlu0 %v878, 112
    %v1019 = vpop.permute.xlu0 %1018
    %v1020 = vsel %vm57, %v1019, 0
    %1022 = vmatprep.subr.mxu0 0.0
    %1023 = vmatpush1.msra.mxu0 %v48
    %1024 = vmatprep.subr.mxu0 0.0
    %1025 = vmatpush1.msra.mxu0 %v49
    %1026 = vmatprep.subr.mxu0 0.0
    %1027 = vmatpush1.msra.mxu0 0.0
    %1028 = vmatprep.subr.mxu0 0.0
    %1029 = vmatpush1.msra.mxu0 0.0
    %1030 = vmatprep.subr.mxu0 0.0
    %1031 = vmatpush1.msra.mxu0 0.0
    %1032 = vmatprep.subr.mxu0 0.0
    %1033 = vmatpush1.msra.mxu0 0.0
    %1034 = vmatprep.subr.mxu0 0.0
    %1035 = vmatpush1.msra.mxu0 0.0
    %1036 = vmatprep.subr.mxu0 0.0
    %1037 = vmatpush1.msra.mxu0 0.0
    %1038 = vmatprep.subr.mxu0 0.0
    %1039 = vmatpush1.msra.mxu0 0.0
    %1040 = vmatprep.subr.mxu0 0.0
    %1041 = vmatpush1.msra.mxu0 0.0
    %1042 = vmatprep.subr.mxu0 0.0
    %1043 = vmatpush1.msra.mxu0 0.0
    %1044 = vmatprep.subr.mxu0 0.0
    %1045 = vmatpush1.msra.mxu0 0.0
    %1046 = vmatprep.subr.mxu0 0.0
    %1047 = vmatpush1.msra.mxu0 0.0
    %1048 = vmatprep.subr.mxu0 0.0
    %1049 = vmatpush1.msra.mxu0 0.0
    %1050 = vmatprep.subr.mxu0 0.0
    %1051 = vmatpush1.msra.mxu0 0.0
    %1052 = vmatprep.subr.mxu0 0.0
    %1053 = vmatpush1.msra.mxu0 0.0
    %1054 = vmatprep.subr.mxu0 0.0
    %1055 = vmatpush1.msra.mxu0 0.0
    %1056 = vmatprep.subr.mxu0 0.0
    %1057 = vmatpush1.msra.mxu0 0.0
    %1058 = vmatprep.subr.mxu0 0.0
    %1059 = vmatpush1.msra.mxu0 0.0
    %1060 = vmatprep.subr.mxu0 0.0
    %1061 = vmatpush1.msra.mxu0 0.0
    %1062 = vmatprep.subr.mxu0 0.0
    %1063 = vmatpush1.msra.mxu0 0.0
    %1064 = vmatprep.subr.mxu0 0.0
    %1065 = vmatpush1.msra.mxu0 0.0
    %1066 = vmatprep.subr.mxu0 0.0
    %1067 = vmatpush1.msra.mxu0 0.0
    %1068 = vmatprep.subr.mxu0 0.0
    %1069 = vmatpush1.msra.mxu0 0.0
    %1070 = vmatprep.subr.mxu0 0.0
    %1071 = vmatpush1.msra.mxu0 0.0
    %1072 = vmatprep.subr.mxu0 0.0
    %1073 = vmatpush1.msra.mxu0 0.0
    %1074 = vmatprep.subr.mxu0 0.0
    %1075 = vmatpush1.msra.mxu0 0.0
    %1076 = vmatprep.subr.mxu0 0.0
    %1077 = vmatpush1.msra.mxu0 0.0
    %1078 = vmatprep.subr.mxu0 0.0
    %1079 = vmatpush1.msra.mxu0 0.0
    %1080 = vmatprep.subr.mxu0 0.0
    %1081 = vmatpush1.msra.mxu0 0.0
    %1082 = vmatprep.subr.mxu0 0.0
    %1083 = vmatpush1.msra.mxu0 0.0
    %1084 = vmatprep.subr.mxu0 0.0
    %1085 = vmatpush1.msra.mxu0 0.0
    %1086 = vmatprep.mubr.f32.mxu0 0.0
    %1087 = vmatmul.mubr.f32.gmra.mrb[0].mxu0 %v1020
    %v1088 = vpop.f32.mrb[0].mxu0
    %v1089 = vadd.f32 0.0, %v1088
    %v1090 = vpop.f32.mrb[0].mxu0
    %1091 = vdwg.mxu0
    %1092 = vrot.lane.b32.xlu0 %v884, 80
    %v1093 = vpop.permute.xlu0 %1092
    %v1094 = vsel %vm57, %v1093, 0
    %1096 = vmatprep.subr.mxu0 0.0
    %1097 = vmatpush1.msra.mxu0 %v46
    %1098 = vmatprep.subr.mxu0 0.0
    %1099 = vmatpush1.msra.mxu0 %v47
    %1100 = vmatprep.subr.mxu0 0.0
    %1101 = vmatpush1.msra.mxu0 0.0
    %1102 = vmatprep.subr.mxu0 0.0
    %1103 = vmatpush1.msra.mxu0 0.0
    %1104 = vmatprep.subr.mxu0 0.0
    %1105 = vmatpush1.msra.mxu0 0.0
    %1106 = vmatprep.subr.mxu0 0.0
    %1107 = vmatpush1.msra.mxu0 0.0
    %1108 = vmatprep.subr.mxu0 0.0
    %1109 = vmatpush1.msra.mxu0 0.0
    %1110 = vmatprep.subr.mxu0 0.0
    %1111 = vmatpush1.msra.mxu0 0.0
    %1112 = vmatprep.subr.mxu0 0.0
    %1113 = vmatpush1.msra.mxu0 0.0
    %1114 = vmatprep.subr.mxu0 0.0
    %1115 = vmatpush1.msra.mxu0 0.0
    %1116 = vmatprep.subr.mxu0 0.0
    %1117 = vmatpush1.msra.mxu0 0.0
    %1118 = vmatprep.subr.mxu0 0.0
    %1119 = vmatpush1.msra.mxu0 0.0
    %1120 = vmatprep.subr.mxu0 0.0
    %1121 = vmatpush1.msra.mxu0 0.0
    %1122 = vmatprep.subr.mxu0 0.0
    %1123 = vmatpush1.msra.mxu0 0.0
    %1124 = vmatprep.subr.mxu0 0.0
    %1125 = vmatpush1.msra.mxu0 0.0
    %1126 = vmatprep.subr.mxu0 0.0
    %1127 = vmatpush1.msra.mxu0 0.0
    %1128 = vmatprep.subr.mxu0 0.0
    %1129 = vmatpush1.msra.mxu0 0.0
    %1130 = vmatprep.subr.mxu0 0.0
    %1131 = vmatpush1.msra.mxu0 0.0
    %1132 = vmatprep.subr.mxu0 0.0
    %1133 = vmatpush1.msra.mxu0 0.0
    %1134 = vmatprep.subr.mxu0 0.0
    %1135 = vmatpush1.msra.mxu0 0.0
    %1136 = vmatprep.subr.mxu0 0.0
    %1137 = vmatpush1.msra.mxu0 0.0
    %1138 = vmatprep.subr.mxu0 0.0
    %1139 = vmatpush1.msra.mxu0 0.0
    %1140 = vmatprep.subr.mxu0 0.0
    %1141 = vmatpush1.msra.mxu0 0.0
    %1142 = vmatprep.subr.mxu0 0.0
    %1143 = vmatpush1.msra.mxu0 0.0
    %1144 = vmatprep.subr.mxu0 0.0
    %1145 = vmatpush1.msra.mxu0 0.0
    %1146 = vmatprep.subr.mxu0 0.0
    %1147 = vmatpush1.msra.mxu0 0.0
    %1148 = vmatprep.subr.mxu0 0.0
    %1149 = vmatpush1.msra.mxu0 0.0
    %1150 = vmatprep.subr.mxu0 0.0
    %1151 = vmatpush1.msra.mxu0 0.0
    %1152 = vmatprep.subr.mxu0 0.0
    %1153 = vmatpush1.msra.mxu0 0.0
    %1154 = vmatprep.subr.mxu0 0.0
    %1155 = vmatpush1.msra.mxu0 0.0
    %1156 = vmatprep.subr.mxu0 0.0
    %1157 = vmatpush1.msra.mxu0 0.0
    %1158 = vmatprep.subr.mxu0 0.0
    %1159 = vmatpush1.msra.mxu0 0.0
    %1160 = vmatprep.mubr.f32.mxu0 0.0
    %1161 = vmatmul.mubr.f32.gmra.mrb[0].mxu0 %v1094
    %v1162 = vpop.f32.mrb[0].mxu0
    %v1163 = vadd.f32 %v1089, %v1162
    %v1164 = vpop.f32.mrb[0].mxu0
    %1165 = vdwg.mxu0
    %v1166 = vadd.f32 %v1163, %v205
    %v1168 = vcombine.high %v1166, %v1166
    %v1170 = vunpack.c.l.s4 1966171168
    %v1171 = vunpack.c.0.s8 %v1170
    %v1172 = vlaneseq
    %v1173 = vshrl.u32 %v1172, 7
    %v1174 = vsub.s32 %v1171, %v1173
    %v1175 = vrot.slane %v1166, %v1174
    %v1177 = vunpack.c.l.s4 1966171168
    %v1178 = vunpack.c.0.s8 %v1177
    %v1179 = vlaneseq
    %v1180 = vshrl.u32 %v1179, 7
    %v1181 = vsub.s32 %v1178, %v1180
    %v1182 = vrot.slane %v1168, %v1181
    %v1183 = vcombine.high %v1175, %v1175
    %v1184 = vcombine.high %v1182, %v1182
    %v1186 = vunpack.c.l.s4 1966171168
    %v1187 = vunpack.c.0.s8 %v1186
    %v1188 = vlaneseq
    %v1189 = vshrl.u32 %v1188, 7
    %v1190 = vsub.s32 %v1187, %v1189
    %v1191 = vrot.slane %v1175, %v1190
    %v1193 = vunpack.c.l.s4 1966171168
    %v1194 = vunpack.c.0.s8 %v1193
    %v1195 = vlaneseq
    %v1196 = vshrl.u32 %v1195, 7
    %v1197 = vsub.s32 %v1194, %v1196
    %v1198 = vrot.slane %v1182, %v1197
    %v1200 = vunpack.c.l.s4 1966171168
    %v1201 = vunpack.c.0.s8 %v1200
    %v1202 = vlaneseq
    %v1203 = vshrl.u32 %v1202, 7
    %v1204 = vsub.s32 %v1201, %v1203
    %v1205 = vrot.slane %v1183, %v1204
    %v1207 = vunpack.c.l.s4 1966171168
    %v1208 = vunpack.c.0.s8 %v1207
    %v1209 = vlaneseq
    %v1210 = vshrl.u32 %v1209, 7
    %v1211 = vsub.s32 %v1208, %v1210
    %v1212 = vrot.slane %v1184, %v1211
    %v1213 = vcombine.high %v1191, %v1191
    %v1214 = vcombine.high %v1198, %v1198
    %v1215 = vcombine.high %v1205, %v1205
    %v1216 = vcombine.high %v1212, %v1212
    %v1217 = vlaneseq
    %v1218 = vshrl.u32 %v1217, 7
    %v1219 = vsub.s32 0, %v1218
    %v1220 = vrot.slane %v1191, %v1219
    %v1221 = vlaneseq
    %v1222 = vshrl.u32 %v1221, 7
    %v1223 = vsub.s32 0, %v1222
    %v1224 = vrot.slane %v1205, %v1223
    %v1225 = vlaneseq
    %v1226 = vshrl.u32 %v1225, 7
    %v1227 = vsub.s32 0, %v1226
    %v1228 = vrot.slane %v1213, %v1227
    %v1229 = vlaneseq
    %v1230 = vshrl.u32 %v1229, 7
    %v1231 = vsub.s32 0, %v1230
    %v1232 = vrot.slane %v1215, %v1231
    %v1233 = vlaneseq
    %v1234 = vshrl.u32 %v1233, 7
    %v1235 = vsub.s32 0, %v1234
    %v1236 = vrot.slane %v1198, %v1235
    %v1237 = vlaneseq
    %v1238 = vshrl.u32 %v1237, 7
    %v1239 = vsub.s32 0, %v1238
    %v1240 = vrot.slane %v1212, %v1239
    %v1241 = vlaneseq
    %v1242 = vshrl.u32 %v1241, 7
    %v1243 = vsub.s32 0, %v1242
    %v1244 = vrot.slane %v1214, %v1243
    %v1245 = vlaneseq
    %v1246 = vshrl.u32 %v1245, 7
    %v1247 = vsub.s32 0, %v1246
    %v1248 = vrot.slane %v1216, %v1247
    %v1257 = vadd.f32 %v38, %v1220
    %v1258 = vadd.f32 %v39, %v1224
    %v1259 = vadd.f32 %v40, %v1228
    %v1260 = vadd.f32 %v41, %v1232
    %v1261 = vadd.f32 %v42, %v1236
    %v1262 = vadd.f32 %v43, %v1240
    %v1263 = vadd.f32 %v44, %v1244
    %v1264 = vadd.f32 %v45, %v1248
    %v1265 = vtanh.pop %v1257
    %v1266 = vtanh.pop %v1258
    %v1267 = vtanh.pop %v1259
    %v1268 = vtanh.pop %v1260
    %v1269 = vtanh.pop %v1261
    %v1270 = vtanh.pop %v1262
    %v1271 = vtanh.pop %v1263
    %v1272 = vtanh.pop %v1264
    %v1273 = vmul.f32 %v1265, %v318
    %v1274 = vmul.f32 %v1266, %v318
    %v1275 = vmul.f32 %v1267, %v318
    %v1276 = vmul.f32 %v1268, %v318
    %v1277 = vmul.f32 %v1269, %v318
    %v1278 = vmul.f32 %v1270, %v318
    %v1279 = vmul.f32 %v1271, %v318
    %v1280 = vmul.f32 %v1272, %v318
    %v1281 = vsel %vm328, %v1273, 0.0
    %1282 = vadd.xlane.f32.xlu0 %v1281
    %v1283 = vpop.xlane.xlu0 %1282
    %v1284 = vsel %vm328, %v1274, 0.0
    %1285 = vadd.xlane.f32.xlu0 %v1284
    %v1286 = vpop.xlane.xlu0 %1285
    %v1287 = vsel %vm328, %v1275, 0.0
    %1288 = vadd.xlane.f32.xlu0 %v1287
    %v1289 = vpop.xlane.xlu0 %1288
    %v1290 = vsel %vm328, %v1276, 0.0
    %1291 = vadd.xlane.f32.xlu0 %v1290
    %v1292 = vpop.xlane.xlu0 %1291
    %v1293 = vsel %vm328, %v1277, 0.0
    %1294 = vadd.xlane.f32.xlu0 %v1293
    %v1295 = vpop.xlane.xlu0 %1294
    %v1296 = vsel %vm328, %v1278, 0.0
    %1297 = vadd.xlane.f32.xlu0 %v1296
    %v1298 = vpop.xlane.xlu0 %1297
    %v1299 = vsel %vm328, %v1279, 0.0
    %1300 = vadd.xlane.f32.xlu0 %v1299
    %v1301 = vpop.xlane.xlu0 %1300
    %v1302 = vsel %vm328, %v1280, 0.0
    %1303 = vadd.xlane.f32.xlu0 %v1302
    %v1304 = vpop.xlane.xlu0 %1303
    %v1305 = vadd.f32 %v1283, %v360
    %v1306 = vadd.f32 %v1286, %v360
    %v1307 = vadd.f32 %v1289, %v360
    %v1308 = vadd.f32 %v1292, %v360
    %v1309 = vadd.f32 %v1295, %v360
    %v1310 = vadd.f32 %v1298, %v360
    %v1311 = vadd.f32 %v1301, %v360
    %v1312 = vadd.f32 %v1304, %v360
    %v1321 = vlaneseq
    %v1322 = vshrl.u32 %v1321, 7
    %v1323 = vsub.s32 %v379, %v1322
    %v1324 = vrot.slane %v1305, %v1323
    %v1325 = vlaneseq
    %v1326 = vshrl.u32 %v1325, 7
    %v1327 = vsub.s32 %v379, %v1326
    %v1328 = vrot.slane %v1306, %v1327
    %v1329 = vlaneseq
    %v1330 = vshrl.u32 %v1329, 7
    %v1331 = vsub.s32 %v379, %v1330
    %v1332 = vrot.slane %v1307, %v1331
    %v1333 = vlaneseq
    %v1334 = vshrl.u32 %v1333, 7
    %v1335 = vsub.s32 %v379, %v1334
    %v1336 = vrot.slane %v1308, %v1335
    %v1337 = vlaneseq
    %v1338 = vshrl.u32 %v1337, 7
    %v1339 = vsub.s32 %v379, %v1338
    %v1340 = vrot.slane %v1309, %v1339
    %v1341 = vlaneseq
    %v1342 = vshrl.u32 %v1341, 7
    %v1343 = vsub.s32 %v379, %v1342
    %v1344 = vrot.slane %v1310, %v1343
    %v1345 = vlaneseq
    %v1346 = vshrl.u32 %v1345, 7
    %v1347 = vsub.s32 %v379, %v1346
    %v1348 = vrot.slane %v1311, %v1347
    %v1349 = vlaneseq
    %v1350 = vshrl.u32 %v1349, 7
    %v1351 = vsub.s32 %v379, %v1350
    %v1352 = vrot.slane %v1312, %v1351
    %v1353 = vsel %vm412, %v1328, %v1324
    %v1354 = vsel %vm414, %v1332, %v1353
    %v1355 = vsel %vm416, %v1336, %v1354
    %v1356 = vsel %vm418, %v1340, %v1355
    %v1357 = vsel %vm420, %v1344, %v1356
    %v1358 = vsel %vm422, %v1348, %v1357
    %v1359 = vsel %vm424, %v1352, %v1358
    %v1361 = vsel %vm328, %v1359, -inf
    %1362 = vmax.xlane.f32.xlu0 %v1361
    %v1363 = vpop.xlane.xlu0 %1362
    %v1365 = vlaneseq
    %v1366 = vshrl.u32 %v1365, 7
    %v1367 = vsub.s32 0, %v1366
    %v1368 = vrot.slane %v1363, %v1367
    %v1369 = vlaneseq
    %v1370 = vshrl.u32 %v1369, 7
    %v1371 = vsub.s32 1, %v1370
    %v1372 = vrot.slane %v1363, %v1371
    %v1373 = vlaneseq
    %v1374 = vshrl.u32 %v1373, 7
    %v1375 = vsub.s32 2, %v1374
    %v1376 = vrot.slane %v1363, %v1375
    %v1377 = vlaneseq
    %v1378 = vshrl.u32 %v1377, 7
    %v1379 = vsub.s32 3, %v1378
    %v1380 = vrot.slane %v1363, %v1379
    %v1381 = vlaneseq
    %v1382 = vshrl.u32 %v1381, 7
    %v1383 = vsub.s32 4, %v1382
    %v1384 = vrot.slane %v1363, %v1383
    %v1385 = vlaneseq
    %v1386 = vshrl.u32 %v1385, 7
    %v1387 = vsub.s32 5, %v1386
    %v1388 = vrot.slane %v1363, %v1387
    %v1389 = vlaneseq
    %v1390 = vshrl.u32 %v1389, 7
    %v1391 = vsub.s32 6, %v1390
    %v1392 = vrot.slane %v1363, %v1391
    %v1393 = vlaneseq
    %v1394 = vshrl.u32 %v1393, 7
    %v1395 = vsub.s32 7, %v1394
    %v1396 = vrot.slane %v1363, %v1395
    %v1405 = vsub.f32 %v1305, %v1368
    %v1406 = vsub.f32 %v1306, %v1372
    %v1407 = vsub.f32 %v1307, %v1376
    %v1408 = vsub.f32 %v1308, %v1380
    %v1409 = vsub.f32 %v1309, %v1384
    %v1410 = vsub.f32 %v1310, %v1388
    %v1411 = vsub.f32 %v1311, %v1392
    %v1412 = vsub.f32 %v1312, %v1396
    %v1413 = vmul.f32 %v1405, 1.442695
    %v1414 = vpow.pop %v1413
    %v1415 = vmul.f32 %v1406, 1.442695
    %v1416 = vpow.pop %v1415
    %v1417 = vmul.f32 %v1407, 1.442695
    %v1418 = vpow.pop %v1417
    %v1419 = vmul.f32 %v1408, 1.442695
    %v1420 = vpow.pop %v1419
    %v1421 = vmul.f32 %v1409, 1.442695
    %v1422 = vpow.pop %v1421
    %v1423 = vmul.f32 %v1410, 1.442695
    %v1424 = vpow.pop %v1423
    %v1425 = vmul.f32 %v1411, 1.442695
    %v1426 = vpow.pop %v1425
    %v1427 = vmul.f32 %v1412, 1.442695
    %v1428 = vpow.pop %v1427
    %1437 = vset.pattern.permute.xlu0 0
    %1438 = vperm.xlu0 %1437, %v1414
    %v1439 = vpop.permute.xlu0 %1438
    %1440 = vset.pattern.permute.xlu0 0
    %1441 = vperm.xlu0 %1440, %v1416
    %v1442 = vpop.permute.xlu0 %1441
    %1443 = vset.pattern.permute.xlu0 0
    %1444 = vperm.xlu0 %1443, %v1418
    %v1445 = vpop.permute.xlu0 %1444
    %1446 = vset.pattern.permute.xlu0 0
    %1447 = vperm.xlu0 %1446, %v1420
    %v1448 = vpop.permute.xlu0 %1447
    %1449 = vset.pattern.permute.xlu0 0
    %1450 = vperm.xlu0 %1449, %v1422
    %v1451 = vpop.permute.xlu0 %1450
    %1452 = vset.pattern.permute.xlu0 0
    %1453 = vperm.xlu0 %1452, %v1424
    %v1454 = vpop.permute.xlu0 %1453
    %1455 = vset.pattern.permute.xlu0 0
    %1456 = vperm.xlu0 %1455, %v1426
    %v1457 = vpop.permute.xlu0 %1456
    %1458 = vset.pattern.permute.xlu0 0
    %1459 = vperm.xlu0 %1458, %v1428
    %v1460 = vpop.permute.xlu0 %1459
    %v1461 = vlaneseq
    %v1462 = vshrl.u32 %v1461, 7
    %v1463 = vsub.s32 %v379, %v1462
    %v1464 = vrot.slane %v1439, %v1463
    %v1465 = vlaneseq
    %v1466 = vshrl.u32 %v1465, 7
    %v1467 = vsub.s32 %v379, %v1466
    %v1468 = vrot.slane %v1442, %v1467
    %v1469 = vlaneseq
    %v1470 = vshrl.u32 %v1469, 7
    %v1471 = vsub.s32 %v379, %v1470
    %v1472 = vrot.slane %v1445, %v1471
    %v1473 = vlaneseq
    %v1474 = vshrl.u32 %v1473, 7
    %v1475 = vsub.s32 %v379, %v1474
    %v1476 = vrot.slane %v1448, %v1475
    %v1477 = vlaneseq
    %v1478 = vshrl.u32 %v1477, 7
    %v1479 = vsub.s32 %v379, %v1478
    %v1480 = vrot.slane %v1451, %v1479
    %v1481 = vlaneseq
    %v1482 = vshrl.u32 %v1481, 7
    %v1483 = vsub.s32 %v379, %v1482
    %v1484 = vrot.slane %v1454, %v1483
    %v1485 = vlaneseq
    %v1486 = vshrl.u32 %v1485, 7
    %v1487 = vsub.s32 %v379, %v1486
    %v1488 = vrot.slane %v1457, %v1487
    %v1489 = vlaneseq
    %v1490 = vshrl.u32 %v1489, 7
    %v1491 = vsub.s32 %v379, %v1490
    %v1492 = vrot.slane %v1460, %v1491
    %v1493 = vsel %vm412, %v1468, %v1464
    %v1494 = vsel %vm414, %v1472, %v1493
    %v1495 = vsel %vm416, %v1476, %v1494
    %v1496 = vsel %vm418, %v1480, %v1495
    %v1497 = vsel %vm420, %v1484, %v1496
    %v1498 = vsel %vm422, %v1488, %v1497
    %v1499 = vsel %vm424, %v1492, %v1498
    %v1501 = vsel %vm328, %v1499, 0.0
    %1502 = vadd.xlane.f32.xlu0 %v1501
    %v1503 = vpop.xlane.xlu0 %1502
    %v1504 = vrcp.pop %v1503
    %v1506 = vlaneseq
    %v1507 = vshrl.u32 %v1506, 7
    %v1508 = vsub.s32 0, %v1507
    %v1509 = vrot.slane %v1504, %v1508
    %v1510 = vlaneseq
    %v1511 = vshrl.u32 %v1510, 7
    %v1512 = vsub.s32 1, %v1511
    %v1513 = vrot.slane %v1504, %v1512
    %v1514 = vlaneseq
    %v1515 = vshrl.u32 %v1514, 7
    %v1516 = vsub.s32 2, %v1515
    %v1517 = vrot.slane %v1504, %v1516
    %v1518 = vlaneseq
    %v1519 = vshrl.u32 %v1518, 7
    %v1520 = vsub.s32 3, %v1519
    %v1521 = vrot.slane %v1504, %v1520
    %v1522 = vlaneseq
    %v1523 = vshrl.u32 %v1522, 7
    %v1524 = vsub.s32 4, %v1523
    %v1525 = vrot.slane %v1504, %v1524
    %v1526 = vlaneseq
    %v1527 = vshrl.u32 %v1526, 7
    %v1528 = vsub.s32 5, %v1527
    %v1529 = vrot.slane %v1504, %v1528
    %v1530 = vlaneseq
    %v1531 = vshrl.u32 %v1530, 7
    %v1532 = vsub.s32 6, %v1531
    %v1533 = vrot.slane %v1504, %v1532
    %v1534 = vlaneseq
    %v1535 = vshrl.u32 %v1534, 7
    %v1536 = vsub.s32 7, %v1535
    %v1537 = vrot.slane %v1504, %v1536
    %v1546 = vmul.f32 %v1414, %v1509
    %v1547 = vmul.f32 %v1416, %v1513
    %v1548 = vmul.f32 %v1418, %v1517
    %v1549 = vmul.f32 %v1420, %v1521
    %v1550 = vmul.f32 %v1422, %v1525
    %v1551 = vmul.f32 %v1424, %v1529
    %v1552 = vmul.f32 %v1426, %v1533
    %v1553 = vmul.f32 %v1428, %v1537
    %v1554 = vld [vmem:[%s1 + $0x1] sm:$0x1]
    %v1555 = vld [vmem:[%s1 + $0x9] sm:$0x1]
    %v1556 = vld [vmem:[%s1 + $0x11] sm:$0x1]
    %v1557 = vld [vmem:[%s1 + $0x19] sm:$0x1]
    %v1558 = vld [vmem:[%s1 + $0x21] sm:$0x1]
    %v1559 = vld [vmem:[%s1 + $0x29] sm:$0x1]
    %v1560 = vld [vmem:[%s1 + $0x31] sm:$0x1]
    %v1561 = vld [vmem:[%s1 + $0x39] sm:$0x1]
    %v1570 = vlaneseq
    %v1571 = vshrl.u32 %v1570, 7
    %v1572 = vsub.s32 0, %v1571
    %v1573 = vrot.slane %v1554, %v1572
    %1575 = vbcast.lane.b32.xlu0 %v1573, 256
    %v1576 = vpop.permute.xlu0 %1575
    %v1577 = vlaneseq
    %v1578 = vshrl.u32 %v1577, 7
    %v1579 = vsub.s32 0, %v1578
    %v1580 = vrot.slane %v1555, %v1579
    %1582 = vbcast.lane.b32.xlu0 %v1580, 256
    %v1583 = vpop.permute.xlu0 %1582
    %v1584 = vlaneseq
    %v1585 = vshrl.u32 %v1584, 7
    %v1586 = vsub.s32 0, %v1585
    %v1587 = vrot.slane %v1556, %v1586
    %1589 = vbcast.lane.b32.xlu0 %v1587, 256
    %v1590 = vpop.permute.xlu0 %1589
    %v1591 = vlaneseq
    %v1592 = vshrl.u32 %v1591, 7
    %v1593 = vsub.s32 0, %v1592
    %v1594 = vrot.slane %v1557, %v1593
    %1596 = vbcast.lane.b32.xlu0 %v1594, 256
    %v1597 = vpop.permute.xlu0 %1596
    %v1598 = vlaneseq
    %v1599 = vshrl.u32 %v1598, 7
    %v1600 = vsub.s32 0, %v1599
    %v1601 = vrot.slane %v1558, %v1600
    %1603 = vbcast.lane.b32.xlu0 %v1601, 256
    %v1604 = vpop.permute.xlu0 %1603
    %v1605 = vlaneseq
    %v1606 = vshrl.u32 %v1605, 7
    %v1607 = vsub.s32 0, %v1606
    %v1608 = vrot.slane %v1559, %v1607
    %1610 = vbcast.lane.b32.xlu0 %v1608, 256
    %v1611 = vpop.permute.xlu0 %1610
    %v1612 = vlaneseq
    %v1613 = vshrl.u32 %v1612, 7
    %v1614 = vsub.s32 0, %v1613
    %v1615 = vrot.slane %v1560, %v1614
    %1617 = vbcast.lane.b32.xlu0 %v1615, 256
    %v1618 = vpop.permute.xlu0 %1617
    %v1619 = vlaneseq
    %v1620 = vshrl.u32 %v1619, 7
    %v1621 = vsub.s32 0, %v1620
    %v1622 = vrot.slane %v1561, %v1621
    %1624 = vbcast.lane.b32.xlu0 %v1622, 256
    %v1625 = vpop.permute.xlu0 %1624
    %v1634 = vmul.f32 %v1546, %v1576
    %v1635 = vmul.f32 %v1547, %v1583
    %v1636 = vmul.f32 %v1548, %v1590
    %v1637 = vmul.f32 %v1549, %v1597
    %v1638 = vmul.f32 %v1550, %v1604
    %v1639 = vmul.f32 %v1551, %v1611
    %v1640 = vmul.f32 %v1552, %v1618
    %v1641 = vmul.f32 %v1553, %v1625
    %1650 = vset.pattern.permute.xlu0 0
    %1651 = vperm.xlu0 %1650, %v1634
    %v1652 = vpop.permute.xlu0 %1651
    %1653 = vset.pattern.permute.xlu0 0
    %1654 = vperm.xlu0 %1653, %v1635
    %v1655 = vpop.permute.xlu0 %1654
    %1656 = vset.pattern.permute.xlu0 0
    %1657 = vperm.xlu0 %1656, %v1636
    %v1658 = vpop.permute.xlu0 %1657
    %1659 = vset.pattern.permute.xlu0 0
    %1660 = vperm.xlu0 %1659, %v1637
    %v1661 = vpop.permute.xlu0 %1660
    %1662 = vset.pattern.permute.xlu0 0
    %1663 = vperm.xlu0 %1662, %v1638
    %v1664 = vpop.permute.xlu0 %1663
    %1665 = vset.pattern.permute.xlu0 0
    %1666 = vperm.xlu0 %1665, %v1639
    %v1667 = vpop.permute.xlu0 %1666
    %1668 = vset.pattern.permute.xlu0 0
    %1669 = vperm.xlu0 %1668, %v1640
    %v1670 = vpop.permute.xlu0 %1669
    %1671 = vset.pattern.permute.xlu0 0
    %1672 = vperm.xlu0 %1671, %v1641
    %v1673 = vpop.permute.xlu0 %1672
    %v1674 = vlaneseq
    %v1675 = vshrl.u32 %v1674, 7
    %v1676 = vsub.s32 %v379, %v1675
    %v1677 = vrot.slane %v1652, %v1676
    %v1678 = vlaneseq
    %v1679 = vshrl.u32 %v1678, 7
    %v1680 = vsub.s32 %v379, %v1679
    %v1681 = vrot.slane %v1655, %v1680
    %v1682 = vlaneseq
    %v1683 = vshrl.u32 %v1682, 7
    %v1684 = vsub.s32 %v379, %v1683
    %v1685 = vrot.slane %v1658, %v1684
    %v1686 = vlaneseq
    %v1687 = vshrl.u32 %v1686, 7
    %v1688 = vsub.s32 %v379, %v1687
    %v1689 = vrot.slane %v1661, %v1688
    %v1690 = vlaneseq
    %v1691 = vshrl.u32 %v1690, 7
    %v1692 = vsub.s32 %v379, %v1691
    %v1693 = vrot.slane %v1664, %v1692
    %v1694 = vlaneseq
    %v1695 = vshrl.u32 %v1694, 7
    %v1696 = vsub.s32 %v379, %v1695
    %v1697 = vrot.slane %v1667, %v1696
    %v1698 = vlaneseq
    %v1699 = vshrl.u32 %v1698, 7
    %v1700 = vsub.s32 %v379, %v1699
    %v1701 = vrot.slane %v1670, %v1700
    %v1702 = vlaneseq
    %v1703 = vshrl.u32 %v1702, 7
    %v1704 = vsub.s32 %v379, %v1703
    %v1705 = vrot.slane %v1673, %v1704
    %v1706 = vsel %vm412, %v1681, %v1677
    %v1707 = vsel %vm414, %v1685, %v1706
    %v1708 = vsel %vm416, %v1689, %v1707
    %v1709 = vsel %vm418, %v1693, %v1708
    %v1710 = vsel %vm420, %v1697, %v1709
    %v1711 = vsel %vm422, %v1701, %v1710
    %v1712 = vsel %vm424, %v1705, %v1711
    %1714 = vrot.lane.b32.xlu0 %v884, 88
    %v1715 = vpop.permute.xlu0 %1714
    %v1717 = vsel %vm328, %v1712, %v1715
    %v1719 = vsel %vm787, %v1717, 0
    %1721 = vmatprep.subr.mxu0 0.0
    %1722 = vmatpush1.msra.mxu0 %v53
    %1723 = vmatprep.subr.mxu0 0.0
    %1724 = vmatpush1.msra.mxu0 %v54
    %1725 = vmatprep.subr.mxu0 0.0
    %1726 = vmatpush1.msra.mxu0 %v55
    %1727 = vmatprep.subr.mxu0 0.0
    %1728 = vmatpush1.msra.mxu0 0.0
    %1729 = vmatprep.subr.mxu0 0.0
    %1730 = vmatpush1.msra.mxu0 0.0
    %1731 = vmatprep.subr.mxu0 0.0
    %1732 = vmatpush1.msra.mxu0 0.0
    %1733 = vmatprep.subr.mxu0 0.0
    %1734 = vmatpush1.msra.mxu0 0.0
    %1735 = vmatprep.subr.mxu0 0.0
    %1736 = vmatpush1.msra.mxu0 0.0
    %1737 = vmatprep.subr.mxu0 0.0
    %1738 = vmatpush1.msra.mxu0 0.0
    %1739 = vmatprep.subr.mxu0 0.0
    %1740 = vmatpush1.msra.mxu0 0.0
    %1741 = vmatprep.subr.mxu0 0.0
    %1742 = vmatpush1.msra.mxu0 0.0
    %1743 = vmatprep.subr.mxu0 0.0
    %1744 = vmatpush1.msra.mxu0 0.0
    %1745 = vmatprep.subr.mxu0 0.0
    %1746 = vmatpush1.msra.mxu0 0.0
    %1747 = vmatprep.subr.mxu0 0.0
    %1748 = vmatpush1.msra.mxu0 0.0
    %1749 = vmatprep.subr.mxu0 0.0
    %1750 = vmatpush1.msra.mxu0 0.0
    %1751 = vmatprep.subr.mxu0 0.0
    %1752 = vmatpush1.msra.mxu0 0.0
    %1753 = vmatprep.subr.mxu0 0.0
    %1754 = vmatpush1.msra.mxu0 0.0
    %1755 = vmatprep.subr.mxu0 0.0
    %1756 = vmatpush1.msra.mxu0 0.0
    %1757 = vmatprep.subr.mxu0 0.0
    %1758 = vmatpush1.msra.mxu0 0.0
    %1759 = vmatprep.subr.mxu0 0.0
    %1760 = vmatpush1.msra.mxu0 0.0
    %1761 = vmatprep.subr.mxu0 0.0
    %1762 = vmatpush1.msra.mxu0 0.0
    %1763 = vmatprep.subr.mxu0 0.0
    %1764 = vmatpush1.msra.mxu0 0.0
    %1765 = vmatprep.subr.mxu0 0.0
    %1766 = vmatpush1.msra.mxu0 0.0
    %1767 = vmatprep.subr.mxu0 0.0
    %1768 = vmatpush1.msra.mxu0 0.0
    %1769 = vmatprep.subr.mxu0 0.0
    %1770 = vmatpush1.msra.mxu0 0.0
    %1771 = vmatprep.subr.mxu0 0.0
    %1772 = vmatpush1.msra.mxu0 0.0
    %1773 = vmatprep.subr.mxu0 0.0
    %1774 = vmatpush1.msra.mxu0 0.0
    %1775 = vmatprep.subr.mxu0 0.0
    %1776 = vmatpush1.msra.mxu0 0.0
    %1777 = vmatprep.subr.mxu0 0.0
    %1778 = vmatpush1.msra.mxu0 0.0
    %1779 = vmatprep.subr.mxu0 0.0
    %1780 = vmatpush1.msra.mxu0 0.0
    %1781 = vmatprep.subr.mxu0 0.0
    %1782 = vmatpush1.msra.mxu0 0.0
    %1783 = vmatprep.subr.mxu0 0.0
    %1784 = vmatpush1.msra.mxu0 0.0
    %1785 = vmatprep.mubr.f32.mxu0 0.0
    %1786 = vmatmul.mubr.f32.gmra.mrb[0].mxu0 %v1719
    %v1787 = vpop.f32.mrb[0].mxu0
    %v1788 = vadd.f32 %v785, %v1787
    %v1789 = vpop.f32.mrb[0].mxu0
    %1790 = vdwg.mxu0
    %v1791 = vxor.u32 %v1788, 2147483648
    %v1792 = vmul.f32 %v1791, 1.442695
    %v1793 = vpow.pop %v1792
    %v1794 = vadd.f32 %v1793, 1.0
    %v1795 = vrcp.pop %v1794
    %v1796 = vmul.f32 1.0, %v1795
    %v1797 = vtanh.pop %v1788
    %v1798 = vmul.f32 %v1796, %v878
    %1800 = vrot.lane.b32.xlu0 %v1797, 96
    %v1801 = vpop.permute.xlu0 %1800
    %v1803 = vmul.f32 %v1796, %v1801
    %1805 = vrot.lane.b32.xlu0 %v1803, 16
    %v1806 = vpop.permute.xlu0 %1805
    %v1808 = vadd.f32 %v1798, %v1806
    %v1809 = vtanh.pop %v1808
    %1811 = vrot.lane.b32.xlu0 %v1809, 32
    %v1812 = vpop.permute.xlu0 %1811
    %v1814 = vmul.f32 %v1796, %v1812
    %1823 = vst.msk [vmem:[#allocation3 + $0x1] sm:$0x1] %vm893, %v1677
    %1824 = vst.msk [vmem:[#allocation3 + $0x9] sm:$0x1] %vm893, %v1681
    %1825 = vst.msk [vmem:[#allocation3 + $0x11] sm:$0x1] %vm893, %v1685
    %1826 = vst.msk [vmem:[#allocation3 + $0x19] sm:$0x1] %vm893, %v1689
    %1827 = vst.msk [vmem:[#allocation3 + $0x21] sm:$0x1] %vm893, %v1693
    %1828 = vst.msk [vmem:[#allocation3 + $0x29] sm:$0x1] %vm893, %v1697
    %1829 = vst.msk [vmem:[#allocation3 + $0x31] sm:$0x1] %vm893, %v1701
    %1830 = vst.msk [vmem:[#allocation3 + $0x39] sm:$0x1] %vm893, %v1705
    %v1832 = vcombine.high %v1814, %v1814
    %v1834 = vunpack.c.l.s4 1966171168
    %v1835 = vunpack.c.0.s8 %v1834
    %v1836 = vlaneseq
    %v1837 = vshrl.u32 %v1836, 7
    %v1838 = vsub.s32 %v1835, %v1837
    %v1839 = vrot.slane %v1814, %v1838
    %v1841 = vunpack.c.l.s4 1966171168
    %v1842 = vunpack.c.0.s8 %v1841
    %v1843 = vlaneseq
    %v1844 = vshrl.u32 %v1843, 7
    %v1845 = vsub.s32 %v1842, %v1844
    %v1846 = vrot.slane %v1832, %v1845
    %v1847 = vcombine.high %v1839, %v1839
    %v1848 = vcombine.high %v1846, %v1846
    %v1850 = vunpack.c.l.s4 1966171168
    %v1851 = vunpack.c.0.s8 %v1850
    %v1852 = vlaneseq
    %v1853 = vshrl.u32 %v1852, 7
    %v1854 = vsub.s32 %v1851, %v1853
    %v1855 = vrot.slane %v1839, %v1854
    %v1857 = vunpack.c.l.s4 1966171168
    %v1858 = vunpack.c.0.s8 %v1857
    %v1859 = vlaneseq
    %v1860 = vshrl.u32 %v1859, 7
    %v1861 = vsub.s32 %v1858, %v1860
    %v1862 = vrot.slane %v1846, %v1861
    %v1864 = vunpack.c.l.s4 1966171168
    %v1865 = vunpack.c.0.s8 %v1864
    %v1866 = vlaneseq
    %v1867 = vshrl.u32 %v1866, 7
    %v1868 = vsub.s32 %v1865, %v1867
    %v1869 = vrot.slane %v1847, %v1868
    %v1871 = vunpack.c.l.s4 1966171168
    %v1872 = vunpack.c.0.s8 %v1871
    %v1873 = vlaneseq
    %v1874 = vshrl.u32 %v1873, 7
    %v1875 = vsub.s32 %v1872, %v1874
    %v1876 = vrot.slane %v1848, %v1875
    %v1877 = vcombine.high %v1855, %v1855
    %v1878 = vcombine.high %v1862, %v1862
    %v1879 = vcombine.high %v1869, %v1869
    %v1880 = vcombine.high %v1876, %v1876
    %v1881 = vlaneseq
    %v1882 = vshrl.u32 %v1881, 7
    %v1883 = vsub.s32 0, %v1882
    %v1884 = vrot.slane %v1855, %v1883
    %v1885 = vlaneseq
    %v1886 = vshrl.u32 %v1885, 7
    %v1887 = vsub.s32 0, %v1886
    %v1888 = vrot.slane %v1869, %v1887
    %v1889 = vlaneseq
    %v1890 = vshrl.u32 %v1889, 7
    %v1891 = vsub.s32 0, %v1890
    %v1892 = vrot.slane %v1877, %v1891
    %v1893 = vlaneseq
    %v1894 = vshrl.u32 %v1893, 7
    %v1895 = vsub.s32 0, %v1894
    %v1896 = vrot.slane %v1879, %v1895
    %v1897 = vlaneseq
    %v1898 = vshrl.u32 %v1897, 7
    %v1899 = vsub.s32 0, %v1898
    %v1900 = vrot.slane %v1862, %v1899
    %v1901 = vlaneseq
    %v1902 = vshrl.u32 %v1901, 7
    %v1903 = vsub.s32 0, %v1902
    %v1904 = vrot.slane %v1876, %v1903
    %v1905 = vlaneseq
    %v1906 = vshrl.u32 %v1905, 7
    %v1907 = vsub.s32 0, %v1906
    %v1908 = vrot.slane %v1878, %v1907
    %v1909 = vlaneseq
    %v1910 = vshrl.u32 %v1909, 7
    %v1911 = vsub.s32 0, %v1910
    %v1912 = vrot.slane %v1880, %v1911
    %1913 = vrot.lane.b32.xlu0 %v1884, 80
    %v1914 = vpop.permute.xlu0 %1913
    %1915 = vrot.lane.b32.xlu0 %v1888, 80
    %v1916 = vpop.permute.xlu0 %1915
    %1917 = vrot.lane.b32.xlu0 %v1892, 80
    %v1918 = vpop.permute.xlu0 %1917
    %1919 = vrot.lane.b32.xlu0 %v1896, 80
    %v1920 = vpop.permute.xlu0 %1919
    %1921 = vrot.lane.b32.xlu0 %v1900, 80
    %v1922 = vpop.permute.xlu0 %1921
    %1923 = vrot.lane.b32.xlu0 %v1904, 80
    %v1924 = vpop.permute.xlu0 %1923
    %1925 = vrot.lane.b32.xlu0 %v1908, 80
    %v1926 = vpop.permute.xlu0 %1925
    %1927 = vrot.lane.b32.xlu0 %v1912, 80
    %v1928 = vpop.permute.xlu0 %1927
    %1937 = vst.msk [vmem:[#allocation5 + $0x1] sm:$0x1] %vm1008, %v1914
    %1938 = vst.msk [vmem:[#allocation5 + $0x9] sm:$0x1] %vm1008, %v1916
    %1939 = vst.msk [vmem:[#allocation5 + $0x11] sm:$0x1] %vm1008, %v1918
    %1940 = vst.msk [vmem:[#allocation5 + $0x19] sm:$0x1] %vm1008, %v1920
    %1941 = vst.msk [vmem:[#allocation5 + $0x21] sm:$0x1] %vm1008, %v1922
    %1942 = vst.msk [vmem:[#allocation5 + $0x29] sm:$0x1] %vm1008, %v1924
    %1943 = vst.msk [vmem:[#allocation5 + $0x31] sm:$0x1] %vm1008, %v1926
    %1944 = vst.msk [vmem:[#allocation5 + $0x39] sm:$0x1] %vm1008, %v1928
    %1946 = vrot.lane.b32.xlu0 %v1808, 112
    %v1947 = vpop.permute.xlu0 %1946
    %v1948 = vsel %vm57, %v1947, 0
    %1950 = vmatprep.subr.mxu0 0.0
    %1951 = vmatpush1.msra.mxu0 %v48
    %1952 = vmatprep.subr.mxu0 0.0
    %1953 = vmatpush1.msra.mxu0 %v49
    %1954 = vmatprep.subr.mxu0 0.0
    %1955 = vmatpush1.msra.mxu0 0.0
    %1956 = vmatprep.subr.mxu0 0.0
    %1957 = vmatpush1.msra.mxu0 0.0
    %1958 = vmatprep.subr.mxu0 0.0
    %1959 = vmatpush1.msra.mxu0 0.0
    %1960 = vmatprep.subr.mxu0 0.0
    %1961 = vmatpush1.msra.mxu0 0.0
    %1962 = vmatprep.subr.mxu0 0.0
    %1963 = vmatpush1.msra.mxu0 0.0
    %1964 = vmatprep.subr.mxu0 0.0
    %1965 = vmatpush1.msra.mxu0 0.0
    %1966 = vmatprep.subr.mxu0 0.0
    %1967 = vmatpush1.msra.mxu0 0.0
    %1968 = vmatprep.subr.mxu0 0.0
    %1969 = vmatpush1.msra.mxu0 0.0
    %1970 = vmatprep.subr.mxu0 0.0
    %1971 = vmatpush1.msra.mxu0 0.0
    %1972 = vmatprep.subr.mxu0 0.0
    %1973 = vmatpush1.msra.mxu0 0.0
    %1974 = vmatprep.subr.mxu0 0.0
    %1975 = vmatpush1.msra.mxu0 0.0
    %1976 = vmatprep.subr.mxu0 0.0
    %1977 = vmatpush1.msra.mxu0 0.0
    %1978 = vmatprep.subr.mxu0 0.0
    %1979 = vmatpush1.msra.mxu0 0.0
    %1980 = vmatprep.subr.mxu0 0.0
    %1981 = vmatpush1.msra.mxu0 0.0
    %1982 = vmatprep.subr.mxu0 0.0
    %1983 = vmatpush1.msra.mxu0 0.0
    %1984 = vmatprep.subr.mxu0 0.0
    %1985 = vmatpush1.msra.mxu0 0.0
    %1986 = vmatprep.subr.mxu0 0.0
    %1987 = vmatpush1.msra.mxu0 0.0
    %1988 = vmatprep.subr.mxu0 0.0
    %1989 = vmatpush1.msra.mxu0 0.0
    %1990 = vmatprep.subr.mxu0 0.0
    %1991 = vmatpush1.msra.mxu0 0.0
    %1992 = vmatprep.subr.mxu0 0.0
    %1993 = vmatpush1.msra.mxu0 0.0
    %1994 = vmatprep.subr.mxu0 0.0
    %1995 = vmatpush1.msra.mxu0 0.0
    %1996 = vmatprep.subr.mxu0 0.0
    %1997 = vmatpush1.msra.mxu0 0.0
    %1998 = vmatprep.subr.mxu0 0.0
    %1999 = vmatpush1.msra.mxu0 0.0
    %2000 = vmatprep.subr.mxu0 0.0
    %2001 = vmatpush1.msra.mxu0 0.0
    %2002 = vmatprep.subr.mxu0 0.0
    %2003 = vmatpush1.msra.mxu0 0.0
    %2004 = vmatprep.subr.mxu0 0.0
    %2005 = vmatpush1.msra.mxu0 0.0
    %2006 = vmatprep.subr.mxu0 0.0
    %2007 = vmatpush1.msra.mxu0 0.0
    %2008 = vmatprep.subr.mxu0 0.0
    %2009 = vmatpush1.msra.mxu0 0.0
    %2010 = vmatprep.subr.mxu0 0.0
    %2011 = vmatpush1.msra.mxu0 0.0
    %2012 = vmatprep.subr.mxu0 0.0
    %2013 = vmatpush1.msra.mxu0 0.0
    %2014 = vmatprep.mubr.f32.mxu0 0.0
    %2015 = vmatmul.mubr.f32.gmra.mrb[0].mxu0 %v1948
    %v2016 = vpop.f32.mrb[0].mxu0
    %v2017 = vadd.f32 0.0, %v2016
    %v2018 = vpop.f32.mrb[0].mxu0
    %2019 = vdwg.mxu0
    %2020 = vrot.lane.b32.xlu0 %v1814, 80
    %v2021 = vpop.permute.xlu0 %2020
    %v2022 = vsel %vm57, %v2021, 0
    %2024 = vmatprep.subr.mxu0 0.0
    %2025 = vmatpush1.msra.mxu0 %v46
    %2026 = vmatprep.subr.mxu0 0.0
    %2027 = vmatpush1.msra.mxu0 %v47
    %2028 = vmatprep.subr.mxu0 0.0
    %2029 = vmatpush1.msra.mxu0 0.0
    %2030 = vmatprep.subr.mxu0 0.0
    %2031 = vmatpush1.msra.mxu0 0.0
    %2032 = vmatprep.subr.mxu0 0.0
    %2033 = vmatpush1.msra.mxu0 0.0
    %2034 = vmatprep.subr.mxu0 0.0
    %2035 = vmatpush1.msra.mxu0 0.0
    %2036 = vmatprep.subr.mxu0 0.0
    %2037 = vmatpush1.msra.mxu0 0.0
    %2038 = vmatprep.subr.mxu0 0.0
    %2039 = vmatpush1.msra.mxu0 0.0
    %2040 = vmatprep.subr.mxu0 0.0
    %2041 = vmatpush1.msra.mxu0 0.0
    %2042 = vmatprep.subr.mxu0 0.0
    %2043 = vmatpush1.msra.mxu0 0.0
    %2044 = vmatprep.subr.mxu0 0.0
    %2045 = vmatpush1.msra.mxu0 0.0
    %2046 = vmatprep.subr.mxu0 0.0
    %2047 = vmatpush1.msra.mxu0 0.0
    %2048 = vmatprep.subr.mxu0 0.0
    %2049 = vmatpush1.msra.mxu0 0.0
    %2050 = vmatprep.subr.mxu0 0.0
    %2051 = vmatpush1.msra.mxu0 0.0
    %2052 = vmatprep.subr.mxu0 0.0
    %2053 = vmatpush1.msra.mxu0 0.0
    %2054 = vmatprep.subr.mxu0 0.0
    %2055 = vmatpush1.msra.mxu0 0.0
    %2056 = vmatprep.subr.mxu0 0.0
    %2057 = vmatpush1.msra.mxu0 0.0
    %2058 = vmatprep.subr.mxu0 0.0
    %2059 = vmatpush1.msra.mxu0 0.0
    %2060 = vmatprep.subr.mxu0 0.0
    %2061 = vmatpush1.msra.mxu0 0.0
    %2062 = vmatprep.subr.mxu0 0.0
    %2063 = vmatpush1.msra.mxu0 0.0
    %2064 = vmatprep.subr.mxu0 0.0
    %2065 = vmatpush1.msra.mxu0 0.0
    %2066 = vmatprep.subr.mxu0 0.0
    %2067 = vmatpush1.msra.mxu0 0.0
    %2068 = vmatprep.subr.mxu0 0.0
    %2069 = vmatpush1.msra.mxu0 0.0
    %2070 = vmatprep.subr.mxu0 0.0
    %2071 = vmatpush1.msra.mxu0 0.0
    %2072 = vmatprep.subr.mxu0 0.0
    %2073 = vmatpush1.msra.mxu0 0.0
    %2074 = vmatprep.subr.mxu0 0.0
    %2075 = vmatpush1.msra.mxu0 0.0
    %2076 = vmatprep.subr.mxu0 0.0
    %2077 = vmatpush1.msra.mxu0 0.0
    %2078 = vmatprep.subr.mxu0 0.0
    %2079 = vmatpush1.msra.mxu0 0.0
    %2080 = vmatprep.subr.mxu0 0.0
    %2081 = vmatpush1.msra.mxu0 0.0
    %2082 = vmatprep.subr.mxu0 0.0
    %2083 = vmatpush1.msra.mxu0 0.0
    %2084 = vmatprep.subr.mxu0 0.0
    %2085 = vmatpush1.msra.mxu0 0.0
    %2086 = vmatprep.subr.mxu0 0.0
    %2087 = vmatpush1.msra.mxu0 0.0
    %2088 = vmatprep.mubr.f32.mxu0 0.0
    %2089 = vmatmul.mubr.f32.gmra.mrb[0].mxu0 %v2022
    %v2090 = vpop.f32.mrb[0].mxu0
    %v2091 = vadd.f32 %v2017, %v2090
    %v2092 = vpop.f32.mrb[0].mxu0
    %2093 = vdwg.mxu0
    %v2094 = vadd.f32 %v2091, %v205
    %v2096 = vcombine.high %v2094, %v2094
    %v2098 = vunpack.c.l.s4 1966171168
    %v2099 = vunpack.c.0.s8 %v2098
    %v2100 = vlaneseq
    %v2101 = vshrl.u32 %v2100, 7
    %v2102 = vsub.s32 %v2099, %v2101
    %v2103 = vrot.slane %v2094, %v2102
    %v2105 = vunpack.c.l.s4 1966171168
    %v2106 = vunpack.c.0.s8 %v2105
    %v2107 = vlaneseq
    %v2108 = vshrl.u32 %v2107, 7
    %v2109 = vsub.s32 %v2106, %v2108
    %v2110 = vrot.slane %v2096, %v2109
    %v2111 = vcombine.high %v2103, %v2103
    %v2112 = vcombine.high %v2110, %v2110
    %v2114 = vunpack.c.l.s4 1966171168
    %v2115 = vunpack.c.0.s8 %v2114
    %v2116 = vlaneseq
    %v2117 = vshrl.u32 %v2116, 7
    %v2118 = vsub.s32 %v2115, %v2117
    %v2119 = vrot.slane %v2103, %v2118
    %v2121 = vunpack.c.l.s4 1966171168
    %v2122 = vunpack.c.0.s8 %v2121
    %v2123 = vlaneseq
    %v2124 = vshrl.u32 %v2123, 7
    %v2125 = vsub.s32 %v2122, %v2124
    %v2126 = vrot.slane %v2110, %v2125
    %v2128 = vunpack.c.l.s4 1966171168
    %v2129 = vunpack.c.0.s8 %v2128
    %v2130 = vlaneseq
    %v2131 = vshrl.u32 %v2130, 7
    %v2132 = vsub.s32 %v2129, %v2131
    %v2133 = vrot.slane %v2111, %v2132
    %v2135 = vunpack.c.l.s4 1966171168
    %v2136 = vunpack.c.0.s8 %v2135
    %v2137 = vlaneseq
    %v2138 = vshrl.u32 %v2137, 7
    %v2139 = vsub.s32 %v2136, %v2138
    %v2140 = vrot.slane %v2112, %v2139
    %v2141 = vcombine.high %v2119, %v2119
    %v2142 = vcombine.high %v2126, %v2126
    %v2143 = vcombine.high %v2133, %v2133
    %v2144 = vcombine.high %v2140, %v2140
    %v2145 = vlaneseq
    %v2146 = vshrl.u32 %v2145, 7
    %v2147 = vsub.s32 0, %v2146
    %v2148 = vrot.slane %v2119, %v2147
    %v2149 = vlaneseq
    %v2150 = vshrl.u32 %v2149, 7
    %v2151 = vsub.s32 0, %v2150
    %v2152 = vrot.slane %v2133, %v2151
    %v2153 = vlaneseq
    %v2154 = vshrl.u32 %v2153, 7
    %v2155 = vsub.s32 0, %v2154
    %v2156 = vrot.slane %v2141, %v2155
    %v2157 = vlaneseq
    %v2158 = vshrl.u32 %v2157, 7
    %v2159 = vsub.s32 0, %v2158
    %v2160 = vrot.slane %v2143, %v2159
    %v2161 = vlaneseq
    %v2162 = vshrl.u32 %v2161, 7
    %v2163 = vsub.s32 0, %v2162
    %v2164 = vrot.slane %v2126, %v2163
    %v2165 = vlaneseq
    %v2166 = vshrl.u32 %v2165, 7
    %v2167 = vsub.s32 0, %v2166
    %v2168 = vrot.slane %v2140, %v2167
    %v2169 = vlaneseq
    %v2170 = vshrl.u32 %v2169, 7
    %v2171 = vsub.s32 0, %v2170
    %v2172 = vrot.slane %v2142, %v2171
    %v2173 = vlaneseq
    %v2174 = vshrl.u32 %v2173, 7
    %v2175 = vsub.s32 0, %v2174
    %v2176 = vrot.slane %v2144, %v2175
    %v2185 = vadd.f32 %v38, %v2148
    %v2186 = vadd.f32 %v39, %v2152
    %v2187 = vadd.f32 %v40, %v2156
    %v2188 = vadd.f32 %v41, %v2160
    %v2189 = vadd.f32 %v42, %v2164
    %v2190 = vadd.f32 %v43, %v2168
    %v2191 = vadd.f32 %v44, %v2172
    %v2192 = vadd.f32 %v45, %v2176
    %v2193 = vtanh.pop %v2185
    %v2194 = vtanh.pop %v2186
    %v2195 = vtanh.pop %v2187
    %v2196 = vtanh.pop %v2188
    %v2197 = vtanh.pop %v2189
    %v2198 = vtanh.pop %v2190
    %v2199 = vtanh.pop %v2191
    %v2200 = vtanh.pop %v2192
    %v2201 = vmul.f32 %v2193, %v318
    %v2202 = vmul.f32 %v2194, %v318
    %v2203 = vmul.f32 %v2195, %v318
    %v2204 = vmul.f32 %v2196, %v318
    %v2205 = vmul.f32 %v2197, %v318
    %v2206 = vmul.f32 %v2198, %v318
    %v2207 = vmul.f32 %v2199, %v318
    %v2208 = vmul.f32 %v2200, %v318
    %v2209 = vsel %vm328, %v2201, 0.0
    %2210 = vadd.xlane.f32.xlu0 %v2209
    %v2211 = vpop.xlane.xlu0 %2210
    %v2212 = vsel %vm328, %v2202, 0.0
    %2213 = vadd.xlane.f32.xlu0 %v2212
    %v2214 = vpop.xlane.xlu0 %2213
    %v2215 = vsel %vm328, %v2203, 0.0
    %2216 = vadd.xlane.f32.xlu0 %v2215
    %v2217 = vpop.xlane.xlu0 %2216
    %v2218 = vsel %vm328, %v2204, 0.0
    %2219 = vadd.xlane.f32.xlu0 %v2218
    %v2220 = vpop.xlane.xlu0 %2219
    %v2221 = vsel %vm328, %v2205, 0.0
    %2222 = vadd.xlane.f32.xlu0 %v2221
    %v2223 = vpop.xlane.xlu0 %2222
    %v2224 = vsel %vm328, %v2206, 0.0
    %2225 = vadd.xlane.f32.xlu0 %v2224
    %v2226 = vpop.xlane.xlu0 %2225
    %v2227 = vsel %vm328, %v2207, 0.0
    %2228 = vadd.xlane.f32.xlu0 %v2227
    %v2229 = vpop.xlane.xlu0 %2228
    %v2230 = vsel %vm328, %v2208, 0.0
    %2231 = vadd.xlane.f32.xlu0 %v2230
    %v2232 = vpop.xlane.xlu0 %2231
    %v2233 = vadd.f32 %v2211, %v360
    %v2234 = vadd.f32 %v2214, %v360
    %v2235 = vadd.f32 %v2217, %v360
    %v2236 = vadd.f32 %v2220, %v360
    %v2237 = vadd.f32 %v2223, %v360
    %v2238 = vadd.f32 %v2226, %v360
    %v2239 = vadd.f32 %v2229, %v360
    %v2240 = vadd.f32 %v2232, %v360
    %v2249 = vlaneseq
    %v2250 = vshrl.u32 %v2249, 7
    %v2251 = vsub.s32 %v379, %v2250
    %v2252 = vrot.slane %v2233, %v2251
    %v2253 = vlaneseq
    %v2254 = vshrl.u32 %v2253, 7
    %v2255 = vsub.s32 %v379, %v2254
    %v2256 = vrot.slane %v2234, %v2255
    %v2257 = vlaneseq
    %v2258 = vshrl.u32 %v2257, 7
    %v2259 = vsub.s32 %v379, %v2258
    %v2260 = vrot.slane %v2235, %v2259
    %v2261 = vlaneseq
    %v2262 = vshrl.u32 %v2261, 7
    %v2263 = vsub.s32 %v379, %v2262
    %v2264 = vrot.slane %v2236, %v2263
    %v2265 = vlaneseq
    %v2266 = vshrl.u32 %v2265, 7
    %v2267 = vsub.s32 %v379, %v2266
    %v2268 = vrot.slane %v2237, %v2267
    %v2269 = vlaneseq
    %v2270 = vshrl.u32 %v2269, 7
    %v2271 = vsub.s32 %v379, %v2270
    %v2272 = vrot.slane %v2238, %v2271
    %v2273 = vlaneseq
    %v2274 = vshrl.u32 %v2273, 7
    %v2275 = vsub.s32 %v379, %v2274
    %v2276 = vrot.slane %v2239, %v2275
    %v2277 = vlaneseq
    %v2278 = vshrl.u32 %v2277, 7
    %v2279 = vsub.s32 %v379, %v2278
    %v2280 = vrot.slane %v2240, %v2279
    %v2281 = vsel %vm412, %v2256, %v2252
    %v2282 = vsel %vm414, %v2260, %v2281
    %v2283 = vsel %vm416, %v2264, %v2282
    %v2284 = vsel %vm418, %v2268, %v2283
    %v2285 = vsel %vm420, %v2272, %v2284
    %v2286 = vsel %vm422, %v2276, %v2285
    %v2287 = vsel %vm424, %v2280, %v2286
    %v2289 = vsel %vm328, %v2287, -inf
    %2290 = vmax.xlane.f32.xlu0 %v2289
    %v2291 = vpop.xlane.xlu0 %2290
    %v2293 = vlaneseq
    %v2294 = vshrl.u32 %v2293, 7
    %v2295 = vsub.s32 0, %v2294
    %v2296 = vrot.slane %v2291, %v2295
    %v2297 = vlaneseq
    %v2298 = vshrl.u32 %v2297, 7
    %v2299 = vsub.s32 1, %v2298
    %v2300 = vrot.slane %v2291, %v2299
    %v2301 = vlaneseq
    %v2302 = vshrl.u32 %v2301, 7
    %v2303 = vsub.s32 2, %v2302
    %v2304 = vrot.slane %v2291, %v2303
    %v2305 = vlaneseq
    %v2306 = vshrl.u32 %v2305, 7
    %v2307 = vsub.s32 3, %v2306
    %v2308 = vrot.slane %v2291, %v2307
    %v2309 = vlaneseq
    %v2310 = vshrl.u32 %v2309, 7
    %v2311 = vsub.s32 4, %v2310
    %v2312 = vrot.slane %v2291, %v2311
    %v2313 = vlaneseq
    %v2314 = vshrl.u32 %v2313, 7
    %v2315 = vsub.s32 5, %v2314
    %v2316 = vrot.slane %v2291, %v2315
    %v2317 = vlaneseq
    %v2318 = vshrl.u32 %v2317, 7
    %v2319 = vsub.s32 6, %v2318
    %v2320 = vrot.slane %v2291, %v2319
    %v2321 = vlaneseq
    %v2322 = vshrl.u32 %v2321, 7
    %v2323 = vsub.s32 7, %v2322
    %v2324 = vrot.slane %v2291, %v2323
    %v2333 = vsub.f32 %v2233, %v2296
    %v2334 = vsub.f32 %v2234, %v2300
    %v2335 = vsub.f32 %v2235, %v2304
    %v2336 = vsub.f32 %v2236, %v2308
    %v2337 = vsub.f32 %v2237, %v2312
    %v2338 = vsub.f32 %v2238, %v2316
    %v2339 = vsub.f32 %v2239, %v2320
    %v2340 = vsub.f32 %v2240, %v2324
    %v2341 = vmul.f32 %v2333, 1.442695
    %v2342 = vpow.pop %v2341
    %v2343 = vmul.f32 %v2334, 1.442695
    %v2344 = vpow.pop %v2343
    %v2345 = vmul.f32 %v2335, 1.442695
    %v2346 = vpow.pop %v2345
    %v2347 = vmul.f32 %v2336, 1.442695
    %v2348 = vpow.pop %v2347
    %v2349 = vmul.f32 %v2337, 1.442695
    %v2350 = vpow.pop %v2349
    %v2351 = vmul.f32 %v2338, 1.442695
    %v2352 = vpow.pop %v2351
    %v2353 = vmul.f32 %v2339, 1.442695
    %v2354 = vpow.pop %v2353
    %v2355 = vmul.f32 %v2340, 1.442695
    %v2356 = vpow.pop %v2355
    %2365 = vset.pattern.permute.xlu0 0
    %2366 = vperm.xlu0 %2365, %v2342
    %v2367 = vpop.permute.xlu0 %2366
    %2368 = vset.pattern.permute.xlu0 0
    %2369 = vperm.xlu0 %2368, %v2344
    %v2370 = vpop.permute.xlu0 %2369
    %2371 = vset.pattern.permute.xlu0 0
    %2372 = vperm.xlu0 %2371, %v2346
    %v2373 = vpop.permute.xlu0 %2372
    %2374 = vset.pattern.permute.xlu0 0
    %2375 = vperm.xlu0 %2374, %v2348
    %v2376 = vpop.permute.xlu0 %2375
    %2377 = vset.pattern.permute.xlu0 0
    %2378 = vperm.xlu0 %2377, %v2350
    %v2379 = vpop.permute.xlu0 %2378
    %2380 = vset.pattern.permute.xlu0 0
    %2381 = vperm.xlu0 %2380, %v2352
    %v2382 = vpop.permute.xlu0 %2381
    %2383 = vset.pattern.permute.xlu0 0
    %2384 = vperm.xlu0 %2383, %v2354
    %v2385 = vpop.permute.xlu0 %2384
    %2386 = vset.pattern.permute.xlu0 0
    %2387 = vperm.xlu0 %2386, %v2356
    %v2388 = vpop.permute.xlu0 %2387
    %v2389 = vlaneseq
    %v2390 = vshrl.u32 %v2389, 7
    %v2391 = vsub.s32 %v379, %v2390
    %v2392 = vrot.slane %v2367, %v2391
    %v2393 = vlaneseq
    %v2394 = vshrl.u32 %v2393, 7
    %v2395 = vsub.s32 %v379, %v2394
    %v2396 = vrot.slane %v2370, %v2395
    %v2397 = vlaneseq
    %v2398 = vshrl.u32 %v2397, 7
    %v2399 = vsub.s32 %v379, %v2398
    %v2400 = vrot.slane %v2373, %v2399
    %v2401 = vlaneseq
    %v2402 = vshrl.u32 %v2401, 7
    %v2403 = vsub.s32 %v379, %v2402
    %v2404 = vrot.slane %v2376, %v2403
    %v2405 = vlaneseq
    %v2406 = vshrl.u32 %v2405, 7
    %v2407 = vsub.s32 %v379, %v2406
    %v2408 = vrot.slane %v2379, %v2407
    %v2409 = vlaneseq
    %v2410 = vshrl.u32 %v2409, 7
    %v2411 = vsub.s32 %v379, %v2410
    %v2412 = vrot.slane %v2382, %v2411
    %v2413 = vlaneseq
    %v2414 = vshrl.u32 %v2413, 7
    %v2415 = vsub.s32 %v379, %v2414
    %v2416 = vrot.slane %v2385, %v2415
    %v2417 = vlaneseq
    %v2418 = vshrl.u32 %v2417, 7
    %v2419 = vsub.s32 %v379, %v2418
    %v2420 = vrot.slane %v2388, %v2419
    %v2421 = vsel %vm412, %v2396, %v2392
    %v2422 = vsel %vm414, %v2400, %v2421
    %v2423 = vsel %vm416, %v2404, %v2422
    %v2424 = vsel %vm418, %v2408, %v2423
    %v2425 = vsel %vm420, %v2412, %v2424
    %v2426 = vsel %vm422, %v2416, %v2425
    %v2427 = vsel %vm424, %v2420, %v2426
    %v2429 = vsel %vm328, %v2427, 0.0
    %2430 = vadd.xlane.f32.xlu0 %v2429
    %v2431 = vpop.xlane.xlu0 %2430
    %v2432 = vrcp.pop %v2431
    %v2434 = vlaneseq
    %v2435 = vshrl.u32 %v2434, 7
    %v2436 = vsub.s32 0, %v2435
    %v2437 = vrot.slane %v2432, %v2436
    %v2438 = vlaneseq
    %v2439 = vshrl.u32 %v2438, 7
    %v2440 = vsub.s32 1, %v2439
    %v2441 = vrot.slane %v2432, %v2440
    %v2442 = vlaneseq
    %v2443 = vshrl.u32 %v2442, 7
    %v2444 = vsub.s32 2, %v2443
    %v2445 = vrot.slane %v2432, %v2444
    %v2446 = vlaneseq
    %v2447 = vshrl.u32 %v2446, 7
    %v2448 = vsub.s32 3, %v2447
    %v2449 = vrot.slane %v2432, %v2448
    %v2450 = vlaneseq
    %v2451 = vshrl.u32 %v2450, 7
    %v2452 = vsub.s32 4, %v2451
    %v2453 = vrot.slane %v2432, %v2452
    %v2454 = vlaneseq
    %v2455 = vshrl.u32 %v2454, 7
    %v2456 = vsub.s32 5, %v2455
    %v2457 = vrot.slane %v2432, %v2456
    %v2458 = vlaneseq
    %v2459 = vshrl.u32 %v2458, 7
    %v2460 = vsub.s32 6, %v2459
    %v2461 = vrot.slane %v2432, %v2460
    %v2462 = vlaneseq
    %v2463 = vshrl.u32 %v2462, 7
    %v2464 = vsub.s32 7, %v2463
    %v2465 = vrot.slane %v2432, %v2464
    %v2474 = vmul.f32 %v2342, %v2437
    %v2475 = vmul.f32 %v2344, %v2441
    %v2476 = vmul.f32 %v2346, %v2445
    %v2477 = vmul.f32 %v2348, %v2449
    %v2478 = vmul.f32 %v2350, %v2453
    %v2479 = vmul.f32 %v2352, %v2457
    %v2480 = vmul.f32 %v2354, %v2461
    %v2481 = vmul.f32 %v2356, %v2465
    %v2482 = vld [vmem:[%s1 + $0x2] sm:$0x1]
    %v2483 = vld [vmem:[%s1 + $0xa] sm:$0x1]
    %v2484 = vld [vmem:[%s1 + $0x12] sm:$0x1]
    %v2485 = vld [vmem:[%s1 + $0x1a] sm:$0x1]
    %v2486 = vld [vmem:[%s1 + $0x22] sm:$0x1]
    %v2487 = vld [vmem:[%s1 + $0x2a] sm:$0x1]
    %v2488 = vld [vmem:[%s1 + $0x32] sm:$0x1]
    %v2489 = vld [vmem:[%s1 + $0x3a] sm:$0x1]
    %v2498 = vlaneseq
    %v2499 = vshrl.u32 %v2498, 7
    %v2500 = vsub.s32 0, %v2499
    %v2501 = vrot.slane %v2482, %v2500
    %2503 = vbcast.lane.b32.xlu0 %v2501, 256
    %v2504 = vpop.permute.xlu0 %2503
    %v2505 = vlaneseq
    %v2506 = vshrl.u32 %v2505, 7
    %v2507 = vsub.s32 0, %v2506
    %v2508 = vrot.slane %v2483, %v2507
    %2510 = vbcast.lane.b32.xlu0 %v2508, 256
    %v2511 = vpop.permute.xlu0 %2510
    %v2512 = vlaneseq
    %v2513 = vshrl.u32 %v2512, 7
    %v2514 = vsub.s32 0, %v2513
    %v2515 = vrot.slane %v2484, %v2514
    %2517 = vbcast.lane.b32.xlu0 %v2515, 256
    %v2518 = vpop.permute.xlu0 %2517
    %v2519 = vlaneseq
    %v2520 = vshrl.u32 %v2519, 7
    %v2521 = vsub.s32 0, %v2520
    %v2522 = vrot.slane %v2485, %v2521
    %2524 = vbcast.lane.b32.xlu0 %v2522, 256
    %v2525 = vpop.permute.xlu0 %2524
    %v2526 = vlaneseq
    %v2527 = vshrl.u32 %v2526, 7
    %v2528 = vsub.s32 0, %v2527
    %v2529 = vrot.slane %v2486, %v2528
    %2531 = vbcast.lane.b32.xlu0 %v2529, 256
    %v2532 = vpop.permute.xlu0 %2531
    %v2533 = vlaneseq
    %v2534 = vshrl.u32 %v2533, 7
    %v2535 = vsub.s32 0, %v2534
    %v2536 = vrot.slane %v2487, %v2535
    %2538 = vbcast.lane.b32.xlu0 %v2536, 256
    %v2539 = vpop.permute.xlu0 %2538
    %v2540 = vlaneseq
    %v2541 = vshrl.u32 %v2540, 7
    %v2542 = vsub.s32 0, %v2541
    %v2543 = vrot.slane %v2488, %v2542
    %2545 = vbcast.lane.b32.xlu0 %v2543, 256
    %v2546 = vpop.permute.xlu0 %2545
    %v2547 = vlaneseq
    %v2548 = vshrl.u32 %v2547, 7
    %v2549 = vsub.s32 0, %v2548
    %v2550 = vrot.slane %v2489, %v2549
    %2552 = vbcast.lane.b32.xlu0 %v2550, 256
    %v2553 = vpop.permute.xlu0 %2552
    %v2562 = vmul.f32 %v2474, %v2504
    %v2563 = vmul.f32 %v2475, %v2511
    %v2564 = vmul.f32 %v2476, %v2518
    %v2565 = vmul.f32 %v2477, %v2525
    %v2566 = vmul.f32 %v2478, %v2532
    %v2567 = vmul.f32 %v2479, %v2539
    %v2568 = vmul.f32 %v2480, %v2546
    %v2569 = vmul.f32 %v2481, %v2553
    %2578 = vset.pattern.permute.xlu0 0
    %2579 = vperm.xlu0 %2578, %v2562
    %v2580 = vpop.permute.xlu0 %2579
    %2581 = vset.pattern.permute.xlu0 0
    %2582 = vperm.xlu0 %2581, %v2563
    %v2583 = vpop.permute.xlu0 %2582
    %2584 = vset.pattern.permute.xlu0 0
    %2585 = vperm.xlu0 %2584, %v2564
    %v2586 = vpop.permute.xlu0 %2585
    %2587 = vset.pattern.permute.xlu0 0
    %2588 = vperm.xlu0 %2587, %v2565
    %v2589 = vpop.permute.xlu0 %2588
    %2590 = vset.pattern.permute.xlu0 0
    %2591 = vperm.xlu0 %2590, %v2566
    %v2592 = vpop.permute.xlu0 %2591
    %2593 = vset.pattern.permute.xlu0 0
    %2594 = vperm.xlu0 %2593, %v2567
    %v2595 = vpop.permute.xlu0 %2594
    %2596 = vset.pattern.permute.xlu0 0
    %2597 = vperm.xlu0 %2596, %v2568
    %v2598 = vpop.permute.xlu0 %2597
    %2599 = vset.pattern.permute.xlu0 0
    %2600 = vperm.xlu0 %2599, %v2569
    %v2601 = vpop.permute.xlu0 %2600
    %v2602 = vlaneseq
    %v2603 = vshrl.u32 %v2602, 7
    %v2604 = vsub.s32 %v379, %v2603
    %v2605 = vrot.slane %v2580, %v2604
    %v2606 = vlaneseq
    %v2607 = vshrl.u32 %v2606, 7
    %v2608 = vsub.s32 %v379, %v2607
    %v2609 = vrot.slane %v2583, %v2608
    %v2610 = vlaneseq
    %v2611 = vshrl.u32 %v2610, 7
    %v2612 = vsub.s32 %v379, %v2611
    %v2613 = vrot.slane %v2586, %v2612
    %v2614 = vlaneseq
    %v2615 = vshrl.u32 %v2614, 7
    %v2616 = vsub.s32 %v379, %v2615
    %v2617 = vrot.slane %v2589, %v2616
    %v2618 = vlaneseq
    %v2619 = vshrl.u32 %v2618, 7
    %v2620 = vsub.s32 %v379, %v2619
    %v2621 = vrot.slane %v2592, %v2620
    %v2622 = vlaneseq
    %v2623 = vshrl.u32 %v2622, 7
    %v2624 = vsub.s32 %v379, %v2623
    %v2625 = vrot.slane %v2595, %v2624
    %v2626 = vlaneseq
    %v2627 = vshrl.u32 %v2626, 7
    %v2628 = vsub.s32 %v379, %v2627
    %v2629 = vrot.slane %v2598, %v2628
    %v2630 = vlaneseq
    %v2631 = vshrl.u32 %v2630, 7
    %v2632 = vsub.s32 %v379, %v2631
    %v2633 = vrot.slane %v2601, %v2632
    %v2634 = vsel %vm412, %v2609, %v2605
    %v2635 = vsel %vm414, %v2613, %v2634
    %v2636 = vsel %vm416, %v2617, %v2635
    %v2637 = vsel %vm418, %v2621, %v2636
    %v2638 = vsel %vm420, %v2625, %v2637
    %v2639 = vsel %vm422, %v2629, %v2638
    %v2640 = vsel %vm424, %v2633, %v2639
    %2642 = vrot.lane.b32.xlu0 %v1814, 88
    %v2643 = vpop.permute.xlu0 %2642
    %v2645 = vsel %vm328, %v2640, %v2643
    %v2647 = vsel %vm787, %v2645, 0
    %2649 = vmatprep.subr.mxu0 0.0
    %2650 = vmatpush1.msra.mxu0 %v53
    %2651 = vmatprep.subr.mxu0 0.0
    %2652 = vmatpush1.msra.mxu0 %v54
    %2653 = vmatprep.subr.mxu0 0.0
    %2654 = vmatpush1.msra.mxu0 %v55
    %2655 = vmatprep.subr.mxu0 0.0
    %2656 = vmatpush1.msra.mxu0 0.0
    %2657 = vmatprep.subr.mxu0 0.0
    %2658 = vmatpush1.msra.mxu0 0.0
    %2659 = vmatprep.subr.mxu0 0.0
    %2660 = vmatpush1.msra.mxu0 0.0
    %2661 = vmatprep.subr.mxu0 0.0
    %2662 = vmatpush1.msra.mxu0 0.0
    %2663 = vmatprep.subr.mxu0 0.0
    %2664 = vmatpush1.msra.mxu0 0.0
    %2665 = vmatprep.subr.mxu0 0.0
    %2666 = vmatpush1.msra.mxu0 0.0
    %2667 = vmatprep.subr.mxu0 0.0
    %2668 = vmatpush1.msra.mxu0 0.0
    %2669 = vmatprep.subr.mxu0 0.0
    %2670 = vmatpush1.msra.mxu0 0.0
    %2671 = vmatprep.subr.mxu0 0.0
    %2672 = vmatpush1.msra.mxu0 0.0
    %2673 = vmatprep.subr.mxu0 0.0
    %2674 = vmatpush1.msra.mxu0 0.0
    %2675 = vmatprep.subr.mxu0 0.0
    %2676 = vmatpush1.msra.mxu0 0.0
    %2677 = vmatprep.subr.mxu0 0.0
    %2678 = vmatpush1.msra.mxu0 0.0
    %2679 = vmatprep.subr.mxu0 0.0
    %2680 = vmatpush1.msra.mxu0 0.0
    %2681 = vmatprep.subr.mxu0 0.0
    %2682 = vmatpush1.msra.mxu0 0.0
    %2683 = vmatprep.subr.mxu0 0.0
    %2684 = vmatpush1.msra.mxu0 0.0
    %2685 = vmatprep.subr.mxu0 0.0
    %2686 = vmatpush1.msra.mxu0 0.0
    %2687 = vmatprep.subr.mxu0 0.0
    %2688 = vmatpush1.msra.mxu0 0.0
    %2689 = vmatprep.subr.mxu0 0.0
    %2690 = vmatpush1.msra.mxu0 0.0
    %2691 = vmatprep.subr.mxu0 0.0
    %2692 = vmatpush1.msra.mxu0 0.0
    %2693 = vmatprep.subr.mxu0 0.0
    %2694 = vmatpush1.msra.mxu0 0.0
    %2695 = vmatprep.subr.mxu0 0.0
    %2696 = vmatpush1.msra.mxu0 0.0
    %2697 = vmatprep.subr.mxu0 0.0
    %2698 = vmatpush1.msra.mxu0 0.0
    %2699 = vmatprep.subr.mxu0 0.0
    %2700 = vmatpush1.msra.mxu0 0.0
    %2701 = vmatprep.subr.mxu0 0.0
    %2702 = vmatpush1.msra.mxu0 0.0
    %2703 = vmatprep.subr.mxu0 0.0
    %2704 = vmatpush1.msra.mxu0 0.0
    %2705 = vmatprep.subr.mxu0 0.0
    %2706 = vmatpush1.msra.mxu0 0.0
    %2707 = vmatprep.subr.mxu0 0.0
    %2708 = vmatpush1.msra.mxu0 0.0
    %2709 = vmatprep.subr.mxu0 0.0
    %2710 = vmatpush1.msra.mxu0 0.0
    %2711 = vmatprep.subr.mxu0 0.0
    %2712 = vmatpush1.msra.mxu0 0.0
    %2713 = vmatprep.mubr.f32.mxu0 0.0
    %2714 = vmatmul.mubr.f32.gmra.mrb[0].mxu0 %v2647
    %v2715 = vpop.f32.mrb[0].mxu0
    %v2716 = vadd.f32 %v785, %v2715
    %v2717 = vpop.f32.mrb[0].mxu0
    %2718 = vdwg.mxu0
    %v2719 = vxor.u32 %v2716, 2147483648
    %v2720 = vmul.f32 %v2719, 1.442695
    %v2721 = vpow.pop %v2720
    %v2722 = vadd.f32 %v2721, 1.0
    %v2723 = vrcp.pop %v2722
    %v2724 = vmul.f32 1.0, %v2723
    %v2725 = vtanh.pop %v2716
    %v2726 = vmul.f32 %v2724, %v1808
    %2728 = vrot.lane.b32.xlu0 %v2725, 96
    %v2729 = vpop.permute.xlu0 %2728
    %v2731 = vmul.f32 %v2724, %v2729
    %2733 = vrot.lane.b32.xlu0 %v2731, 16
    %v2734 = vpop.permute.xlu0 %2733
    %v2736 = vadd.f32 %v2726, %v2734
    %v2737 = vtanh.pop %v2736
    %2739 = vrot.lane.b32.xlu0 %v2737, 32
    %v2740 = vpop.permute.xlu0 %2739
    %v2742 = vmul.f32 %v2724, %v2740
    %2751 = vst.msk [vmem:[#allocation3 + $0x2] sm:$0x1] %vm893, %v2605
    %2752 = vst.msk [vmem:[#allocation3 + $0xa] sm:$0x1] %vm893, %v2609
    %2753 = vst.msk [vmem:[#allocation3 + $0x12] sm:$0x1] %vm893, %v2613
    %2754 = vst.msk [vmem:[#allocation3 + $0x1a] sm:$0x1] %vm893, %v2617
    %2755 = vst.msk [vmem:[#allocation3 + $0x22] sm:$0x1] %vm893, %v2621
    %2756 = vst.msk [vmem:[#allocation3 + $0x2a] sm:$0x1] %vm893, %v2625
    %2757 = vst.msk [vmem:[#allocation3 + $0x32] sm:$0x1] %vm893, %v2629
    %2758 = vst.msk [vmem:[#allocation3 + $0x3a] sm:$0x1] %vm893, %v2633
    %v2760 = vcombine.high %v2742, %v2742
    %v2762 = vunpack.c.l.s4 1966171168
    %v2763 = vunpack.c.0.s8 %v2762
    %v2764 = vlaneseq
    %v2765 = vshrl.u32 %v2764, 7
    %v2766 = vsub.s32 %v2763, %v2765
    %v2767 = vrot.slane %v2742, %v2766
    %v2769 = vunpack.c.l.s4 1966171168
    %v2770 = vunpack.c.0.s8 %v2769
    %v2771 = vlaneseq
    %v2772 = vshrl.u32 %v2771, 7
    %v2773 = vsub.s32 %v2770, %v2772
    %v2774 = vrot.slane %v2760, %v2773
    %v2775 = vcombine.high %v2767, %v2767
    %v2776 = vcombine.high %v2774, %v2774
    %v2778 = vunpack.c.l.s4 1966171168
    %v2779 = vunpack.c.0.s8 %v2778
    %v2780 = vlaneseq
    %v2781 = vshrl.u32 %v2780, 7
    %v2782 = vsub.s32 %v2779, %v2781
    %v2783 = vrot.slane %v2767, %v2782
    %v2785 = vunpack.c.l.s4 1966171168
    %v2786 = vunpack.c.0.s8 %v2785
    %v2787 = vlaneseq
    %v2788 = vshrl.u32 %v2787, 7
    %v2789 = vsub.s32 %v2786, %v2788
    %v2790 = vrot.slane %v2774, %v2789
    %v2792 = vunpack.c.l.s4 1966171168
    %v2793 = vunpack.c.0.s8 %v2792
    %v2794 = vlaneseq
    %v2795 = vshrl.u32 %v2794, 7
    %v2796 = vsub.s32 %v2793, %v2795
    %v2797 = vrot.slane %v2775, %v2796
    %v2799 = vunpack.c.l.s4 1966171168
    %v2800 = vunpack.c.0.s8 %v2799
    %v2801 = vlaneseq
    %v2802 = vshrl.u32 %v2801, 7
    %v2803 = vsub.s32 %v2800, %v2802
    %v2804 = vrot.slane %v2776, %v2803
    %v2805 = vcombine.high %v2783, %v2783
    %v2806 = vcombine.high %v2790, %v2790
    %v2807 = vcombine.high %v2797, %v2797
    %v2808 = vcombine.high %v2804, %v2804
    %v2809 = vlaneseq
    %v2810 = vshrl.u32 %v2809, 7
    %v2811 = vsub.s32 0, %v2810
    %v2812 = vrot.slane %v2783, %v2811
    %v2813 = vlaneseq
    %v2814 = vshrl.u32 %v2813, 7
    %v2815 = vsub.s32 0, %v2814
    %v2816 = vrot.slane %v2797, %v2815
    %v2817 = vlaneseq
    %v2818 = vshrl.u32 %v2817, 7
    %v2819 = vsub.s32 0, %v2818
    %v2820 = vrot.slane %v2805, %v2819
    %v2821 = vlaneseq
    %v2822 = vshrl.u32 %v2821, 7
    %v2823 = vsub.s32 0, %v2822
    %v2824 = vrot.slane %v2807, %v2823
    %v2825 = vlaneseq
    %v2826 = vshrl.u32 %v2825, 7
    %v2827 = vsub.s32 0, %v2826
    %v2828 = vrot.slane %v2790, %v2827
    %v2829 = vlaneseq
    %v2830 = vshrl.u32 %v2829, 7
    %v2831 = vsub.s32 0, %v2830
    %v2832 = vrot.slane %v2804, %v2831
    %v2833 = vlaneseq
    %v2834 = vshrl.u32 %v2833, 7
    %v2835 = vsub.s32 0, %v2834
    %v2836 = vrot.slane %v2806, %v2835
    %v2837 = vlaneseq
    %v2838 = vshrl.u32 %v2837, 7
    %v2839 = vsub.s32 0, %v2838
    %v2840 = vrot.slane %v2808, %v2839
    %2841 = vrot.lane.b32.xlu0 %v2812, 80
    %v2842 = vpop.permute.xlu0 %2841
    %2843 = vrot.lane.b32.xlu0 %v2816, 80
    %v2844 = vpop.permute.xlu0 %2843
    %2845 = vrot.lane.b32.xlu0 %v2820, 80
    %v2846 = vpop.permute.xlu0 %2845
    %2847 = vrot.lane.b32.xlu0 %v2824, 80
    %v2848 = vpop.permute.xlu0 %2847
    %2849 = vrot.lane.b32.xlu0 %v2828, 80
    %v2850 = vpop.permute.xlu0 %2849
    %2851 = vrot.lane.b32.xlu0 %v2832, 80
    %v2852 = vpop.permute.xlu0 %2851
    %2853 = vrot.lane.b32.xlu0 %v2836, 80
    %v2854 = vpop.permute.xlu0 %2853
    %2855 = vrot.lane.b32.xlu0 %v2840, 80
    %v2856 = vpop.permute.xlu0 %2855
    %2865 = vst.msk [vmem:[#allocation5 + $0x2] sm:$0x1] %vm1008, %v2842
    %2866 = vst.msk [vmem:[#allocation5 + $0xa] sm:$0x1] %vm1008, %v2844
    %2867 = vst.msk [vmem:[#allocation5 + $0x12] sm:$0x1] %vm1008, %v2846
    %2868 = vst.msk [vmem:[#allocation5 + $0x1a] sm:$0x1] %vm1008, %v2848
    %2869 = vst.msk [vmem:[#allocation5 + $0x22] sm:$0x1] %vm1008, %v2850
    %2870 = vst.msk [vmem:[#allocation5 + $0x2a] sm:$0x1] %vm1008, %v2852
    %2871 = vst.msk [vmem:[#allocation5 + $0x32] sm:$0x1] %vm1008, %v2854
    %2872 = vst.msk [vmem:[#allocation5 + $0x3a] sm:$0x1] %vm1008, %v2856
    %2874 = vrot.lane.b32.xlu0 %v2736, 112
    %v2875 = vpop.permute.xlu0 %2874
    %v2876 = vsel %vm57, %v2875, 0
    %2878 = vmatprep.subr.mxu0 0.0
    %2879 = vmatpush1.msra.mxu0 %v48
    %2880 = vmatprep.subr.mxu0 0.0
    %2881 = vmatpush1.msra.mxu0 %v49
    %2882 = vmatprep.subr.mxu0 0.0
    %2883 = vmatpush1.msra.mxu0 0.0
    %2884 = vmatprep.subr.mxu0 0.0
    %2885 = vmatpush1.msra.mxu0 0.0
    %2886 = vmatprep.subr.mxu0 0.0
    %2887 = vmatpush1.msra.mxu0 0.0
    %2888 = vmatprep.subr.mxu0 0.0
    %2889 = vmatpush1.msra.mxu0 0.0
    %2890 = vmatprep.subr.mxu0 0.0
    %2891 = vmatpush1.msra.mxu0 0.0
    %2892 = vmatprep.subr.mxu0 0.0
    %2893 = vmatpush1.msra.mxu0 0.0
    %2894 = vmatprep.subr.mxu0 0.0
    %2895 = vmatpush1.msra.mxu0 0.0
    %2896 = vmatprep.subr.mxu0 0.0
    %2897 = vmatpush1.msra.mxu0 0.0
    %2898 = vmatprep.subr.mxu0 0.0
    %2899 = vmatpush1.msra.mxu0 0.0
    %2900 = vmatprep.subr.mxu0 0.0
    %2901 = vmatpush1.msra.mxu0 0.0
    %2902 = vmatprep.subr.mxu0 0.0
    %2903 = vmatpush1.msra.mxu0 0.0
    %2904 = vmatprep.subr.mxu0 0.0
    %2905 = vmatpush1.msra.mxu0 0.0
    %2906 = vmatprep.subr.mxu0 0.0
    %2907 = vmatpush1.msra.mxu0 0.0
    %2908 = vmatprep.subr.mxu0 0.0
    %2909 = vmatpush1.msra.mxu0 0.0
    %2910 = vmatprep.subr.mxu0 0.0
    %2911 = vmatpush1.msra.mxu0 0.0
    %2912 = vmatprep.subr.mxu0 0.0
    %2913 = vmatpush1.msra.mxu0 0.0
    %2914 = vmatprep.subr.mxu0 0.0
    %2915 = vmatpush1.msra.mxu0 0.0
    %2916 = vmatprep.subr.mxu0 0.0
    %2917 = vmatpush1.msra.mxu0 0.0
    %2918 = vmatprep.subr.mxu0 0.0
    %2919 = vmatpush1.msra.mxu0 0.0
    %2920 = vmatprep.subr.mxu0 0.0
    %2921 = vmatpush1.msra.mxu0 0.0
    %2922 = vmatprep.subr.mxu0 0.0
    %2923 = vmatpush1.msra.mxu0 0.0
    %2924 = vmatprep.subr.mxu0 0.0
    %2925 = vmatpush1.msra.mxu0 0.0
    %2926 = vmatprep.subr.mxu0 0.0
    %2927 = vmatpush1.msra.mxu0 0.0
    %2928 = vmatprep.subr.mxu0 0.0
    %2929 = vmatpush1.msra.mxu0 0.0
    %2930 = vmatprep.subr.mxu0 0.0
    %2931 = vmatpush1.msra.mxu0 0.0
    %2932 = vmatprep.subr.mxu0 0.0
    %2933 = vmatpush1.msra.mxu0 0.0
    %2934 = vmatprep.subr.mxu0 0.0
    %2935 = vmatpush1.msra.mxu0 0.0
    %2936 = vmatprep.subr.mxu0 0.0
    %2937 = vmatpush1.msra.mxu0 0.0
    %2938 = vmatprep.subr.mxu0 0.0
    %2939 = vmatpush1.msra.mxu0 0.0
    %2940 = vmatprep.subr.mxu0 0.0
    %2941 = vmatpush1.msra.mxu0 0.0
    %2942 = vmatprep.mubr.f32.mxu0 0.0
    %2943 = vmatmul.mubr.f32.gmra.mrb[0].mxu0 %v2876
    %v2944 = vpop.f32.mrb[0].mxu0
    %v2945 = vadd.f32 0.0, %v2944
    %v2946 = vpop.f32.mrb[0].mxu0
    %2947 = vdwg.mxu0
    %2948 = vrot.lane.b32.xlu0 %v2742, 80
    %v2949 = vpop.permute.xlu0 %2948
    %v2950 = vsel %vm57, %v2949, 0
    %2952 = vmatprep.subr.mxu0 0.0
    %2953 = vmatpush1.msra.mxu0 %v46
    %2954 = vmatprep.subr.mxu0 0.0
    %2955 = vmatpush1.msra.mxu0 %v47
    %2956 = vmatprep.subr.mxu0 0.0
    %2957 = vmatpush1.msra.mxu0 0.0
    %2958 = vmatprep.subr.mxu0 0.0
    %2959 = vmatpush1.msra.mxu0 0.0
    %2960 = vmatprep.subr.mxu0 0.0
    %2961 = vmatpush1.msra.mxu0 0.0
    %2962 = vmatprep.subr.mxu0 0.0
    %2963 = vmatpush1.msra.mxu0 0.0
    %2964 = vmatprep.subr.mxu0 0.0
    %2965 = vmatpush1.msra.mxu0 0.0
    %2966 = vmatprep.subr.mxu0 0.0
    %2967 = vmatpush1.msra.mxu0 0.0
    %2968 = vmatprep.subr.mxu0 0.0
    %2969 = vmatpush1.msra.mxu0 0.0
    %2970 = vmatprep.subr.mxu0 0.0
    %2971 = vmatpush1.msra.mxu0 0.0
    %2972 = vmatprep.subr.mxu0 0.0
    %2973 = vmatpush1.msra.mxu0 0.0
    %2974 = vmatprep.subr.mxu0 0.0
    %2975 = vmatpush1.msra.mxu0 0.0
    %2976 = vmatprep.subr.mxu0 0.0
    %2977 = vmatpush1.msra.mxu0 0.0
    %2978 = vmatprep.subr.mxu0 0.0
    %2979 = vmatpush1.msra.mxu0 0.0
    %2980 = vmatprep.subr.mxu0 0.0
    %2981 = vmatpush1.msra.mxu0 0.0
    %2982 = vmatprep.subr.mxu0 0.0
    %2983 = vmatpush1.msra.mxu0 0.0
    %2984 = vmatprep.subr.mxu0 0.0
    %2985 = vmatpush1.msra.mxu0 0.0
    %2986 = vmatprep.subr.mxu0 0.0
    %2987 = vmatpush1.msra.mxu0 0.0
    %2988 = vmatprep.subr.mxu0 0.0
    %2989 = vmatpush1.msra.mxu0 0.0
    %2990 = vmatprep.subr.mxu0 0.0
    %2991 = vmatpush1.msra.mxu0 0.0
    %2992 = vmatprep.subr.mxu0 0.0
    %2993 = vmatpush1.msra.mxu0 0.0
    %2994 = vmatprep.subr.mxu0 0.0
    %2995 = vmatpush1.msra.mxu0 0.0
    %2996 = vmatprep.subr.mxu0 0.0
    %2997 = vmatpush1.msra.mxu0 0.0
    %2998 = vmatprep.subr.mxu0 0.0
    %2999 = vmatpush1.msra.mxu0 0.0
    %3000 = vmatprep.subr.mxu0 0.0
    %3001 = vmatpush1.msra.mxu0 0.0
    %3002 = vmatprep.subr.mxu0 0.0
    %3003 = vmatpush1.msra.mxu0 0.0
    %3004 = vmatprep.subr.mxu0 0.0
    %3005 = vmatpush1.msra.mxu0 0.0
    %3006 = vmatprep.subr.mxu0 0.0
    %3007 = vmatpush1.msra.mxu0 0.0
    %3008 = vmatprep.subr.mxu0 0.0
    %3009 = vmatpush1.msra.mxu0 0.0
    %3010 = vmatprep.subr.mxu0 0.0
    %3011 = vmatpush1.msra.mxu0 0.0
    %3012 = vmatprep.subr.mxu0 0.0
    %3013 = vmatpush1.msra.mxu0 0.0
    %3014 = vmatprep.subr.mxu0 0.0
    %3015 = vmatpush1.msra.mxu0 0.0
    %3016 = vmatprep.mubr.f32.mxu0 0.0
    %3017 = vmatmul.mubr.f32.gmra.mrb[0].mxu0 %v2950
    %v3018 = vpop.f32.mrb[0].mxu0
    %v3019 = vadd.f32 %v2945, %v3018
    %v3020 = vpop.f32.mrb[0].mxu0
    %3021 = vdwg.mxu0
    %v3022 = vadd.f32 %v3019, %v205
    %v3024 = vcombine.high %v3022, %v3022
    %v3026 = vunpack.c.l.s4 1966171168
    %v3027 = vunpack.c.0.s8 %v3026
    %v3028 = vlaneseq
    %v3029 = vshrl.u32 %v3028, 7
    %v3030 = vsub.s32 %v3027, %v3029
    %v3031 = vrot.slane %v3022, %v3030
    %v3033 = vunpack.c.l.s4 1966171168
    %v3034 = vunpack.c.0.s8 %v3033
    %v3035 = vlaneseq
    %v3036 = vshrl.u32 %v3035, 7
    %v3037 = vsub.s32 %v3034, %v3036
    %v3038 = vrot.slane %v3024, %v3037
    %v3039 = vcombine.high %v3031, %v3031
    %v3040 = vcombine.high %v3038, %v3038
    %v3042 = vunpack.c.l.s4 1966171168
    %v3043 = vunpack.c.0.s8 %v3042
    %v3044 = vlaneseq
    %v3045 = vshrl.u32 %v3044, 7
    %v3046 = vsub.s32 %v3043, %v3045
    %v3047 = vrot.slane %v3031, %v3046
    %v3049 = vunpack.c.l.s4 1966171168
    %v3050 = vunpack.c.0.s8 %v3049
    %v3051 = vlaneseq
    %v3052 = vshrl.u32 %v3051, 7
    %v3053 = vsub.s32 %v3050, %v3052
    %v3054 = vrot.slane %v3038, %v3053
    %v3056 = vunpack.c.l.s4 1966171168
    %v3057 = vunpack.c.0.s8 %v3056
    %v3058 = vlaneseq
    %v3059 = vshrl.u32 %v3058, 7
    %v3060 = vsub.s32 %v3057, %v3059
    %v3061 = vrot.slane %v3039, %v3060
    %v3063 = vunpack.c.l.s4 1966171168
    %v3064 = vunpack.c.0.s8 %v3063
    %v3065 = vlaneseq
    %v3066 = vshrl.u32 %v3065, 7
    %v3067 = vsub.s32 %v3064, %v3066
    %v3068 = vrot.slane %v3040, %v3067
    %v3069 = vcombine.high %v3047, %v3047
    %v3070 = vcombine.high %v3054, %v3054
    %v3071 = vcombine.high %v3061, %v3061
    %v3072 = vcombine.high %v3068, %v3068
    %v3073 = vlaneseq
    %v3074 = vshrl.u32 %v3073, 7
    %v3075 = vsub.s32 0, %v3074
    %v3076 = vrot.slane %v3047, %v3075
    %v3077 = vlaneseq
    %v3078 = vshrl.u32 %v3077, 7
    %v3079 = vsub.s32 0, %v3078
    %v3080 = vrot.slane %v3061, %v3079
    %v3081 = vlaneseq
    %v3082 = vshrl.u32 %v3081, 7
    %v3083 = vsub.s32 0, %v3082
    %v3084 = vrot.slane %v3069, %v3083
    %v3085 = vlaneseq
    %v3086 = vshrl.u32 %v3085, 7
    %v3087 = vsub.s32 0, %v3086
    %v3088 = vrot.slane %v3071, %v3087
    %v3089 = vlaneseq
    %v3090 = vshrl.u32 %v3089, 7
    %v3091 = vsub.s32 0, %v3090
    %v3092 = vrot.slane %v3054, %v3091
    %v3093 = vlaneseq
    %v3094 = vshrl.u32 %v3093, 7
    %v3095 = vsub.s32 0, %v3094
    %v3096 = vrot.slane %v3068, %v3095
    %v3097 = vlaneseq
    %v3098 = vshrl.u32 %v3097, 7
    %v3099 = vsub.s32 0, %v3098
    %v3100 = vrot.slane %v3070, %v3099
    %v3101 = vlaneseq
    %v3102 = vshrl.u32 %v3101, 7
    %v3103 = vsub.s32 0, %v3102
    %v3104 = vrot.slane %v3072, %v3103
    %v3113 = vadd.f32 %v38, %v3076
    %v3114 = vadd.f32 %v39, %v3080
    %v3115 = vadd.f32 %v40, %v3084
    %v3116 = vadd.f32 %v41, %v3088
    %v3117 = vadd.f32 %v42, %v3092
    %v3118 = vadd.f32 %v43, %v3096
    %v3119 = vadd.f32 %v44, %v3100
    %v3120 = vadd.f32 %v45, %v3104
    %v3121 = vtanh.pop %v3113
    %v3122 = vtanh.pop %v3114
    %v3123 = vtanh.pop %v3115
    %v3124 = vtanh.pop %v3116
    %v3125 = vtanh.pop %v3117
    %v3126 = vtanh.pop %v3118
    %v3127 = vtanh.pop %v3119
    %v3128 = vtanh.pop %v3120
    %v3129 = vmul.f32 %v3121, %v318
    %v3130 = vmul.f32 %v3122, %v318
    %v3131 = vmul.f32 %v3123, %v318
    %v3132 = vmul.f32 %v3124, %v318
    %v3133 = vmul.f32 %v3125, %v318
    %v3134 = vmul.f32 %v3126, %v318
    %v3135 = vmul.f32 %v3127, %v318
    %v3136 = vmul.f32 %v3128, %v318
    %v3137 = vsel %vm328, %v3129, 0.0
    %3138 = vadd.xlane.f32.xlu0 %v3137
    %v3139 = vpop.xlane.xlu0 %3138
    %v3140 = vsel %vm328, %v3130, 0.0
    %3141 = vadd.xlane.f32.xlu0 %v3140
    %v3142 = vpop.xlane.xlu0 %3141
    %v3143 = vsel %vm328, %v3131, 0.0
    %3144 = vadd.xlane.f32.xlu0 %v3143
    %v3145 = vpop.xlane.xlu0 %3144
    %v3146 = vsel %vm328, %v3132, 0.0
    %3147 = vadd.xlane.f32.xlu0 %v3146
    %v3148 = vpop.xlane.xlu0 %3147
    %v3149 = vsel %vm328, %v3133, 0.0
    %3150 = vadd.xlane.f32.xlu0 %v3149
    %v3151 = vpop.xlane.xlu0 %3150
    %v3152 = vsel %vm328, %v3134, 0.0
    %3153 = vadd.xlane.f32.xlu0 %v3152
    %v3154 = vpop.xlane.xlu0 %3153
    %v3155 = vsel %vm328, %v3135, 0.0
    %3156 = vadd.xlane.f32.xlu0 %v3155
    %v3157 = vpop.xlane.xlu0 %3156
    %v3158 = vsel %vm328, %v3136, 0.0
    %3159 = vadd.xlane.f32.xlu0 %v3158
    %v3160 = vpop.xlane.xlu0 %3159
    %v3161 = vadd.f32 %v3139, %v360
    %v3162 = vadd.f32 %v3142, %v360
    %v3163 = vadd.f32 %v3145, %v360
    %v3164 = vadd.f32 %v3148, %v360
    %v3165 = vadd.f32 %v3151, %v360
    %v3166 = vadd.f32 %v3154, %v360
    %v3167 = vadd.f32 %v3157, %v360
    %v3168 = vadd.f32 %v3160, %v360
    %v3177 = vlaneseq
    %v3178 = vshrl.u32 %v3177, 7
    %v3179 = vsub.s32 %v379, %v3178
    %v3180 = vrot.slane %v3161, %v3179
    %v3181 = vlaneseq
    %v3182 = vshrl.u32 %v3181, 7
    %v3183 = vsub.s32 %v379, %v3182
    %v3184 = vrot.slane %v3162, %v3183
    %v3185 = vlaneseq
    %v3186 = vshrl.u32 %v3185, 7
    %v3187 = vsub.s32 %v379, %v3186
    %v3188 = vrot.slane %v3163, %v3187
    %v3189 = vlaneseq
    %v3190 = vshrl.u32 %v3189, 7
    %v3191 = vsub.s32 %v379, %v3190
    %v3192 = vrot.slane %v3164, %v3191
    %v3193 = vlaneseq
    %v3194 = vshrl.u32 %v3193, 7
    %v3195 = vsub.s32 %v379, %v3194
    %v3196 = vrot.slane %v3165, %v3195
    %v3197 = vlaneseq
    %v3198 = vshrl.u32 %v3197, 7
    %v3199 = vsub.s32 %v379, %v3198
    %v3200 = vrot.slane %v3166, %v3199
    %v3201 = vlaneseq
    %v3202 = vshrl.u32 %v3201, 7
    %v3203 = vsub.s32 %v379, %v3202
    %v3204 = vrot.slane %v3167, %v3203
    %v3205 = vlaneseq
    %v3206 = vshrl.u32 %v3205, 7
    %v3207 = vsub.s32 %v379, %v3206
    %v3208 = vrot.slane %v3168, %v3207
    %v3209 = vsel %vm412, %v3184, %v3180
    %v3210 = vsel %vm414, %v3188, %v3209
    %v3211 = vsel %vm416, %v3192, %v3210
    %v3212 = vsel %vm418, %v3196, %v3211
    %v3213 = vsel %vm420, %v3200, %v3212
    %v3214 = vsel %vm422, %v3204, %v3213
    %v3215 = vsel %vm424, %v3208, %v3214
    %v3217 = vsel %vm328, %v3215, -inf
    %3218 = vmax.xlane.f32.xlu0 %v3217
    %v3219 = vpop.xlane.xlu0 %3218
    %v3221 = vlaneseq
    %v3222 = vshrl.u32 %v3221, 7
    %v3223 = vsub.s32 0, %v3222
    %v3224 = vrot.slane %v3219, %v3223
    %v3225 = vlaneseq
    %v3226 = vshrl.u32 %v3225, 7
    %v3227 = vsub.s32 1, %v3226
    %v3228 = vrot.slane %v3219, %v3227
    %v3229 = vlaneseq
    %v3230 = vshrl.u32 %v3229, 7
    %v3231 = vsub.s32 2, %v3230
    %v3232 = vrot.slane %v3219, %v3231
    %v3233 = vlaneseq
    %v3234 = vshrl.u32 %v3233, 7
    %v3235 = vsub.s32 3, %v3234
    %v3236 = vrot.slane %v3219, %v3235
    %v3237 = vlaneseq
    %v3238 = vshrl.u32 %v3237, 7
    %v3239 = vsub.s32 4, %v3238
    %v3240 = vrot.slane %v3219, %v3239
    %v3241 = vlaneseq
    %v3242 = vshrl.u32 %v3241, 7
    %v3243 = vsub.s32 5, %v3242
    %v3244 = vrot.slane %v3219, %v3243
    %v3245 = vlaneseq
    %v3246 = vshrl.u32 %v3245, 7
    %v3247 = vsub.s32 6, %v3246
    %v3248 = vrot.slane %v3219, %v3247
    %v3249 = vlaneseq
    %v3250 = vshrl.u32 %v3249, 7
    %v3251 = vsub.s32 7, %v3250
    %v3252 = vrot.slane %v3219, %v3251
    %v3261 = vsub.f32 %v3161, %v3224
    %v3262 = vsub.f32 %v3162, %v3228
    %v3263 = vsub.f32 %v3163, %v3232
    %v3264 = vsub.f32 %v3164, %v3236
    %v3265 = vsub.f32 %v3165, %v3240
    %v3266 = vsub.f32 %v3166, %v3244
    %v3267 = vsub.f32 %v3167, %v3248
    %v3268 = vsub.f32 %v3168, %v3252
    %v3269 = vmul.f32 %v3261, 1.442695
    %v3270 = vpow.pop %v3269
    %v3271 = vmul.f32 %v3262, 1.442695
    %v3272 = vpow.pop %v3271
    %v3273 = vmul.f32 %v3263, 1.442695
    %v3274 = vpow.pop %v3273
    %v3275 = vmul.f32 %v3264, 1.442695
    %v3276 = vpow.pop %v3275
    %v3277 = vmul.f32 %v3265, 1.442695
    %v3278 = vpow.pop %v3277
    %v3279 = vmul.f32 %v3266, 1.442695
    %v3280 = vpow.pop %v3279
    %v3281 = vmul.f32 %v3267, 1.442695
    %v3282 = vpow.pop %v3281
    %v3283 = vmul.f32 %v3268, 1.442695
    %v3284 = vpow.pop %v3283
    %3293 = vset.pattern.permute.xlu0 0
    %3294 = vperm.xlu0 %3293, %v3270
    %v3295 = vpop.permute.xlu0 %3294
    %3296 = vset.pattern.permute.xlu0 0
    %3297 = vperm.xlu0 %3296, %v3272
    %v3298 = vpop.permute.xlu0 %3297
    %3299 = vset.pattern.permute.xlu0 0
    %3300 = vperm.xlu0 %3299, %v3274
    %v3301 = vpop.permute.xlu0 %3300
    %3302 = vset.pattern.permute.xlu0 0
    %3303 = vperm.xlu0 %3302, %v3276
    %v3304 = vpop.permute.xlu0 %3303
    %3305 = vset.pattern.permute.xlu0 0
    %3306 = vperm.xlu0 %3305, %v3278
    %v3307 = vpop.permute.xlu0 %3306
    %3308 = vset.pattern.permute.xlu0 0
    %3309 = vperm.xlu0 %3308, %v3280
    %v3310 = vpop.permute.xlu0 %3309
    %3311 = vset.pattern.permute.xlu0 0
    %3312 = vperm.xlu0 %3311, %v3282
    %v3313 = vpop.permute.xlu0 %3312
    %3314 = vset.pattern.permute.xlu0 0
    %3315 = vperm.xlu0 %3314, %v3284
    %v3316 = vpop.permute.xlu0 %3315
    %v3317 = vlaneseq
    %v3318 = vshrl.u32 %v3317, 7
    %v3319 = vsub.s32 %v379, %v3318
    %v3320 = vrot.slane %v3295, %v3319
    %v3321 = vlaneseq
    %v3322 = vshrl.u32 %v3321, 7
    %v3323 = vsub.s32 %v379, %v3322
    %v3324 = vrot.slane %v3298, %v3323
    %v3325 = vlaneseq
    %v3326 = vshrl.u32 %v3325, 7
    %v3327 = vsub.s32 %v379, %v3326
    %v3328 = vrot.slane %v3301, %v3327
    %v3329 = vlaneseq
    %v3330 = vshrl.u32 %v3329, 7
    %v3331 = vsub.s32 %v379, %v3330
    %v3332 = vrot.slane %v3304, %v3331
    %v3333 = vlaneseq
    %v3334 = vshrl.u32 %v3333, 7
    %v3335 = vsub.s32 %v379, %v3334
    %v3336 = vrot.slane %v3307, %v3335
    %v3337 = vlaneseq
    %v3338 = vshrl.u32 %v3337, 7
    %v3339 = vsub.s32 %v379, %v3338
    %v3340 = vrot.slane %v3310, %v3339
    %v3341 = vlaneseq
    %v3342 = vshrl.u32 %v3341, 7
    %v3343 = vsub.s32 %v379, %v3342
    %v3344 = vrot.slane %v3313, %v3343
    %v3345 = vlaneseq
    %v3346 = vshrl.u32 %v3345, 7
    %v3347 = vsub.s32 %v379, %v3346
    %v3348 = vrot.slane %v3316, %v3347
    %v3349 = vsel %vm412, %v3324, %v3320
    %v3350 = vsel %vm414, %v3328, %v3349
    %v3351 = vsel %vm416, %v3332, %v3350
    %v3352 = vsel %vm418, %v3336, %v3351
    %v3353 = vsel %vm420, %v3340, %v3352
    %v3354 = vsel %vm422, %v3344, %v3353
    %v3355 = vsel %vm424, %v3348, %v3354
    %v3357 = vsel %vm328, %v3355, 0.0
    %3358 = vadd.xlane.f32.xlu0 %v3357
    %v3359 = vpop.xlane.xlu0 %3358
    %v3360 = vrcp.pop %v3359
    %v3362 = vlaneseq
    %v3363 = vshrl.u32 %v3362, 7
    %v3364 = vsub.s32 0, %v3363
    %v3365 = vrot.slane %v3360, %v3364
    %v3366 = vlaneseq
    %v3367 = vshrl.u32 %v3366, 7
    %v3368 = vsub.s32 1, %v3367
    %v3369 = vrot.slane %v3360, %v3368
    %v3370 = vlaneseq
    %v3371 = vshrl.u32 %v3370, 7
    %v3372 = vsub.s32 2, %v3371
    %v3373 = vrot.slane %v3360, %v3372
    %v3374 = vlaneseq
    %v3375 = vshrl.u32 %v3374, 7
    %v3376 = vsub.s32 3, %v3375
    %v3377 = vrot.slane %v3360, %v3376
    %v3378 = vlaneseq
    %v3379 = vshrl.u32 %v3378, 7
    %v3380 = vsub.s32 4, %v3379
    %v3381 = vrot.slane %v3360, %v3380
    %v3382 = vlaneseq
    %v3383 = vshrl.u32 %v3382, 7
    %v3384 = vsub.s32 5, %v3383
    %v3385 = vrot.slane %v3360, %v3384
    %v3386 = vlaneseq
    %v3387 = vshrl.u32 %v3386, 7
    %v3388 = vsub.s32 6, %v3387
    %v3389 = vrot.slane %v3360, %v3388
    %v3390 = vlaneseq
    %v3391 = vshrl.u32 %v3390, 7
    %v3392 = vsub.s32 7, %v3391
    %v3393 = vrot.slane %v3360, %v3392
    %v3402 = vmul.f32 %v3270, %v3365
    %v3403 = vmul.f32 %v3272, %v3369
    %v3404 = vmul.f32 %v3274, %v3373
    %v3405 = vmul.f32 %v3276, %v3377
    %v3406 = vmul.f32 %v3278, %v3381
    %v3407 = vmul.f32 %v3280, %v3385
    %v3408 = vmul.f32 %v3282, %v3389
    %v3409 = vmul.f32 %v3284, %v3393
    %v3410 = vld [vmem:[%s1 + $0x3] sm:$0x1]
    %v3411 = vld [vmem:[%s1 + $0xb] sm:$0x1]
    %v3412 = vld [vmem:[%s1 + $0x13] sm:$0x1]
    %v3413 = vld [vmem:[%s1 + $0x1b] sm:$0x1]
    %v3414 = vld [vmem:[%s1 + $0x23] sm:$0x1]
    %v3415 = vld [vmem:[%s1 + $0x2b] sm:$0x1]
    %v3416 = vld [vmem:[%s1 + $0x33] sm:$0x1]
    %v3417 = vld [vmem:[%s1 + $0x3b] sm:$0x1]
    %v3426 = vlaneseq
    %v3427 = vshrl.u32 %v3426, 7
    %v3428 = vsub.s32 0, %v3427
    %v3429 = vrot.slane %v3410, %v3428
    %3431 = vbcast.lane.b32.xlu0 %v3429, 256
    %v3432 = vpop.permute.xlu0 %3431
    %v3433 = vlaneseq
    %v3434 = vshrl.u32 %v3433, 7
    %v3435 = vsub.s32 0, %v3434
    %v3436 = vrot.slane %v3411, %v3435
    %3438 = vbcast.lane.b32.xlu0 %v3436, 256
    %v3439 = vpop.permute.xlu0 %3438
    %v3440 = vlaneseq
    %v3441 = vshrl.u32 %v3440, 7
    %v3442 = vsub.s32 0, %v3441
    %v3443 = vrot.slane %v3412, %v3442
    %3445 = vbcast.lane.b32.xlu0 %v3443, 256
    %v3446 = vpop.permute.xlu0 %3445
    %v3447 = vlaneseq
    %v3448 = vshrl.u32 %v3447, 7
    %v3449 = vsub.s32 0, %v3448
    %v3450 = vrot.slane %v3413, %v3449
    %3452 = vbcast.lane.b32.xlu0 %v3450, 256
    %v3453 = vpop.permute.xlu0 %3452
    %v3454 = vlaneseq
    %v3455 = vshrl.u32 %v3454, 7
    %v3456 = vsub.s32 0, %v3455
    %v3457 = vrot.slane %v3414, %v3456
    %3459 = vbcast.lane.b32.xlu0 %v3457, 256
    %v3460 = vpop.permute.xlu0 %3459
    %v3461 = vlaneseq
    %v3462 = vshrl.u32 %v3461, 7
    %v3463 = vsub.s32 0, %v3462
    %v3464 = vrot.slane %v3415, %v3463
    %3466 = vbcast.lane.b32.xlu0 %v3464, 256
    %v3467 = vpop.permute.xlu0 %3466
    %v3468 = vlaneseq
    %v3469 = vshrl.u32 %v3468, 7
    %v3470 = vsub.s32 0, %v3469
    %v3471 = vrot.slane %v3416, %v3470
    %3473 = vbcast.lane.b32.xlu0 %v3471, 256
    %v3474 = vpop.permute.xlu0 %3473
    %v3475 = vlaneseq
    %v3476 = vshrl.u32 %v3475, 7
    %v3477 = vsub.s32 0, %v3476
    %v3478 = vrot.slane %v3417, %v3477
    %3480 = vbcast.lane.b32.xlu0 %v3478, 256
    %v3481 = vpop.permute.xlu0 %3480
    %v3490 = vmul.f32 %v3402, %v3432
    %v3491 = vmul.f32 %v3403, %v3439
    %v3492 = vmul.f32 %v3404, %v3446
    %v3493 = vmul.f32 %v3405, %v3453
    %v3494 = vmul.f32 %v3406, %v3460
    %v3495 = vmul.f32 %v3407, %v3467
    %v3496 = vmul.f32 %v3408, %v3474
    %v3497 = vmul.f32 %v3409, %v3481
    %3506 = vset.pattern.permute.xlu0 0
    %3507 = vperm.xlu0 %3506, %v3490
    %v3508 = vpop.permute.xlu0 %3507
    %3509 = vset.pattern.permute.xlu0 0
    %3510 = vperm.xlu0 %3509, %v3491
    %v3511 = vpop.permute.xlu0 %3510
    %3512 = vset.pattern.permute.xlu0 0
    %3513 = vperm.xlu0 %3512, %v3492
    %v3514 = vpop.permute.xlu0 %3513
    %3515 = vset.pattern.permute.xlu0 0
    %3516 = vperm.xlu0 %3515, %v3493
    %v3517 = vpop.permute.xlu0 %3516
    %3518 = vset.pattern.permute.xlu0 0
    %3519 = vperm.xlu0 %3518, %v3494
    %v3520 = vpop.permute.xlu0 %3519
    %3521 = vset.pattern.permute.xlu0 0
    %3522 = vperm.xlu0 %3521, %v3495
    %v3523 = vpop.permute.xlu0 %3522
    %3524 = vset.pattern.permute.xlu0 0
    %3525 = vperm.xlu0 %3524, %v3496
    %v3526 = vpop.permute.xlu0 %3525
    %3527 = vset.pattern.permute.xlu0 0
    %3528 = vperm.xlu0 %3527, %v3497
    %v3529 = vpop.permute.xlu0 %3528
    %v3530 = vlaneseq
    %v3531 = vshrl.u32 %v3530, 7
    %v3532 = vsub.s32 %v379, %v3531
    %v3533 = vrot.slane %v3508, %v3532
    %v3534 = vlaneseq
    %v3535 = vshrl.u32 %v3534, 7
    %v3536 = vsub.s32 %v379, %v3535
    %v3537 = vrot.slane %v3511, %v3536
    %v3538 = vlaneseq
    %v3539 = vshrl.u32 %v3538, 7
    %v3540 = vsub.s32 %v379, %v3539
    %v3541 = vrot.slane %v3514, %v3540
    %v3542 = vlaneseq
    %v3543 = vshrl.u32 %v3542, 7
    %v3544 = vsub.s32 %v379, %v3543
    %v3545 = vrot.slane %v3517, %v3544
    %v3546 = vlaneseq
    %v3547 = vshrl.u32 %v3546, 7
    %v3548 = vsub.s32 %v379, %v3547
    %v3549 = vrot.slane %v3520, %v3548
    %v3550 = vlaneseq
    %v3551 = vshrl.u32 %v3550, 7
    %v3552 = vsub.s32 %v379, %v3551
    %v3553 = vrot.slane %v3523, %v3552
    %v3554 = vlaneseq
    %v3555 = vshrl.u32 %v3554, 7
    %v3556 = vsub.s32 %v379, %v3555
    %v3557 = vrot.slane %v3526, %v3556
    %v3558 = vlaneseq
    %v3559 = vshrl.u32 %v3558, 7
    %v3560 = vsub.s32 %v379, %v3559
    %v3561 = vrot.slane %v3529, %v3560
    %v3562 = vsel %vm412, %v3537, %v3533
    %v3563 = vsel %vm414, %v3541, %v3562
    %v3564 = vsel %vm416, %v3545, %v3563
    %v3565 = vsel %vm418, %v3549, %v3564
    %v3566 = vsel %vm420, %v3553, %v3565
    %v3567 = vsel %vm422, %v3557, %v3566
    %v3568 = vsel %vm424, %v3561, %v3567
    %3570 = vrot.lane.b32.xlu0 %v2742, 88
    %v3571 = vpop.permute.xlu0 %3570
    %v3573 = vsel %vm328, %v3568, %v3571
    %v3575 = vsel %vm787, %v3573, 0
    %3577 = vmatprep.subr.mxu0 0.0
    %3578 = vmatpush1.msra.mxu0 %v53
    %3579 = vmatprep.subr.mxu0 0.0
    %3580 = vmatpush1.msra.mxu0 %v54
    %3581 = vmatprep.subr.mxu0 0.0
    %3582 = vmatpush1.msra.mxu0 %v55
    %3583 = vmatprep.subr.mxu0 0.0
    %3584 = vmatpush1.msra.mxu0 0.0
    %3585 = vmatprep.subr.mxu0 0.0
    %3586 = vmatpush1.msra.mxu0 0.0
    %3587 = vmatprep.subr.mxu0 0.0
    %3588 = vmatpush1.msra.mxu0 0.0
    %3589 = vmatprep.subr.mxu0 0.0
    %3590 = vmatpush1.msra.mxu0 0.0
    %3591 = vmatprep.subr.mxu0 0.0
    %3592 = vmatpush1.msra.mxu0 0.0
    %3593 = vmatprep.subr.mxu0 0.0
    %3594 = vmatpush1.msra.mxu0 0.0
    %3595 = vmatprep.subr.mxu0 0.0
    %3596 = vmatpush1.msra.mxu0 0.0
    %3597 = vmatprep.subr.mxu0 0.0
    %3598 = vmatpush1.msra.mxu0 0.0
    %3599 = vmatprep.subr.mxu0 0.0
    %3600 = vmatpush1.msra.mxu0 0.0
    %3601 = vmatprep.subr.mxu0 0.0
    %3602 = vmatpush1.msra.mxu0 0.0
    %3603 = vmatprep.subr.mxu0 0.0
    %3604 = vmatpush1.msra.mxu0 0.0
    %3605 = vmatprep.subr.mxu0 0.0
    %3606 = vmatpush1.msra.mxu0 0.0
    %3607 = vmatprep.subr.mxu0 0.0
    %3608 = vmatpush1.msra.mxu0 0.0
    %3609 = vmatprep.subr.mxu0 0.0
    %3610 = vmatpush1.msra.mxu0 0.0
    %3611 = vmatprep.subr.mxu0 0.0
    %3612 = vmatpush1.msra.mxu0 0.0
    %3613 = vmatprep.subr.mxu0 0.0
    %3614 = vmatpush1.msra.mxu0 0.0
    %3615 = vmatprep.subr.mxu0 0.0
    %3616 = vmatpush1.msra.mxu0 0.0
    %3617 = vmatprep.subr.mxu0 0.0
    %3618 = vmatpush1.msra.mxu0 0.0
    %3619 = vmatprep.subr.mxu0 0.0
    %3620 = vmatpush1.msra.mxu0 0.0
    %3621 = vmatprep.subr.mxu0 0.0
    %3622 = vmatpush1.msra.mxu0 0.0
    %3623 = vmatprep.subr.mxu0 0.0
    %3624 = vmatpush1.msra.mxu0 0.0
    %3625 = vmatprep.subr.mxu0 0.0
    %3626 = vmatpush1.msra.mxu0 0.0
    %3627 = vmatprep.subr.mxu0 0.0
    %3628 = vmatpush1.msra.mxu0 0.0
    %3629 = vmatprep.subr.mxu0 0.0
    %3630 = vmatpush1.msra.mxu0 0.0
    %3631 = vmatprep.subr.mxu0 0.0
    %3632 = vmatpush1.msra.mxu0 0.0
    %3633 = vmatprep.subr.mxu0 0.0
    %3634 = vmatpush1.msra.mxu0 0.0
    %3635 = vmatprep.subr.mxu0 0.0
    %3636 = vmatpush1.msra.mxu0 0.0
    %3637 = vmatprep.subr.mxu0 0.0
    %3638 = vmatpush1.msra.mxu0 0.0
    %3639 = vmatprep.subr.mxu0 0.0
    %3640 = vmatpush1.msra.mxu0 0.0
    %3641 = vmatprep.mubr.f32.mxu0 0.0
    %3642 = vmatmul.mubr.f32.gmra.mrb[0].mxu0 %v3575
    %v3643 = vpop.f32.mrb[0].mxu0
    %v3644 = vadd.f32 %v785, %v3643
    %v3645 = vpop.f32.mrb[0].mxu0
    %3646 = vdwg.mxu0
    %v3647 = vxor.u32 %v3644, 2147483648
    %v3648 = vmul.f32 %v3647, 1.442695
    %v3649 = vpow.pop %v3648
    %v3650 = vadd.f32 %v3649, 1.0
    %v3651 = vrcp.pop %v3650
    %v3652 = vmul.f32 1.0, %v3651
    %v3653 = vtanh.pop %v3644
    %v3654 = vmul.f32 %v3652, %v2736
    %3656 = vrot.lane.b32.xlu0 %v3653, 96
    %v3657 = vpop.permute.xlu0 %3656
    %v3659 = vmul.f32 %v3652, %v3657
    %3661 = vrot.lane.b32.xlu0 %v3659, 16
    %v3662 = vpop.permute.xlu0 %3661
    %v3664 = vadd.f32 %v3654, %v3662
    %v3665 = vtanh.pop %v3664
    %3667 = vrot.lane.b32.xlu0 %v3665, 32
    %v3668 = vpop.permute.xlu0 %3667
    %v3670 = vmul.f32 %v3652, %v3668
    %3679 = vst.msk [vmem:[#allocation3 + $0x3] sm:$0x1] %vm893, %v3533
    %3680 = vst.msk [vmem:[#allocation3 + $0xb] sm:$0x1] %vm893, %v3537
    %3681 = vst.msk [vmem:[#allocation3 + $0x13] sm:$0x1] %vm893, %v3541
    %3682 = vst.msk [vmem:[#allocation3 + $0x1b] sm:$0x1] %vm893, %v3545
    %3683 = vst.msk [vmem:[#allocation3 + $0x23] sm:$0x1] %vm893, %v3549
    %3684 = vst.msk [vmem:[#allocation3 + $0x2b] sm:$0x1] %vm893, %v3553
    %3685 = vst.msk [vmem:[#allocation3 + $0x33] sm:$0x1] %vm893, %v3557
    %3686 = vst.msk [vmem:[#allocation3 + $0x3b] sm:$0x1] %vm893, %v3561
    %v3688 = vcombine.high %v3670, %v3670
    %v3690 = vunpack.c.l.s4 1966171168
    %v3691 = vunpack.c.0.s8 %v3690
    %v3692 = vlaneseq
    %v3693 = vshrl.u32 %v3692, 7
    %v3694 = vsub.s32 %v3691, %v3693
    %v3695 = vrot.slane %v3670, %v3694
    %v3697 = vunpack.c.l.s4 1966171168
    %v3698 = vunpack.c.0.s8 %v3697
    %v3699 = vlaneseq
    %v3700 = vshrl.u32 %v3699, 7
    %v3701 = vsub.s32 %v3698, %v3700
    %v3702 = vrot.slane %v3688, %v3701
    %v3703 = vcombine.high %v3695, %v3695
    %v3704 = vcombine.high %v3702, %v3702
    %v3706 = vunpack.c.l.s4 1966171168
    %v3707 = vunpack.c.0.s8 %v3706
    %v3708 = vlaneseq
    %v3709 = vshrl.u32 %v3708, 7
    %v3710 = vsub.s32 %v3707, %v3709
    %v3711 = vrot.slane %v3695, %v3710
    %v3713 = vunpack.c.l.s4 1966171168
    %v3714 = vunpack.c.0.s8 %v3713
    %v3715 = vlaneseq
    %v3716 = vshrl.u32 %v3715, 7
    %v3717 = vsub.s32 %v3714, %v3716
    %v3718 = vrot.slane %v3702, %v3717
    %v3720 = vunpack.c.l.s4 1966171168
    %v3721 = vunpack.c.0.s8 %v3720
    %v3722 = vlaneseq
    %v3723 = vshrl.u32 %v3722, 7
    %v3724 = vsub.s32 %v3721, %v3723
    %v3725 = vrot.slane %v3703, %v3724
    %v3727 = vunpack.c.l.s4 1966171168
    %v3728 = vunpack.c.0.s8 %v3727
    %v3729 = vlaneseq
    %v3730 = vshrl.u32 %v3729, 7
    %v3731 = vsub.s32 %v3728, %v3730
    %v3732 = vrot.slane %v3704, %v3731
    %v3733 = vcombine.high %v3711, %v3711
    %v3734 = vcombine.high %v3718, %v3718
    %v3735 = vcombine.high %v3725, %v3725
    %v3736 = vcombine.high %v3732, %v3732
    %v3737 = vlaneseq
    %v3738 = vshrl.u32 %v3737, 7
    %v3739 = vsub.s32 0, %v3738
    %v3740 = vrot.slane %v3711, %v3739
    %v3741 = vlaneseq
    %v3742 = vshrl.u32 %v3741, 7
    %v3743 = vsub.s32 0, %v3742
    %v3744 = vrot.slane %v3725, %v3743
    %v3745 = vlaneseq
    %v3746 = vshrl.u32 %v3745, 7
    %v3747 = vsub.s32 0, %v3746
    %v3748 = vrot.slane %v3733, %v3747
    %v3749 = vlaneseq
    %v3750 = vshrl.u32 %v3749, 7
    %v3751 = vsub.s32 0, %v3750
    %v3752 = vrot.slane %v3735, %v3751
    %v3753 = vlaneseq
    %v3754 = vshrl.u32 %v3753, 7
    %v3755 = vsub.s32 0, %v3754
    %v3756 = vrot.slane %v3718, %v3755
    %v3757 = vlaneseq
    %v3758 = vshrl.u32 %v3757, 7
    %v3759 = vsub.s32 0, %v3758
    %v3760 = vrot.slane %v3732, %v3759
    %v3761 = vlaneseq
    %v3762 = vshrl.u32 %v3761, 7
    %v3763 = vsub.s32 0, %v3762
    %v3764 = vrot.slane %v3734, %v3763
    %v3765 = vlaneseq
    %v3766 = vshrl.u32 %v3765, 7
    %v3767 = vsub.s32 0, %v3766
    %v3768 = vrot.slane %v3736, %v3767
    %3769 = vrot.lane.b32.xlu0 %v3740, 80
    %v3770 = vpop.permute.xlu0 %3769
    %3771 = vrot.lane.b32.xlu0 %v3744, 80
    %v3772 = vpop.permute.xlu0 %3771
    %3773 = vrot.lane.b32.xlu0 %v3748, 80
    %v3774 = vpop.permute.xlu0 %3773
    %3775 = vrot.lane.b32.xlu0 %v3752, 80
    %v3776 = vpop.permute.xlu0 %3775
    %3777 = vrot.lane.b32.xlu0 %v3756, 80
    %v3778 = vpop.permute.xlu0 %3777
    %3779 = vrot.lane.b32.xlu0 %v3760, 80
    %v3780 = vpop.permute.xlu0 %3779
    %3781 = vrot.lane.b32.xlu0 %v3764, 80
    %v3782 = vpop.permute.xlu0 %3781
    %3783 = vrot.lane.b32.xlu0 %v3768, 80
    %v3784 = vpop.permute.xlu0 %3783
    %3793 = vst.msk [vmem:[#allocation5 + $0x3] sm:$0x1] %vm1008, %v3770
    %3794 = vst.msk [vmem:[#allocation5 + $0xb] sm:$0x1] %vm1008, %v3772
    %3795 = vst.msk [vmem:[#allocation5 + $0x13] sm:$0x1] %vm1008, %v3774
    %3796 = vst.msk [vmem:[#allocation5 + $0x1b] sm:$0x1] %vm1008, %v3776
    %3797 = vst.msk [vmem:[#allocation5 + $0x23] sm:$0x1] %vm1008, %v3778
    %3798 = vst.msk [vmem:[#allocation5 + $0x2b] sm:$0x1] %vm1008, %v3780
    %3799 = vst.msk [vmem:[#allocation5 + $0x33] sm:$0x1] %vm1008, %v3782
    %3800 = vst.msk [vmem:[#allocation5 + $0x3b] sm:$0x1] %vm1008, %v3784
    %3802 = vrot.lane.b32.xlu0 %v3664, 112
    %v3803 = vpop.permute.xlu0 %3802
    %v3804 = vsel %vm57, %v3803, 0
    %3806 = vmatprep.subr.mxu0 0.0
    %3807 = vmatpush1.msra.mxu0 %v48
    %3808 = vmatprep.subr.mxu0 0.0
    %3809 = vmatpush1.msra.mxu0 %v49
    %3810 = vmatprep.subr.mxu0 0.0
    %3811 = vmatpush1.msra.mxu0 0.0
    %3812 = vmatprep.subr.mxu0 0.0
    %3813 = vmatpush1.msra.mxu0 0.0
    %3814 = vmatprep.subr.mxu0 0.0
    %3815 = vmatpush1.msra.mxu0 0.0
    %3816 = vmatprep.subr.mxu0 0.0
    %3817 = vmatpush1.msra.mxu0 0.0
    %3818 = vmatprep.subr.mxu0 0.0
    %3819 = vmatpush1.msra.mxu0 0.0
    %3820 = vmatprep.subr.mxu0 0.0
    %3821 = vmatpush1.msra.mxu0 0.0
    %3822 = vmatprep.subr.mxu0 0.0
    %3823 = vmatpush1.msra.mxu0 0.0
    %3824 = vmatprep.subr.mxu0 0.0
    %3825 = vmatpush1.msra.mxu0 0.0
    %3826 = vmatprep.subr.mxu0 0.0
    %3827 = vmatpush1.msra.mxu0 0.0
    %3828 = vmatprep.subr.mxu0 0.0
    %3829 = vmatpush1.msra.mxu0 0.0
    %3830 = vmatprep.subr.mxu0 0.0
    %3831 = vmatpush1.msra.mxu0 0.0
    %3832 = vmatprep.subr.mxu0 0.0
    %3833 = vmatpush1.msra.mxu0 0.0
    %3834 = vmatprep.subr.mxu0 0.0
    %3835 = vmatpush1.msra.mxu0 0.0
    %3836 = vmatprep.subr.mxu0 0.0
    %3837 = vmatpush1.msra.mxu0 0.0
    %3838 = vmatprep.subr.mxu0 0.0
    %3839 = vmatpush1.msra.mxu0 0.0
    %3840 = vmatprep.subr.mxu0 0.0
    %3841 = vmatpush1.msra.mxu0 0.0
    %3842 = vmatprep.subr.mxu0 0.0
    %3843 = vmatpush1.msra.mxu0 0.0
    %3844 = vmatprep.subr.mxu0 0.0
    %3845 = vmatpush1.msra.mxu0 0.0
    %3846 = vmatprep.subr.mxu0 0.0
    %3847 = vmatpush1.msra.mxu0 0.0
    %3848 = vmatprep.subr.mxu0 0.0
    %3849 = vmatpush1.msra.mxu0 0.0
    %3850 = vmatprep.subr.mxu0 0.0
    %3851 = vmatpush1.msra.mxu0 0.0
    %3852 = vmatprep.subr.mxu0 0.0
    %3853 = vmatpush1.msra.mxu0 0.0
    %3854 = vmatprep.subr.mxu0 0.0
    %3855 = vmatpush1.msra.mxu0 0.0
    %3856 = vmatprep.subr.mxu0 0.0
    %3857 = vmatpush1.msra.mxu0 0.0
    %3858 = vmatprep.subr.mxu0 0.0
    %3859 = vmatpush1.msra.mxu0 0.0
    %3860 = vmatprep.subr.mxu0 0.0
    %3861 = vmatpush1.msra.mxu0 0.0
    %3862 = vmatprep.subr.mxu0 0.0
    %3863 = vmatpush1.msra.mxu0 0.0
    %3864 = vmatprep.subr.mxu0 0.0
    %3865 = vmatpush1.msra.mxu0 0.0
    %3866 = vmatprep.subr.mxu0 0.0
    %3867 = vmatpush1.msra.mxu0 0.0
    %3868 = vmatprep.subr.mxu0 0.0
    %3869 = vmatpush1.msra.mxu0 0.0
    %3870 = vmatprep.mubr.f32.mxu0 0.0
    %3871 = vmatmul.mubr.f32.gmra.mrb[0].mxu0 %v3804
    %v3872 = vpop.f32.mrb[0].mxu0
    %v3873 = vadd.f32 0.0, %v3872
    %v3874 = vpop.f32.mrb[0].mxu0
    %3875 = vdwg.mxu0
    %3876 = vrot.lane.b32.xlu0 %v3670, 80
    %v3877 = vpop.permute.xlu0 %3876
    %v3878 = vsel %vm57, %v3877, 0
    %3880 = vmatprep.subr.mxu0 0.0
    %3881 = vmatpush1.msra.mxu0 %v46
    %3882 = vmatprep.subr.mxu0 0.0
    %3883 = vmatpush1.msra.mxu0 %v47
    %3884 = vmatprep.subr.mxu0 0.0
    %3885 = vmatpush1.msra.mxu0 0.0
    %3886 = vmatprep.subr.mxu0 0.0
    %3887 = vmatpush1.msra.mxu0 0.0
    %3888 = vmatprep.subr.mxu0 0.0
    %3889 = vmatpush1.msra.mxu0 0.0
    %3890 = vmatprep.subr.mxu0 0.0
    %3891 = vmatpush1.msra.mxu0 0.0
    %3892 = vmatprep.subr.mxu0 0.0
    %3893 = vmatpush1.msra.mxu0 0.0
    %3894 = vmatprep.subr.mxu0 0.0
    %3895 = vmatpush1.msra.mxu0 0.0
    %3896 = vmatprep.subr.mxu0 0.0
    %3897 = vmatpush1.msra.mxu0 0.0
    %3898 = vmatprep.subr.mxu0 0.0
    %3899 = vmatpush1.msra.mxu0 0.0
    %3900 = vmatprep.subr.mxu0 0.0
    %3901 = vmatpush1.msra.mxu0 0.0
    %3902 = vmatprep.subr.mxu0 0.0
    %3903 = vmatpush1.msra.mxu0 0.0
    %3904 = vmatprep.subr.mxu0 0.0
    %3905 = vmatpush1.msra.mxu0 0.0
    %3906 = vmatprep.subr.mxu0 0.0
    %3907 = vmatpush1.msra.mxu0 0.0
    %3908 = vmatprep.subr.mxu0 0.0
    %3909 = vmatpush1.msra.mxu0 0.0
    %3910 = vmatprep.subr.mxu0 0.0
    %3911 = vmatpush1.msra.mxu0 0.0
    %3912 = vmatprep.subr.mxu0 0.0
    %3913 = vmatpush1.msra.mxu0 0.0
    %3914 = vmatprep.subr.mxu0 0.0
    %3915 = vmatpush1.msra.mxu0 0.0
    %3916 = vmatprep.subr.mxu0 0.0
    %3917 = vmatpush1.msra.mxu0 0.0
    %3918 = vmatprep.subr.mxu0 0.0
    %3919 = vmatpush1.msra.mxu0 0.0
    %3920 = vmatprep.subr.mxu0 0.0
    %3921 = vmatpush1.msra.mxu0 0.0
    %3922 = vmatprep.subr.mxu0 0.0
    %3923 = vmatpush1.msra.mxu0 0.0
    %3924 = vmatprep.subr.mxu0 0.0
    %3925 = vmatpush1.msra.mxu0 0.0
    %3926 = vmatprep.subr.mxu0 0.0
    %3927 = vmatpush1.msra.mxu0 0.0
    %3928 = vmatprep.subr.mxu0 0.0
    %3929 = vmatpush1.msra.mxu0 0.0
    %3930 = vmatprep.subr.mxu0 0.0
    %3931 = vmatpush1.msra.mxu0 0.0
    %3932 = vmatprep.subr.mxu0 0.0
    %3933 = vmatpush1.msra.mxu0 0.0
    %3934 = vmatprep.subr.mxu0 0.0
    %3935 = vmatpush1.msra.mxu0 0.0
    %3936 = vmatprep.subr.mxu0 0.0
    %3937 = vmatpush1.msra.mxu0 0.0
    %3938 = vmatprep.subr.mxu0 0.0
    %3939 = vmatpush1.msra.mxu0 0.0
    %3940 = vmatprep.subr.mxu0 0.0
    %3941 = vmatpush1.msra.mxu0 0.0
    %3942 = vmatprep.subr.mxu0 0.0
    %3943 = vmatpush1.msra.mxu0 0.0
    %3944 = vmatprep.mubr.f32.mxu0 0.0
    %3945 = vmatmul.mubr.f32.gmra.mrb[0].mxu0 %v3878
    %v3946 = vpop.f32.mrb[0].mxu0
    %v3947 = vadd.f32 %v3873, %v3946
    %v3948 = vpop.f32.mrb[0].mxu0
    %3949 = vdwg.mxu0
    %v3950 = vadd.f32 %v3947, %v205
    %v3952 = vcombine.high %v3950, %v3950
    %v3954 = vunpack.c.l.s4 1966171168
    %v3955 = vunpack.c.0.s8 %v3954
    %v3956 = vlaneseq
    %v3957 = vshrl.u32 %v3956, 7
    %v3958 = vsub.s32 %v3955, %v3957
    %v3959 = vrot.slane %v3950, %v3958
    %v3961 = vunpack.c.l.s4 1966171168
    %v3962 = vunpack.c.0.s8 %v3961
    %v3963 = vlaneseq
    %v3964 = vshrl.u32 %v3963, 7
    %v3965 = vsub.s32 %v3962, %v3964
    %v3966 = vrot.slane %v3952, %v3965
    %v3967 = vcombine.high %v3959, %v3959
    %v3968 = vcombine.high %v3966, %v3966
    %v3970 = vunpack.c.l.s4 1966171168
    %v3971 = vunpack.c.0.s8 %v3970
    %v3972 = vlaneseq
    %v3973 = vshrl.u32 %v3972, 7
    %v3974 = vsub.s32 %v3971, %v3973
    %v3975 = vrot.slane %v3959, %v3974
    %v3977 = vunpack.c.l.s4 1966171168
    %v3978 = vunpack.c.0.s8 %v3977
    %v3979 = vlaneseq
    %v3980 = vshrl.u32 %v3979, 7
    %v3981 = vsub.s32 %v3978, %v3980
    %v3982 = vrot.slane %v3966, %v3981
    %v3984 = vunpack.c.l.s4 1966171168
    %v3985 = vunpack.c.0.s8 %v3984
    %v3986 = vlaneseq
    %v3987 = vshrl.u32 %v3986, 7
    %v3988 = vsub.s32 %v3985, %v3987
    %v3989 = vrot.slane %v3967, %v3988
    %v3991 = vunpack.c.l.s4 1966171168
    %v3992 = vunpack.c.0.s8 %v3991
    %v3993 = vlaneseq
    %v3994 = vshrl.u32 %v3993, 7
    %v3995 = vsub.s32 %v3992, %v3994
    %v3996 = vrot.slane %v3968, %v3995
    %v3997 = vcombine.high %v3975, %v3975
    %v3998 = vcombine.high %v3982, %v3982
    %v3999 = vcombine.high %v3989, %v3989
    %v4000 = vcombine.high %v3996, %v3996
    %v4001 = vlaneseq
    %v4002 = vshrl.u32 %v4001, 7
    %v4003 = vsub.s32 0, %v4002
    %v4004 = vrot.slane %v3975, %v4003
    %v4005 = vlaneseq
    %v4006 = vshrl.u32 %v4005, 7
    %v4007 = vsub.s32 0, %v4006
    %v4008 = vrot.slane %v3989, %v4007
    %v4009 = vlaneseq
    %v4010 = vshrl.u32 %v4009, 7
    %v4011 = vsub.s32 0, %v4010
    %v4012 = vrot.slane %v3997, %v4011
    %v4013 = vlaneseq
    %v4014 = vshrl.u32 %v4013, 7
    %v4015 = vsub.s32 0, %v4014
    %v4016 = vrot.slane %v3999, %v4015
    %v4017 = vlaneseq
    %v4018 = vshrl.u32 %v4017, 7
    %v4019 = vsub.s32 0, %v4018
    %v4020 = vrot.slane %v3982, %v4019
    %v4021 = vlaneseq
    %v4022 = vshrl.u32 %v4021, 7
    %v4023 = vsub.s32 0, %v4022
    %v4024 = vrot.slane %v3996, %v4023
    %v4025 = vlaneseq
    %v4026 = vshrl.u32 %v4025, 7
    %v4027 = vsub.s32 0, %v4026
    %v4028 = vrot.slane %v3998, %v4027
    %v4029 = vlaneseq
    %v4030 = vshrl.u32 %v4029, 7
    %v4031 = vsub.s32 0, %v4030
    %v4032 = vrot.slane %v4000, %v4031
    %v4041 = vadd.f32 %v38, %v4004
    %v4042 = vadd.f32 %v39, %v4008
    %v4043 = vadd.f32 %v40, %v4012
    %v4044 = vadd.f32 %v41, %v4016
    %v4045 = vadd.f32 %v42, %v4020
    %v4046 = vadd.f32 %v43, %v4024
    %v4047 = vadd.f32 %v44, %v4028
    %v4048 = vadd.f32 %v45, %v4032
    %v4049 = vtanh.pop %v4041
    %v4050 = vtanh.pop %v4042
    %v4051 = vtanh.pop %v4043
    %v4052 = vtanh.pop %v4044
    %v4053 = vtanh.pop %v4045
    %v4054 = vtanh.pop %v4046
    %v4055 = vtanh.pop %v4047
    %v4056 = vtanh.pop %v4048
    %v4057 = vmul.f32 %v4049, %v318
    %v4058 = vmul.f32 %v4050, %v318
    %v4059 = vmul.f32 %v4051, %v318
    %v4060 = vmul.f32 %v4052, %v318
    %v4061 = vmul.f32 %v4053, %v318
    %v4062 = vmul.f32 %v4054, %v318
    %v4063 = vmul.f32 %v4055, %v318
    %v4064 = vmul.f32 %v4056, %v318
    %v4065 = vsel %vm328, %v4057, 0.0
    %4066 = vadd.xlane.f32.xlu0 %v4065
    %v4067 = vpop.xlane.xlu0 %4066
    %v4068 = vsel %vm328, %v4058, 0.0
    %4069 = vadd.xlane.f32.xlu0 %v4068
    %v4070 = vpop.xlane.xlu0 %4069
    %v4071 = vsel %vm328, %v4059, 0.0
    %4072 = vadd.xlane.f32.xlu0 %v4071
    %v4073 = vpop.xlane.xlu0 %4072
    %v4074 = vsel %vm328, %v4060, 0.0
    %4075 = vadd.xlane.f32.xlu0 %v4074
    %v4076 = vpop.xlane.xlu0 %4075
    %v4077 = vsel %vm328, %v4061, 0.0
    %4078 = vadd.xlane.f32.xlu0 %v4077
    %v4079 = vpop.xlane.xlu0 %4078
    %v4080 = vsel %vm328, %v4062, 0.0
    %4081 = vadd.xlane.f32.xlu0 %v4080
    %v4082 = vpop.xlane.xlu0 %4081
    %v4083 = vsel %vm328, %v4063, 0.0
    %4084 = vadd.xlane.f32.xlu0 %v4083
    %v4085 = vpop.xlane.xlu0 %4084
    %v4086 = vsel %vm328, %v4064, 0.0
    %4087 = vadd.xlane.f32.xlu0 %v4086
    %v4088 = vpop.xlane.xlu0 %4087
    %v4089 = vadd.f32 %v4067, %v360
    %v4090 = vadd.f32 %v4070, %v360
    %v4091 = vadd.f32 %v4073, %v360
    %v4092 = vadd.f32 %v4076, %v360
    %v4093 = vadd.f32 %v4079, %v360
    %v4094 = vadd.f32 %v4082, %v360
    %v4095 = vadd.f32 %v4085, %v360
    %v4096 = vadd.f32 %v4088, %v360
    %v4105 = vlaneseq
    %v4106 = vshrl.u32 %v4105, 7
    %v4107 = vsub.s32 %v379, %v4106
    %v4108 = vrot.slane %v4089, %v4107
    %v4109 = vlaneseq
    %v4110 = vshrl.u32 %v4109, 7
    %v4111 = vsub.s32 %v379, %v4110
    %v4112 = vrot.slane %v4090, %v4111
    %v4113 = vlaneseq
    %v4114 = vshrl.u32 %v4113, 7
    %v4115 = vsub.s32 %v379, %v4114
    %v4116 = vrot.slane %v4091, %v4115
    %v4117 = vlaneseq
    %v4118 = vshrl.u32 %v4117, 7
    %v4119 = vsub.s32 %v379, %v4118
    %v4120 = vrot.slane %v4092, %v4119
    %v4121 = vlaneseq
    %v4122 = vshrl.u32 %v4121, 7
    %v4123 = vsub.s32 %v379, %v4122
    %v4124 = vrot.slane %v4093, %v4123
    %v4125 = vlaneseq
    %v4126 = vshrl.u32 %v4125, 7
    %v4127 = vsub.s32 %v379, %v4126
    %v4128 = vrot.slane %v4094, %v4127
    %v4129 = vlaneseq
    %v4130 = vshrl.u32 %v4129, 7
    %v4131 = vsub.s32 %v379, %v4130
    %v4132 = vrot.slane %v4095, %v4131
    %v4133 = vlaneseq
    %v4134 = vshrl.u32 %v4133, 7
    %v4135 = vsub.s32 %v379, %v4134
    %v4136 = vrot.slane %v4096, %v4135
    %v4137 = vsel %vm412, %v4112, %v4108
    %v4138 = vsel %vm414, %v4116, %v4137
    %v4139 = vsel %vm416, %v4120, %v4138
    %v4140 = vsel %vm418, %v4124, %v4139
    %v4141 = vsel %vm420, %v4128, %v4140
    %v4142 = vsel %vm422, %v4132, %v4141
    %v4143 = vsel %vm424, %v4136, %v4142
    %v4145 = vsel %vm328, %v4143, -inf
    %4146 = vmax.xlane.f32.xlu0 %v4145
    %v4147 = vpop.xlane.xlu0 %4146
    %v4149 = vlaneseq
    %v4150 = vshrl.u32 %v4149, 7
    %v4151 = vsub.s32 0, %v4150
    %v4152 = vrot.slane %v4147, %v4151
    %v4153 = vlaneseq
    %v4154 = vshrl.u32 %v4153, 7
    %v4155 = vsub.s32 1, %v4154
    %v4156 = vrot.slane %v4147, %v4155
    %v4157 = vlaneseq
    %v4158 = vshrl.u32 %v4157, 7
    %v4159 = vsub.s32 2, %v4158
    %v4160 = vrot.slane %v4147, %v4159
    %v4161 = vlaneseq
    %v4162 = vshrl.u32 %v4161, 7
    %v4163 = vsub.s32 3, %v4162
    %v4164 = vrot.slane %v4147, %v4163
    %v4165 = vlaneseq
    %v4166 = vshrl.u32 %v4165, 7
    %v4167 = vsub.s32 4, %v4166
    %v4168 = vrot.slane %v4147, %v4167
    %v4169 = vlaneseq
    %v4170 = vshrl.u32 %v4169, 7
    %v4171 = vsub.s32 5, %v4170
    %v4172 = vrot.slane %v4147, %v4171
    %v4173 = vlaneseq
    %v4174 = vshrl.u32 %v4173, 7
    %v4175 = vsub.s32 6, %v4174
    %v4176 = vrot.slane %v4147, %v4175
    %v4177 = vlaneseq
    %v4178 = vshrl.u32 %v4177, 7
    %v4179 = vsub.s32 7, %v4178
    %v4180 = vrot.slane %v4147, %v4179
    %v4189 = vsub.f32 %v4089, %v4152
    %v4190 = vsub.f32 %v4090, %v4156
    %v4191 = vsub.f32 %v4091, %v4160
    %v4192 = vsub.f32 %v4092, %v4164
    %v4193 = vsub.f32 %v4093, %v4168
    %v4194 = vsub.f32 %v4094, %v4172
    %v4195 = vsub.f32 %v4095, %v4176
    %v4196 = vsub.f32 %v4096, %v4180
    %v4197 = vmul.f32 %v4189, 1.442695
    %v4198 = vpow.pop %v4197
    %v4199 = vmul.f32 %v4190, 1.442695
    %v4200 = vpow.pop %v4199
    %v4201 = vmul.f32 %v4191, 1.442695
    %v4202 = vpow.pop %v4201
    %v4203 = vmul.f32 %v4192, 1.442695
    %v4204 = vpow.pop %v4203
    %v4205 = vmul.f32 %v4193, 1.442695
    %v4206 = vpow.pop %v4205
    %v4207 = vmul.f32 %v4194, 1.442695
    %v4208 = vpow.pop %v4207
    %v4209 = vmul.f32 %v4195, 1.442695
    %v4210 = vpow.pop %v4209
    %v4211 = vmul.f32 %v4196, 1.442695
    %v4212 = vpow.pop %v4211
    %4221 = vset.pattern.permute.xlu0 0
    %4222 = vperm.xlu0 %4221, %v4198
    %v4223 = vpop.permute.xlu0 %4222
    %4224 = vset.pattern.permute.xlu0 0
    %4225 = vperm.xlu0 %4224, %v4200
    %v4226 = vpop.permute.xlu0 %4225
    %4227 = vset.pattern.permute.xlu0 0
    %4228 = vperm.xlu0 %4227, %v4202
    %v4229 = vpop.permute.xlu0 %4228
    %4230 = vset.pattern.permute.xlu0 0
    %4231 = vperm.xlu0 %4230, %v4204
    %v4232 = vpop.permute.xlu0 %4231
    %4233 = vset.pattern.permute.xlu0 0
    %4234 = vperm.xlu0 %4233, %v4206
    %v4235 = vpop.permute.xlu0 %4234
    %4236 = vset.pattern.permute.xlu0 0
    %4237 = vperm.xlu0 %4236, %v4208
    %v4238 = vpop.permute.xlu0 %4237
    %4239 = vset.pattern.permute.xlu0 0
    %4240 = vperm.xlu0 %4239, %v4210
    %v4241 = vpop.permute.xlu0 %4240
    %4242 = vset.pattern.permute.xlu0 0
    %4243 = vperm.xlu0 %4242, %v4212
    %v4244 = vpop.permute.xlu0 %4243
    %v4245 = vlaneseq
    %v4246 = vshrl.u32 %v4245, 7
    %v4247 = vsub.s32 %v379, %v4246
    %v4248 = vrot.slane %v4223, %v4247
    %v4249 = vlaneseq
    %v4250 = vshrl.u32 %v4249, 7
    %v4251 = vsub.s32 %v379, %v4250
    %v4252 = vrot.slane %v4226, %v4251
    %v4253 = vlaneseq
    %v4254 = vshrl.u32 %v4253, 7
    %v4255 = vsub.s32 %v379, %v4254
    %v4256 = vrot.slane %v4229, %v4255
    %v4257 = vlaneseq
    %v4258 = vshrl.u32 %v4257, 7
    %v4259 = vsub.s32 %v379, %v4258
    %v4260 = vrot.slane %v4232, %v4259
    %v4261 = vlaneseq
    %v4262 = vshrl.u32 %v4261, 7
    %v4263 = vsub.s32 %v379, %v4262
    %v4264 = vrot.slane %v4235, %v4263
    %v4265 = vlaneseq
    %v4266 = vshrl.u32 %v4265, 7
    %v4267 = vsub.s32 %v379, %v4266
    %v4268 = vrot.slane %v4238, %v4267
    %v4269 = vlaneseq
    %v4270 = vshrl.u32 %v4269, 7
    %v4271 = vsub.s32 %v379, %v4270
    %v4272 = vrot.slane %v4241, %v4271
    %v4273 = vlaneseq
    %v4274 = vshrl.u32 %v4273, 7
    %v4275 = vsub.s32 %v379, %v4274
    %v4276 = vrot.slane %v4244, %v4275
    %v4277 = vsel %vm412, %v4252, %v4248
    %v4278 = vsel %vm414, %v4256, %v4277
    %v4279 = vsel %vm416, %v4260, %v4278
    %v4280 = vsel %vm418, %v4264, %v4279
    %v4281 = vsel %vm420, %v4268, %v4280
    %v4282 = vsel %vm422, %v4272, %v4281
    %v4283 = vsel %vm424, %v4276, %v4282
    %v4285 = vsel %vm328, %v4283, 0.0
    %4286 = vadd.xlane.f32.xlu0 %v4285
    %v4287 = vpop.xlane.xlu0 %4286
    %v4288 = vrcp.pop %v4287
    %v4290 = vlaneseq
    %v4291 = vshrl.u32 %v4290, 7
    %v4292 = vsub.s32 0, %v4291
    %v4293 = vrot.slane %v4288, %v4292
    %v4294 = vlaneseq
    %v4295 = vshrl.u32 %v4294, 7
    %v4296 = vsub.s32 1, %v4295
    %v4297 = vrot.slane %v4288, %v4296
    %v4298 = vlaneseq
    %v4299 = vshrl.u32 %v4298, 7
    %v4300 = vsub.s32 2, %v4299
    %v4301 = vrot.slane %v4288, %v4300
    %v4302 = vlaneseq
    %v4303 = vshrl.u32 %v4302, 7
    %v4304 = vsub.s32 3, %v4303
    %v4305 = vrot.slane %v4288, %v4304
    %v4306 = vlaneseq
    %v4307 = vshrl.u32 %v4306, 7
    %v4308 = vsub.s32 4, %v4307
    %v4309 = vrot.slane %v4288, %v4308
    %v4310 = vlaneseq
    %v4311 = vshrl.u32 %v4310, 7
    %v4312 = vsub.s32 5, %v4311
    %v4313 = vrot.slane %v4288, %v4312
    %v4314 = vlaneseq
    %v4315 = vshrl.u32 %v4314, 7
    %v4316 = vsub.s32 6, %v4315
    %v4317 = vrot.slane %v4288, %v4316
    %v4318 = vlaneseq
    %v4319 = vshrl.u32 %v4318, 7
    %v4320 = vsub.s32 7, %v4319
    %v4321 = vrot.slane %v4288, %v4320
    %v4330 = vmul.f32 %v4198, %v4293
    %v4331 = vmul.f32 %v4200, %v4297
    %v4332 = vmul.f32 %v4202, %v4301
    %v4333 = vmul.f32 %v4204, %v4305
    %v4334 = vmul.f32 %v4206, %v4309
    %v4335 = vmul.f32 %v4208, %v4313
    %v4336 = vmul.f32 %v4210, %v4317
    %v4337 = vmul.f32 %v4212, %v4321
    %v4338 = vld [vmem:[%s1 + $0x4] sm:$0x1]
    %v4339 = vld [vmem:[%s1 + $0xc] sm:$0x1]
    %v4340 = vld [vmem:[%s1 + $0x14] sm:$0x1]
    %v4341 = vld [vmem:[%s1 + $0x1c] sm:$0x1]
    %v4342 = vld [vmem:[%s1 + $0x24] sm:$0x1]
    %v4343 = vld [vmem:[%s1 + $0x2c] sm:$0x1]
    %v4344 = vld [vmem:[%s1 + $0x34] sm:$0x1]
    %v4345 = vld [vmem:[%s1 + $0x3c] sm:$0x1]
    %v4354 = vlaneseq
    %v4355 = vshrl.u32 %v4354, 7
    %v4356 = vsub.s32 0, %v4355
    %v4357 = vrot.slane %v4338, %v4356
    %4359 = vbcast.lane.b32.xlu0 %v4357, 256
    %v4360 = vpop.permute.xlu0 %4359
    %v4361 = vlaneseq
    %v4362 = vshrl.u32 %v4361, 7
    %v4363 = vsub.s32 0, %v4362
    %v4364 = vrot.slane %v4339, %v4363
    %4366 = vbcast.lane.b32.xlu0 %v4364, 256
    %v4367 = vpop.permute.xlu0 %4366
    %v4368 = vlaneseq
    %v4369 = vshrl.u32 %v4368, 7
    %v4370 = vsub.s32 0, %v4369
    %v4371 = vrot.slane %v4340, %v4370
    %4373 = vbcast.lane.b32.xlu0 %v4371, 256
    %v4374 = vpop.permute.xlu0 %4373
    %v4375 = vlaneseq
    %v4376 = vshrl.u32 %v4375, 7
    %v4377 = vsub.s32 0, %v4376
    %v4378 = vrot.slane %v4341, %v4377
    %4380 = vbcast.lane.b32.xlu0 %v4378, 256
    %v4381 = vpop.permute.xlu0 %4380
    %v4382 = vlaneseq
    %v4383 = vshrl.u32 %v4382, 7
    %v4384 = vsub.s32 0, %v4383
    %v4385 = vrot.slane %v4342, %v4384
    %4387 = vbcast.lane.b32.xlu0 %v4385, 256
    %v4388 = vpop.permute.xlu0 %4387
    %v4389 = vlaneseq
    %v4390 = vshrl.u32 %v4389, 7
    %v4391 = vsub.s32 0, %v4390
    %v4392 = vrot.slane %v4343, %v4391
    %4394 = vbcast.lane.b32.xlu0 %v4392, 256
    %v4395 = vpop.permute.xlu0 %4394
    %v4396 = vlaneseq
    %v4397 = vshrl.u32 %v4396, 7
    %v4398 = vsub.s32 0, %v4397
    %v4399 = vrot.slane %v4344, %v4398
    %4401 = vbcast.lane.b32.xlu0 %v4399, 256
    %v4402 = vpop.permute.xlu0 %4401
    %v4403 = vlaneseq
    %v4404 = vshrl.u32 %v4403, 7
    %v4405 = vsub.s32 0, %v4404
    %v4406 = vrot.slane %v4345, %v4405
    %4408 = vbcast.lane.b32.xlu0 %v4406, 256
    %v4409 = vpop.permute.xlu0 %4408
    %v4418 = vmul.f32 %v4330, %v4360
    %v4419 = vmul.f32 %v4331, %v4367
    %v4420 = vmul.f32 %v4332, %v4374
    %v4421 = vmul.f32 %v4333, %v4381
    %v4422 = vmul.f32 %v4334, %v4388
    %v4423 = vmul.f32 %v4335, %v4395
    %v4424 = vmul.f32 %v4336, %v4402
    %v4425 = vmul.f32 %v4337, %v4409
    %4434 = vset.pattern.permute.xlu0 0
    %4435 = vperm.xlu0 %4434, %v4418
    %v4436 = vpop.permute.xlu0 %4435
    %4437 = vset.pattern.permute.xlu0 0
    %4438 = vperm.xlu0 %4437, %v4419
    %v4439 = vpop.permute.xlu0 %4438
    %4440 = vset.pattern.permute.xlu0 0
    %4441 = vperm.xlu0 %4440, %v4420
    %v4442 = vpop.permute.xlu0 %4441
    %4443 = vset.pattern.permute.xlu0 0
    %4444 = vperm.xlu0 %4443, %v4421
    %v4445 = vpop.permute.xlu0 %4444
    %4446 = vset.pattern.permute.xlu0 0
    %4447 = vperm.xlu0 %4446, %v4422
    %v4448 = vpop.permute.xlu0 %4447
    %4449 = vset.pattern.permute.xlu0 0
    %4450 = vperm.xlu0 %4449, %v4423
    %v4451 = vpop.permute.xlu0 %4450
    %4452 = vset.pattern.permute.xlu0 0
    %4453 = vperm.xlu0 %4452, %v4424
    %v4454 = vpop.permute.xlu0 %4453
    %4455 = vset.pattern.permute.xlu0 0
    %4456 = vperm.xlu0 %4455, %v4425
    %v4457 = vpop.permute.xlu0 %4456
    %v4458 = vlaneseq
    %v4459 = vshrl.u32 %v4458, 7
    %v4460 = vsub.s32 %v379, %v4459
    %v4461 = vrot.slane %v4436, %v4460
    %v4462 = vlaneseq
    %v4463 = vshrl.u32 %v4462, 7
    %v4464 = vsub.s32 %v379, %v4463
    %v4465 = vrot.slane %v4439, %v4464
    %v4466 = vlaneseq
    %v4467 = vshrl.u32 %v4466, 7
    %v4468 = vsub.s32 %v379, %v4467
    %v4469 = vrot.slane %v4442, %v4468
    %v4470 = vlaneseq
    %v4471 = vshrl.u32 %v4470, 7
    %v4472 = vsub.s32 %v379, %v4471
    %v4473 = vrot.slane %v4445, %v4472
    %v4474 = vlaneseq
    %v4475 = vshrl.u32 %v4474, 7
    %v4476 = vsub.s32 %v379, %v4475
    %v4477 = vrot.slane %v4448, %v4476
    %v4478 = vlaneseq
    %v4479 = vshrl.u32 %v4478, 7
    %v4480 = vsub.s32 %v379, %v4479
    %v4481 = vrot.slane %v4451, %v4480
    %v4482 = vlaneseq
    %v4483 = vshrl.u32 %v4482, 7
    %v4484 = vsub.s32 %v379, %v4483
    %v4485 = vrot.slane %v4454, %v4484
    %v4486 = vlaneseq
    %v4487 = vshrl.u32 %v4486, 7
    %v4488 = vsub.s32 %v379, %v4487
    %v4489 = vrot.slane %v4457, %v4488
    %v4490 = vsel %vm412, %v4465, %v4461
    %v4491 = vsel %vm414, %v4469, %v4490
    %v4492 = vsel %vm416, %v4473, %v4491
    %v4493 = vsel %vm418, %v4477, %v4492
    %v4494 = vsel %vm420, %v4481, %v4493
    %v4495 = vsel %vm422, %v4485, %v4494
    %v4496 = vsel %vm424, %v4489, %v4495
    %4498 = vrot.lane.b32.xlu0 %v3670, 88
    %v4499 = vpop.permute.xlu0 %4498
    %v4501 = vsel %vm328, %v4496, %v4499
    %v4503 = vsel %vm787, %v4501, 0
    %4505 = vmatprep.subr.mxu0 0.0
    %4506 = vmatpush1.msra.mxu0 %v53
    %4507 = vmatprep.subr.mxu0 0.0
    %4508 = vmatpush1.msra.mxu0 %v54
    %4509 = vmatprep.subr.mxu0 0.0
    %4510 = vmatpush1.msra.mxu0 %v55
    %4511 = vmatprep.subr.mxu0 0.0
    %4512 = vmatpush1.msra.mxu0 0.0
    %4513 = vmatprep.subr.mxu0 0.0
    %4514 = vmatpush1.msra.mxu0 0.0
    %4515 = vmatprep.subr.mxu0 0.0
    %4516 = vmatpush1.msra.mxu0 0.0
    %4517 = vmatprep.subr.mxu0 0.0
    %4518 = vmatpush1.msra.mxu0 0.0
    %4519 = vmatprep.subr.mxu0 0.0
    %4520 = vmatpush1.msra.mxu0 0.0
    %4521 = vmatprep.subr.mxu0 0.0
    %4522 = vmatpush1.msra.mxu0 0.0
    %4523 = vmatprep.subr.mxu0 0.0
    %4524 = vmatpush1.msra.mxu0 0.0
    %4525 = vmatprep.subr.mxu0 0.0
    %4526 = vmatpush1.msra.mxu0 0.0
    %4527 = vmatprep.subr.mxu0 0.0
    %4528 = vmatpush1.msra.mxu0 0.0
    %4529 = vmatprep.subr.mxu0 0.0
    %4530 = vmatpush1.msra.mxu0 0.0
    %4531 = vmatprep.subr.mxu0 0.0
    %4532 = vmatpush1.msra.mxu0 0.0
    %4533 = vmatprep.subr.mxu0 0.0
    %4534 = vmatpush1.msra.mxu0 0.0
    %4535 = vmatprep.subr.mxu0 0.0
    %4536 = vmatpush1.msra.mxu0 0.0
    %4537 = vmatprep.subr.mxu0 0.0
    %4538 = vmatpush1.msra.mxu0 0.0
    %4539 = vmatprep.subr.mxu0 0.0
    %4540 = vmatpush1.msra.mxu0 0.0
    %4541 = vmatprep.subr.mxu0 0.0
    %4542 = vmatpush1.msra.mxu0 0.0
    %4543 = vmatprep.subr.mxu0 0.0
    %4544 = vmatpush1.msra.mxu0 0.0
    %4545 = vmatprep.subr.mxu0 0.0
    %4546 = vmatpush1.msra.mxu0 0.0
    %4547 = vmatprep.subr.mxu0 0.0
    %4548 = vmatpush1.msra.mxu0 0.0
    %4549 = vmatprep.subr.mxu0 0.0
    %4550 = vmatpush1.msra.mxu0 0.0
    %4551 = vmatprep.subr.mxu0 0.0
    %4552 = vmatpush1.msra.mxu0 0.0
    %4553 = vmatprep.subr.mxu0 0.0
    %4554 = vmatpush1.msra.mxu0 0.0
    %4555 = vmatprep.subr.mxu0 0.0
    %4556 = vmatpush1.msra.mxu0 0.0
    %4557 = vmatprep.subr.mxu0 0.0
    %4558 = vmatpush1.msra.mxu0 0.0
    %4559 = vmatprep.subr.mxu0 0.0
    %4560 = vmatpush1.msra.mxu0 0.0
    %4561 = vmatprep.subr.mxu0 0.0
    %4562 = vmatpush1.msra.mxu0 0.0
    %4563 = vmatprep.subr.mxu0 0.0
    %4564 = vmatpush1.msra.mxu0 0.0
    %4565 = vmatprep.subr.mxu0 0.0
    %4566 = vmatpush1.msra.mxu0 0.0
    %4567 = vmatprep.subr.mxu0 0.0
    %4568 = vmatpush1.msra.mxu0 0.0
    %4569 = vmatprep.mubr.f32.mxu0 0.0
    %4570 = vmatmul.mubr.f32.gmra.mrb[0].mxu0 %v4503
    %v4571 = vpop.f32.mrb[0].mxu0
    %v4572 = vadd.f32 %v785, %v4571
    %v4573 = vpop.f32.mrb[0].mxu0
    %4574 = vdwg.mxu0
    %v4575 = vxor.u32 %v4572, 2147483648
    %v4576 = vmul.f32 %v4575, 1.442695
    %v4577 = vpow.pop %v4576
    %v4578 = vadd.f32 %v4577, 1.0
    %v4579 = vrcp.pop %v4578
    %v4580 = vmul.f32 1.0, %v4579
    %v4581 = vtanh.pop %v4572
    %v4582 = vmul.f32 %v4580, %v3664
    %4584 = vrot.lane.b32.xlu0 %v4581, 96
    %v4585 = vpop.permute.xlu0 %4584
    %v4587 = vmul.f32 %v4580, %v4585
    %4589 = vrot.lane.b32.xlu0 %v4587, 16
    %v4590 = vpop.permute.xlu0 %4589
    %v4592 = vadd.f32 %v4582, %v4590
    %v4593 = vtanh.pop %v4592
    %4595 = vrot.lane.b32.xlu0 %v4593, 32
    %v4596 = vpop.permute.xlu0 %4595
    %v4598 = vmul.f32 %v4580, %v4596
    %4607 = vst.msk [vmem:[#allocation3 + $0x4] sm:$0x1] %vm893, %v4461
    %4608 = vst.msk [vmem:[#allocation3 + $0xc] sm:$0x1] %vm893, %v4465
    %4609 = vst.msk [vmem:[#allocation3 + $0x14] sm:$0x1] %vm893, %v4469
    %4610 = vst.msk [vmem:[#allocation3 + $0x1c] sm:$0x1] %vm893, %v4473
    %4611 = vst.msk [vmem:[#allocation3 + $0x24] sm:$0x1] %vm893, %v4477
    %4612 = vst.msk [vmem:[#allocation3 + $0x2c] sm:$0x1] %vm893, %v4481
    %4613 = vst.msk [vmem:[#allocation3 + $0x34] sm:$0x1] %vm893, %v4485
    %4614 = vst.msk [vmem:[#allocation3 + $0x3c] sm:$0x1] %vm893, %v4489
    %v4616 = vcombine.high %v4598, %v4598
    %v4618 = vunpack.c.l.s4 1966171168
    %v4619 = vunpack.c.0.s8 %v4618
    %v4620 = vlaneseq
    %v4621 = vshrl.u32 %v4620, 7
    %v4622 = vsub.s32 %v4619, %v4621
    %v4623 = vrot.slane %v4598, %v4622
    %v4625 = vunpack.c.l.s4 1966171168
    %v4626 = vunpack.c.0.s8 %v4625
    %v4627 = vlaneseq
    %v4628 = vshrl.u32 %v4627, 7
    %v4629 = vsub.s32 %v4626, %v4628
    %v4630 = vrot.slane %v4616, %v4629
    %v4631 = vcombine.high %v4623, %v4623
    %v4632 = vcombine.high %v4630, %v4630
    %v4634 = vunpack.c.l.s4 1966171168
    %v4635 = vunpack.c.0.s8 %v4634
    %v4636 = vlaneseq
    %v4637 = vshrl.u32 %v4636, 7
    %v4638 = vsub.s32 %v4635, %v4637
    %v4639 = vrot.slane %v4623, %v4638
    %v4641 = vunpack.c.l.s4 1966171168
    %v4642 = vunpack.c.0.s8 %v4641
    %v4643 = vlaneseq
    %v4644 = vshrl.u32 %v4643, 7
    %v4645 = vsub.s32 %v4642, %v4644
    %v4646 = vrot.slane %v4630, %v4645
    %v4648 = vunpack.c.l.s4 1966171168
    %v4649 = vunpack.c.0.s8 %v4648
    %v4650 = vlaneseq
    %v4651 = vshrl.u32 %v4650, 7
    %v4652 = vsub.s32 %v4649, %v4651
    %v4653 = vrot.slane %v4631, %v4652
    %v4655 = vunpack.c.l.s4 1966171168
    %v4656 = vunpack.c.0.s8 %v4655
    %v4657 = vlaneseq
    %v4658 = vshrl.u32 %v4657, 7
    %v4659 = vsub.s32 %v4656, %v4658
    %v4660 = vrot.slane %v4632, %v4659
    %v4661 = vcombine.high %v4639, %v4639
    %v4662 = vcombine.high %v4646, %v4646
    %v4663 = vcombine.high %v4653, %v4653
    %v4664 = vcombine.high %v4660, %v4660
    %v4665 = vlaneseq
    %v4666 = vshrl.u32 %v4665, 7
    %v4667 = vsub.s32 0, %v4666
    %v4668 = vrot.slane %v4639, %v4667
    %v4669 = vlaneseq
    %v4670 = vshrl.u32 %v4669, 7
    %v4671 = vsub.s32 0, %v4670
    %v4672 = vrot.slane %v4653, %v4671
    %v4673 = vlaneseq
    %v4674 = vshrl.u32 %v4673, 7
    %v4675 = vsub.s32 0, %v4674
    %v4676 = vrot.slane %v4661, %v4675
    %v4677 = vlaneseq
    %v4678 = vshrl.u32 %v4677, 7
    %v4679 = vsub.s32 0, %v4678
    %v4680 = vrot.slane %v4663, %v4679
    %v4681 = vlaneseq
    %v4682 = vshrl.u32 %v4681, 7
    %v4683 = vsub.s32 0, %v4682
    %v4684 = vrot.slane %v4646, %v4683
    %v4685 = vlaneseq
    %v4686 = vshrl.u32 %v4685, 7
    %v4687 = vsub.s32 0, %v4686
    %v4688 = vrot.slane %v4660, %v4687
    %v4689 = vlaneseq
    %v4690 = vshrl.u32 %v4689, 7
    %v4691 = vsub.s32 0, %v4690
    %v4692 = vrot.slane %v4662, %v4691
    %v4693 = vlaneseq
    %v4694 = vshrl.u32 %v4693, 7
    %v4695 = vsub.s32 0, %v4694
    %v4696 = vrot.slane %v4664, %v4695
    %4697 = vrot.lane.b32.xlu0 %v4668, 80
    %v4698 = vpop.permute.xlu0 %4697
    %4699 = vrot.lane.b32.xlu0 %v4672, 80
    %v4700 = vpop.permute.xlu0 %4699
    %4701 = vrot.lane.b32.xlu0 %v4676, 80
    %v4702 = vpop.permute.xlu0 %4701
    %4703 = vrot.lane.b32.xlu0 %v4680, 80
    %v4704 = vpop.permute.xlu0 %4703
    %4705 = vrot.lane.b32.xlu0 %v4684, 80
    %v4706 = vpop.permute.xlu0 %4705
    %4707 = vrot.lane.b32.xlu0 %v4688, 80
    %v4708 = vpop.permute.xlu0 %4707
    %4709 = vrot.lane.b32.xlu0 %v4692, 80
    %v4710 = vpop.permute.xlu0 %4709
    %4711 = vrot.lane.b32.xlu0 %v4696, 80
    %v4712 = vpop.permute.xlu0 %4711
    %4721 = vst.msk [vmem:[#allocation5 + $0x4] sm:$0x1] %vm1008, %v4698
    %4722 = vst.msk [vmem:[#allocation5 + $0xc] sm:$0x1] %vm1008, %v4700
    %4723 = vst.msk [vmem:[#allocation5 + $0x14] sm:$0x1] %vm1008, %v4702
    %4724 = vst.msk [vmem:[#allocation5 + $0x1c] sm:$0x1] %vm1008, %v4704
    %4725 = vst.msk [vmem:[#allocation5 + $0x24] sm:$0x1] %vm1008, %v4706
    %4726 = vst.msk [vmem:[#allocation5 + $0x2c] sm:$0x1] %vm1008, %v4708
    %4727 = vst.msk [vmem:[#allocation5 + $0x34] sm:$0x1] %vm1008, %v4710
    %4728 = vst.msk [vmem:[#allocation5 + $0x3c] sm:$0x1] %vm1008, %v4712
    %4730 = vrot.lane.b32.xlu0 %v4592, 112
    %v4731 = vpop.permute.xlu0 %4730
    %v4732 = vsel %vm57, %v4731, 0
    %4734 = vmatprep.subr.mxu0 0.0
    %4735 = vmatpush1.msra.mxu0 %v48
    %4736 = vmatprep.subr.mxu0 0.0
    %4737 = vmatpush1.msra.mxu0 %v49
    %4738 = vmatprep.subr.mxu0 0.0
    %4739 = vmatpush1.msra.mxu0 0.0
    %4740 = vmatprep.subr.mxu0 0.0
    %4741 = vmatpush1.msra.mxu0 0.0
    %4742 = vmatprep.subr.mxu0 0.0
    %4743 = vmatpush1.msra.mxu0 0.0
    %4744 = vmatprep.subr.mxu0 0.0
    %4745 = vmatpush1.msra.mxu0 0.0
    %4746 = vmatprep.subr.mxu0 0.0
    %4747 = vmatpush1.msra.mxu0 0.0
    %4748 = vmatprep.subr.mxu0 0.0
    %4749 = vmatpush1.msra.mxu0 0.0
    %4750 = vmatprep.subr.mxu0 0.0
    %4751 = vmatpush1.msra.mxu0 0.0
    %4752 = vmatprep.subr.mxu0 0.0
    %4753 = vmatpush1.msra.mxu0 0.0
    %4754 = vmatprep.subr.mxu0 0.0
    %4755 = vmatpush1.msra.mxu0 0.0
    %4756 = vmatprep.subr.mxu0 0.0
    %4757 = vmatpush1.msra.mxu0 0.0
    %4758 = vmatprep.subr.mxu0 0.0
    %4759 = vmatpush1.msra.mxu0 0.0
    %4760 = vmatprep.subr.mxu0 0.0
    %4761 = vmatpush1.msra.mxu0 0.0
    %4762 = vmatprep.subr.mxu0 0.0
    %4763 = vmatpush1.msra.mxu0 0.0
    %4764 = vmatprep.subr.mxu0 0.0
    %4765 = vmatpush1.msra.mxu0 0.0
    %4766 = vmatprep.subr.mxu0 0.0
    %4767 = vmatpush1.msra.mxu0 0.0
    %4768 = vmatprep.subr.mxu0 0.0
    %4769 = vmatpush1.msra.mxu0 0.0
    %4770 = vmatprep.subr.mxu0 0.0
    %4771 = vmatpush1.msra.mxu0 0.0
    %4772 = vmatprep.subr.mxu0 0.0
    %4773 = vmatpush1.msra.mxu0 0.0
    %4774 = vmatprep.subr.mxu0 0.0
    %4775 = vmatpush1.msra.mxu0 0.0
    %4776 = vmatprep.subr.mxu0 0.0
    %4777 = vmatpush1.msra.mxu0 0.0
    %4778 = vmatprep.subr.mxu0 0.0
    %4779 = vmatpush1.msra.mxu0 0.0
    %4780 = vmatprep.subr.mxu0 0.0
    %4781 = vmatpush1.msra.mxu0 0.0
    %4782 = vmatprep.subr.mxu0 0.0
    %4783 = vmatpush1.msra.mxu0 0.0
    %4784 = vmatprep.subr.mxu0 0.0
    %4785 = vmatpush1.msra.mxu0 0.0
    %4786 = vmatprep.subr.mxu0 0.0
    %4787 = vmatpush1.msra.mxu0 0.0
    %4788 = vmatprep.subr.mxu0 0.0
    %4789 = vmatpush1.msra.mxu0 0.0
    %4790 = vmatprep.subr.mxu0 0.0
    %4791 = vmatpush1.msra.mxu0 0.0
    %4792 = vmatprep.subr.mxu0 0.0
    %4793 = vmatpush1.msra.mxu0 0.0
    %4794 = vmatprep.subr.mxu0 0.0
    %4795 = vmatpush1.msra.mxu0 0.0
    %4796 = vmatprep.subr.mxu0 0.0
    %4797 = vmatpush1.msra.mxu0 0.0
    %4798 = vmatprep.mubr.f32.mxu0 0.0
    %4799 = vmatmul.mubr.f32.gmra.mrb[0].mxu0 %v4732
    %v4800 = vpop.f32.mrb[0].mxu0
    %v4801 = vadd.f32 0.0, %v4800
    %v4802 = vpop.f32.mrb[0].mxu0
    %4803 = vdwg.mxu0
    %4804 = vrot.lane.b32.xlu0 %v4598, 80
    %v4805 = vpop.permute.xlu0 %4804
    %v4806 = vsel %vm57, %v4805, 0
    %4808 = vmatprep.subr.mxu0 0.0
    %4809 = vmatpush1.msra.mxu0 %v46
    %4810 = vmatprep.subr.mxu0 0.0
    %4811 = vmatpush1.msra.mxu0 %v47
    %4812 = vmatprep.subr.mxu0 0.0
    %4813 = vmatpush1.msra.mxu0 0.0
    %4814 = vmatprep.subr.mxu0 0.0
    %4815 = vmatpush1.msra.mxu0 0.0
    %4816 = vmatprep.subr.mxu0 0.0
    %4817 = vmatpush1.msra.mxu0 0.0
    %4818 = vmatprep.subr.mxu0 0.0
    %4819 = vmatpush1.msra.mxu0 0.0
    %4820 = vmatprep.subr.mxu0 0.0
    %4821 = vmatpush1.msra.mxu0 0.0
    %4822 = vmatprep.subr.mxu0 0.0
    %4823 = vmatpush1.msra.mxu0 0.0
    %4824 = vmatprep.subr.mxu0 0.0
    %4825 = vmatpush1.msra.mxu0 0.0
    %4826 = vmatprep.subr.mxu0 0.0
    %4827 = vmatpush1.msra.mxu0 0.0
    %4828 = vmatprep.subr.mxu0 0.0
    %4829 = vmatpush1.msra.mxu0 0.0
    %4830 = vmatprep.subr.mxu0 0.0
    %4831 = vmatpush1.msra.mxu0 0.0
    %4832 = vmatprep.subr.mxu0 0.0
    %4833 = vmatpush1.msra.mxu0 0.0
    %4834 = vmatprep.subr.mxu0 0.0
    %4835 = vmatpush1.msra.mxu0 0.0
    %4836 = vmatprep.subr.mxu0 0.0
    %4837 = vmatpush1.msra.mxu0 0.0
    %4838 = vmatprep.subr.mxu0 0.0
    %4839 = vmatpush1.msra.mxu0 0.0
    %4840 = vmatprep.subr.mxu0 0.0
    %4841 = vmatpush1.msra.mxu0 0.0
    %4842 = vmatprep.subr.mxu0 0.0
    %4843 = vmatpush1.msra.mxu0 0.0
    %4844 = vmatprep.subr.mxu0 0.0
    %4845 = vmatpush1.msra.mxu0 0.0
    %4846 = vmatprep.subr.mxu0 0.0
    %4847 = vmatpush1.msra.mxu0 0.0
    %4848 = vmatprep.subr.mxu0 0.0
    %4849 = vmatpush1.msra.mxu0 0.0
    %4850 = vmatprep.subr.mxu0 0.0
    %4851 = vmatpush1.msra.mxu0 0.0
    %4852 = vmatprep.subr.mxu0 0.0
    %4853 = vmatpush1.msra.mxu0 0.0
    %4854 = vmatprep.subr.mxu0 0.0
    %4855 = vmatpush1.msra.mxu0 0.0
    %4856 = vmatprep.subr.mxu0 0.0
    %4857 = vmatpush1.msra.mxu0 0.0
    %4858 = vmatprep.subr.mxu0 0.0
    %4859 = vmatpush1.msra.mxu0 0.0
    %4860 = vmatprep.subr.mxu0 0.0
    %4861 = vmatpush1.msra.mxu0 0.0
    %4862 = vmatprep.subr.mxu0 0.0
    %4863 = vmatpush1.msra.mxu0 0.0
    %4864 = vmatprep.subr.mxu0 0.0
    %4865 = vmatpush1.msra.mxu0 0.0
    %4866 = vmatprep.subr.mxu0 0.0
    %4867 = vmatpush1.msra.mxu0 0.0
    %4868 = vmatprep.subr.mxu0 0.0
    %4869 = vmatpush1.msra.mxu0 0.0
    %4870 = vmatprep.subr.mxu0 0.0
    %4871 = vmatpush1.msra.mxu0 0.0
    %4872 = vmatprep.mubr.f32.mxu0 0.0
    %4873 = vmatmul.mubr.f32.gmra.mrb[0].mxu0 %v4806
    %v4874 = vpop.f32.mrb[0].mxu0
    %v4875 = vadd.f32 %v4801, %v4874
    %v4876 = vpop.f32.mrb[0].mxu0
    %4877 = vdwg.mxu0
    %v4878 = vadd.f32 %v4875, %v205
    %v4880 = vcombine.high %v4878, %v4878
    %v4882 = vunpack.c.l.s4 1966171168
    %v4883 = vunpack.c.0.s8 %v4882
    %v4884 = vlaneseq
    %v4885 = vshrl.u32 %v4884, 7
    %v4886 = vsub.s32 %v4883, %v4885
    %v4887 = vrot.slane %v4878, %v4886
    %v4889 = vunpack.c.l.s4 1966171168
    %v4890 = vunpack.c.0.s8 %v4889
    %v4891 = vlaneseq
    %v4892 = vshrl.u32 %v4891, 7
    %v4893 = vsub.s32 %v4890, %v4892
    %v4894 = vrot.slane %v4880, %v4893
    %v4895 = vcombine.high %v4887, %v4887
    %v4896 = vcombine.high %v4894, %v4894
    %v4898 = vunpack.c.l.s4 1966171168
    %v4899 = vunpack.c.0.s8 %v4898
    %v4900 = vlaneseq
    %v4901 = vshrl.u32 %v4900, 7
    %v4902 = vsub.s32 %v4899, %v4901
    %v4903 = vrot.slane %v4887, %v4902
    %v4905 = vunpack.c.l.s4 1966171168
    %v4906 = vunpack.c.0.s8 %v4905
    %v4907 = vlaneseq
    %v4908 = vshrl.u32 %v4907, 7
    %v4909 = vsub.s32 %v4906, %v4908
    %v4910 = vrot.slane %v4894, %v4909
    %v4912 = vunpack.c.l.s4 1966171168
    %v4913 = vunpack.c.0.s8 %v4912
    %v4914 = vlaneseq
    %v4915 = vshrl.u32 %v4914, 7
    %v4916 = vsub.s32 %v4913, %v4915
    %v4917 = vrot.slane %v4895, %v4916
    %v4919 = vunpack.c.l.s4 1966171168
    %v4920 = vunpack.c.0.s8 %v4919
    %v4921 = vlaneseq
    %v4922 = vshrl.u32 %v4921, 7
    %v4923 = vsub.s32 %v4920, %v4922
    %v4924 = vrot.slane %v4896, %v4923
    %v4925 = vcombine.high %v4903, %v4903
    %v4926 = vcombine.high %v4910, %v4910
    %v4927 = vcombine.high %v4917, %v4917
    %v4928 = vcombine.high %v4924, %v4924
    %v4929 = vlaneseq
    %v4930 = vshrl.u32 %v4929, 7
    %v4931 = vsub.s32 0, %v4930
    %v4932 = vrot.slane %v4903, %v4931
    %v4933 = vlaneseq
    %v4934 = vshrl.u32 %v4933, 7
    %v4935 = vsub.s32 0, %v4934
    %v4936 = vrot.slane %v4917, %v4935
    %v4937 = vlaneseq
    %v4938 = vshrl.u32 %v4937, 7
    %v4939 = vsub.s32 0, %v4938
    %v4940 = vrot.slane %v4925, %v4939
    %v4941 = vlaneseq
    %v4942 = vshrl.u32 %v4941, 7
    %v4943 = vsub.s32 0, %v4942
    %v4944 = vrot.slane %v4927, %v4943
    %v4945 = vlaneseq
    %v4946 = vshrl.u32 %v4945, 7
    %v4947 = vsub.s32 0, %v4946
    %v4948 = vrot.slane %v4910, %v4947
    %v4949 = vlaneseq
    %v4950 = vshrl.u32 %v4949, 7
    %v4951 = vsub.s32 0, %v4950
    %v4952 = vrot.slane %v4924, %v4951
    %v4953 = vlaneseq
    %v4954 = vshrl.u32 %v4953, 7
    %v4955 = vsub.s32 0, %v4954
    %v4956 = vrot.slane %v4926, %v4955
    %v4957 = vlaneseq
    %v4958 = vshrl.u32 %v4957, 7
    %v4959 = vsub.s32 0, %v4958
    %v4960 = vrot.slane %v4928, %v4959
    %v4969 = vadd.f32 %v38, %v4932
    %v4970 = vadd.f32 %v39, %v4936
    %v4971 = vadd.f32 %v40, %v4940
    %v4972 = vadd.f32 %v41, %v4944
    %v4973 = vadd.f32 %v42, %v4948
    %v4974 = vadd.f32 %v43, %v4952
    %v4975 = vadd.f32 %v44, %v4956
    %v4976 = vadd.f32 %v45, %v4960
    %v4977 = vtanh.pop %v4969
    %v4978 = vtanh.pop %v4970
    %v4979 = vtanh.pop %v4971
    %v4980 = vtanh.pop %v4972
    %v4981 = vtanh.pop %v4973
    %v4982 = vtanh.pop %v4974
    %v4983 = vtanh.pop %v4975
    %v4984 = vtanh.pop %v4976
    %v4985 = vmul.f32 %v4977, %v318
    %v4986 = vmul.f32 %v4978, %v318
    %v4987 = vmul.f32 %v4979, %v318
    %v4988 = vmul.f32 %v4980, %v318
    %v4989 = vmul.f32 %v4981, %v318
    %v4990 = vmul.f32 %v4982, %v318
    %v4991 = vmul.f32 %v4983, %v318
    %v4992 = vmul.f32 %v4984, %v318
    %v4993 = vsel %vm328, %v4985, 0.0
    %4994 = vadd.xlane.f32.xlu0 %v4993
    %v4995 = vpop.xlane.xlu0 %4994
    %v4996 = vsel %vm328, %v4986, 0.0
    %4997 = vadd.xlane.f32.xlu0 %v4996
    %v4998 = vpop.xlane.xlu0 %4997
    %v4999 = vsel %vm328, %v4987, 0.0
    %5000 = vadd.xlane.f32.xlu0 %v4999
    %v5001 = vpop.xlane.xlu0 %5000
    %v5002 = vsel %vm328, %v4988, 0.0
    %5003 = vadd.xlane.f32.xlu0 %v5002
    %v5004 = vpop.xlane.xlu0 %5003
    %v5005 = vsel %vm328, %v4989, 0.0
    %5006 = vadd.xlane.f32.xlu0 %v5005
    %v5007 = vpop.xlane.xlu0 %5006
    %v5008 = vsel %vm328, %v4990, 0.0
    %5009 = vadd.xlane.f32.xlu0 %v5008
    %v5010 = vpop.xlane.xlu0 %5009
    %v5011 = vsel %vm328, %v4991, 0.0
    %5012 = vadd.xlane.f32.xlu0 %v5011
    %v5013 = vpop.xlane.xlu0 %5012
    %v5014 = vsel %vm328, %v4992, 0.0
    %5015 = vadd.xlane.f32.xlu0 %v5014
    %v5016 = vpop.xlane.xlu0 %5015
    %v5017 = vadd.f32 %v4995, %v360
    %v5018 = vadd.f32 %v4998, %v360
    %v5019 = vadd.f32 %v5001, %v360
    %v5020 = vadd.f32 %v5004, %v360
    %v5021 = vadd.f32 %v5007, %v360
    %v5022 = vadd.f32 %v5010, %v360
    %v5023 = vadd.f32 %v5013, %v360
    %v5024 = vadd.f32 %v5016, %v360
    %v5033 = vlaneseq
    %v5034 = vshrl.u32 %v5033, 7
    %v5035 = vsub.s32 %v379, %v5034
    %v5036 = vrot.slane %v5017, %v5035
    %v5037 = vlaneseq
    %v5038 = vshrl.u32 %v5037, 7
    %v5039 = vsub.s32 %v379, %v5038
    %v5040 = vrot.slane %v5018, %v5039
    %v5041 = vlaneseq
    %v5042 = vshrl.u32 %v5041, 7
    %v5043 = vsub.s32 %v379, %v5042
    %v5044 = vrot.slane %v5019, %v5043
    %v5045 = vlaneseq
    %v5046 = vshrl.u32 %v5045, 7
    %v5047 = vsub.s32 %v379, %v5046
    %v5048 = vrot.slane %v5020, %v5047
    %v5049 = vlaneseq
    %v5050 = vshrl.u32 %v5049, 7
    %v5051 = vsub.s32 %v379, %v5050
    %v5052 = vrot.slane %v5021, %v5051
    %v5053 = vlaneseq
    %v5054 = vshrl.u32 %v5053, 7
    %v5055 = vsub.s32 %v379, %v5054
    %v5056 = vrot.slane %v5022, %v5055
    %v5057 = vlaneseq
    %v5058 = vshrl.u32 %v5057, 7
    %v5059 = vsub.s32 %v379, %v5058
    %v5060 = vrot.slane %v5023, %v5059
    %v5061 = vlaneseq
    %v5062 = vshrl.u32 %v5061, 7
    %v5063 = vsub.s32 %v379, %v5062
    %v5064 = vrot.slane %v5024, %v5063
    %v5065 = vsel %vm412, %v5040, %v5036
    %v5066 = vsel %vm414, %v5044, %v5065
    %v5067 = vsel %vm416, %v5048, %v5066
    %v5068 = vsel %vm418, %v5052, %v5067
    %v5069 = vsel %vm420, %v5056, %v5068
    %v5070 = vsel %vm422, %v5060, %v5069
    %v5071 = vsel %vm424, %v5064, %v5070
    %v5073 = vsel %vm328, %v5071, -inf
    %5074 = vmax.xlane.f32.xlu0 %v5073
    %v5075 = vpop.xlane.xlu0 %5074
    %v5077 = vlaneseq
    %v5078 = vshrl.u32 %v5077, 7
    %v5079 = vsub.s32 0, %v5078
    %v5080 = vrot.slane %v5075, %v5079
    %v5081 = vlaneseq
    %v5082 = vshrl.u32 %v5081, 7
    %v5083 = vsub.s32 1, %v5082
    %v5084 = vrot.slane %v5075, %v5083
    %v5085 = vlaneseq
    %v5086 = vshrl.u32 %v5085, 7
    %v5087 = vsub.s32 2, %v5086
    %v5088 = vrot.slane %v5075, %v5087
    %v5089 = vlaneseq
    %v5090 = vshrl.u32 %v5089, 7
    %v5091 = vsub.s32 3, %v5090
    %v5092 = vrot.slane %v5075, %v5091
    %v5093 = vlaneseq
    %v5094 = vshrl.u32 %v5093, 7
    %v5095 = vsub.s32 4, %v5094
    %v5096 = vrot.slane %v5075, %v5095
    %v5097 = vlaneseq
    %v5098 = vshrl.u32 %v5097, 7
    %v5099 = vsub.s32 5, %v5098
    %v5100 = vrot.slane %v5075, %v5099
    %v5101 = vlaneseq
    %v5102 = vshrl.u32 %v5101, 7
    %v5103 = vsub.s32 6, %v5102
    %v5104 = vrot.slane %v5075, %v5103
    %v5105 = vlaneseq
    %v5106 = vshrl.u32 %v5105, 7
    %v5107 = vsub.s32 7, %v5106
    %v5108 = vrot.slane %v5075, %v5107
    %v5117 = vsub.f32 %v5017, %v5080
    %v5118 = vsub.f32 %v5018, %v5084
    %v5119 = vsub.f32 %v5019, %v5088
    %v5120 = vsub.f32 %v5020, %v5092
    %v5121 = vsub.f32 %v5021, %v5096
    %v5122 = vsub.f32 %v5022, %v5100
    %v5123 = vsub.f32 %v5023, %v5104
    %v5124 = vsub.f32 %v5024, %v5108
    %v5125 = vmul.f32 %v5117, 1.442695
    %v5126 = vpow.pop %v5125
    %v5127 = vmul.f32 %v5118, 1.442695
    %v5128 = vpow.pop %v5127
    %v5129 = vmul.f32 %v5119, 1.442695
    %v5130 = vpow.pop %v5129
    %v5131 = vmul.f32 %v5120, 1.442695
    %v5132 = vpow.pop %v5131
    %v5133 = vmul.f32 %v5121, 1.442695
    %v5134 = vpow.pop %v5133
    %v5135 = vmul.f32 %v5122, 1.442695
    %v5136 = vpow.pop %v5135
    %v5137 = vmul.f32 %v5123, 1.442695
    %v5138 = vpow.pop %v5137
    %v5139 = vmul.f32 %v5124, 1.442695
    %v5140 = vpow.pop %v5139
    %5149 = vset.pattern.permute.xlu0 0
    %5150 = vperm.xlu0 %5149, %v5126
    %v5151 = vpop.permute.xlu0 %5150
    %5152 = vset.pattern.permute.xlu0 0
    %5153 = vperm.xlu0 %5152, %v5128
    %v5154 = vpop.permute.xlu0 %5153
    %5155 = vset.pattern.permute.xlu0 0
    %5156 = vperm.xlu0 %5155, %v5130
    %v5157 = vpop.permute.xlu0 %5156
    %5158 = vset.pattern.permute.xlu0 0
    %5159 = vperm.xlu0 %5158, %v5132
    %v5160 = vpop.permute.xlu0 %5159
    %5161 = vset.pattern.permute.xlu0 0
    %5162 = vperm.xlu0 %5161, %v5134
    %v5163 = vpop.permute.xlu0 %5162
    %5164 = vset.pattern.permute.xlu0 0
    %5165 = vperm.xlu0 %5164, %v5136
    %v5166 = vpop.permute.xlu0 %5165
    %5167 = vset.pattern.permute.xlu0 0
    %5168 = vperm.xlu0 %5167, %v5138
    %v5169 = vpop.permute.xlu0 %5168
    %5170 = vset.pattern.permute.xlu0 0
    %5171 = vperm.xlu0 %5170, %v5140
    %v5172 = vpop.permute.xlu0 %5171
    %v5173 = vlaneseq
    %v5174 = vshrl.u32 %v5173, 7
    %v5175 = vsub.s32 %v379, %v5174
    %v5176 = vrot.slane %v5151, %v5175
    %v5177 = vlaneseq
    %v5178 = vshrl.u32 %v5177, 7
    %v5179 = vsub.s32 %v379, %v5178
    %v5180 = vrot.slane %v5154, %v5179
    %v5181 = vlaneseq
    %v5182 = vshrl.u32 %v5181, 7
    %v5183 = vsub.s32 %v379, %v5182
    %v5184 = vrot.slane %v5157, %v5183
    %v5185 = vlaneseq
    %v5186 = vshrl.u32 %v5185, 7
    %v5187 = vsub.s32 %v379, %v5186
    %v5188 = vrot.slane %v5160, %v5187
    %v5189 = vlaneseq
    %v5190 = vshrl.u32 %v5189, 7
    %v5191 = vsub.s32 %v379, %v5190
    %v5192 = vrot.slane %v5163, %v5191
    %v5193 = vlaneseq
    %v5194 = vshrl.u32 %v5193, 7
    %v5195 = vsub.s32 %v379, %v5194
    %v5196 = vrot.slane %v5166, %v5195
    %v5197 = vlaneseq
    %v5198 = vshrl.u32 %v5197, 7
    %v5199 = vsub.s32 %v379, %v5198
    %v5200 = vrot.slane %v5169, %v5199
    %v5201 = vlaneseq
    %v5202 = vshrl.u32 %v5201, 7
    %v5203 = vsub.s32 %v379, %v5202
    %v5204 = vrot.slane %v5172, %v5203
    %v5205 = vsel %vm412, %v5180, %v5176
    %v5206 = vsel %vm414, %v5184, %v5205
    %v5207 = vsel %vm416, %v5188, %v5206
    %v5208 = vsel %vm418, %v5192, %v5207
    %v5209 = vsel %vm420, %v5196, %v5208
    %v5210 = vsel %vm422, %v5200, %v5209
    %v5211 = vsel %vm424, %v5204, %v5210
    %v5213 = vsel %vm328, %v5211, 0.0
    %5214 = vadd.xlane.f32.xlu0 %v5213
    %v5215 = vpop.xlane.xlu0 %5214
    %v5216 = vrcp.pop %v5215
    %v5218 = vlaneseq
    %v5219 = vshrl.u32 %v5218, 7
    %v5220 = vsub.s32 0, %v5219
    %v5221 = vrot.slane %v5216, %v5220
    %v5222 = vlaneseq
    %v5223 = vshrl.u32 %v5222, 7
    %v5224 = vsub.s32 1, %v5223
    %v5225 = vrot.slane %v5216, %v5224
    %v5226 = vlaneseq
    %v5227 = vshrl.u32 %v5226, 7
    %v5228 = vsub.s32 2, %v5227
    %v5229 = vrot.slane %v5216, %v5228
    %v5230 = vlaneseq
    %v5231 = vshrl.u32 %v5230, 7
    %v5232 = vsub.s32 3, %v5231
    %v5233 = vrot.slane %v5216, %v5232
    %v5234 = vlaneseq
    %v5235 = vshrl.u32 %v5234, 7
    %v5236 = vsub.s32 4, %v5235
    %v5237 = vrot.slane %v5216, %v5236
    %v5238 = vlaneseq
    %v5239 = vshrl.u32 %v5238, 7
    %v5240 = vsub.s32 5, %v5239
    %v5241 = vrot.slane %v5216, %v5240
    %v5242 = vlaneseq
    %v5243 = vshrl.u32 %v5242, 7
    %v5244 = vsub.s32 6, %v5243
    %v5245 = vrot.slane %v5216, %v5244
    %v5246 = vlaneseq
    %v5247 = vshrl.u32 %v5246, 7
    %v5248 = vsub.s32 7, %v5247
    %v5249 = vrot.slane %v5216, %v5248
    %v5258 = vmul.f32 %v5126, %v5221
    %v5259 = vmul.f32 %v5128, %v5225
    %v5260 = vmul.f32 %v5130, %v5229
    %v5261 = vmul.f32 %v5132, %v5233
    %v5262 = vmul.f32 %v5134, %v5237
    %v5263 = vmul.f32 %v5136, %v5241
    %v5264 = vmul.f32 %v5138, %v5245
    %v5265 = vmul.f32 %v5140, %v5249
    %v5266 = vld [vmem:[%s1 + $0x5] sm:$0x1]
    %v5267 = vld [vmem:[%s1 + $0xd] sm:$0x1]
    %v5268 = vld [vmem:[%s1 + $0x15] sm:$0x1]
    %v5269 = vld [vmem:[%s1 + $0x1d] sm:$0x1]
    %v5270 = vld [vmem:[%s1 + $0x25] sm:$0x1]
    %v5271 = vld [vmem:[%s1 + $0x2d] sm:$0x1]
    %v5272 = vld [vmem:[%s1 + $0x35] sm:$0x1]
    %v5273 = vld [vmem:[%s1 + $0x3d] sm:$0x1]
    %v5282 = vlaneseq
    %v5283 = vshrl.u32 %v5282, 7
    %v5284 = vsub.s32 0, %v5283
    %v5285 = vrot.slane %v5266, %v5284
    %5287 = vbcast.lane.b32.xlu0 %v5285, 256
    %v5288 = vpop.permute.xlu0 %5287
    %v5289 = vlaneseq
    %v5290 = vshrl.u32 %v5289, 7
    %v5291 = vsub.s32 0, %v5290
    %v5292 = vrot.slane %v5267, %v5291
    %5294 = vbcast.lane.b32.xlu0 %v5292, 256
    %v5295 = vpop.permute.xlu0 %5294
    %v5296 = vlaneseq
    %v5297 = vshrl.u32 %v5296, 7
    %v5298 = vsub.s32 0, %v5297
    %v5299 = vrot.slane %v5268, %v5298
    %5301 = vbcast.lane.b32.xlu0 %v5299, 256
    %v5302 = vpop.permute.xlu0 %5301
    %v5303 = vlaneseq
    %v5304 = vshrl.u32 %v5303, 7
    %v5305 = vsub.s32 0, %v5304
    %v5306 = vrot.slane %v5269, %v5305
    %5308 = vbcast.lane.b32.xlu0 %v5306, 256
    %v5309 = vpop.permute.xlu0 %5308
    %v5310 = vlaneseq
    %v5311 = vshrl.u32 %v5310, 7
    %v5312 = vsub.s32 0, %v5311
    %v5313 = vrot.slane %v5270, %v5312
    %5315 = vbcast.lane.b32.xlu0 %v5313, 256
    %v5316 = vpop.permute.xlu0 %5315
    %v5317 = vlaneseq
    %v5318 = vshrl.u32 %v5317, 7
    %v5319 = vsub.s32 0, %v5318
    %v5320 = vrot.slane %v5271, %v5319
    %5322 = vbcast.lane.b32.xlu0 %v5320, 256
    %v5323 = vpop.permute.xlu0 %5322
    %v5324 = vlaneseq
    %v5325 = vshrl.u32 %v5324, 7
    %v5326 = vsub.s32 0, %v5325
    %v5327 = vrot.slane %v5272, %v5326
    %5329 = vbcast.lane.b32.xlu0 %v5327, 256
    %v5330 = vpop.permute.xlu0 %5329
    %v5331 = vlaneseq
    %v5332 = vshrl.u32 %v5331, 7
    %v5333 = vsub.s32 0, %v5332
    %v5334 = vrot.slane %v5273, %v5333
    %5336 = vbcast.lane.b32.xlu0 %v5334, 256
    %v5337 = vpop.permute.xlu0 %5336
    %v5346 = vmul.f32 %v5258, %v5288
    %v5347 = vmul.f32 %v5259, %v5295
    %v5348 = vmul.f32 %v5260, %v5302
    %v5349 = vmul.f32 %v5261, %v5309
    %v5350 = vmul.f32 %v5262, %v5316
    %v5351 = vmul.f32 %v5263, %v5323
    %v5352 = vmul.f32 %v5264, %v5330
    %v5353 = vmul.f32 %v5265, %v5337
    %5362 = vset.pattern.permute.xlu0 0
    %5363 = vperm.xlu0 %5362, %v5346
    %v5364 = vpop.permute.xlu0 %5363
    %5365 = vset.pattern.permute.xlu0 0
    %5366 = vperm.xlu0 %5365, %v5347
    %v5367 = vpop.permute.xlu0 %5366
    %5368 = vset.pattern.permute.xlu0 0
    %5369 = vperm.xlu0 %5368, %v5348
    %v5370 = vpop.permute.xlu0 %5369
    %5371 = vset.pattern.permute.xlu0 0
    %5372 = vperm.xlu0 %5371, %v5349
    %v5373 = vpop.permute.xlu0 %5372
    %5374 = vset.pattern.permute.xlu0 0
    %5375 = vperm.xlu0 %5374, %v5350
    %v5376 = vpop.permute.xlu0 %5375
    %5377 = vset.pattern.permute.xlu0 0
    %5378 = vperm.xlu0 %5377, %v5351
    %v5379 = vpop.permute.xlu0 %5378
    %5380 = vset.pattern.permute.xlu0 0
    %5381 = vperm.xlu0 %5380, %v5352
    %v5382 = vpop.permute.xlu0 %5381
    %5383 = vset.pattern.permute.xlu0 0
    %5384 = vperm.xlu0 %5383, %v5353
    %v5385 = vpop.permute.xlu0 %5384
    %v5386 = vlaneseq
    %v5387 = vshrl.u32 %v5386, 7
    %v5388 = vsub.s32 %v379, %v5387
    %v5389 = vrot.slane %v5364, %v5388
    %v5390 = vlaneseq
    %v5391 = vshrl.u32 %v5390, 7
    %v5392 = vsub.s32 %v379, %v5391
    %v5393 = vrot.slane %v5367, %v5392
    %v5394 = vlaneseq
    %v5395 = vshrl.u32 %v5394, 7
    %v5396 = vsub.s32 %v379, %v5395
    %v5397 = vrot.slane %v5370, %v5396
    %v5398 = vlaneseq
    %v5399 = vshrl.u32 %v5398, 7
    %v5400 = vsub.s32 %v379, %v5399
    %v5401 = vrot.slane %v5373, %v5400
    %v5402 = vlaneseq
    %v5403 = vshrl.u32 %v5402, 7
    %v5404 = vsub.s32 %v379, %v5403
    %v5405 = vrot.slane %v5376, %v5404
    %v5406 = vlaneseq
    %v5407 = vshrl.u32 %v5406, 7
    %v5408 = vsub.s32 %v379, %v5407
    %v5409 = vrot.slane %v5379, %v5408
    %v5410 = vlaneseq
    %v5411 = vshrl.u32 %v5410, 7
    %v5412 = vsub.s32 %v379, %v5411
    %v5413 = vrot.slane %v5382, %v5412
    %v5414 = vlaneseq
    %v5415 = vshrl.u32 %v5414, 7
    %v5416 = vsub.s32 %v379, %v5415
    %v5417 = vrot.slane %v5385, %v5416
    %v5418 = vsel %vm412, %v5393, %v5389
    %v5419 = vsel %vm414, %v5397, %v5418
    %v5420 = vsel %vm416, %v5401, %v5419
    %v5421 = vsel %vm418, %v5405, %v5420
    %v5422 = vsel %vm420, %v5409, %v5421
    %v5423 = vsel %vm422, %v5413, %v5422
    %v5424 = vsel %vm424, %v5417, %v5423
    %5426 = vrot.lane.b32.xlu0 %v4598, 88
    %v5427 = vpop.permute.xlu0 %5426
    %v5429 = vsel %vm328, %v5424, %v5427
    %v5431 = vsel %vm787, %v5429, 0
    %5433 = vmatprep.subr.mxu0 0.0
    %5434 = vmatpush1.msra.mxu0 %v53
    %5435 = vmatprep.subr.mxu0 0.0
    %5436 = vmatpush1.msra.mxu0 %v54
    %5437 = vmatprep.subr.mxu0 0.0
    %5438 = vmatpush1.msra.mxu0 %v55
    %5439 = vmatprep.subr.mxu0 0.0
    %5440 = vmatpush1.msra.mxu0 0.0
    %5441 = vmatprep.subr.mxu0 0.0
    %5442 = vmatpush1.msra.mxu0 0.0
    %5443 = vmatprep.subr.mxu0 0.0
    %5444 = vmatpush1.msra.mxu0 0.0
    %5445 = vmatprep.subr.mxu0 0.0
    %5446 = vmatpush1.msra.mxu0 0.0
    %5447 = vmatprep.subr.mxu0 0.0
    %5448 = vmatpush1.msra.mxu0 0.0
    %5449 = vmatprep.subr.mxu0 0.0
    %5450 = vmatpush1.msra.mxu0 0.0
    %5451 = vmatprep.subr.mxu0 0.0
    %5452 = vmatpush1.msra.mxu0 0.0
    %5453 = vmatprep.subr.mxu0 0.0
    %5454 = vmatpush1.msra.mxu0 0.0
    %5455 = vmatprep.subr.mxu0 0.0
    %5456 = vmatpush1.msra.mxu0 0.0
    %5457 = vmatprep.subr.mxu0 0.0
    %5458 = vmatpush1.msra.mxu0 0.0
    %5459 = vmatprep.subr.mxu0 0.0
    %5460 = vmatpush1.msra.mxu0 0.0
    %5461 = vmatprep.subr.mxu0 0.0
    %5462 = vmatpush1.msra.mxu0 0.0
    %5463 = vmatprep.subr.mxu0 0.0
    %5464 = vmatpush1.msra.mxu0 0.0
    %5465 = vmatprep.subr.mxu0 0.0
    %5466 = vmatpush1.msra.mxu0 0.0
    %5467 = vmatprep.subr.mxu0 0.0
    %5468 = vmatpush1.msra.mxu0 0.0
    %5469 = vmatprep.subr.mxu0 0.0
    %5470 = vmatpush1.msra.mxu0 0.0
    %5471 = vmatprep.subr.mxu0 0.0
    %5472 = vmatpush1.msra.mxu0 0.0
    %5473 = vmatprep.subr.mxu0 0.0
    %5474 = vmatpush1.msra.mxu0 0.0
    %5475 = vmatprep.subr.mxu0 0.0
    %5476 = vmatpush1.msra.mxu0 0.0
    %5477 = vmatprep.subr.mxu0 0.0
    %5478 = vmatpush1.msra.mxu0 0.0
    %5479 = vmatprep.subr.mxu0 0.0
    %5480 = vmatpush1.msra.mxu0 0.0
    %5481 = vmatprep.subr.mxu0 0.0
    %5482 = vmatpush1.msra.mxu0 0.0
    %5483 = vmatprep.subr.mxu0 0.0
    %5484 = vmatpush1.msra.mxu0 0.0
    %5485 = vmatprep.subr.mxu0 0.0
    %5486 = vmatpush1.msra.mxu0 0.0
    %5487 = vmatprep.subr.mxu0 0.0
    %5488 = vmatpush1.msra.mxu0 0.0
    %5489 = vmatprep.subr.mxu0 0.0
    %5490 = vmatpush1.msra.mxu0 0.0
    %5491 = vmatprep.subr.mxu0 0.0
    %5492 = vmatpush1.msra.mxu0 0.0
    %5493 = vmatprep.subr.mxu0 0.0
    %5494 = vmatpush1.msra.mxu0 0.0
    %5495 = vmatprep.subr.mxu0 0.0
    %5496 = vmatpush1.msra.mxu0 0.0
    %5497 = vmatprep.mubr.f32.mxu0 0.0
    %5498 = vmatmul.mubr.f32.gmra.mrb[0].mxu0 %v5431
    %v5499 = vpop.f32.mrb[0].mxu0
    %v5500 = vadd.f32 %v785, %v5499
    %v5501 = vpop.f32.mrb[0].mxu0
    %5502 = vdwg.mxu0
    %v5503 = vxor.u32 %v5500, 2147483648
    %v5504 = vmul.f32 %v5503, 1.442695
    %v5505 = vpow.pop %v5504
    %v5506 = vadd.f32 %v5505, 1.0
    %v5507 = vrcp.pop %v5506
    %v5508 = vmul.f32 1.0, %v5507
    %v5509 = vtanh.pop %v5500
    %v5510 = vmul.f32 %v5508, %v4592
    %5512 = vrot.lane.b32.xlu0 %v5509, 96
    %v5513 = vpop.permute.xlu0 %5512
    %v5515 = vmul.f32 %v5508, %v5513
    %5517 = vrot.lane.b32.xlu0 %v5515, 16
    %v5518 = vpop.permute.xlu0 %5517
    %v5520 = vadd.f32 %v5510, %v5518
    %v5521 = vtanh.pop %v5520
    %5523 = vrot.lane.b32.xlu0 %v5521, 32
    %v5524 = vpop.permute.xlu0 %5523
    %v5526 = vmul.f32 %v5508, %v5524
    %5535 = vst.msk [vmem:[#allocation3 + $0x5] sm:$0x1] %vm893, %v5389
    %5536 = vst.msk [vmem:[#allocation3 + $0xd] sm:$0x1] %vm893, %v5393
    %5537 = vst.msk [vmem:[#allocation3 + $0x15] sm:$0x1] %vm893, %v5397
    %5538 = vst.msk [vmem:[#allocation3 + $0x1d] sm:$0x1] %vm893, %v5401
    %5539 = vst.msk [vmem:[#allocation3 + $0x25] sm:$0x1] %vm893, %v5405
    %5540 = vst.msk [vmem:[#allocation3 + $0x2d] sm:$0x1] %vm893, %v5409
    %5541 = vst.msk [vmem:[#allocation3 + $0x35] sm:$0x1] %vm893, %v5413
    %5542 = vst.msk [vmem:[#allocation3 + $0x3d] sm:$0x1] %vm893, %v5417
    %v5544 = vcombine.high %v5526, %v5526
    %v5546 = vunpack.c.l.s4 1966171168
    %v5547 = vunpack.c.0.s8 %v5546
    %v5548 = vlaneseq
    %v5549 = vshrl.u32 %v5548, 7
    %v5550 = vsub.s32 %v5547, %v5549
    %v5551 = vrot.slane %v5526, %v5550
    %v5553 = vunpack.c.l.s4 1966171168
    %v5554 = vunpack.c.0.s8 %v5553
    %v5555 = vlaneseq
    %v5556 = vshrl.u32 %v5555, 7
    %v5557 = vsub.s32 %v5554, %v5556
    %v5558 = vrot.slane %v5544, %v5557
    %v5559 = vcombine.high %v5551, %v5551
    %v5560 = vcombine.high %v5558, %v5558
    %v5562 = vunpack.c.l.s4 1966171168
    %v5563 = vunpack.c.0.s8 %v5562
    %v5564 = vlaneseq
    %v5565 = vshrl.u32 %v5564, 7
    %v5566 = vsub.s32 %v5563, %v5565
    %v5567 = vrot.slane %v5551, %v5566
    %v5569 = vunpack.c.l.s4 1966171168
    %v5570 = vunpack.c.0.s8 %v5569
    %v5571 = vlaneseq
    %v5572 = vshrl.u32 %v5571, 7
    %v5573 = vsub.s32 %v5570, %v5572
    %v5574 = vrot.slane %v5558, %v5573
    %v5576 = vunpack.c.l.s4 1966171168
    %v5577 = vunpack.c.0.s8 %v5576
    %v5578 = vlaneseq
    %v5579 = vshrl.u32 %v5578, 7
    %v5580 = vsub.s32 %v5577, %v5579
    %v5581 = vrot.slane %v5559, %v5580
    %v5583 = vunpack.c.l.s4 1966171168
    %v5584 = vunpack.c.0.s8 %v5583
    %v5585 = vlaneseq
    %v5586 = vshrl.u32 %v5585, 7
    %v5587 = vsub.s32 %v5584, %v5586
    %v5588 = vrot.slane %v5560, %v5587
    %v5589 = vcombine.high %v5567, %v5567
    %v5590 = vcombine.high %v5574, %v5574
    %v5591 = vcombine.high %v5581, %v5581
    %v5592 = vcombine.high %v5588, %v5588
    %v5593 = vlaneseq
    %v5594 = vshrl.u32 %v5593, 7
    %v5595 = vsub.s32 0, %v5594
    %v5596 = vrot.slane %v5567, %v5595
    %v5597 = vlaneseq
    %v5598 = vshrl.u32 %v5597, 7
    %v5599 = vsub.s32 0, %v5598
    %v5600 = vrot.slane %v5581, %v5599
    %v5601 = vlaneseq
    %v5602 = vshrl.u32 %v5601, 7
    %v5603 = vsub.s32 0, %v5602
    %v5604 = vrot.slane %v5589, %v5603
    %v5605 = vlaneseq
    %v5606 = vshrl.u32 %v5605, 7
    %v5607 = vsub.s32 0, %v5606
    %v5608 = vrot.slane %v5591, %v5607
    %v5609 = vlaneseq
    %v5610 = vshrl.u32 %v5609, 7
    %v5611 = vsub.s32 0, %v5610
    %v5612 = vrot.slane %v5574, %v5611
    %v5613 = vlaneseq
    %v5614 = vshrl.u32 %v5613, 7
    %v5615 = vsub.s32 0, %v5614
    %v5616 = vrot.slane %v5588, %v5615
    %v5617 = vlaneseq
    %v5618 = vshrl.u32 %v5617, 7
    %v5619 = vsub.s32 0, %v5618
    %v5620 = vrot.slane %v5590, %v5619
    %v5621 = vlaneseq
    %v5622 = vshrl.u32 %v5621, 7
    %v5623 = vsub.s32 0, %v5622
    %v5624 = vrot.slane %v5592, %v5623
    %5625 = vrot.lane.b32.xlu0 %v5596, 80
    %v5626 = vpop.permute.xlu0 %5625
    %5627 = vrot.lane.b32.xlu0 %v5600, 80
    %v5628 = vpop.permute.xlu0 %5627
    %5629 = vrot.lane.b32.xlu0 %v5604, 80
    %v5630 = vpop.permute.xlu0 %5629
    %5631 = vrot.lane.b32.xlu0 %v5608, 80
    %v5632 = vpop.permute.xlu0 %5631
    %5633 = vrot.lane.b32.xlu0 %v5612, 80
    %v5634 = vpop.permute.xlu0 %5633
    %5635 = vrot.lane.b32.xlu0 %v5616, 80
    %v5636 = vpop.permute.xlu0 %5635
    %5637 = vrot.lane.b32.xlu0 %v5620, 80
    %v5638 = vpop.permute.xlu0 %5637
    %5639 = vrot.lane.b32.xlu0 %v5624, 80
    %v5640 = vpop.permute.xlu0 %5639
    %5649 = vst.msk [vmem:[#allocation5 + $0x5] sm:$0x1] %vm1008, %v5626
    %5650 = vst.msk [vmem:[#allocation5 + $0xd] sm:$0x1] %vm1008, %v5628
    %5651 = vst.msk [vmem:[#allocation5 + $0x15] sm:$0x1] %vm1008, %v5630
    %5652 = vst.msk [vmem:[#allocation5 + $0x1d] sm:$0x1] %vm1008, %v5632
    %5653 = vst.msk [vmem:[#allocation5 + $0x25] sm:$0x1] %vm1008, %v5634
    %5654 = vst.msk [vmem:[#allocation5 + $0x2d] sm:$0x1] %vm1008, %v5636
    %5655 = vst.msk [vmem:[#allocation5 + $0x35] sm:$0x1] %vm1008, %v5638
    %5656 = vst.msk [vmem:[#allocation5 + $0x3d] sm:$0x1] %vm1008, %v5640
    %5658 = vrot.lane.b32.xlu0 %v5520, 112
    %v5659 = vpop.permute.xlu0 %5658
    %v5660 = vsel %vm57, %v5659, 0
    %5662 = vmatprep.subr.mxu0 0.0
    %5663 = vmatpush1.msra.mxu0 %v48
    %5664 = vmatprep.subr.mxu0 0.0
    %5665 = vmatpush1.msra.mxu0 %v49
    %5666 = vmatprep.subr.mxu0 0.0
    %5667 = vmatpush1.msra.mxu0 0.0
    %5668 = vmatprep.subr.mxu0 0.0
    %5669 = vmatpush1.msra.mxu0 0.0
    %5670 = vmatprep.subr.mxu0 0.0
    %5671 = vmatpush1.msra.mxu0 0.0
    %5672 = vmatprep.subr.mxu0 0.0
    %5673 = vmatpush1.msra.mxu0 0.0
    %5674 = vmatprep.subr.mxu0 0.0
    %5675 = vmatpush1.msra.mxu0 0.0
    %5676 = vmatprep.subr.mxu0 0.0
    %5677 = vmatpush1.msra.mxu0 0.0
    %5678 = vmatprep.subr.mxu0 0.0
    %5679 = vmatpush1.msra.mxu0 0.0
    %5680 = vmatprep.subr.mxu0 0.0
    %5681 = vmatpush1.msra.mxu0 0.0
    %5682 = vmatprep.subr.mxu0 0.0
    %5683 = vmatpush1.msra.mxu0 0.0
    %5684 = vmatprep.subr.mxu0 0.0
    %5685 = vmatpush1.msra.mxu0 0.0
    %5686 = vmatprep.subr.mxu0 0.0
    %5687 = vmatpush1.msra.mxu0 0.0
    %5688 = vmatprep.subr.mxu0 0.0
    %5689 = vmatpush1.msra.mxu0 0.0
    %5690 = vmatprep.subr.mxu0 0.0
    %5691 = vmatpush1.msra.mxu0 0.0
    %5692 = vmatprep.subr.mxu0 0.0
    %5693 = vmatpush1.msra.mxu0 0.0
    %5694 = vmatprep.subr.mxu0 0.0
    %5695 = vmatpush1.msra.mxu0 0.0
    %5696 = vmatprep.subr.mxu0 0.0
    %5697 = vmatpush1.msra.mxu0 0.0
    %5698 = vmatprep.subr.mxu0 0.0
    %5699 = vmatpush1.msra.mxu0 0.0
    %5700 = vmatprep.subr.mxu0 0.0
    %5701 = vmatpush1.msra.mxu0 0.0
    %5702 = vmatprep.subr.mxu0 0.0
    %5703 = vmatpush1.msra.mxu0 0.0
    %5704 = vmatprep.subr.mxu0 0.0
    %5705 = vmatpush1.msra.mxu0 0.0
    %5706 = vmatprep.subr.mxu0 0.0
    %5707 = vmatpush1.msra.mxu0 0.0
    %5708 = vmatprep.subr.mxu0 0.0
    %5709 = vmatpush1.msra.mxu0 0.0
    %5710 = vmatprep.subr.mxu0 0.0
    %5711 = vmatpush1.msra.mxu0 0.0
    %5712 = vmatprep.subr.mxu0 0.0
    %5713 = vmatpush1.msra.mxu0 0.0
    %5714 = vmatprep.subr.mxu0 0.0
    %5715 = vmatpush1.msra.mxu0 0.0
    %5716 = vmatprep.subr.mxu0 0.0
    %5717 = vmatpush1.msra.mxu0 0.0
    %5718 = vmatprep.subr.mxu0 0.0
    %5719 = vmatpush1.msra.mxu0 0.0
    %5720 = vmatprep.subr.mxu0 0.0
    %5721 = vmatpush1.msra.mxu0 0.0
    %5722 = vmatprep.subr.mxu0 0.0
    %5723 = vmatpush1.msra.mxu0 0.0
    %5724 = vmatprep.subr.mxu0 0.0
    %5725 = vmatpush1.msra.mxu0 0.0
    %5726 = vmatprep.mubr.f32.mxu0 0.0
    %5727 = vmatmul.mubr.f32.gmra.mrb[0].mxu0 %v5660
    %v5728 = vpop.f32.mrb[0].mxu0
    %v5729 = vadd.f32 0.0, %v5728
    %v5730 = vpop.f32.mrb[0].mxu0
    %5731 = vdwg.mxu0
    %5732 = vrot.lane.b32.xlu0 %v5526, 80
    %v5733 = vpop.permute.xlu0 %5732
    %v5734 = vsel %vm57, %v5733, 0
    %5736 = vmatprep.subr.mxu0 0.0
    %5737 = vmatpush1.msra.mxu0 %v46
    %5738 = vmatprep.subr.mxu0 0.0
    %5739 = vmatpush1.msra.mxu0 %v47
    %5740 = vmatprep.subr.mxu0 0.0
    %5741 = vmatpush1.msra.mxu0 0.0
    %5742 = vmatprep.subr.mxu0 0.0
    %5743 = vmatpush1.msra.mxu0 0.0
    %5744 = vmatprep.subr.mxu0 0.0
    %5745 = vmatpush1.msra.mxu0 0.0
    %5746 = vmatprep.subr.mxu0 0.0
    %5747 = vmatpush1.msra.mxu0 0.0
    %5748 = vmatprep.subr.mxu0 0.0
    %5749 = vmatpush1.msra.mxu0 0.0
    %5750 = vmatprep.subr.mxu0 0.0
    %5751 = vmatpush1.msra.mxu0 0.0
    %5752 = vmatprep.subr.mxu0 0.0
    %5753 = vmatpush1.msra.mxu0 0.0
    %5754 = vmatprep.subr.mxu0 0.0
    %5755 = vmatpush1.msra.mxu0 0.0
    %5756 = vmatprep.subr.mxu0 0.0
    %5757 = vmatpush1.msra.mxu0 0.0
    %5758 = vmatprep.subr.mxu0 0.0
    %5759 = vmatpush1.msra.mxu0 0.0
    %5760 = vmatprep.subr.mxu0 0.0
    %5761 = vmatpush1.msra.mxu0 0.0
    %5762 = vmatprep.subr.mxu0 0.0
    %5763 = vmatpush1.msra.mxu0 0.0
    %5764 = vmatprep.subr.mxu0 0.0
    %5765 = vmatpush1.msra.mxu0 0.0
    %5766 = vmatprep.subr.mxu0 0.0
    %5767 = vmatpush1.msra.mxu0 0.0
    %5768 = vmatprep.subr.mxu0 0.0
    %5769 = vmatpush1.msra.mxu0 0.0
    %5770 = vmatprep.subr.mxu0 0.0
    %5771 = vmatpush1.msra.mxu0 0.0
    %5772 = vmatprep.subr.mxu0 0.0
    %5773 = vmatpush1.msra.mxu0 0.0
    %5774 = vmatprep.subr.mxu0 0.0
    %5775 = vmatpush1.msra.mxu0 0.0
    %5776 = vmatprep.subr.mxu0 0.0
    %5777 = vmatpush1.msra.mxu0 0.0
    %5778 = vmatprep.subr.mxu0 0.0
    %5779 = vmatpush1.msra.mxu0 0.0
    %5780 = vmatprep.subr.mxu0 0.0
    %5781 = vmatpush1.msra.mxu0 0.0
    %5782 = vmatprep.subr.mxu0 0.0
    %5783 = vmatpush1.msra.mxu0 0.0
    %5784 = vmatprep.subr.mxu0 0.0
    %5785 = vmatpush1.msra.mxu0 0.0
    %5786 = vmatprep.subr.mxu0 0.0
    %5787 = vmatpush1.msra.mxu0 0.0
    %5788 = vmatprep.subr.mxu0 0.0
    %5789 = vmatpush1.msra.mxu0 0.0
    %5790 = vmatprep.subr.mxu0 0.0
    %5791 = vmatpush1.msra.mxu0 0.0
    %5792 = vmatprep.subr.mxu0 0.0
    %5793 = vmatpush1.msra.mxu0 0.0
    %5794 = vmatprep.subr.mxu0 0.0
    %5795 = vmatpush1.msra.mxu0 0.0
    %5796 = vmatprep.subr.mxu0 0.0
    %5797 = vmatpush1.msra.mxu0 0.0
    %5798 = vmatprep.subr.mxu0 0.0
    %5799 = vmatpush1.msra.mxu0 0.0
    %5800 = vmatprep.mubr.f32.mxu0 0.0
    %5801 = vmatmul.mubr.f32.gmra.mrb[0].mxu0 %v5734
    %v5802 = vpop.f32.mrb[0].mxu0
    %v5803 = vadd.f32 %v5729, %v5802
    %v5804 = vpop.f32.mrb[0].mxu0
    %5805 = vdwg.mxu0
    %v5806 = vadd.f32 %v5803, %v205
    %v5808 = vcombine.high %v5806, %v5806
    %v5810 = vunpack.c.l.s4 1966171168
    %v5811 = vunpack.c.0.s8 %v5810
    %v5812 = vlaneseq
    %v5813 = vshrl.u32 %v5812, 7
    %v5814 = vsub.s32 %v5811, %v5813
    %v5815 = vrot.slane %v5806, %v5814
    %v5817 = vunpack.c.l.s4 1966171168
    %v5818 = vunpack.c.0.s8 %v5817
    %v5819 = vlaneseq
    %v5820 = vshrl.u32 %v5819, 7
    %v5821 = vsub.s32 %v5818, %v5820
    %v5822 = vrot.slane %v5808, %v5821
    %v5823 = vcombine.high %v5815, %v5815
    %v5824 = vcombine.high %v5822, %v5822
    %v5826 = vunpack.c.l.s4 1966171168
    %v5827 = vunpack.c.0.s8 %v5826
    %v5828 = vlaneseq
    %v5829 = vshrl.u32 %v5828, 7
    %v5830 = vsub.s32 %v5827, %v5829
    %v5831 = vrot.slane %v5815, %v5830
    %v5833 = vunpack.c.l.s4 1966171168
    %v5834 = vunpack.c.0.s8 %v5833
    %v5835 = vlaneseq
    %v5836 = vshrl.u32 %v5835, 7
    %v5837 = vsub.s32 %v5834, %v5836
    %v5838 = vrot.slane %v5822, %v5837
    %v5840 = vunpack.c.l.s4 1966171168
    %v5841 = vunpack.c.0.s8 %v5840
    %v5842 = vlaneseq
    %v5843 = vshrl.u32 %v5842, 7
    %v5844 = vsub.s32 %v5841, %v5843
    %v5845 = vrot.slane %v5823, %v5844
    %v5847 = vunpack.c.l.s4 1966171168
    %v5848 = vunpack.c.0.s8 %v5847
    %v5849 = vlaneseq
    %v5850 = vshrl.u32 %v5849, 7
    %v5851 = vsub.s32 %v5848, %v5850
    %v5852 = vrot.slane %v5824, %v5851
    %v5853 = vcombine.high %v5831, %v5831
    %v5854 = vcombine.high %v5838, %v5838
    %v5855 = vcombine.high %v5845, %v5845
    %v5856 = vcombine.high %v5852, %v5852
    %v5857 = vlaneseq
    %v5858 = vshrl.u32 %v5857, 7
    %v5859 = vsub.s32 0, %v5858
    %v5860 = vrot.slane %v5831, %v5859
    %v5861 = vlaneseq
    %v5862 = vshrl.u32 %v5861, 7
    %v5863 = vsub.s32 0, %v5862
    %v5864 = vrot.slane %v5845, %v5863
    %v5865 = vlaneseq
    %v5866 = vshrl.u32 %v5865, 7
    %v5867 = vsub.s32 0, %v5866
    %v5868 = vrot.slane %v5853, %v5867
    %v5869 = vlaneseq
    %v5870 = vshrl.u32 %v5869, 7
    %v5871 = vsub.s32 0, %v5870
    %v5872 = vrot.slane %v5855, %v5871
    %v5873 = vlaneseq
    %v5874 = vshrl.u32 %v5873, 7
    %v5875 = vsub.s32 0, %v5874
    %v5876 = vrot.slane %v5838, %v5875
    %v5877 = vlaneseq
    %v5878 = vshrl.u32 %v5877, 7
    %v5879 = vsub.s32 0, %v5878
    %v5880 = vrot.slane %v5852, %v5879
    %v5881 = vlaneseq
    %v5882 = vshrl.u32 %v5881, 7
    %v5883 = vsub.s32 0, %v5882
    %v5884 = vrot.slane %v5854, %v5883
    %v5885 = vlaneseq
    %v5886 = vshrl.u32 %v5885, 7
    %v5887 = vsub.s32 0, %v5886
    %v5888 = vrot.slane %v5856, %v5887
    %v5897 = vadd.f32 %v38, %v5860
    %v5898 = vadd.f32 %v39, %v5864
    %v5899 = vadd.f32 %v40, %v5868
    %v5900 = vadd.f32 %v41, %v5872
    %v5901 = vadd.f32 %v42, %v5876
    %v5902 = vadd.f32 %v43, %v5880
    %v5903 = vadd.f32 %v44, %v5884
    %v5904 = vadd.f32 %v45, %v5888
    %v5905 = vtanh.pop %v5897
    %v5906 = vtanh.pop %v5898
    %v5907 = vtanh.pop %v5899
    %v5908 = vtanh.pop %v5900
    %v5909 = vtanh.pop %v5901
    %v5910 = vtanh.pop %v5902
    %v5911 = vtanh.pop %v5903
    %v5912 = vtanh.pop %v5904
    %v5913 = vmul.f32 %v5905, %v318
    %v5914 = vmul.f32 %v5906, %v318
    %v5915 = vmul.f32 %v5907, %v318
    %v5916 = vmul.f32 %v5908, %v318
    %v5917 = vmul.f32 %v5909, %v318
    %v5918 = vmul.f32 %v5910, %v318
    %v5919 = vmul.f32 %v5911, %v318
    %v5920 = vmul.f32 %v5912, %v318
    %v5921 = vsel %vm328, %v5913, 0.0
    %5922 = vadd.xlane.f32.xlu0 %v5921
    %v5923 = vpop.xlane.xlu0 %5922
    %v5924 = vsel %vm328, %v5914, 0.0
    %5925 = vadd.xlane.f32.xlu0 %v5924
    %v5926 = vpop.xlane.xlu0 %5925
    %v5927 = vsel %vm328, %v5915, 0.0
    %5928 = vadd.xlane.f32.xlu0 %v5927
    %v5929 = vpop.xlane.xlu0 %5928
    %v5930 = vsel %vm328, %v5916, 0.0
    %5931 = vadd.xlane.f32.xlu0 %v5930
    %v5932 = vpop.xlane.xlu0 %5931
    %v5933 = vsel %vm328, %v5917, 0.0
    %5934 = vadd.xlane.f32.xlu0 %v5933
    %v5935 = vpop.xlane.xlu0 %5934
    %v5936 = vsel %vm328, %v5918, 0.0
    %5937 = vadd.xlane.f32.xlu0 %v5936
    %v5938 = vpop.xlane.xlu0 %5937
    %v5939 = vsel %vm328, %v5919, 0.0
    %5940 = vadd.xlane.f32.xlu0 %v5939
    %v5941 = vpop.xlane.xlu0 %5940
    %v5942 = vsel %vm328, %v5920, 0.0
    %5943 = vadd.xlane.f32.xlu0 %v5942
    %v5944 = vpop.xlane.xlu0 %5943
    %v5945 = vadd.f32 %v5923, %v360
    %v5946 = vadd.f32 %v5926, %v360
    %v5947 = vadd.f32 %v5929, %v360
    %v5948 = vadd.f32 %v5932, %v360
    %v5949 = vadd.f32 %v5935, %v360
    %v5950 = vadd.f32 %v5938, %v360
    %v5951 = vadd.f32 %v5941, %v360
    %v5952 = vadd.f32 %v5944, %v360
    %v5961 = vlaneseq
    %v5962 = vshrl.u32 %v5961, 7
    %v5963 = vsub.s32 %v379, %v5962
    %v5964 = vrot.slane %v5945, %v5963
    %v5965 = vlaneseq
    %v5966 = vshrl.u32 %v5965, 7
    %v5967 = vsub.s32 %v379, %v5966
    %v5968 = vrot.slane %v5946, %v5967
    %v5969 = vlaneseq
    %v5970 = vshrl.u32 %v5969, 7
    %v5971 = vsub.s32 %v379, %v5970
    %v5972 = vrot.slane %v5947, %v5971
    %v5973 = vlaneseq
    %v5974 = vshrl.u32 %v5973, 7
    %v5975 = vsub.s32 %v379, %v5974
    %v5976 = vrot.slane %v5948, %v5975
    %v5977 = vlaneseq
    %v5978 = vshrl.u32 %v5977, 7
    %v5979 = vsub.s32 %v379, %v5978
    %v5980 = vrot.slane %v5949, %v5979
    %v5981 = vlaneseq
    %v5982 = vshrl.u32 %v5981, 7
    %v5983 = vsub.s32 %v379, %v5982
    %v5984 = vrot.slane %v5950, %v5983
    %v5985 = vlaneseq
    %v5986 = vshrl.u32 %v5985, 7
    %v5987 = vsub.s32 %v379, %v5986
    %v5988 = vrot.slane %v5951, %v5987
    %v5989 = vlaneseq
    %v5990 = vshrl.u32 %v5989, 7
    %v5991 = vsub.s32 %v379, %v5990
    %v5992 = vrot.slane %v5952, %v5991
    %v5993 = vsel %vm412, %v5968, %v5964
    %v5994 = vsel %vm414, %v5972, %v5993
    %v5995 = vsel %vm416, %v5976, %v5994
    %v5996 = vsel %vm418, %v5980, %v5995
    %v5997 = vsel %vm420, %v5984, %v5996
    %v5998 = vsel %vm422, %v5988, %v5997
    %v5999 = vsel %vm424, %v5992, %v5998
    %v6001 = vsel %vm328, %v5999, -inf
    %6002 = vmax.xlane.f32.xlu0 %v6001
    %v6003 = vpop.xlane.xlu0 %6002
    %v6005 = vlaneseq
    %v6006 = vshrl.u32 %v6005, 7
    %v6007 = vsub.s32 0, %v6006
    %v6008 = vrot.slane %v6003, %v6007
    %v6009 = vlaneseq
    %v6010 = vshrl.u32 %v6009, 7
    %v6011 = vsub.s32 1, %v6010
    %v6012 = vrot.slane %v6003, %v6011
    %v6013 = vlaneseq
    %v6014 = vshrl.u32 %v6013, 7
    %v6015 = vsub.s32 2, %v6014
    %v6016 = vrot.slane %v6003, %v6015
    %v6017 = vlaneseq
    %v6018 = vshrl.u32 %v6017, 7
    %v6019 = vsub.s32 3, %v6018
    %v6020 = vrot.slane %v6003, %v6019
    %v6021 = vlaneseq
    %v6022 = vshrl.u32 %v6021, 7
    %v6023 = vsub.s32 4, %v6022
    %v6024 = vrot.slane %v6003, %v6023
    %v6025 = vlaneseq
    %v6026 = vshrl.u32 %v6025, 7
    %v6027 = vsub.s32 5, %v6026
    %v6028 = vrot.slane %v6003, %v6027
    %v6029 = vlaneseq
    %v6030 = vshrl.u32 %v6029, 7
    %v6031 = vsub.s32 6, %v6030
    %v6032 = vrot.slane %v6003, %v6031
    %v6033 = vlaneseq
    %v6034 = vshrl.u32 %v6033, 7
    %v6035 = vsub.s32 7, %v6034
    %v6036 = vrot.slane %v6003, %v6035
    %v6045 = vsub.f32 %v5945, %v6008
    %v6046 = vsub.f32 %v5946, %v6012
    %v6047 = vsub.f32 %v5947, %v6016
    %v6048 = vsub.f32 %v5948, %v6020
    %v6049 = vsub.f32 %v5949, %v6024
    %v6050 = vsub.f32 %v5950, %v6028
    %v6051 = vsub.f32 %v5951, %v6032
    %v6052 = vsub.f32 %v5952, %v6036
    %v6053 = vmul.f32 %v6045, 1.442695
    %v6054 = vpow.pop %v6053
    %v6055 = vmul.f32 %v6046, 1.442695
    %v6056 = vpow.pop %v6055
    %v6057 = vmul.f32 %v6047, 1.442695
    %v6058 = vpow.pop %v6057
    %v6059 = vmul.f32 %v6048, 1.442695
    %v6060 = vpow.pop %v6059
    %v6061 = vmul.f32 %v6049, 1.442695
    %v6062 = vpow.pop %v6061
    %v6063 = vmul.f32 %v6050, 1.442695
    %v6064 = vpow.pop %v6063
    %v6065 = vmul.f32 %v6051, 1.442695
    %v6066 = vpow.pop %v6065
    %v6067 = vmul.f32 %v6052, 1.442695
    %v6068 = vpow.pop %v6067
    %6077 = vset.pattern.permute.xlu0 0
    %6078 = vperm.xlu0 %6077, %v6054
    %v6079 = vpop.permute.xlu0 %6078
    %6080 = vset.pattern.permute.xlu0 0
    %6081 = vperm.xlu0 %6080, %v6056
    %v6082 = vpop.permute.xlu0 %6081
    %6083 = vset.pattern.permute.xlu0 0
    %6084 = vperm.xlu0 %6083, %v6058
    %v6085 = vpop.permute.xlu0 %6084
    %6086 = vset.pattern.permute.xlu0 0
    %6087 = vperm.xlu0 %6086, %v6060
    %v6088 = vpop.permute.xlu0 %6087
    %6089 = vset.pattern.permute.xlu0 0
    %6090 = vperm.xlu0 %6089, %v6062
    %v6091 = vpop.permute.xlu0 %6090
    %6092 = vset.pattern.permute.xlu0 0
    %6093 = vperm.xlu0 %6092, %v6064
    %v6094 = vpop.permute.xlu0 %6093
    %6095 = vset.pattern.permute.xlu0 0
    %6096 = vperm.xlu0 %6095, %v6066
    %v6097 = vpop.permute.xlu0 %6096
    %6098 = vset.pattern.permute.xlu0 0
    %6099 = vperm.xlu0 %6098, %v6068
    %v6100 = vpop.permute.xlu0 %6099
    %v6101 = vlaneseq
    %v6102 = vshrl.u32 %v6101, 7
    %v6103 = vsub.s32 %v379, %v6102
    %v6104 = vrot.slane %v6079, %v6103
    %v6105 = vlaneseq
    %v6106 = vshrl.u32 %v6105, 7
    %v6107 = vsub.s32 %v379, %v6106
    %v6108 = vrot.slane %v6082, %v6107
    %v6109 = vlaneseq
    %v6110 = vshrl.u32 %v6109, 7
    %v6111 = vsub.s32 %v379, %v6110
    %v6112 = vrot.slane %v6085, %v6111
    %v6113 = vlaneseq
    %v6114 = vshrl.u32 %v6113, 7
    %v6115 = vsub.s32 %v379, %v6114
    %v6116 = vrot.slane %v6088, %v6115
    %v6117 = vlaneseq
    %v6118 = vshrl.u32 %v6117, 7
    %v6119 = vsub.s32 %v379, %v6118
    %v6120 = vrot.slane %v6091, %v6119
    %v6121 = vlaneseq
    %v6122 = vshrl.u32 %v6121, 7
    %v6123 = vsub.s32 %v379, %v6122
    %v6124 = vrot.slane %v6094, %v6123
    %v6125 = vlaneseq
    %v6126 = vshrl.u32 %v6125, 7
    %v6127 = vsub.s32 %v379, %v6126
    %v6128 = vrot.slane %v6097, %v6127
    %v6129 = vlaneseq
    %v6130 = vshrl.u32 %v6129, 7
    %v6131 = vsub.s32 %v379, %v6130
    %v6132 = vrot.slane %v6100, %v6131
    %v6133 = vsel %vm412, %v6108, %v6104
    %v6134 = vsel %vm414, %v6112, %v6133
    %v6135 = vsel %vm416, %v6116, %v6134
    %v6136 = vsel %vm418, %v6120, %v6135
    %v6137 = vsel %vm420, %v6124, %v6136
    %v6138 = vsel %vm422, %v6128, %v6137
    %v6139 = vsel %vm424, %v6132, %v6138
    %v6141 = vsel %vm328, %v6139, 0.0
    %6142 = vadd.xlane.f32.xlu0 %v6141
    %v6143 = vpop.xlane.xlu0 %6142
    %v6144 = vrcp.pop %v6143
    %v6146 = vlaneseq
    %v6147 = vshrl.u32 %v6146, 7
    %v6148 = vsub.s32 0, %v6147
    %v6149 = vrot.slane %v6144, %v6148
    %v6150 = vlaneseq
    %v6151 = vshrl.u32 %v6150, 7
    %v6152 = vsub.s32 1, %v6151
    %v6153 = vrot.slane %v6144, %v6152
    %v6154 = vlaneseq
    %v6155 = vshrl.u32 %v6154, 7
    %v6156 = vsub.s32 2, %v6155
    %v6157 = vrot.slane %v6144, %v6156
    %v6158 = vlaneseq
    %v6159 = vshrl.u32 %v6158, 7
    %v6160 = vsub.s32 3, %v6159
    %v6161 = vrot.slane %v6144, %v6160
    %v6162 = vlaneseq
    %v6163 = vshrl.u32 %v6162, 7
    %v6164 = vsub.s32 4, %v6163
    %v6165 = vrot.slane %v6144, %v6164
    %v6166 = vlaneseq
    %v6167 = vshrl.u32 %v6166, 7
    %v6168 = vsub.s32 5, %v6167
    %v6169 = vrot.slane %v6144, %v6168
    %v6170 = vlaneseq
    %v6171 = vshrl.u32 %v6170, 7
    %v6172 = vsub.s32 6, %v6171
    %v6173 = vrot.slane %v6144, %v6172
    %v6174 = vlaneseq
    %v6175 = vshrl.u32 %v6174, 7
    %v6176 = vsub.s32 7, %v6175
    %v6177 = vrot.slane %v6144, %v6176
    %v6186 = vmul.f32 %v6054, %v6149
    %v6187 = vmul.f32 %v6056, %v6153
    %v6188 = vmul.f32 %v6058, %v6157
    %v6189 = vmul.f32 %v6060, %v6161
    %v6190 = vmul.f32 %v6062, %v6165
    %v6191 = vmul.f32 %v6064, %v6169
    %v6192 = vmul.f32 %v6066, %v6173
    %v6193 = vmul.f32 %v6068, %v6177
    %v6194 = vld [vmem:[%s1 + $0x6] sm:$0x1]
    %v6195 = vld [vmem:[%s1 + $0xe] sm:$0x1]
    %v6196 = vld [vmem:[%s1 + $0x16] sm:$0x1]
    %v6197 = vld [vmem:[%s1 + $0x1e] sm:$0x1]
    %v6198 = vld [vmem:[%s1 + $0x26] sm:$0x1]
    %v6199 = vld [vmem:[%s1 + $0x2e] sm:$0x1]
    %v6200 = vld [vmem:[%s1 + $0x36] sm:$0x1]
    %v6201 = vld [vmem:[%s1 + $0x3e] sm:$0x1]
    %v6210 = vlaneseq
    %v6211 = vshrl.u32 %v6210, 7
    %v6212 = vsub.s32 0, %v6211
    %v6213 = vrot.slane %v6194, %v6212
    %6215 = vbcast.lane.b32.xlu0 %v6213, 256
    %v6216 = vpop.permute.xlu0 %6215
    %v6217 = vlaneseq
    %v6218 = vshrl.u32 %v6217, 7
    %v6219 = vsub.s32 0, %v6218
    %v6220 = vrot.slane %v6195, %v6219
    %6222 = vbcast.lane.b32.xlu0 %v6220, 256
    %v6223 = vpop.permute.xlu0 %6222
    %v6224 = vlaneseq
    %v6225 = vshrl.u32 %v6224, 7
    %v6226 = vsub.s32 0, %v6225
    %v6227 = vrot.slane %v6196, %v6226
    %6229 = vbcast.lane.b32.xlu0 %v6227, 256
    %v6230 = vpop.permute.xlu0 %6229
    %v6231 = vlaneseq
    %v6232 = vshrl.u32 %v6231, 7
    %v6233 = vsub.s32 0, %v6232
    %v6234 = vrot.slane %v6197, %v6233
    %6236 = vbcast.lane.b32.xlu0 %v6234, 256
    %v6237 = vpop.permute.xlu0 %6236
    %v6238 = vlaneseq
    %v6239 = vshrl.u32 %v6238, 7
    %v6240 = vsub.s32 0, %v6239
    %v6241 = vrot.slane %v6198, %v6240
    %6243 = vbcast.lane.b32.xlu0 %v6241, 256
    %v6244 = vpop.permute.xlu0 %6243
    %v6245 = vlaneseq
    %v6246 = vshrl.u32 %v6245, 7
    %v6247 = vsub.s32 0, %v6246
    %v6248 = vrot.slane %v6199, %v6247
    %6250 = vbcast.lane.b32.xlu0 %v6248, 256
    %v6251 = vpop.permute.xlu0 %6250
    %v6252 = vlaneseq
    %v6253 = vshrl.u32 %v6252, 7
    %v6254 = vsub.s32 0, %v6253
    %v6255 = vrot.slane %v6200, %v6254
    %6257 = vbcast.lane.b32.xlu0 %v6255, 256
    %v6258 = vpop.permute.xlu0 %6257
    %v6259 = vlaneseq
    %v6260 = vshrl.u32 %v6259, 7
    %v6261 = vsub.s32 0, %v6260
    %v6262 = vrot.slane %v6201, %v6261
    %6264 = vbcast.lane.b32.xlu0 %v6262, 256
    %v6265 = vpop.permute.xlu0 %6264
    %v6274 = vmul.f32 %v6186, %v6216
    %v6275 = vmul.f32 %v6187, %v6223
    %v6276 = vmul.f32 %v6188, %v6230
    %v6277 = vmul.f32 %v6189, %v6237
    %v6278 = vmul.f32 %v6190, %v6244
    %v6279 = vmul.f32 %v6191, %v6251
    %v6280 = vmul.f32 %v6192, %v6258
    %v6281 = vmul.f32 %v6193, %v6265
    %6290 = vset.pattern.permute.xlu0 0
    %6291 = vperm.xlu0 %6290, %v6274
    %v6292 = vpop.permute.xlu0 %6291
    %6293 = vset.pattern.permute.xlu0 0
    %6294 = vperm.xlu0 %6293, %v6275
    %v6295 = vpop.permute.xlu0 %6294
    %6296 = vset.pattern.permute.xlu0 0
    %6297 = vperm.xlu0 %6296, %v6276
    %v6298 = vpop.permute.xlu0 %6297
    %6299 = vset.pattern.permute.xlu0 0
    %6300 = vperm.xlu0 %6299, %v6277
    %v6301 = vpop.permute.xlu0 %6300
    %6302 = vset.pattern.permute.xlu0 0
    %6303 = vperm.xlu0 %6302, %v6278
    %v6304 = vpop.permute.xlu0 %6303
    %6305 = vset.pattern.permute.xlu0 0
    %6306 = vperm.xlu0 %6305, %v6279
    %v6307 = vpop.permute.xlu0 %6306
    %6308 = vset.pattern.permute.xlu0 0
    %6309 = vperm.xlu0 %6308, %v6280
    %v6310 = vpop.permute.xlu0 %6309
    %6311 = vset.pattern.permute.xlu0 0
    %6312 = vperm.xlu0 %6311, %v6281
    %v6313 = vpop.permute.xlu0 %6312
    %v6314 = vlaneseq
    %v6315 = vshrl.u32 %v6314, 7
    %v6316 = vsub.s32 %v379, %v6315
    %v6317 = vrot.slane %v6292, %v6316
    %v6318 = vlaneseq
    %v6319 = vshrl.u32 %v6318, 7
    %v6320 = vsub.s32 %v379, %v6319
    %v6321 = vrot.slane %v6295, %v6320
    %v6322 = vlaneseq
    %v6323 = vshrl.u32 %v6322, 7
    %v6324 = vsub.s32 %v379, %v6323
    %v6325 = vrot.slane %v6298, %v6324
    %v6326 = vlaneseq
    %v6327 = vshrl.u32 %v6326, 7
    %v6328 = vsub.s32 %v379, %v6327
    %v6329 = vrot.slane %v6301, %v6328
    %v6330 = vlaneseq
    %v6331 = vshrl.u32 %v6330, 7
    %v6332 = vsub.s32 %v379, %v6331
    %v6333 = vrot.slane %v6304, %v6332
    %v6334 = vlaneseq
    %v6335 = vshrl.u32 %v6334, 7
    %v6336 = vsub.s32 %v379, %v6335
    %v6337 = vrot.slane %v6307, %v6336
    %v6338 = vlaneseq
    %v6339 = vshrl.u32 %v6338, 7
    %v6340 = vsub.s32 %v379, %v6339
    %v6341 = vrot.slane %v6310, %v6340
    %v6342 = vlaneseq
    %v6343 = vshrl.u32 %v6342, 7
    %v6344 = vsub.s32 %v379, %v6343
    %v6345 = vrot.slane %v6313, %v6344
    %v6346 = vsel %vm412, %v6321, %v6317
    %v6347 = vsel %vm414, %v6325, %v6346
    %v6348 = vsel %vm416, %v6329, %v6347
    %v6349 = vsel %vm418, %v6333, %v6348
    %v6350 = vsel %vm420, %v6337, %v6349
    %v6351 = vsel %vm422, %v6341, %v6350
    %v6352 = vsel %vm424, %v6345, %v6351
    %6354 = vrot.lane.b32.xlu0 %v5526, 88
    %v6355 = vpop.permute.xlu0 %6354
    %v6357 = vsel %vm328, %v6352, %v6355
    %v6359 = vsel %vm787, %v6357, 0
    %6361 = vmatprep.subr.mxu0 0.0
    %6362 = vmatpush1.msra.mxu0 %v53
    %6363 = vmatprep.subr.mxu0 0.0
    %6364 = vmatpush1.msra.mxu0 %v54
    %6365 = vmatprep.subr.mxu0 0.0
    %6366 = vmatpush1.msra.mxu0 %v55
    %6367 = vmatprep.subr.mxu0 0.0
    %6368 = vmatpush1.msra.mxu0 0.0
    %6369 = vmatprep.subr.mxu0 0.0
    %6370 = vmatpush1.msra.mxu0 0.0
    %6371 = vmatprep.subr.mxu0 0.0
    %6372 = vmatpush1.msra.mxu0 0.0
    %6373 = vmatprep.subr.mxu0 0.0
    %6374 = vmatpush1.msra.mxu0 0.0
    %6375 = vmatprep.subr.mxu0 0.0
    %6376 = vmatpush1.msra.mxu0 0.0
    %6377 = vmatprep.subr.mxu0 0.0
    %6378 = vmatpush1.msra.mxu0 0.0
    %6379 = vmatprep.subr.mxu0 0.0
    %6380 = vmatpush1.msra.mxu0 0.0
    %6381 = vmatprep.subr.mxu0 0.0
    %6382 = vmatpush1.msra.mxu0 0.0
    %6383 = vmatprep.subr.mxu0 0.0
    %6384 = vmatpush1.msra.mxu0 0.0
    %6385 = vmatprep.subr.mxu0 0.0
    %6386 = vmatpush1.msra.mxu0 0.0
    %6387 = vmatprep.subr.mxu0 0.0
    %6388 = vmatpush1.msra.mxu0 0.0
    %6389 = vmatprep.subr.mxu0 0.0
    %6390 = vmatpush1.msra.mxu0 0.0
    %6391 = vmatprep.subr.mxu0 0.0
    %6392 = vmatpush1.msra.mxu0 0.0
    %6393 = vmatprep.subr.mxu0 0.0
    %6394 = vmatpush1.msra.mxu0 0.0
    %6395 = vmatprep.subr.mxu0 0.0
    %6396 = vmatpush1.msra.mxu0 0.0
    %6397 = vmatprep.subr.mxu0 0.0
    %6398 = vmatpush1.msra.mxu0 0.0
    %6399 = vmatprep.subr.mxu0 0.0
    %6400 = vmatpush1.msra.mxu0 0.0
    %6401 = vmatprep.subr.mxu0 0.0
    %6402 = vmatpush1.msra.mxu0 0.0
    %6403 = vmatprep.subr.mxu0 0.0
    %6404 = vmatpush1.msra.mxu0 0.0
    %6405 = vmatprep.subr.mxu0 0.0
    %6406 = vmatpush1.msra.mxu0 0.0
    %6407 = vmatprep.subr.mxu0 0.0
    %6408 = vmatpush1.msra.mxu0 0.0
    %6409 = vmatprep.subr.mxu0 0.0
    %6410 = vmatpush1.msra.mxu0 0.0
    %6411 = vmatprep.subr.mxu0 0.0
    %6412 = vmatpush1.msra.mxu0 0.0
    %6413 = vmatprep.subr.mxu0 0.0
    %6414 = vmatpush1.msra.mxu0 0.0
    %6415 = vmatprep.subr.mxu0 0.0
    %6416 = vmatpush1.msra.mxu0 0.0
    %6417 = vmatprep.subr.mxu0 0.0
    %6418 = vmatpush1.msra.mxu0 0.0
    %6419 = vmatprep.subr.mxu0 0.0
    %6420 = vmatpush1.msra.mxu0 0.0
    %6421 = vmatprep.subr.mxu0 0.0
    %6422 = vmatpush1.msra.mxu0 0.0
    %6423 = vmatprep.subr.mxu0 0.0
    %6424 = vmatpush1.msra.mxu0 0.0
    %6425 = vmatprep.mubr.f32.mxu0 0.0
    %6426 = vmatmul.mubr.f32.gmra.mrb[0].mxu0 %v6359
    %v6427 = vpop.f32.mrb[0].mxu0
    %v6428 = vadd.f32 %v785, %v6427
    %v6429 = vpop.f32.mrb[0].mxu0
    %6430 = vdwg.mxu0
    %v6431 = vxor.u32 %v6428, 2147483648
    %v6432 = vmul.f32 %v6431, 1.442695
    %v6433 = vpow.pop %v6432
    %v6434 = vadd.f32 %v6433, 1.0
    %v6435 = vrcp.pop %v6434
    %v6436 = vmul.f32 1.0, %v6435
    %v6437 = vtanh.pop %v6428
    %v6438 = vmul.f32 %v6436, %v5520
    %6440 = vrot.lane.b32.xlu0 %v6437, 96
    %v6441 = vpop.permute.xlu0 %6440
    %v6443 = vmul.f32 %v6436, %v6441
    %6445 = vrot.lane.b32.xlu0 %v6443, 16
    %v6446 = vpop.permute.xlu0 %6445
    %v6448 = vadd.f32 %v6438, %v6446
    %v6449 = vtanh.pop %v6448
    %6451 = vrot.lane.b32.xlu0 %v6449, 32
    %v6452 = vpop.permute.xlu0 %6451
    %v6454 = vmul.f32 %v6436, %v6452
    %6463 = vst.msk [vmem:[#allocation3 + $0x6] sm:$0x1] %vm893, %v6317
    %6464 = vst.msk [vmem:[#allocation3 + $0xe] sm:$0x1] %vm893, %v6321
    %6465 = vst.msk [vmem:[#allocation3 + $0x16] sm:$0x1] %vm893, %v6325
    %6466 = vst.msk [vmem:[#allocation3 + $0x1e] sm:$0x1] %vm893, %v6329
    %6467 = vst.msk [vmem:[#allocation3 + $0x26] sm:$0x1] %vm893, %v6333
    %6468 = vst.msk [vmem:[#allocation3 + $0x2e] sm:$0x1] %vm893, %v6337
    %6469 = vst.msk [vmem:[#allocation3 + $0x36] sm:$0x1] %vm893, %v6341
    %6470 = vst.msk [vmem:[#allocation3 + $0x3e] sm:$0x1] %vm893, %v6345
    %v6472 = vcombine.high %v6454, %v6454
    %v6474 = vunpack.c.l.s4 1966171168
    %v6475 = vunpack.c.0.s8 %v6474
    %v6476 = vlaneseq
    %v6477 = vshrl.u32 %v6476, 7
    %v6478 = vsub.s32 %v6475, %v6477
    %v6479 = vrot.slane %v6454, %v6478
    %v6481 = vunpack.c.l.s4 1966171168
    %v6482 = vunpack.c.0.s8 %v6481
    %v6483 = vlaneseq
    %v6484 = vshrl.u32 %v6483, 7
    %v6485 = vsub.s32 %v6482, %v6484
    %v6486 = vrot.slane %v6472, %v6485
    %v6487 = vcombine.high %v6479, %v6479
    %v6488 = vcombine.high %v6486, %v6486
    %v6490 = vunpack.c.l.s4 1966171168
    %v6491 = vunpack.c.0.s8 %v6490
    %v6492 = vlaneseq
    %v6493 = vshrl.u32 %v6492, 7
    %v6494 = vsub.s32 %v6491, %v6493
    %v6495 = vrot.slane %v6479, %v6494
    %v6497 = vunpack.c.l.s4 1966171168
    %v6498 = vunpack.c.0.s8 %v6497
    %v6499 = vlaneseq
    %v6500 = vshrl.u32 %v6499, 7
    %v6501 = vsub.s32 %v6498, %v6500
    %v6502 = vrot.slane %v6486, %v6501
    %v6504 = vunpack.c.l.s4 1966171168
    %v6505 = vunpack.c.0.s8 %v6504
    %v6506 = vlaneseq
    %v6507 = vshrl.u32 %v6506, 7
    %v6508 = vsub.s32 %v6505, %v6507
    %v6509 = vrot.slane %v6487, %v6508
    %v6511 = vunpack.c.l.s4 1966171168
    %v6512 = vunpack.c.0.s8 %v6511
    %v6513 = vlaneseq
    %v6514 = vshrl.u32 %v6513, 7
    %v6515 = vsub.s32 %v6512, %v6514
    %v6516 = vrot.slane %v6488, %v6515
    %v6517 = vcombine.high %v6495, %v6495
    %v6518 = vcombine.high %v6502, %v6502
    %v6519 = vcombine.high %v6509, %v6509
    %v6520 = vcombine.high %v6516, %v6516
    %v6521 = vlaneseq
    %v6522 = vshrl.u32 %v6521, 7
    %v6523 = vsub.s32 0, %v6522
    %v6524 = vrot.slane %v6495, %v6523
    %v6525 = vlaneseq
    %v6526 = vshrl.u32 %v6525, 7
    %v6527 = vsub.s32 0, %v6526
    %v6528 = vrot.slane %v6509, %v6527
    %v6529 = vlaneseq
    %v6530 = vshrl.u32 %v6529, 7
    %v6531 = vsub.s32 0, %v6530
    %v6532 = vrot.slane %v6517, %v6531
    %v6533 = vlaneseq
    %v6534 = vshrl.u32 %v6533, 7
    %v6535 = vsub.s32 0, %v6534
    %v6536 = vrot.slane %v6519, %v6535
    %v6537 = vlaneseq
    %v6538 = vshrl.u32 %v6537, 7
    %v6539 = vsub.s32 0, %v6538
    %v6540 = vrot.slane %v6502, %v6539
    %v6541 = vlaneseq
    %v6542 = vshrl.u32 %v6541, 7
    %v6543 = vsub.s32 0, %v6542
    %v6544 = vrot.slane %v6516, %v6543
    %v6545 = vlaneseq
    %v6546 = vshrl.u32 %v6545, 7
    %v6547 = vsub.s32 0, %v6546
    %v6548 = vrot.slane %v6518, %v6547
    %v6549 = vlaneseq
    %v6550 = vshrl.u32 %v6549, 7
    %v6551 = vsub.s32 0, %v6550
    %v6552 = vrot.slane %v6520, %v6551
    %6553 = vrot.lane.b32.xlu0 %v6524, 80
    %v6554 = vpop.permute.xlu0 %6553
    %6555 = vrot.lane.b32.xlu0 %v6528, 80
    %v6556 = vpop.permute.xlu0 %6555
    %6557 = vrot.lane.b32.xlu0 %v6532, 80
    %v6558 = vpop.permute.xlu0 %6557
    %6559 = vrot.lane.b32.xlu0 %v6536, 80
    %v6560 = vpop.permute.xlu0 %6559
    %6561 = vrot.lane.b32.xlu0 %v6540, 80
    %v6562 = vpop.permute.xlu0 %6561
    %6563 = vrot.lane.b32.xlu0 %v6544, 80
    %v6564 = vpop.permute.xlu0 %6563
    %6565 = vrot.lane.b32.xlu0 %v6548, 80
    %v6566 = vpop.permute.xlu0 %6565
    %6567 = vrot.lane.b32.xlu0 %v6552, 80
    %v6568 = vpop.permute.xlu0 %6567
    %6577 = vst.msk [vmem:[#allocation5 + $0x6] sm:$0x1] %vm1008, %v6554
    %6578 = vst.msk [vmem:[#allocation5 + $0xe] sm:$0x1] %vm1008, %v6556
    %6579 = vst.msk [vmem:[#allocation5 + $0x16] sm:$0x1] %vm1008, %v6558
    %6580 = vst.msk [vmem:[#allocation5 + $0x1e] sm:$0x1] %vm1008, %v6560
    %6581 = vst.msk [vmem:[#allocation5 + $0x26] sm:$0x1] %vm1008, %v6562
    %6582 = vst.msk [vmem:[#allocation5 + $0x2e] sm:$0x1] %vm1008, %v6564
    %6583 = vst.msk [vmem:[#allocation5 + $0x36] sm:$0x1] %vm1008, %v6566
    %6584 = vst.msk [vmem:[#allocation5 + $0x3e] sm:$0x1] %vm1008, %v6568
    %6586 = vrot.lane.b32.xlu0 %v6448, 112
    %v6587 = vpop.permute.xlu0 %6586
    %v6588 = vsel %vm57, %v6587, 0
    %6590 = vmatprep.subr.mxu0 0.0
    %6591 = vmatpush1.msra.mxu0 %v48
    %6592 = vmatprep.subr.mxu0 0.0
    %6593 = vmatpush1.msra.mxu0 %v49
    %6594 = vmatprep.subr.mxu0 0.0
    %6595 = vmatpush1.msra.mxu0 0.0
    %6596 = vmatprep.subr.mxu0 0.0
    %6597 = vmatpush1.msra.mxu0 0.0
    %6598 = vmatprep.subr.mxu0 0.0
    %6599 = vmatpush1.msra.mxu0 0.0
    %6600 = vmatprep.subr.mxu0 0.0
    %6601 = vmatpush1.msra.mxu0 0.0
    %6602 = vmatprep.subr.mxu0 0.0
    %6603 = vmatpush1.msra.mxu0 0.0
    %6604 = vmatprep.subr.mxu0 0.0
    %6605 = vmatpush1.msra.mxu0 0.0
    %6606 = vmatprep.subr.mxu0 0.0
    %6607 = vmatpush1.msra.mxu0 0.0
    %6608 = vmatprep.subr.mxu0 0.0
    %6609 = vmatpush1.msra.mxu0 0.0
    %6610 = vmatprep.subr.mxu0 0.0
    %6611 = vmatpush1.msra.mxu0 0.0
    %6612 = vmatprep.subr.mxu0 0.0
    %6613 = vmatpush1.msra.mxu0 0.0
    %6614 = vmatprep.subr.mxu0 0.0
    %6615 = vmatpush1.msra.mxu0 0.0
    %6616 = vmatprep.subr.mxu0 0.0
    %6617 = vmatpush1.msra.mxu0 0.0
    %6618 = vmatprep.subr.mxu0 0.0
    %6619 = vmatpush1.msra.mxu0 0.0
    %6620 = vmatprep.subr.mxu0 0.0
    %6621 = vmatpush1.msra.mxu0 0.0
    %6622 = vmatprep.subr.mxu0 0.0
    %6623 = vmatpush1.msra.mxu0 0.0
    %6624 = vmatprep.subr.mxu0 0.0
    %6625 = vmatpush1.msra.mxu0 0.0
    %6626 = vmatprep.subr.mxu0 0.0
    %6627 = vmatpush1.msra.mxu0 0.0
    %6628 = vmatprep.subr.mxu0 0.0
    %6629 = vmatpush1.msra.mxu0 0.0
    %6630 = vmatprep.subr.mxu0 0.0
    %6631 = vmatpush1.msra.mxu0 0.0
    %6632 = vmatprep.subr.mxu0 0.0
    %6633 = vmatpush1.msra.mxu0 0.0
    %6634 = vmatprep.subr.mxu0 0.0
    %6635 = vmatpush1.msra.mxu0 0.0
    %6636 = vmatprep.subr.mxu0 0.0
    %6637 = vmatpush1.msra.mxu0 0.0
    %6638 = vmatprep.subr.mxu0 0.0
    %6639 = vmatpush1.msra.mxu0 0.0
    %6640 = vmatprep.subr.mxu0 0.0
    %6641 = vmatpush1.msra.mxu0 0.0
    %6642 = vmatprep.subr.mxu0 0.0
    %6643 = vmatpush1.msra.mxu0 0.0
    %6644 = vmatprep.subr.mxu0 0.0
    %6645 = vmatpush1.msra.mxu0 0.0
    %6646 = vmatprep.subr.mxu0 0.0
    %6647 = vmatpush1.msra.mxu0 0.0
    %6648 = vmatprep.subr.mxu0 0.0
    %6649 = vmatpush1.msra.mxu0 0.0
    %6650 = vmatprep.subr.mxu0 0.0
    %6651 = vmatpush1.msra.mxu0 0.0
    %6652 = vmatprep.subr.mxu0 0.0
    %6653 = vmatpush1.msra.mxu0 0.0
    %6654 = vmatprep.mubr.f32.mxu0 0.0
    %6655 = vmatmul.mubr.f32.gmra.mrb[0].mxu0 %v6588
    %v6656 = vpop.f32.mrb[0].mxu0
    %v6657 = vadd.f32 0.0, %v6656
    %v6658 = vpop.f32.mrb[0].mxu0
    %6659 = vdwg.mxu0
    %6660 = vrot.lane.b32.xlu0 %v6454, 80
    %v6661 = vpop.permute.xlu0 %6660
    %v6662 = vsel %vm57, %v6661, 0
    %6664 = vmatprep.subr.mxu0 0.0
    %6665 = vmatpush1.msra.mxu0 %v46
    %6666 = vmatprep.subr.mxu0 0.0
    %6667 = vmatpush1.msra.mxu0 %v47
    %6668 = vmatprep.subr.mxu0 0.0
    %6669 = vmatpush1.msra.mxu0 0.0
    %6670 = vmatprep.subr.mxu0 0.0
    %6671 = vmatpush1.msra.mxu0 0.0
    %6672 = vmatprep.subr.mxu0 0.0
    %6673 = vmatpush1.msra.mxu0 0.0
    %6674 = vmatprep.subr.mxu0 0.0
    %6675 = vmatpush1.msra.mxu0 0.0
    %6676 = vmatprep.subr.mxu0 0.0
    %6677 = vmatpush1.msra.mxu0 0.0
    %6678 = vmatprep.subr.mxu0 0.0
    %6679 = vmatpush1.msra.mxu0 0.0
    %6680 = vmatprep.subr.mxu0 0.0
    %6681 = vmatpush1.msra.mxu0 0.0
    %6682 = vmatprep.subr.mxu0 0.0
    %6683 = vmatpush1.msra.mxu0 0.0
    %6684 = vmatprep.subr.mxu0 0.0
    %6685 = vmatpush1.msra.mxu0 0.0
    %6686 = vmatprep.subr.mxu0 0.0
    %6687 = vmatpush1.msra.mxu0 0.0
    %6688 = vmatprep.subr.mxu0 0.0
    %6689 = vmatpush1.msra.mxu0 0.0
    %6690 = vmatprep.subr.mxu0 0.0
    %6691 = vmatpush1.msra.mxu0 0.0
    %6692 = vmatprep.subr.mxu0 0.0
    %6693 = vmatpush1.msra.mxu0 0.0
    %6694 = vmatprep.subr.mxu0 0.0
    %6695 = vmatpush1.msra.mxu0 0.0
    %6696 = vmatprep.subr.mxu0 0.0
    %6697 = vmatpush1.msra.mxu0 0.0
    %6698 = vmatprep.subr.mxu0 0.0
    %6699 = vmatpush1.msra.mxu0 0.0
    %6700 = vmatprep.subr.mxu0 0.0
    %6701 = vmatpush1.msra.mxu0 0.0
    %6702 = vmatprep.subr.mxu0 0.0
    %6703 = vmatpush1.msra.mxu0 0.0
    %6704 = vmatprep.subr.mxu0 0.0
    %6705 = vmatpush1.msra.mxu0 0.0
    %6706 = vmatprep.subr.mxu0 0.0
    %6707 = vmatpush1.msra.mxu0 0.0
    %6708 = vmatprep.subr.mxu0 0.0
    %6709 = vmatpush1.msra.mxu0 0.0
    %6710 = vmatprep.subr.mxu0 0.0
    %6711 = vmatpush1.msra.mxu0 0.0
    %6712 = vmatprep.subr.mxu0 0.0
    %6713 = vmatpush1.msra.mxu0 0.0
    %6714 = vmatprep.subr.mxu0 0.0
    %6715 = vmatpush1.msra.mxu0 0.0
    %6716 = vmatprep.subr.mxu0 0.0
    %6717 = vmatpush1.msra.mxu0 0.0
    %6718 = vmatprep.subr.mxu0 0.0
    %6719 = vmatpush1.msra.mxu0 0.0
    %6720 = vmatprep.subr.mxu0 0.0
    %6721 = vmatpush1.msra.mxu0 0.0
    %6722 = vmatprep.subr.mxu0 0.0
    %6723 = vmatpush1.msra.mxu0 0.0
    %6724 = vmatprep.subr.mxu0 0.0
    %6725 = vmatpush1.msra.mxu0 0.0
    %6726 = vmatprep.subr.mxu0 0.0
    %6727 = vmatpush1.msra.mxu0 0.0
    %6728 = vmatprep.mubr.f32.mxu0 0.0
    %6729 = vmatmul.mubr.f32.gmra.mrb[0].mxu0 %v6662
    %v6730 = vpop.f32.mrb[0].mxu0
    %v6731 = vadd.f32 %v6657, %v6730
    %v6732 = vpop.f32.mrb[0].mxu0
    %6733 = vdwg.mxu0
    %v6734 = vadd.f32 %v6731, %v205
    %v6736 = vcombine.high %v6734, %v6734
    %v6738 = vunpack.c.l.s4 1966171168
    %v6739 = vunpack.c.0.s8 %v6738
    %v6740 = vlaneseq
    %v6741 = vshrl.u32 %v6740, 7
    %v6742 = vsub.s32 %v6739, %v6741
    %v6743 = vrot.slane %v6734, %v6742
    %v6745 = vunpack.c.l.s4 1966171168
    %v6746 = vunpack.c.0.s8 %v6745
    %v6747 = vlaneseq
    %v6748 = vshrl.u32 %v6747, 7
    %v6749 = vsub.s32 %v6746, %v6748
    %v6750 = vrot.slane %v6736, %v6749
    %v6751 = vcombine.high %v6743, %v6743
    %v6752 = vcombine.high %v6750, %v6750
    %v6754 = vunpack.c.l.s4 1966171168
    %v6755 = vunpack.c.0.s8 %v6754
    %v6756 = vlaneseq
    %v6757 = vshrl.u32 %v6756, 7
    %v6758 = vsub.s32 %v6755, %v6757
    %v6759 = vrot.slane %v6743, %v6758
    %v6761 = vunpack.c.l.s4 1966171168
    %v6762 = vunpack.c.0.s8 %v6761
    %v6763 = vlaneseq
    %v6764 = vshrl.u32 %v6763, 7
    %v6765 = vsub.s32 %v6762, %v6764
    %v6766 = vrot.slane %v6750, %v6765
    %v6768 = vunpack.c.l.s4 1966171168
    %v6769 = vunpack.c.0.s8 %v6768
    %v6770 = vlaneseq
    %v6771 = vshrl.u32 %v6770, 7
    %v6772 = vsub.s32 %v6769, %v6771
    %v6773 = vrot.slane %v6751, %v6772
    %v6775 = vunpack.c.l.s4 1966171168
    %v6776 = vunpack.c.0.s8 %v6775
    %v6777 = vlaneseq
    %v6778 = vshrl.u32 %v6777, 7
    %v6779 = vsub.s32 %v6776, %v6778
    %v6780 = vrot.slane %v6752, %v6779
    %v6781 = vcombine.high %v6759, %v6759
    %v6782 = vcombine.high %v6766, %v6766
    %v6783 = vcombine.high %v6773, %v6773
    %v6784 = vcombine.high %v6780, %v6780
    %v6785 = vlaneseq
    %v6786 = vshrl.u32 %v6785, 7
    %v6787 = vsub.s32 0, %v6786
    %v6788 = vrot.slane %v6759, %v6787
    %v6789 = vlaneseq
    %v6790 = vshrl.u32 %v6789, 7
    %v6791 = vsub.s32 0, %v6790
    %v6792 = vrot.slane %v6773, %v6791
    %v6793 = vlaneseq
    %v6794 = vshrl.u32 %v6793, 7
    %v6795 = vsub.s32 0, %v6794
    %v6796 = vrot.slane %v6781, %v6795
    %v6797 = vlaneseq
    %v6798 = vshrl.u32 %v6797, 7
    %v6799 = vsub.s32 0, %v6798
    %v6800 = vrot.slane %v6783, %v6799
    %v6801 = vlaneseq
    %v6802 = vshrl.u32 %v6801, 7
    %v6803 = vsub.s32 0, %v6802
    %v6804 = vrot.slane %v6766, %v6803
    %v6805 = vlaneseq
    %v6806 = vshrl.u32 %v6805, 7
    %v6807 = vsub.s32 0, %v6806
    %v6808 = vrot.slane %v6780, %v6807
    %v6809 = vlaneseq
    %v6810 = vshrl.u32 %v6809, 7
    %v6811 = vsub.s32 0, %v6810
    %v6812 = vrot.slane %v6782, %v6811
    %v6813 = vlaneseq
    %v6814 = vshrl.u32 %v6813, 7
    %v6815 = vsub.s32 0, %v6814
    %v6816 = vrot.slane %v6784, %v6815
    %v6825 = vadd.f32 %v38, %v6788
    %v6826 = vadd.f32 %v39, %v6792
    %v6827 = vadd.f32 %v40, %v6796
    %v6828 = vadd.f32 %v41, %v6800
    %v6829 = vadd.f32 %v42, %v6804
    %v6830 = vadd.f32 %v43, %v6808
    %v6831 = vadd.f32 %v44, %v6812
    %v6832 = vadd.f32 %v45, %v6816
    %v6833 = vtanh.pop %v6825
    %v6834 = vtanh.pop %v6826
    %v6835 = vtanh.pop %v6827
    %v6836 = vtanh.pop %v6828
    %v6837 = vtanh.pop %v6829
    %v6838 = vtanh.pop %v6830
    %v6839 = vtanh.pop %v6831
    %v6840 = vtanh.pop %v6832
    %v6841 = vmul.f32 %v6833, %v318
    %v6842 = vmul.f32 %v6834, %v318
    %v6843 = vmul.f32 %v6835, %v318
    %v6844 = vmul.f32 %v6836, %v318
    %v6845 = vmul.f32 %v6837, %v318
    %v6846 = vmul.f32 %v6838, %v318
    %v6847 = vmul.f32 %v6839, %v318
    %v6848 = vmul.f32 %v6840, %v318
    %v6849 = vsel %vm328, %v6841, 0.0
    %6850 = vadd.xlane.f32.xlu0 %v6849
    %v6851 = vpop.xlane.xlu0 %6850
    %v6852 = vsel %vm328, %v6842, 0.0
    %6853 = vadd.xlane.f32.xlu0 %v6852
    %v6854 = vpop.xlane.xlu0 %6853
    %v6855 = vsel %vm328, %v6843, 0.0
    %6856 = vadd.xlane.f32.xlu0 %v6855
    %v6857 = vpop.xlane.xlu0 %6856
    %v6858 = vsel %vm328, %v6844, 0.0
    %6859 = vadd.xlane.f32.xlu0 %v6858
    %v6860 = vpop.xlane.xlu0 %6859
    %v6861 = vsel %vm328, %v6845, 0.0
    %6862 = vadd.xlane.f32.xlu0 %v6861
    %v6863 = vpop.xlane.xlu0 %6862
    %v6864 = vsel %vm328, %v6846, 0.0
    %6865 = vadd.xlane.f32.xlu0 %v6864
    %v6866 = vpop.xlane.xlu0 %6865
    %v6867 = vsel %vm328, %v6847, 0.0
    %6868 = vadd.xlane.f32.xlu0 %v6867
    %v6869 = vpop.xlane.xlu0 %6868
    %v6870 = vsel %vm328, %v6848, 0.0
    %6871 = vadd.xlane.f32.xlu0 %v6870
    %v6872 = vpop.xlane.xlu0 %6871
    %v6873 = vadd.f32 %v6851, %v360
    %v6874 = vadd.f32 %v6854, %v360
    %v6875 = vadd.f32 %v6857, %v360
    %v6876 = vadd.f32 %v6860, %v360
    %v6877 = vadd.f32 %v6863, %v360
    %v6878 = vadd.f32 %v6866, %v360
    %v6879 = vadd.f32 %v6869, %v360
    %v6880 = vadd.f32 %v6872, %v360
    %v6889 = vlaneseq
    %v6890 = vshrl.u32 %v6889, 7
    %v6891 = vsub.s32 %v379, %v6890
    %v6892 = vrot.slane %v6873, %v6891
    %v6893 = vlaneseq
    %v6894 = vshrl.u32 %v6893, 7
    %v6895 = vsub.s32 %v379, %v6894
    %v6896 = vrot.slane %v6874, %v6895
    %v6897 = vlaneseq
    %v6898 = vshrl.u32 %v6897, 7
    %v6899 = vsub.s32 %v379, %v6898
    %v6900 = vrot.slane %v6875, %v6899
    %v6901 = vlaneseq
    %v6902 = vshrl.u32 %v6901, 7
    %v6903 = vsub.s32 %v379, %v6902
    %v6904 = vrot.slane %v6876, %v6903
    %v6905 = vlaneseq
    %v6906 = vshrl.u32 %v6905, 7
    %v6907 = vsub.s32 %v379, %v6906
    %v6908 = vrot.slane %v6877, %v6907
    %v6909 = vlaneseq
    %v6910 = vshrl.u32 %v6909, 7
    %v6911 = vsub.s32 %v379, %v6910
    %v6912 = vrot.slane %v6878, %v6911
    %v6913 = vlaneseq
    %v6914 = vshrl.u32 %v6913, 7
    %v6915 = vsub.s32 %v379, %v6914
    %v6916 = vrot.slane %v6879, %v6915
    %v6917 = vlaneseq
    %v6918 = vshrl.u32 %v6917, 7
    %v6919 = vsub.s32 %v379, %v6918
    %v6920 = vrot.slane %v6880, %v6919
    %v6921 = vsel %vm412, %v6896, %v6892
    %v6922 = vsel %vm414, %v6900, %v6921
    %v6923 = vsel %vm416, %v6904, %v6922
    %v6924 = vsel %vm418, %v6908, %v6923
    %v6925 = vsel %vm420, %v6912, %v6924
    %v6926 = vsel %vm422, %v6916, %v6925
    %v6927 = vsel %vm424, %v6920, %v6926
    %v6929 = vsel %vm328, %v6927, -inf
    %6930 = vmax.xlane.f32.xlu0 %v6929
    %v6931 = vpop.xlane.xlu0 %6930
    %v6933 = vlaneseq
    %v6934 = vshrl.u32 %v6933, 7
    %v6935 = vsub.s32 0, %v6934
    %v6936 = vrot.slane %v6931, %v6935
    %v6937 = vlaneseq
    %v6938 = vshrl.u32 %v6937, 7
    %v6939 = vsub.s32 1, %v6938
    %v6940 = vrot.slane %v6931, %v6939
    %v6941 = vlaneseq
    %v6942 = vshrl.u32 %v6941, 7
    %v6943 = vsub.s32 2, %v6942
    %v6944 = vrot.slane %v6931, %v6943
    %v6945 = vlaneseq
    %v6946 = vshrl.u32 %v6945, 7
    %v6947 = vsub.s32 3, %v6946
    %v6948 = vrot.slane %v6931, %v6947
    %v6949 = vlaneseq
    %v6950 = vshrl.u32 %v6949, 7
    %v6951 = vsub.s32 4, %v6950
    %v6952 = vrot.slane %v6931, %v6951
    %v6953 = vlaneseq
    %v6954 = vshrl.u32 %v6953, 7
    %v6955 = vsub.s32 5, %v6954
    %v6956 = vrot.slane %v6931, %v6955
    %v6957 = vlaneseq
    %v6958 = vshrl.u32 %v6957, 7
    %v6959 = vsub.s32 6, %v6958
    %v6960 = vrot.slane %v6931, %v6959
    %v6961 = vlaneseq
    %v6962 = vshrl.u32 %v6961, 7
    %v6963 = vsub.s32 7, %v6962
    %v6964 = vrot.slane %v6931, %v6963
    %v6973 = vsub.f32 %v6873, %v6936
    %v6974 = vsub.f32 %v6874, %v6940
    %v6975 = vsub.f32 %v6875, %v6944
    %v6976 = vsub.f32 %v6876, %v6948
    %v6977 = vsub.f32 %v6877, %v6952
    %v6978 = vsub.f32 %v6878, %v6956
    %v6979 = vsub.f32 %v6879, %v6960
    %v6980 = vsub.f32 %v6880, %v6964
    %v6981 = vmul.f32 %v6973, 1.442695
    %v6982 = vpow.pop %v6981
    %v6983 = vmul.f32 %v6974, 1.442695
    %v6984 = vpow.pop %v6983
    %v6985 = vmul.f32 %v6975, 1.442695
    %v6986 = vpow.pop %v6985
    %v6987 = vmul.f32 %v6976, 1.442695
    %v6988 = vpow.pop %v6987
    %v6989 = vmul.f32 %v6977, 1.442695
    %v6990 = vpow.pop %v6989
    %v6991 = vmul.f32 %v6978, 1.442695
    %v6992 = vpow.pop %v6991
    %v6993 = vmul.f32 %v6979, 1.442695
    %v6994 = vpow.pop %v6993
    %v6995 = vmul.f32 %v6980, 1.442695
    %v6996 = vpow.pop %v6995
    %7005 = vset.pattern.permute.xlu0 0
    %7006 = vperm.xlu0 %7005, %v6982
    %v7007 = vpop.permute.xlu0 %7006
    %7008 = vset.pattern.permute.xlu0 0
    %7009 = vperm.xlu0 %7008, %v6984
    %v7010 = vpop.permute.xlu0 %7009
    %7011 = vset.pattern.permute.xlu0 0
    %7012 = vperm.xlu0 %7011, %v6986
    %v7013 = vpop.permute.xlu0 %7012
    %7014 = vset.pattern.permute.xlu0 0
    %7015 = vperm.xlu0 %7014, %v6988
    %v7016 = vpop.permute.xlu0 %7015
    %7017 = vset.pattern.permute.xlu0 0
    %7018 = vperm.xlu0 %7017, %v6990
    %v7019 = vpop.permute.xlu0 %7018
    %7020 = vset.pattern.permute.xlu0 0
    %7021 = vperm.xlu0 %7020, %v6992
    %v7022 = vpop.permute.xlu0 %7021
    %7023 = vset.pattern.permute.xlu0 0
    %7024 = vperm.xlu0 %7023, %v6994
    %v7025 = vpop.permute.xlu0 %7024
    %7026 = vset.pattern.permute.xlu0 0
    %7027 = vperm.xlu0 %7026, %v6996
    %v7028 = vpop.permute.xlu0 %7027
    %v7029 = vlaneseq
    %v7030 = vshrl.u32 %v7029, 7
    %v7031 = vsub.s32 %v379, %v7030
    %v7032 = vrot.slane %v7007, %v7031
    %v7033 = vlaneseq
    %v7034 = vshrl.u32 %v7033, 7
    %v7035 = vsub.s32 %v379, %v7034
    %v7036 = vrot.slane %v7010, %v7035
    %v7037 = vlaneseq
    %v7038 = vshrl.u32 %v7037, 7
    %v7039 = vsub.s32 %v379, %v7038
    %v7040 = vrot.slane %v7013, %v7039
    %v7041 = vlaneseq
    %v7042 = vshrl.u32 %v7041, 7
    %v7043 = vsub.s32 %v379, %v7042
    %v7044 = vrot.slane %v7016, %v7043
    %v7045 = vlaneseq
    %v7046 = vshrl.u32 %v7045, 7
    %v7047 = vsub.s32 %v379, %v7046
    %v7048 = vrot.slane %v7019, %v7047
    %v7049 = vlaneseq
    %v7050 = vshrl.u32 %v7049, 7
    %v7051 = vsub.s32 %v379, %v7050
    %v7052 = vrot.slane %v7022, %v7051
    %v7053 = vlaneseq
    %v7054 = vshrl.u32 %v7053, 7
    %v7055 = vsub.s32 %v379, %v7054
    %v7056 = vrot.slane %v7025, %v7055
    %v7057 = vlaneseq
    %v7058 = vshrl.u32 %v7057, 7
    %v7059 = vsub.s32 %v379, %v7058
    %v7060 = vrot.slane %v7028, %v7059
    %v7061 = vsel %vm412, %v7036, %v7032
    %v7062 = vsel %vm414, %v7040, %v7061
    %v7063 = vsel %vm416, %v7044, %v7062
    %v7064 = vsel %vm418, %v7048, %v7063
    %v7065 = vsel %vm420, %v7052, %v7064
    %v7066 = vsel %vm422, %v7056, %v7065
    %v7067 = vsel %vm424, %v7060, %v7066
    %v7069 = vsel %vm328, %v7067, 0.0
    %7070 = vadd.xlane.f32.xlu0 %v7069
    %v7071 = vpop.xlane.xlu0 %7070
    %v7072 = vrcp.pop %v7071
    %v7074 = vlaneseq
    %v7075 = vshrl.u32 %v7074, 7
    %v7076 = vsub.s32 0, %v7075
    %v7077 = vrot.slane %v7072, %v7076
    %v7078 = vlaneseq
    %v7079 = vshrl.u32 %v7078, 7
    %v7080 = vsub.s32 1, %v7079
    %v7081 = vrot.slane %v7072, %v7080
    %v7082 = vlaneseq
    %v7083 = vshrl.u32 %v7082, 7
    %v7084 = vsub.s32 2, %v7083
    %v7085 = vrot.slane %v7072, %v7084
    %v7086 = vlaneseq
    %v7087 = vshrl.u32 %v7086, 7
    %v7088 = vsub.s32 3, %v7087
    %v7089 = vrot.slane %v7072, %v7088
    %v7090 = vlaneseq
    %v7091 = vshrl.u32 %v7090, 7
    %v7092 = vsub.s32 4, %v7091
    %v7093 = vrot.slane %v7072, %v7092
    %v7094 = vlaneseq
    %v7095 = vshrl.u32 %v7094, 7
    %v7096 = vsub.s32 5, %v7095
    %v7097 = vrot.slane %v7072, %v7096
    %v7098 = vlaneseq
    %v7099 = vshrl.u32 %v7098, 7
    %v7100 = vsub.s32 6, %v7099
    %v7101 = vrot.slane %v7072, %v7100
    %v7102 = vlaneseq
    %v7103 = vshrl.u32 %v7102, 7
    %v7104 = vsub.s32 7, %v7103
    %v7105 = vrot.slane %v7072, %v7104
    %v7114 = vmul.f32 %v6982, %v7077
    %v7115 = vmul.f32 %v6984, %v7081
    %v7116 = vmul.f32 %v6986, %v7085
    %v7117 = vmul.f32 %v6988, %v7089
    %v7118 = vmul.f32 %v6990, %v7093
    %v7119 = vmul.f32 %v6992, %v7097
    %v7120 = vmul.f32 %v6994, %v7101
    %v7121 = vmul.f32 %v6996, %v7105
    %v7122 = vld [vmem:[%s1 + $0x7] sm:$0x1]
    %v7123 = vld [vmem:[%s1 + $0xf] sm:$0x1]
    %v7124 = vld [vmem:[%s1 + $0x17] sm:$0x1]
    %v7125 = vld [vmem:[%s1 + $0x1f] sm:$0x1]
    %v7126 = vld [vmem:[%s1 + $0x27] sm:$0x1]
    %v7127 = vld [vmem:[%s1 + $0x2f] sm:$0x1]
    %v7128 = vld [vmem:[%s1 + $0x37] sm:$0x1]
    %v7129 = vld [vmem:[%s1 + $0x3f] sm:$0x1]
    %v7138 = vlaneseq
    %v7139 = vshrl.u32 %v7138, 7
    %v7140 = vsub.s32 0, %v7139
    %v7141 = vrot.slane %v7122, %v7140
    %7143 = vbcast.lane.b32.xlu0 %v7141, 256
    %v7144 = vpop.permute.xlu0 %7143
    %v7145 = vlaneseq
    %v7146 = vshrl.u32 %v7145, 7
    %v7147 = vsub.s32 0, %v7146
    %v7148 = vrot.slane %v7123, %v7147
    %7150 = vbcast.lane.b32.xlu0 %v7148, 256
    %v7151 = vpop.permute.xlu0 %7150
    %v7152 = vlaneseq
    %v7153 = vshrl.u32 %v7152, 7
    %v7154 = vsub.s32 0, %v7153
    %v7155 = vrot.slane %v7124, %v7154
    %7157 = vbcast.lane.b32.xlu0 %v7155, 256
    %v7158 = vpop.permute.xlu0 %7157
    %v7159 = vlaneseq
    %v7160 = vshrl.u32 %v7159, 7
    %v7161 = vsub.s32 0, %v7160
    %v7162 = vrot.slane %v7125, %v7161
    %7164 = vbcast.lane.b32.xlu0 %v7162, 256
    %v7165 = vpop.permute.xlu0 %7164
    %v7166 = vlaneseq
    %v7167 = vshrl.u32 %v7166, 7
    %v7168 = vsub.s32 0, %v7167
    %v7169 = vrot.slane %v7126, %v7168
    %7171 = vbcast.lane.b32.xlu0 %v7169, 256
    %v7172 = vpop.permute.xlu0 %7171
    %v7173 = vlaneseq
    %v7174 = vshrl.u32 %v7173, 7
    %v7175 = vsub.s32 0, %v7174
    %v7176 = vrot.slane %v7127, %v7175
    %7178 = vbcast.lane.b32.xlu0 %v7176, 256
    %v7179 = vpop.permute.xlu0 %7178
    %v7180 = vlaneseq
    %v7181 = vshrl.u32 %v7180, 7
    %v7182 = vsub.s32 0, %v7181
    %v7183 = vrot.slane %v7128, %v7182
    %7185 = vbcast.lane.b32.xlu0 %v7183, 256
    %v7186 = vpop.permute.xlu0 %7185
    %v7187 = vlaneseq
    %v7188 = vshrl.u32 %v7187, 7
    %v7189 = vsub.s32 0, %v7188
    %v7190 = vrot.slane %v7129, %v7189
    %7192 = vbcast.lane.b32.xlu0 %v7190, 256
    %v7193 = vpop.permute.xlu0 %7192
    %v7202 = vmul.f32 %v7114, %v7144
    %v7203 = vmul.f32 %v7115, %v7151
    %v7204 = vmul.f32 %v7116, %v7158
    %v7205 = vmul.f32 %v7117, %v7165
    %v7206 = vmul.f32 %v7118, %v7172
    %v7207 = vmul.f32 %v7119, %v7179
    %v7208 = vmul.f32 %v7120, %v7186
    %v7209 = vmul.f32 %v7121, %v7193
    %7218 = vset.pattern.permute.xlu0 0
    %7219 = vperm.xlu0 %7218, %v7202
    %v7220 = vpop.permute.xlu0 %7219
    %7221 = vset.pattern.permute.xlu0 0
    %7222 = vperm.xlu0 %7221, %v7203
    %v7223 = vpop.permute.xlu0 %7222
    %7224 = vset.pattern.permute.xlu0 0
    %7225 = vperm.xlu0 %7224, %v7204
    %v7226 = vpop.permute.xlu0 %7225
    %7227 = vset.pattern.permute.xlu0 0
    %7228 = vperm.xlu0 %7227, %v7205
    %v7229 = vpop.permute.xlu0 %7228
    %7230 = vset.pattern.permute.xlu0 0
    %7231 = vperm.xlu0 %7230, %v7206
    %v7232 = vpop.permute.xlu0 %7231
    %7233 = vset.pattern.permute.xlu0 0
    %7234 = vperm.xlu0 %7233, %v7207
    %v7235 = vpop.permute.xlu0 %7234
    %7236 = vset.pattern.permute.xlu0 0
    %7237 = vperm.xlu0 %7236, %v7208
    %v7238 = vpop.permute.xlu0 %7237
    %7239 = vset.pattern.permute.xlu0 0
    %7240 = vperm.xlu0 %7239, %v7209
    %v7241 = vpop.permute.xlu0 %7240
    %v7242 = vlaneseq
    %v7243 = vshrl.u32 %v7242, 7
    %v7244 = vsub.s32 %v379, %v7243
    %v7245 = vrot.slane %v7220, %v7244
    %v7246 = vlaneseq
    %v7247 = vshrl.u32 %v7246, 7
    %v7248 = vsub.s32 %v379, %v7247
    %v7249 = vrot.slane %v7223, %v7248
    %v7250 = vlaneseq
    %v7251 = vshrl.u32 %v7250, 7
    %v7252 = vsub.s32 %v379, %v7251
    %v7253 = vrot.slane %v7226, %v7252
    %v7254 = vlaneseq
    %v7255 = vshrl.u32 %v7254, 7
    %v7256 = vsub.s32 %v379, %v7255
    %v7257 = vrot.slane %v7229, %v7256
    %v7258 = vlaneseq
    %v7259 = vshrl.u32 %v7258, 7
    %v7260 = vsub.s32 %v379, %v7259
    %v7261 = vrot.slane %v7232, %v7260
    %v7262 = vlaneseq
    %v7263 = vshrl.u32 %v7262, 7
    %v7264 = vsub.s32 %v379, %v7263
    %v7265 = vrot.slane %v7235, %v7264
    %v7266 = vlaneseq
    %v7267 = vshrl.u32 %v7266, 7
    %v7268 = vsub.s32 %v379, %v7267
    %v7269 = vrot.slane %v7238, %v7268
    %v7270 = vlaneseq
    %v7271 = vshrl.u32 %v7270, 7
    %v7272 = vsub.s32 %v379, %v7271
    %v7273 = vrot.slane %v7241, %v7272
    %v7274 = vsel %vm412, %v7249, %v7245
    %v7275 = vsel %vm414, %v7253, %v7274
    %v7276 = vsel %vm416, %v7257, %v7275
    %v7277 = vsel %vm418, %v7261, %v7276
    %v7278 = vsel %vm420, %v7265, %v7277
    %v7279 = vsel %vm422, %v7269, %v7278
    %v7280 = vsel %vm424, %v7273, %v7279
    %7282 = vrot.lane.b32.xlu0 %v6454, 88
    %v7283 = vpop.permute.xlu0 %7282
    %v7285 = vsel %vm328, %v7280, %v7283
    %v7287 = vsel %vm787, %v7285, 0
    %7289 = vmatprep.subr.mxu0 0.0
    %7290 = vmatpush1.msra.mxu0 %v53
    %7291 = vmatprep.subr.mxu0 0.0
    %7292 = vmatpush1.msra.mxu0 %v54
    %7293 = vmatprep.subr.mxu0 0.0
    %7294 = vmatpush1.msra.mxu0 %v55
    %7295 = vmatprep.subr.mxu0 0.0
    %7296 = vmatpush1.msra.mxu0 0.0
    %7297 = vmatprep.subr.mxu0 0.0
    %7298 = vmatpush1.msra.mxu0 0.0
    %7299 = vmatprep.subr.mxu0 0.0
    %7300 = vmatpush1.msra.mxu0 0.0
    %7301 = vmatprep.subr.mxu0 0.0
    %7302 = vmatpush1.msra.mxu0 0.0
    %7303 = vmatprep.subr.mxu0 0.0
    %7304 = vmatpush1.msra.mxu0 0.0
    %7305 = vmatprep.subr.mxu0 0.0
    %7306 = vmatpush1.msra.mxu0 0.0
    %7307 = vmatprep.subr.mxu0 0.0
    %7308 = vmatpush1.msra.mxu0 0.0
    %7309 = vmatprep.subr.mxu0 0.0
    %7310 = vmatpush1.msra.mxu0 0.0
    %7311 = vmatprep.subr.mxu0 0.0
    %7312 = vmatpush1.msra.mxu0 0.0
    %7313 = vmatprep.subr.mxu0 0.0
    %7314 = vmatpush1.msra.mxu0 0.0
    %7315 = vmatprep.subr.mxu0 0.0
    %7316 = vmatpush1.msra.mxu0 0.0
    %7317 = vmatprep.subr.mxu0 0.0
    %7318 = vmatpush1.msra.mxu0 0.0
    %7319 = vmatprep.subr.mxu0 0.0
    %7320 = vmatpush1.msra.mxu0 0.0
    %7321 = vmatprep.subr.mxu0 0.0
    %7322 = vmatpush1.msra.mxu0 0.0
    %7323 = vmatprep.subr.mxu0 0.0
    %7324 = vmatpush1.msra.mxu0 0.0
    %7325 = vmatprep.subr.mxu0 0.0
    %7326 = vmatpush1.msra.mxu0 0.0
    %7327 = vmatprep.subr.mxu0 0.0
    %7328 = vmatpush1.msra.mxu0 0.0
    %7329 = vmatprep.subr.mxu0 0.0
    %7330 = vmatpush1.msra.mxu0 0.0
    %7331 = vmatprep.subr.mxu0 0.0
    %7332 = vmatpush1.msra.mxu0 0.0
    %7333 = vmatprep.subr.mxu0 0.0
    %7334 = vmatpush1.msra.mxu0 0.0
    %7335 = vmatprep.subr.mxu0 0.0
    %7336 = vmatpush1.msra.mxu0 0.0
    %7337 = vmatprep.subr.mxu0 0.0
    %7338 = vmatpush1.msra.mxu0 0.0
    %7339 = vmatprep.subr.mxu0 0.0
    %7340 = vmatpush1.msra.mxu0 0.0
    %7341 = vmatprep.subr.mxu0 0.0
    %7342 = vmatpush1.msra.mxu0 0.0
    %7343 = vmatprep.subr.mxu0 0.0
    %7344 = vmatpush1.msra.mxu0 0.0
    %7345 = vmatprep.subr.mxu0 0.0
    %7346 = vmatpush1.msra.mxu0 0.0
    %7347 = vmatprep.subr.mxu0 0.0
    %7348 = vmatpush1.msra.mxu0 0.0
    %7349 = vmatprep.subr.mxu0 0.0
    %7350 = vmatpush1.msra.mxu0 0.0
    %7351 = vmatprep.subr.mxu0 0.0
    %7352 = vmatpush1.msra.mxu0 0.0
    %7353 = vmatprep.mubr.f32.mxu0 0.0
    %7354 = vmatmul.mubr.f32.gmra.mrb[0].mxu0 %v7287
    %v7355 = vpop.f32.mrb[0].mxu0
    %v7356 = vadd.f32 %v785, %v7355
    %v7357 = vpop.f32.mrb[0].mxu0
    %7358 = vdwg.mxu0
    %v7359 = vxor.u32 %v7356, 2147483648
    %v7360 = vmul.f32 %v7359, 1.442695
    %v7361 = vpow.pop %v7360
    %v7362 = vadd.f32 %v7361, 1.0
    %v7363 = vrcp.pop %v7362
    %v7364 = vmul.f32 1.0, %v7363
    %v7365 = vtanh.pop %v7356
    %v7366 = vmul.f32 %v7364, %v6448
    %7368 = vrot.lane.b32.xlu0 %v7365, 96
    %v7369 = vpop.permute.xlu0 %7368
    %v7371 = vmul.f32 %v7364, %v7369
    %7373 = vrot.lane.b32.xlu0 %v7371, 16
    %v7374 = vpop.permute.xlu0 %7373
    %v7376 = vadd.f32 %v7366, %v7374
    %v7377 = vtanh.pop %v7376
    %7379 = vrot.lane.b32.xlu0 %v7377, 32
    %v7380 = vpop.permute.xlu0 %7379
    %v7382 = vmul.f32 %v7364, %v7380
    %7391 = vst.msk [vmem:[#allocation3 + $0x7] sm:$0x1] %vm893, %v7245
    %7392 = vst.msk [vmem:[#allocation3 + $0xf] sm:$0x1] %vm893, %v7249
    %7393 = vst.msk [vmem:[#allocation3 + $0x17] sm:$0x1] %vm893, %v7253
    %7394 = vst.msk [vmem:[#allocation3 + $0x1f] sm:$0x1] %vm893, %v7257
    %7395 = vst.msk [vmem:[#allocation3 + $0x27] sm:$0x1] %vm893, %v7261
    %7396 = vst.msk [vmem:[#allocation3 + $0x2f] sm:$0x1] %vm893, %v7265
    %7397 = vst.msk [vmem:[#allocation3 + $0x37] sm:$0x1] %vm893, %v7269
    %7398 = vst.msk [vmem:[#allocation3 + $0x3f] sm:$0x1] %vm893, %v7273
    %v7400 = vcombine.high %v7382, %v7382
    %v7402 = vunpack.c.l.s4 1966171168
    %v7403 = vunpack.c.0.s8 %v7402
    %v7404 = vlaneseq
    %v7405 = vshrl.u32 %v7404, 7
    %v7406 = vsub.s32 %v7403, %v7405
    %v7407 = vrot.slane %v7382, %v7406
    %v7409 = vunpack.c.l.s4 1966171168
    %v7410 = vunpack.c.0.s8 %v7409
    %v7411 = vlaneseq
    %v7412 = vshrl.u32 %v7411, 7
    %v7413 = vsub.s32 %v7410, %v7412
    %v7414 = vrot.slane %v7400, %v7413
    %v7415 = vcombine.high %v7407, %v7407
    %v7416 = vcombine.high %v7414, %v7414
    %v7418 = vunpack.c.l.s4 1966171168
    %v7419 = vunpack.c.0.s8 %v7418
    %v7420 = vlaneseq
    %v7421 = vshrl.u32 %v7420, 7
    %v7422 = vsub.s32 %v7419, %v7421
    %v7423 = vrot.slane %v7407, %v7422
    %v7425 = vunpack.c.l.s4 1966171168
    %v7426 = vunpack.c.0.s8 %v7425
    %v7427 = vlaneseq
    %v7428 = vshrl.u32 %v7427, 7
    %v7429 = vsub.s32 %v7426, %v7428
    %v7430 = vrot.slane %v7414, %v7429
    %v7432 = vunpack.c.l.s4 1966171168
    %v7433 = vunpack.c.0.s8 %v7432
    %v7434 = vlaneseq
    %v7435 = vshrl.u32 %v7434, 7
    %v7436 = vsub.s32 %v7433, %v7435
    %v7437 = vrot.slane %v7415, %v7436
    %v7439 = vunpack.c.l.s4 1966171168
    %v7440 = vunpack.c.0.s8 %v7439
    %v7441 = vlaneseq
    %v7442 = vshrl.u32 %v7441, 7
    %v7443 = vsub.s32 %v7440, %v7442
    %v7444 = vrot.slane %v7416, %v7443
    %v7445 = vcombine.high %v7423, %v7423
    %v7446 = vcombine.high %v7430, %v7430
    %v7447 = vcombine.high %v7437, %v7437
    %v7448 = vcombine.high %v7444, %v7444
    %v7449 = vlaneseq
    %v7450 = vshrl.u32 %v7449, 7
    %v7451 = vsub.s32 0, %v7450
    %v7452 = vrot.slane %v7423, %v7451
    %v7453 = vlaneseq
    %v7454 = vshrl.u32 %v7453, 7
    %v7455 = vsub.s32 0, %v7454
    %v7456 = vrot.slane %v7437, %v7455
    %v7457 = vlaneseq
    %v7458 = vshrl.u32 %v7457, 7
    %v7459 = vsub.s32 0, %v7458
    %v7460 = vrot.slane %v7445, %v7459
    %v7461 = vlaneseq
    %v7462 = vshrl.u32 %v7461, 7
    %v7463 = vsub.s32 0, %v7462
    %v7464 = vrot.slane %v7447, %v7463
    %v7465 = vlaneseq
    %v7466 = vshrl.u32 %v7465, 7
    %v7467 = vsub.s32 0, %v7466
    %v7468 = vrot.slane %v7430, %v7467
    %v7469 = vlaneseq
    %v7470 = vshrl.u32 %v7469, 7
    %v7471 = vsub.s32 0, %v7470
    %v7472 = vrot.slane %v7444, %v7471
    %v7473 = vlaneseq
    %v7474 = vshrl.u32 %v7473, 7
    %v7475 = vsub.s32 0, %v7474
    %v7476 = vrot.slane %v7446, %v7475
    %v7477 = vlaneseq
    %v7478 = vshrl.u32 %v7477, 7
    %v7479 = vsub.s32 0, %v7478
    %v7480 = vrot.slane %v7448, %v7479
    %7481 = vrot.lane.b32.xlu0 %v7452, 80
    %v7482 = vpop.permute.xlu0 %7481
    %7483 = vrot.lane.b32.xlu0 %v7456, 80
    %v7484 = vpop.permute.xlu0 %7483
    %7485 = vrot.lane.b32.xlu0 %v7460, 80
    %v7486 = vpop.permute.xlu0 %7485
    %7487 = vrot.lane.b32.xlu0 %v7464, 80
    %v7488 = vpop.permute.xlu0 %7487
    %7489 = vrot.lane.b32.xlu0 %v7468, 80
    %v7490 = vpop.permute.xlu0 %7489
    %7491 = vrot.lane.b32.xlu0 %v7472, 80
    %v7492 = vpop.permute.xlu0 %7491
    %7493 = vrot.lane.b32.xlu0 %v7476, 80
    %v7494 = vpop.permute.xlu0 %7493
    %7495 = vrot.lane.b32.xlu0 %v7480, 80
    %v7496 = vpop.permute.xlu0 %7495
    %7505 = vst.msk [vmem:[#allocation5 + $0x7] sm:$0x1] %vm1008, %v7482
    %7506 = vst.msk [vmem:[#allocation5 + $0xf] sm:$0x1] %vm1008, %v7484
    %7507 = vst.msk [vmem:[#allocation5 + $0x17] sm:$0x1] %vm1008, %v7486
    %7508 = vst.msk [vmem:[#allocation5 + $0x1f] sm:$0x1] %vm1008, %v7488
    %7509 = vst.msk [vmem:[#allocation5 + $0x27] sm:$0x1] %vm1008, %v7490
    %7510 = vst.msk [vmem:[#allocation5 + $0x2f] sm:$0x1] %vm1008, %v7492
    %7511 = vst.msk [vmem:[#allocation5 + $0x37] sm:$0x1] %vm1008, %v7494
    %7512 = vst.msk [vmem:[#allocation5 + $0x3f] sm:$0x1] %vm1008, %v7496
    // Predicated region
    $region38: #{encoder_forward.1} parent=1 // pred_check
      _
    $region39: #{encoder_forward.1} parent=1 // pred_check_branch
      %7514 = sbr.rel (0) target = $region41
    $region40: #{encoder_forward.1} parent=1 // pred_region
      %s7516 = ssub.s32 1024, 1024
      %7517 = vsyncadd [#allocation4], %s7516
      %s7518 = sshll.u32 [#allocation3], 4
      %s7519 = int_to_ptr.vmem [resolvable:$true] %s7518
      %7524 = dma.vmem_to_hbm [thread:$0]  %s7519, 1024, %s9, [#allocation4], 128, 128, 8
    $region41: #{encoder_forward.1} parent=1 // pred_fallthru
      _
    // Predicated region
    $region42: #{encoder_forward.1} parent=1 // pred_check
      _
    $region43: #{encoder_forward.1} parent=1 // pred_check_branch
      %7526 = sbr.rel (0) target = $region45
    $region44: #{encoder_forward.1} parent=1 // pred_region
      %s7528 = ssub.s32 1024, 1024
      %7529 = vsyncadd [#allocation6], %s7528
      %s7530 = sshll.u32 [#allocation5], 4
      %s7531 = int_to_ptr.vmem [resolvable:$true] %s7530
      %7536 = dma.vmem_to_hbm [thread:$0]  %s7531, 1024, %s10, [#allocation6], 128, 128, 8
    $region45: #{encoder_forward.1} parent=1 // pred_fallthru
      _
    // Predicated region
    $region46: #{encoder_forward.1} parent=1 // pred_check
      _
    $region47: #{encoder_forward.1} parent=1 // pred_check_branch
      %7538 = sbr.rel (0) target = $region49
    $region48: #{encoder_forward.1} parent=1 // pred_region
      %7539 = dma.done [#allocation4], 1024
    $region49: #{encoder_forward.1} parent=1 // pred_fallthru
      _
    // Predicated region
    $region50: #{encoder_forward.1} parent=1 // pred_check
      _
    $region51: #{encoder_forward.1} parent=1 // pred_check_branch
      %7541 = sbr.rel (0) target = $region53
    $region52: #{encoder_forward.1} parent=1 // pred_region
      %7542 = dma.done [#allocation6], 1024
    $region53: #{encoder_forward.1} parent=1 // pred_fallthru
      _
    %7543 = vsyncpa [#allocation4], 1
    %7544 = vsyncpa [#allocation6], 1

</llo_original>
